<compile_context>
chip_gen: v7x
topology: tpu7x:2x2x1
jax: 0.10.0
libtpu: 0.0.40
codegen_flags: <defaults>
</compile_context>

<pallas_src>
import functools

import jax
import jax.numpy as jnp
from jax import lax
from jax.experimental import pallas as pl


# --------------------------------------------------------------------------------------
# Fused ODE right-hand side kernel (retained Fourier band only).
# --------------------------------------------------------------------------------------
def _ode_rhs_kernel(v2_ref, v3_ref, w_ref, gtr_ref, gti_ref, fr_ref, fi_ref,
                    w1_ref, b1_ref, w2_ref, b2_ref, o_ref, *, hidden, batch):
    """d(state)/dt for the band-limited Fourier ODE.

    v2_ref : (M, 2*B*H) f32   state, lane-dense; per batch b: [real(H) | imag(H)]
    v3_ref : (M, B, 2H) f32   same bytes, reshaped wrapper-side (for the batched dot)
    w_ref  : (M, 2H, 2H) f32  packed complex spectral weights per mode
    gtr/gti: (X*Y, M) f32     inverse band-DFT factors (1/(X*Y) folded in)
    fr/fi  : (M, X*Y) f32     forward band-DFT factors
    w1,b1,w2,b2               pointwise channel-MLP params (pde_func stand-in)
    o_ref  : (M, 2*B*H) f32   output
    """
    H = hidden

    # ---- spectral term: per-mode complex mat-vec, one batched MXU dot ---------------
    av = jnp.einsum('mbk,mkn->mbn', v3_ref[...], w_ref[...],
                    preferred_element_type=jnp.float32)          # (M, B, 2H) f32

    gtr = gtr_ref[...]
    gti = gti_ref[...]
    fr = fr_ref[...]
    fi = fi_ref[...]
    w1 = w1_ref[...]
    b1 = b1_ref[...]
    w2 = w2_ref[...]
    b2 = b2_ref[...]

    cols = []
    for b in range(batch):                          # B is tiny -> fully unrolled
        base = 2 * H * b
        vr = v2_ref[:, base:base + H]               # (M, H) real part, batch b
        vi = v2_ref[:, base + H:base + 2 * H]       # (M, H) imag part, batch b

        # band-limited inverse DFT -> physical rows (X*Y, H), channels-last
        z = (jnp.dot(gtr, vr, preferred_element_type=jnp.float32)
             - jnp.dot(gti, vi, preferred_element_type=jnp.float32))

        # pointwise channel MLP (pde_func stand-in)
        h1 = jnp.tanh(jnp.dot(z, w1, preferred_element_type=jnp.float32) + b1)
        fz = jnp.dot(h1, w2, preferred_element_type=jnp.float32) + b2

        # band-limited forward DFT -> retained modes, real & imag (M, H) each
        hr = jnp.dot(fr, fz, preferred_element_type=jnp.float32)
        hi = jnp.dot(fi, fz, preferred_element_type=jnp.float32)

        cols.append(av[:, b, :] + jnp.concatenate([hr, hi], axis=-1))   # (M, 2H)

    # single lane-dense (M, 2*B*H) = (64, 128) unmasked store
    o_ref[...] = jnp.concatenate(cols, axis=-1)


def _make_rhs(W, dft, pde_w, B, H):
    """Build the jit-able RHS function wrapping the fused Pallas kernel."""
    gtr, gti, fr, fi = dft
    w1, b1, w2, b2 = pde_w
    M = W.shape[0]
    XY = gtr.shape[0]
    C = 2 * B * H

    flops = (2 * M * B * (2 * H) * (2 * H)
             + B * (2 * (2 * XY * M * H)        # inverse band DFT
                    + 2 * (2 * XY * H * H)      # 2-layer pointwise MLP
                    + 2 * (2 * M * XY * H)))    # forward band DFT
    bytes_accessed = 4 * (2 * M * C + M * B * 2 * H + M * 4 * H * H
                          + 4 * XY * M + 2 * H * H + 2 * H)
    cost = pl.CostEstimate(flops=flops, transcendentals=B * XY * H,
                           bytes_accessed=bytes_accessed)

    kernel = functools.partial(_ode_rhs_kernel, hidden=H, batch=B)

    def rhs(v):
        # Free metadata reshape: the same state is handed to the kernel twice so the
        # batched per-mode dot and the lane-sliced DFT operands each get their
        # natural VMEM layout (no in-kernel relayout; duplicate DMA is 32 KiB).
        v3 = v.reshape(M, B, 2 * H)
        return pl.pallas_call(
            kernel,
            out_shape=jax.ShapeDtypeStruct((M, C), jnp.float32),
            cost_estimate=cost,
        )(v, v3, W, gtr, gti, fr, fi, w1, b1, w2, b2)

    return rhs


# --------------------------------------------------------------------------------------
# Fixed-step RK4 integrator over the given time grid.
# TODO(synk): reference uses torchdiffeq's adaptive dopri5 odeint; replaced by fixed-step
#             RK4 sub-stepping (no clean Pallas/JAX-exact equivalent).
# --------------------------------------------------------------------------------------
def _odeint_rk4(func, y0, t, substeps=2):
    def rk4_step(y, dt):
        k1 = func(y)
        k2 = func(y + 0.5 * dt * k1)
        k3 = func(y + 0.5 * dt * k2)
        k4 = func(y + dt * k3)
        return y + (dt / 6.0) * (k1 + 2.0 * k2 + 2.0 * k3 + k4)

    def interval(y, t_pair):
        t0, t1 = t_pair
        dt = (t1 - t0) / substeps
        y = lax.fori_loop(0, substeps, lambda i, yy: rk4_step(yy, dt), y)
        return y, y

    _, ys = lax.scan(interval, y0, (t[:-1], t[1:]))
    return jnp.concatenate([y0[None], ys], axis=0)


# --------------------------------------------------------------------------------------
# DiffeqSolver.forward
# --------------------------------------------------------------------------------------
def diffeq_solver_forward(z0, xi, A, pde_params, modes):
    """z0: (B, z_dim, X, Y);  xi: (B, x_dim, X, Y, T)  ->  z: (B, z_dim, X, Y, T)."""
    B, Z, X, Y = z0.shape
    m1, m2 = modes
    H = Z
    M = m1 * m2
    XY = X * Y
    f0 = X // 2 - m1 // 2
    g0 = Y // 2 - m2 // 2

    # ---- loop-invariant operator prep (hoisted out of the ODE loop) -----------------
    # Packed complex weight: [out_r | out_i] = [vr | vi] @ [[Ar^T, Ai^T], [-Ai^T, Ar^T]].
    Ar = A[0].reshape(M, H, H)
    Ai = A[1].reshape(M, H, H)
    ArT = jnp.swapaxes(Ar, 1, 2)
    AiT = jnp.swapaxes(Ai, 1, 2)
    W = jnp.concatenate(
        [jnp.concatenate([ArT, AiT], axis=-1),
         jnp.concatenate([-AiT, ArT], axis=-1)],
        axis=1).astype(jnp.float32)                              # (M, 2H, 2H)

    # Band-limited DFT factor matrices: replace fftn/ifftn + fftshift + zero-embed.
    kx = (jnp.arange(f0, f0 + m1) - X // 2).astype(jnp.float32)  # signed band freqs
    ky = (jnp.arange(g0, g0 + m2) - Y // 2).astype(jnp.float32)
    xs = jnp.arange(X, dtype=jnp.float32)
    ys = jnp.arange(Y, dtype=jnp.float32)
    theta = 2.0 * jnp.pi * (kx[:, None, None, None] * xs[None, None, :, None] / X
                            + ky[None, :, None, None] * ys[None, None, None, :] / Y)
    theta = theta.reshape(M, XY)
    fwd_r = jnp.cos(theta)                                       # (M, XY)  Re exp(-i th)
    fwd_i = -jnp.sin(theta)                                      # (M, XY)  Im exp(-i th)
    inv_rT = jnp.transpose(jnp.cos(theta)) / float(X * Y)        # (XY, M)  Re exp(+i th)/XY
    inv_iT = jnp.transpose(jnp.sin(theta)) / float(X * Y)        # (XY, M)  Im exp(+i th)/XY

    # TODO(synk): reference pde_func is an arbitrary module; stand-in here is a 2-layer
    #             tanh pointwise (1x1-conv style) channel MLP.
    w1, b1, w2, b2 = (p.astype(jnp.float32) for p in pde_params)

    # ---- initial condition: retained band of fftshift(fftn(z0)) via forward DFT -----
    z0_rows = jnp.transpose(z0, (2, 3, 0, 1)).reshape(XY, B * Z)
    band_r = (fwd_r @ z0_rows).reshape(M, B, H)
    band_i = (fwd_i @ z0_rows).reshape(M, B, H)
    v0 = jnp.concatenate([band_r, band_i], axis=-1).reshape(M, 2 * B * H)

    # TODO(synk): torchcde linear interpolation of xi only contributes its time grid
    #             (arange over the last axis); xi values never enter the ODE func.
    T = xi.shape[-1]
    t = jnp.arange(T, dtype=jnp.float32)

    rhs = _make_rhs(W, (inv_rT, inv_iT, fwd_r, fwd_i), (w1, b1, w2, b2), B, H)
    traj = _odeint_rk4(rhs, v0, t)                               # (T, M, 2*B*H)

    # ---- band-limited inverse DFT of the whole trajectory (outside the ODE loop) ----
    traj = traj.reshape(T, M, B, 2 * H)
    vr = traj[..., :H]
    vi = traj[..., H:]
    zf = (jnp.einsum('sm,tmbh->bhst', inv_rT, vr)
          - jnp.einsum('sm,tmbh->bhst', inv_iT, vi))             # (B, H, X*Y, T)
    return zf.reshape(B, Z, X, Y, T)


# --------------------------------------------------------------------------------------
if __name__ == "__main__":
    key = jax.random.PRNGKey(0)
    batch, z_dim, dim_x, dim_y = 2, 32, 16, 16
    modes1, modes2 = 8, 8
    x_dim, dim_t = 3, 4

    k1, k2, k3, k4, k5, k6, k7 = jax.random.split(key, 7)
    z0 = jax.random.normal(k1, (batch, z_dim, dim_x, dim_y), jnp.float32)
    xi = jax.random.normal(k2, (batch, x_dim, dim_x, dim_y, dim_t), jnp.float32)

    # ODE.A parameter: scale * rand(2, modes1, modes2, z_dim, z_dim)
    scale = 1.0 / z_dim ** 2
    A = scale * jax.random.uniform(
        k3, (2, modes1, modes2, z_dim, z_dim), jnp.float32
    )

    # pde_func parameters (pointwise channel MLP / stacked 1x1 convs).
    wscale = 1.0 / jnp.sqrt(jnp.float32(z_dim))
    w1 = wscale * jax.random.normal(k4, (z_dim, z_dim), jnp.float32)
    b1 = 0.01 * jax.random.normal(k5, (1, z_dim), jnp.float32)
    w2 = wscale * jax.random.normal(k6, (z_dim, z_dim), jnp.float32)
    b2 = 0.01 * jax.random.normal(k7, (1, z_dim), jnp.float32)
    pde_params = (w1, b1, w2, b2)

    fwd = jax.jit(
        functools.partial(diffeq_solver_forward, modes=(modes1, modes2))
    )
    z = fwd(z0, xi, A, pde_params)
    jax.block_until_ready(z)

    assert z.shape == (batch, z_dim, dim_x, dim_y, dim_t), z.shape
    assert z.dtype == jnp.float32, z.dtype
    assert bool(jnp.all(jnp.isfinite(z)))
    print("KERNEL_OK")
</pallas_src>

<mosaic_0001>
module attributes {stable_mosaic.version = 11 : i64} {
  func.func @_ode_rhs_kernel(%arg0: memref<64x128xf32, #tpu.memory_space<vmem>>, %arg1: memref<64x2x64xf32, #tpu.memory_space<vmem>>, %arg2: memref<64x64x64xf32, #tpu.memory_space<vmem>>, %arg3: memref<256x64xf32, #tpu.memory_space<vmem>>, %arg4: memref<256x64xf32, #tpu.memory_space<vmem>>, %arg5: memref<64x256xf32, #tpu.memory_space<vmem>>, %arg6: memref<64x256xf32, #tpu.memory_space<vmem>>, %arg7: memref<32x32xf32, #tpu.memory_space<vmem>>, %arg8: memref<1x32xf32, #tpu.memory_space<vmem>>, %arg9: memref<32x32xf32, #tpu.memory_space<vmem>>, %arg10: memref<1x32xf32, #tpu.memory_space<vmem>>, %arg11: memref<64x128xf32, #tpu.memory_space<vmem>>) attributes {dimension_semantics = [], scalar_prefetch = 0 : i64, scratch_operands = 0 : i64, tpu.core_type = #tpu.core_type<tc>} {
    %c0 = arith.constant 0 : index
    %c0_0 = arith.constant 0 : index
    %c0_1 = arith.constant 0 : index
    %0 = vector.load %arg1[%c0, %c0_0, %c0_1] : memref<64x2x64xf32, #tpu.memory_space<vmem>>, vector<64x2x64xf32>
    %c0_2 = arith.constant 0 : index
    %c0_3 = arith.constant 0 : index
    %c0_4 = arith.constant 0 : index
    %1 = vector.load %arg2[%c0_2, %c0_3, %c0_4] : memref<64x64x64xf32, #tpu.memory_space<vmem>>, vector<64x64x64xf32>
    "tpu.trace_start"() <{level = 10 : i32, message = "mbk,mkn->mbn"}> : () -> ()
    %cst = arith.constant dense<0.000000e+00> : vector<64x2x64xf32>
    %2 = tpu.matmul %0, %1, %cst {dimension_numbers = #tpu.dot_dimension_numbers<[2], [1], [1], [2], [0, 0, 0, 1, 1, 2], [0], [0]>} : vector<64x2x64xf32>, vector<64x64x64xf32>, vector<64x2x64xf32> -> vector<64x2x64xf32>
    "tpu.trace_stop"() : () -> ()
    %c0_5 = arith.constant 0 : index
    %c0_6 = arith.constant 0 : index
    %3 = vector.load %arg3[%c0_5, %c0_6] : memref<256x64xf32, #tpu.memory_space<vmem>>, vector<256x64xf32>
    %c0_7 = arith.constant 0 : index
    %c0_8 = arith.constant 0 : index
    %4 = vector.load %arg4[%c0_7, %c0_8] : memref<256x64xf32, #tpu.memory_space<vmem>>, vector<256x64xf32>
    %c0_9 = arith.constant 0 : index
    %c0_10 = arith.constant 0 : index
    %5 = vector.load %arg5[%c0_9, %c0_10] : memref<64x256xf32, #tpu.memory_space<vmem>>, vector<64x256xf32>
    %c0_11 = arith.constant 0 : index
    %c0_12 = arith.constant 0 : index
    %6 = vector.load %arg6[%c0_11, %c0_12] : memref<64x256xf32, #tpu.memory_space<vmem>>, vector<64x256xf32>
    %c0_13 = arith.constant 0 : index
    %c0_14 = arith.constant 0 : index
    %7 = vector.load %arg7[%c0_13, %c0_14] : memref<32x32xf32, #tpu.memory_space<vmem>>, vector<32x32xf32>
    %c0_15 = arith.constant 0 : index
    %c0_16 = arith.constant 0 : index
    %8 = vector.load %arg8[%c0_15, %c0_16] : memref<1x32xf32, #tpu.memory_space<vmem>>, vector<1x32xf32>
    %c0_17 = arith.constant 0 : index
    %c0_18 = arith.constant 0 : index
    %9 = vector.load %arg9[%c0_17, %c0_18] : memref<32x32xf32, #tpu.memory_space<vmem>>, vector<32x32xf32>
    %c0_19 = arith.constant 0 : index
    %c0_20 = arith.constant 0 : index
    %10 = vector.load %arg10[%c0_19, %c0_20] : memref<1x32xf32, #tpu.memory_space<vmem>>, vector<1x32xf32>
    %c0_21 = arith.constant 0 : index
    %c0_22 = arith.constant 0 : index
    %11 = vector.load %arg0[%c0_21, %c0_22] : memref<64x128xf32, #tpu.memory_space<vmem>>, vector<64x32xf32>
    %c0_23 = arith.constant 0 : index
    %c32 = arith.constant 32 : index
    %12 = vector.load %arg0[%c0_23, %c32] : memref<64x128xf32, #tpu.memory_space<vmem>>, vector<64x32xf32>
    %cst_24 = arith.constant dense<0.000000e+00> : vector<256x32xf32>
    %13 = tpu.matmul %3, %11, %cst_24 {dimension_numbers = #tpu.dot_dimension_numbers<[1], [0], [0], [1], [0, 0, 1, 1], [], []>} : vector<256x64xf32>, vector<64x32xf32>, vector<256x32xf32> -> vector<256x32xf32>
    %cst_25 = arith.constant dense<0.000000e+00> : vector<256x32xf32>
    %14 = tpu.matmul %4, %12, %cst_25 {dimension_numbers = #tpu.dot_dimension_numbers<[1], [0], [0], [1], [0, 0, 1, 1], [], []>} : vector<256x64xf32>, vector<64x32xf32>, vector<256x32xf32> -> vector<256x32xf32>
    %15 = arith.subf %13, %14 : vector<256x32xf32>
    %cst_26 = arith.constant dense<0.000000e+00> : vector<256x32xf32>
    %16 = tpu.matmul %15, %7, %cst_26 {dimension_numbers = #tpu.dot_dimension_numbers<[1], [0], [0], [1], [0, 0, 1, 1], [], []>} : vector<256x32xf32>, vector<32x32xf32>, vector<256x32xf32> -> vector<256x32xf32>
    %17 = vector.broadcast %8 : vector<1x32xf32> to vector<256x32xf32>
    %18 = arith.addf %16, %17 : vector<256x32xf32>
    %19 = math.tanh %18 : vector<256x32xf32>
    %cst_27 = arith.constant dense<0.000000e+00> : vector<256x32xf32>
    %20 = tpu.matmul %19, %9, %cst_27 {dimension_numbers = #tpu.dot_dimension_numbers<[1], [0], [0], [1], [0, 0, 1, 1], [], []>} : vector<256x32xf32>, vector<32x32xf32>, vector<256x32xf32> -> vector<256x32xf32>
    %21 = vector.broadcast %10 : vector<1x32xf32> to vector<256x32xf32>
    %22 = arith.addf %20, %21 : vector<256x32xf32>
    %cst_28 = arith.constant dense<0.000000e+00> : vector<64x32xf32>
    %23 = tpu.matmul %5, %22, %cst_28 {dimension_numbers = #tpu.dot_dimension_numbers<[1], [0], [0], [1], [0, 0, 1, 1], [], []>} : vector<64x256xf32>, vector<256x32xf32>, vector<64x32xf32> -> vector<64x32xf32>
    %cst_29 = arith.constant dense<0.000000e+00> : vector<64x32xf32>
    %24 = tpu.matmul %6, %22, %cst_29 {dimension_numbers = #tpu.dot_dimension_numbers<[1], [0], [0], [1], [0, 0, 1, 1], [], []>} : vector<64x256xf32>, vector<256x32xf32>, vector<64x32xf32> -> vector<64x32xf32>
    %25 = vector.extract_strided_slice %2 {offsets = [0, 0, 0], sizes = [64, 1, 64], strides = [1, 1, 1]} : vector<64x2x64xf32> to vector<64x1x64xf32>
    %26 = vector.shape_cast %25 : vector<64x1x64xf32> to vector<64x64xf32>
    %27 = tpu.concatenate %23, %24 in 1 : vector<64x32xf32>, vector<64x32xf32> -> vector<64x64xf32>
    %28 = arith.addf %26, %27 : vector<64x64xf32>
    %c0_30 = arith.constant 0 : index
    %c64 = arith.constant 64 : index
    %29 = vector.load %arg0[%c0_30, %c64] : memref<64x128xf32, #tpu.memory_space<vmem>>, vector<64x32xf32>
    %c0_31 = arith.constant 0 : index
    %c96 = arith.constant 96 : index
    %30 = vector.load %arg0[%c0_31, %c96] : memref<64x128xf32, #tpu.memory_space<vmem>>, vector<64x32xf32>
    %cst_32 = arith.constant dense<0.000000e+00> : vector<256x32xf32>
    %31 = tpu.matmul %3, %29, %cst_32 {dimension_numbers = #tpu.dot_dimension_numbers<[1], [0], [0], [1], [0, 0, 1, 1], [], []>} : vector<256x64xf32>, vector<64x32xf32>, vector<256x32xf32> -> vector<256x32xf32>
    %cst_33 = arith.constant dense<0.000000e+00> : vector<256x32xf32>
    %32 = tpu.matmul %4, %30, %cst_33 {dimension_numbers = #tpu.dot_dimension_numbers<[1], [0], [0], [1], [0, 0, 1, 1], [], []>} : vector<256x64xf32>, vector<64x32xf32>, vector<256x32xf32> -> vector<256x32xf32>
    %33 = arith.subf %31, %32 : vector<256x32xf32>
    %cst_34 = arith.constant dense<0.000000e+00> : vector<256x32xf32>
    %34 = tpu.matmul %33, %7, %cst_34 {dimension_numbers = #tpu.dot_dimension_numbers<[1], [0], [0], [1], [0, 0, 1, 1], [], []>} : vector<256x32xf32>, vector<32x32xf32>, vector<256x32xf32> -> vector<256x32xf32>
    %35 = vector.broadcast %8 : vector<1x32xf32> to vector<256x32xf32>
    %36 = arith.addf %34, %35 : vector<256x32xf32>
    %37 = math.tanh %36 : vector<256x32xf32>
    %cst_35 = arith.constant dense<0.000000e+00> : vector<256x32xf32>
    %38 = tpu.matmul %37, %9, %cst_35 {dimension_numbers = #tpu.dot_dimension_numbers<[1], [0], [0], [1], [0, 0, 1, 1], [], []>} : vector<256x32xf32>, vector<32x32xf32>, vector<256x32xf32> -> vector<256x32xf32>
    %39 = vector.broadcast %10 : vector<1x32xf32> to vector<256x32xf32>
    %40 = arith.addf %38, %39 : vector<256x32xf32>
    %cst_36 = arith.constant dense<0.000000e+00> : vector<64x32xf32>
    %41 = tpu.matmul %5, %40, %cst_36 {dimension_numbers = #tpu.dot_dimension_numbers<[1], [0], [0], [1], [0, 0, 1, 1], [], []>} : vector<64x256xf32>, vector<256x32xf32>, vector<64x32xf32> -> vector<64x32xf32>
    %cst_37 = arith.constant dense<0.000000e+00> : vector<64x32xf32>
    %42 = tpu.matmul %6, %40, %cst_37 {dimension_numbers = #tpu.dot_dimension_numbers<[1], [0], [0], [1], [0, 0, 1, 1], [], []>} : vector<64x256xf32>, vector<256x32xf32>, vector<64x32xf32> -> vector<64x32xf32>
    %43 = vector.extract_strided_slice %2 {offsets = [0, 1, 0], sizes = [64, 1, 64], strides = [1, 1, 1]} : vector<64x2x64xf32> to vector<64x1x64xf32>
    %44 = vector.shape_cast %43 : vector<64x1x64xf32> to vector<64x64xf32>
    %45 = tpu.concatenate %41, %42 in 1 : vector<64x32xf32>, vector<64x32xf32> -> vector<64x64xf32>
    %46 = arith.addf %44, %45 : vector<64x64xf32>
    %47 = tpu.concatenate %28, %46 in 1 : vector<64x64xf32>, vector<64x64xf32> -> vector<64x128xf32>
    %c0_38 = arith.constant 0 : index
    %c0_39 = arith.constant 0 : index
    %48 = vector.load %arg11[%c0_38, %c0_39] : memref<64x128xf32, #tpu.memory_space<vmem>>, vector<64x128xf32>
    tpu.vector_store %arg11[%c0_38, %c0_39], %47 {strides = array<i32>} : memref<64x128xf32, #tpu.memory_space<vmem>>, vector<64x128xf32>,
    return
  }
}

</mosaic_0001>

<llo_original>
// kernel: custom-call
$region0: #{custom-call}
  %s0 = inlined_call_operand.vmem [shape: bf16[3,64,128], index: 0, kind: output, shape index: {}]

// kernel: neg.2
$region0: #{neg.2}
  #allocation0 [shape = 's32[1]{0}', space=sflag, size = 0x4, scoped, tag = 'scoped memory for neg.2']
  %s0 = inlined_call_operand.vmem [shape: f32[64,32,32], index: 0, kind: input, shape index: {}]
  %s1 = inlined_call_operand.vmem [shape: f32[64,32,32], index: 1, kind: output, shape index: {}]
  %v2 = vld [vmem:[%s0] sm:$0xff]
  %3 = xla_tuple %v2
  %4 = xla_tuple %3
  %v5 = vxor.u32 %v2, 2147483648
  %6 = xla_tuple %v5
  %7 = vst [vmem:[%s1] sm:$0xff] %v5
  %s8 = scalar_lea.vmem %s0, 32
  %v9 = vld [vmem:[%s8] sm:$0xff]
  %10 = xla_tuple %v9
  %11 = xla_tuple %10
  %v12 = vxor.u32 %v9, 2147483648
  %13 = xla_tuple %v12
  %s14 = scalar_lea.vmem %s1, 32
  %15 = vst [vmem:[%s14] sm:$0xff] %v12
  %s16 = scalar_lea.vmem %s0, 64
  %v17 = vld [vmem:[%s16] sm:$0xff]
  %18 = xla_tuple %v17
  %19 = xla_tuple %18
  %v20 = vxor.u32 %v17, 2147483648
  %21 = xla_tuple %v20
  %s22 = scalar_lea.vmem %s1, 64
  %23 = vst [vmem:[%s22] sm:$0xff] %v20
  %s24 = scalar_lea.vmem %s0, 96
  %v25 = vld [vmem:[%s24] sm:$0xff]
  %26 = xla_tuple %v25
  %27 = xla_tuple %26
  %v28 = vxor.u32 %v25, 2147483648
  %29 = xla_tuple %v28
  %s30 = scalar_lea.vmem %s1, 96
  %31 = vst [vmem:[%s30] sm:$0xff] %v28
  %s32 = scalar_lea.vmem %s0, 128
  %v33 = vld [vmem:[%s32] sm:$0xff]
  %34 = xla_tuple %v33
  %35 = xla_tuple %34
  %v36 = vxor.u32 %v33, 2147483648
  %37 = xla_tuple %v36
  %s38 = scalar_lea.vmem %s1, 128
  %39 = vst [vmem:[%s38] sm:$0xff] %v36
  %s40 = scalar_lea.vmem %s0, 160
  %v41 = vld [vmem:[%s40] sm:$0xff]
  %42 = xla_tuple %v41
  %43 = xla_tuple %42
  %v44 = vxor.u32 %v41, 2147483648
  %45 = xla_tuple %v44
  %s46 = scalar_lea.vmem %s1, 160
  %47 = vst [vmem:[%s46] sm:$0xff] %v44
  %s48 = scalar_lea.vmem %s0, 192
  %v49 = vld [vmem:[%s48] sm:$0xff]
  %50 = xla_tuple %v49
  %51 = xla_tuple %50
  %v52 = vxor.u32 %v49, 2147483648
  %53 = xla_tuple %v52
  %s54 = scalar_lea.vmem %s1, 192
  %55 = vst [vmem:[%s54] sm:$0xff] %v52
  %s56 = scalar_lea.vmem %s0, 224
  %v57 = vld [vmem:[%s56] sm:$0xff]
  %58 = xla_tuple %v57
  %59 = xla_tuple %58
  %v60 = vxor.u32 %v57, 2147483648
  %61 = xla_tuple %v60
  %s62 = scalar_lea.vmem %s1, 224
  %63 = vst [vmem:[%s62] sm:$0xff] %v60
  %s64 = scalar_lea.vmem %s0, 256
  %v65 = vld [vmem:[%s64] sm:$0xff]
  %66 = xla_tuple %v65
  %67 = xla_tuple %66
  %v68 = vxor.u32 %v65, 2147483648
  %69 = xla_tuple %v68
  %s70 = scalar_lea.vmem %s1, 256
  %71 = vst [vmem:[%s70] sm:$0xff] %v68
  %s72 = scalar_lea.vmem %s0, 288
  %v73 = vld [vmem:[%s72] sm:$0xff]
  %74 = xla_tuple %v73
  %75 = xla_tuple %74
  %v76 = vxor.u32 %v73, 2147483648
  %77 = xla_tuple %v76
  %s78 = scalar_lea.vmem %s1, 288
  %79 = vst [vmem:[%s78] sm:$0xff] %v76
  %s80 = scalar_lea.vmem %s0, 320
  %v81 = vld [vmem:[%s80] sm:$0xff]
  %82 = xla_tuple %v81
  %83 = xla_tuple %82
  %v84 = vxor.u32 %v81, 2147483648
  %85 = xla_tuple %v84
  %s86 = scalar_lea.vmem %s1, 320
  %87 = vst [vmem:[%s86] sm:$0xff] %v84
  %s88 = scalar_lea.vmem %s0, 352
  %v89 = vld [vmem:[%s88] sm:$0xff]
  %90 = xla_tuple %v89
  %91 = xla_tuple %90
  %v92 = vxor.u32 %v89, 2147483648
  %93 = xla_tuple %v92
  %s94 = scalar_lea.vmem %s1, 352
  %95 = vst [vmem:[%s94] sm:$0xff] %v92
  %s96 = scalar_lea.vmem %s0, 384
  %v97 = vld [vmem:[%s96] sm:$0xff]
  %98 = xla_tuple %v97
  %99 = xla_tuple %98
  %v100 = vxor.u32 %v97, 2147483648
  %101 = xla_tuple %v100
  %s102 = scalar_lea.vmem %s1, 384
  %103 = vst [vmem:[%s102] sm:$0xff] %v100
  %s104 = scalar_lea.vmem %s0, 416
  %v105 = vld [vmem:[%s104] sm:$0xff]
  %106 = xla_tuple %v105
  %107 = xla_tuple %106
  %v108 = vxor.u32 %v105, 2147483648
  %109 = xla_tuple %v108
  %s110 = scalar_lea.vmem %s1, 416
  %111 = vst [vmem:[%s110] sm:$0xff] %v108
  %s112 = scalar_lea.vmem %s0, 448
  %v113 = vld [vmem:[%s112] sm:$0xff]
  %114 = xla_tuple %v113
  %115 = xla_tuple %114
  %v116 = vxor.u32 %v113, 2147483648
  %117 = xla_tuple %v116
  %s118 = scalar_lea.vmem %s1, 448
  %119 = vst [vmem:[%s118] sm:$0xff] %v116
  %s120 = scalar_lea.vmem %s0, 480
  %v121 = vld [vmem:[%s120] sm:$0xff]
  %122 = xla_tuple %v121
  %123 = xla_tuple %122
  %v124 = vxor.u32 %v121, 2147483648
  %125 = xla_tuple %v124
  %s126 = scalar_lea.vmem %s1, 480
  %127 = vst [vmem:[%s126] sm:$0xff] %v124
  %s128 = scalar_lea.vmem %s0, 512
  %v129 = vld [vmem:[%s128] sm:$0xff]
  %130 = xla_tuple %v129
  %131 = xla_tuple %130
  %v132 = vxor.u32 %v129, 2147483648
  %133 = xla_tuple %v132
  %s134 = scalar_lea.vmem %s1, 512
  %135 = vst [vmem:[%s134] sm:$0xff] %v132
  %s136 = scalar_lea.vmem %s0, 544
  %v137 = vld [vmem:[%s136] sm:$0xff]
  %138 = xla_tuple %v137
  %139 = xla_tuple %138
  %v140 = vxor.u32 %v137, 2147483648
  %141 = xla_tuple %v140
  %s142 = scalar_lea.vmem %s1, 544
  %143 = vst [vmem:[%s142] sm:$0xff] %v140
  %s144 = scalar_lea.vmem %s0, 576
  %v145 = vld [vmem:[%s144] sm:$0xff]
  %146 = xla_tuple %v145
  %147 = xla_tuple %146
  %v148 = vxor.u32 %v145, 2147483648
  %149 = xla_tuple %v148
  %s150 = scalar_lea.vmem %s1, 576
  %151 = vst [vmem:[%s150] sm:$0xff] %v148
  %s152 = scalar_lea.vmem %s0, 608
  %v153 = vld [vmem:[%s152] sm:$0xff]
  %154 = xla_tuple %v153
  %155 = xla_tuple %154
  %v156 = vxor.u32 %v153, 2147483648
  %157 = xla_tuple %v156
  %s158 = scalar_lea.vmem %s1, 608
  %159 = vst [vmem:[%s158] sm:$0xff] %v156
  %s160 = scalar_lea.vmem %s0, 640
  %v161 = vld [vmem:[%s160] sm:$0xff]
  %162 = xla_tuple %v161
  %163 = xla_tuple %162
  %v164 = vxor.u32 %v161, 2147483648
  %165 = xla_tuple %v164
  %s166 = scalar_lea.vmem %s1, 640
  %167 = vst [vmem:[%s166] sm:$0xff] %v164
  %s168 = scalar_lea.vmem %s0, 672
  %v169 = vld [vmem:[%s168] sm:$0xff]
  %170 = xla_tuple %v169
  %171 = xla_tuple %170
  %v172 = vxor.u32 %v169, 2147483648
  %173 = xla_tuple %v172
  %s174 = scalar_lea.vmem %s1, 672
  %175 = vst [vmem:[%s174] sm:$0xff] %v172
  %s176 = scalar_lea.vmem %s0, 704
  %v177 = vld [vmem:[%s176] sm:$0xff]
  %178 = xla_tuple %v177
  %179 = xla_tuple %178
  %v180 = vxor.u32 %v177, 2147483648
  %181 = xla_tuple %v180
  %s182 = scalar_lea.vmem %s1, 704
  %183 = vst [vmem:[%s182] sm:$0xff] %v180
  %s184 = scalar_lea.vmem %s0, 736
  %v185 = vld [vmem:[%s184] sm:$0xff]
  %186 = xla_tuple %v185
  %187 = xla_tuple %186
  %v188 = vxor.u32 %v185, 2147483648
  %189 = xla_tuple %v188
  %s190 = scalar_lea.vmem %s1, 736
  %191 = vst [vmem:[%s190] sm:$0xff] %v188
  %s192 = scalar_lea.vmem %s0, 768
  %v193 = vld [vmem:[%s192] sm:$0xff]
  %194 = xla_tuple %v193
  %195 = xla_tuple %194
  %v196 = vxor.u32 %v193, 2147483648
  %197 = xla_tuple %v196
  %s198 = scalar_lea.vmem %s1, 768
  %199 = vst [vmem:[%s198] sm:$0xff] %v196
  %s200 = scalar_lea.vmem %s0, 800
  %v201 = vld [vmem:[%s200] sm:$0xff]
  %202 = xla_tuple %v201
  %203 = xla_tuple %202
  %v204 = vxor.u32 %v201, 2147483648
  %205 = xla_tuple %v204
  %s206 = scalar_lea.vmem %s1, 800
  %207 = vst [vmem:[%s206] sm:$0xff] %v204
  %s208 = scalar_lea.vmem %s0, 832
  %v209 = vld [vmem:[%s208] sm:$0xff]
  %210 = xla_tuple %v209
  %211 = xla_tuple %210
  %v212 = vxor.u32 %v209, 2147483648
  %213 = xla_tuple %v212
  %s214 = scalar_lea.vmem %s1, 832
  %215 = vst [vmem:[%s214] sm:$0xff] %v212
  %s216 = scalar_lea.vmem %s0, 864
  %v217 = vld [vmem:[%s216] sm:$0xff]
  %218 = xla_tuple %v217
  %219 = xla_tuple %218
  %v220 = vxor.u32 %v217, 2147483648
  %221 = xla_tuple %v220
  %s222 = scalar_lea.vmem %s1, 864
  %223 = vst [vmem:[%s222] sm:$0xff] %v220
  %s224 = scalar_lea.vmem %s0, 896
  %v225 = vld [vmem:[%s224] sm:$0xff]
  %226 = xla_tuple %v225
  %227 = xla_tuple %226
  %v228 = vxor.u32 %v225, 2147483648
  %229 = xla_tuple %v228
  %s230 = scalar_lea.vmem %s1, 896
  %231 = vst [vmem:[%s230] sm:$0xff] %v228
  %s232 = scalar_lea.vmem %s0, 928
  %v233 = vld [vmem:[%s232] sm:$0xff]
  %234 = xla_tuple %v233
  %235 = xla_tuple %234
  %v236 = vxor.u32 %v233, 2147483648
  %237 = xla_tuple %v236
  %s238 = scalar_lea.vmem %s1, 928
  %239 = vst [vmem:[%s238] sm:$0xff] %v236
  %s240 = scalar_lea.vmem %s0, 960
  %v241 = vld [vmem:[%s240] sm:$0xff]
  %242 = xla_tuple %v241
  %243 = xla_tuple %242
  %v244 = vxor.u32 %v241, 2147483648
  %245 = xla_tuple %v244
  %s246 = scalar_lea.vmem %s1, 960
  %247 = vst [vmem:[%s246] sm:$0xff] %v244
  %s248 = scalar_lea.vmem %s0, 992
  %v249 = vld [vmem:[%s248] sm:$0xff]
  %250 = xla_tuple %v249
  %251 = xla_tuple %250
  %v252 = vxor.u32 %v249, 2147483648
  %253 = xla_tuple %v252
  %s254 = scalar_lea.vmem %s1, 992
  %255 = vst [vmem:[%s254] sm:$0xff] %v252
  %s256 = scalar_lea.vmem %s0, 1024
  %v257 = vld [vmem:[%s256] sm:$0xff]
  %258 = xla_tuple %v257
  %259 = xla_tuple %258
  %v260 = vxor.u32 %v257, 2147483648
  %261 = xla_tuple %v260
  %s262 = scalar_lea.vmem %s1, 1024
  %263 = vst [vmem:[%s262] sm:$0xff] %v260
  %s264 = scalar_lea.vmem %s0, 1056
  %v265 = vld [vmem:[%s264] sm:$0xff]
  %266 = xla_tuple %v265
  %267 = xla_tuple %266
  %v268 = vxor.u32 %v265, 2147483648
  %269 = xla_tuple %v268
  %s270 = scalar_lea.vmem %s1, 1056
  %271 = vst [vmem:[%s270] sm:$0xff] %v268
  %s272 = scalar_lea.vmem %s0, 1088
  %v273 = vld [vmem:[%s272] sm:$0xff]
  %274 = xla_tuple %v273
  %275 = xla_tuple %274
  %v276 = vxor.u32 %v273, 2147483648
  %277 = xla_tuple %v276
  %s278 = scalar_lea.vmem %s1, 1088
  %279 = vst [vmem:[%s278] sm:$0xff] %v276
  %s280 = scalar_lea.vmem %s0, 1120
  %v281 = vld [vmem:[%s280] sm:$0xff]
  %282 = xla_tuple %v281
  %283 = xla_tuple %282
  %v284 = vxor.u32 %v281, 2147483648
  %285 = xla_tuple %v284
  %s286 = scalar_lea.vmem %s1, 1120
  %287 = vst [vmem:[%s286] sm:$0xff] %v284
  %s288 = scalar_lea.vmem %s0, 1152
  %v289 = vld [vmem:[%s288] sm:$0xff]
  %290 = xla_tuple %v289
  %291 = xla_tuple %290
  %v292 = vxor.u32 %v289, 2147483648
  %293 = xla_tuple %v292
  %s294 = scalar_lea.vmem %s1, 1152
  %295 = vst [vmem:[%s294] sm:$0xff] %v292
  %s296 = scalar_lea.vmem %s0, 1184
  %v297 = vld [vmem:[%s296] sm:$0xff]
  %298 = xla_tuple %v297
  %299 = xla_tuple %298
  %v300 = vxor.u32 %v297, 2147483648
  %301 = xla_tuple %v300
  %s302 = scalar_lea.vmem %s1, 1184
  %303 = vst [vmem:[%s302] sm:$0xff] %v300
  %s304 = scalar_lea.vmem %s0, 1216
  %v305 = vld [vmem:[%s304] sm:$0xff]
  %306 = xla_tuple %v305
  %307 = xla_tuple %306
  %v308 = vxor.u32 %v305, 2147483648
  %309 = xla_tuple %v308
  %s310 = scalar_lea.vmem %s1, 1216
  %311 = vst [vmem:[%s310] sm:$0xff] %v308
  %s312 = scalar_lea.vmem %s0, 1248
  %v313 = vld [vmem:[%s312] sm:$0xff]
  %314 = xla_tuple %v313
  %315 = xla_tuple %314
  %v316 = vxor.u32 %v313, 2147483648
  %317 = xla_tuple %v316
  %s318 = scalar_lea.vmem %s1, 1248
  %319 = vst [vmem:[%s318] sm:$0xff] %v316
  %s320 = scalar_lea.vmem %s0, 1280
  %v321 = vld [vmem:[%s320] sm:$0xff]
  %322 = xla_tuple %v321
  %323 = xla_tuple %322
  %v324 = vxor.u32 %v321, 2147483648
  %325 = xla_tuple %v324
  %s326 = scalar_lea.vmem %s1, 1280
  %327 = vst [vmem:[%s326] sm:$0xff] %v324
  %s328 = scalar_lea.vmem %s0, 1312
  %v329 = vld [vmem:[%s328] sm:$0xff]
  %330 = xla_tuple %v329
  %331 = xla_tuple %330
  %v332 = vxor.u32 %v329, 2147483648
  %333 = xla_tuple %v332
  %s334 = scalar_lea.vmem %s1, 1312
  %335 = vst [vmem:[%s334] sm:$0xff] %v332
  %s336 = scalar_lea.vmem %s0, 1344
  %v337 = vld [vmem:[%s336] sm:$0xff]
  %338 = xla_tuple %v337
  %339 = xla_tuple %338
  %v340 = vxor.u32 %v337, 2147483648
  %341 = xla_tuple %v340
  %s342 = scalar_lea.vmem %s1, 1344
  %343 = vst [vmem:[%s342] sm:$0xff] %v340
  %s344 = scalar_lea.vmem %s0, 1376
  %v345 = vld [vmem:[%s344] sm:$0xff]
  %346 = xla_tuple %v345
  %347 = xla_tuple %346
  %v348 = vxor.u32 %v345, 2147483648
  %349 = xla_tuple %v348
  %s350 = scalar_lea.vmem %s1, 1376
  %351 = vst [vmem:[%s350] sm:$0xff] %v348
  %s352 = scalar_lea.vmem %s0, 1408
  %v353 = vld [vmem:[%s352] sm:$0xff]
  %354 = xla_tuple %v353
  %355 = xla_tuple %354
  %v356 = vxor.u32 %v353, 2147483648
  %357 = xla_tuple %v356
  %s358 = scalar_lea.vmem %s1, 1408
  %359 = vst [vmem:[%s358] sm:$0xff] %v356
  %s360 = scalar_lea.vmem %s0, 1440
  %v361 = vld [vmem:[%s360] sm:$0xff]
  %362 = xla_tuple %v361
  %363 = xla_tuple %362
  %v364 = vxor.u32 %v361, 2147483648
  %365 = xla_tuple %v364
  %s366 = scalar_lea.vmem %s1, 1440
  %367 = vst [vmem:[%s366] sm:$0xff] %v364
  %s368 = scalar_lea.vmem %s0, 1472
  %v369 = vld [vmem:[%s368] sm:$0xff]
  %370 = xla_tuple %v369
  %371 = xla_tuple %370
  %v372 = vxor.u32 %v369, 2147483648
  %373 = xla_tuple %v372
  %s374 = scalar_lea.vmem %s1, 1472
  %375 = vst [vmem:[%s374] sm:$0xff] %v372
  %s376 = scalar_lea.vmem %s0, 1504
  %v377 = vld [vmem:[%s376] sm:$0xff]
  %378 = xla_tuple %v377
  %379 = xla_tuple %378
  %v380 = vxor.u32 %v377, 2147483648
  %381 = xla_tuple %v380
  %s382 = scalar_lea.vmem %s1, 1504
  %383 = vst [vmem:[%s382] sm:$0xff] %v380
  %s384 = scalar_lea.vmem %s0, 1536
  %v385 = vld [vmem:[%s384] sm:$0xff]
  %386 = xla_tuple %v385
  %387 = xla_tuple %386
  %v388 = vxor.u32 %v385, 2147483648
  %389 = xla_tuple %v388
  %s390 = scalar_lea.vmem %s1, 1536
  %391 = vst [vmem:[%s390] sm:$0xff] %v388
  %s392 = scalar_lea.vmem %s0, 1568
  %v393 = vld [vmem:[%s392] sm:$0xff]
  %394 = xla_tuple %v393
  %395 = xla_tuple %394
  %v396 = vxor.u32 %v393, 2147483648
  %397 = xla_tuple %v396
  %s398 = scalar_lea.vmem %s1, 1568
  %399 = vst [vmem:[%s398] sm:$0xff] %v396
  %s400 = scalar_lea.vmem %s0, 1600
  %v401 = vld [vmem:[%s400] sm:$0xff]
  %402 = xla_tuple %v401
  %403 = xla_tuple %402
  %v404 = vxor.u32 %v401, 2147483648
  %405 = xla_tuple %v404
  %s406 = scalar_lea.vmem %s1, 1600
  %407 = vst [vmem:[%s406] sm:$0xff] %v404
  %s408 = scalar_lea.vmem %s0, 1632
  %v409 = vld [vmem:[%s408] sm:$0xff]
  %410 = xla_tuple %v409
  %411 = xla_tuple %410
  %v412 = vxor.u32 %v409, 2147483648
  %413 = xla_tuple %v412
  %s414 = scalar_lea.vmem %s1, 1632
  %415 = vst [vmem:[%s414] sm:$0xff] %v412
  %s416 = scalar_lea.vmem %s0, 1664
  %v417 = vld [vmem:[%s416] sm:$0xff]
  %418 = xla_tuple %v417
  %419 = xla_tuple %418
  %v420 = vxor.u32 %v417, 2147483648
  %421 = xla_tuple %v420
  %s422 = scalar_lea.vmem %s1, 1664
  %423 = vst [vmem:[%s422] sm:$0xff] %v420
  %s424 = scalar_lea.vmem %s0, 1696
  %v425 = vld [vmem:[%s424] sm:$0xff]
  %426 = xla_tuple %v425
  %427 = xla_tuple %426
  %v428 = vxor.u32 %v425, 2147483648
  %429 = xla_tuple %v428
  %s430 = scalar_lea.vmem %s1, 1696
  %431 = vst [vmem:[%s430] sm:$0xff] %v428
  %s432 = scalar_lea.vmem %s0, 1728
  %v433 = vld [vmem:[%s432] sm:$0xff]
  %434 = xla_tuple %v433
  %435 = xla_tuple %434
  %v436 = vxor.u32 %v433, 2147483648
  %437 = xla_tuple %v436
  %s438 = scalar_lea.vmem %s1, 1728
  %439 = vst [vmem:[%s438] sm:$0xff] %v436
  %s440 = scalar_lea.vmem %s0, 1760
  %v441 = vld [vmem:[%s440] sm:$0xff]
  %442 = xla_tuple %v441
  %443 = xla_tuple %442
  %v444 = vxor.u32 %v441, 2147483648
  %445 = xla_tuple %v444
  %s446 = scalar_lea.vmem %s1, 1760
  %447 = vst [vmem:[%s446] sm:$0xff] %v444
  %s448 = scalar_lea.vmem %s0, 1792
  %v449 = vld [vmem:[%s448] sm:$0xff]
  %450 = xla_tuple %v449
  %451 = xla_tuple %450
  %v452 = vxor.u32 %v449, 2147483648
  %453 = xla_tuple %v452
  %s454 = scalar_lea.vmem %s1, 1792
  %455 = vst [vmem:[%s454] sm:$0xff] %v452
  %s456 = scalar_lea.vmem %s0, 1824
  %v457 = vld [vmem:[%s456] sm:$0xff]
  %458 = xla_tuple %v457
  %459 = xla_tuple %458
  %v460 = vxor.u32 %v457, 2147483648
  %461 = xla_tuple %v460
  %s462 = scalar_lea.vmem %s1, 1824
  %463 = vst [vmem:[%s462] sm:$0xff] %v460
  %s464 = scalar_lea.vmem %s0, 1856
  %v465 = vld [vmem:[%s464] sm:$0xff]
  %466 = xla_tuple %v465
  %467 = xla_tuple %466
  %v468 = vxor.u32 %v465, 2147483648
  %469 = xla_tuple %v468
  %s470 = scalar_lea.vmem %s1, 1856
  %471 = vst [vmem:[%s470] sm:$0xff] %v468
  %s472 = scalar_lea.vmem %s0, 1888
  %v473 = vld [vmem:[%s472] sm:$0xff]
  %474 = xla_tuple %v473
  %475 = xla_tuple %474
  %v476 = vxor.u32 %v473, 2147483648
  %477 = xla_tuple %v476
  %s478 = scalar_lea.vmem %s1, 1888
  %479 = vst [vmem:[%s478] sm:$0xff] %v476
  %s480 = scalar_lea.vmem %s0, 1920
  %v481 = vld [vmem:[%s480] sm:$0xff]
  %482 = xla_tuple %v481
  %483 = xla_tuple %482
  %v484 = vxor.u32 %v481, 2147483648
  %485 = xla_tuple %v484
  %s486 = scalar_lea.vmem %s1, 1920
  %487 = vst [vmem:[%s486] sm:$0xff] %v484
  %s488 = scalar_lea.vmem %s0, 1952
  %v489 = vld [vmem:[%s488] sm:$0xff]
  %490 = xla_tuple %v489
  %491 = xla_tuple %490
  %v492 = vxor.u32 %v489, 2147483648
  %493 = xla_tuple %v492
  %s494 = scalar_lea.vmem %s1, 1952
  %495 = vst [vmem:[%s494] sm:$0xff] %v492
  %s496 = scalar_lea.vmem %s0, 1984
  %v497 = vld [vmem:[%s496] sm:$0xff]
  %498 = xla_tuple %v497
  %499 = xla_tuple %498
  %v500 = vxor.u32 %v497, 2147483648
  %501 = xla_tuple %v500
  %s502 = scalar_lea.vmem %s1, 1984
  %503 = vst [vmem:[%s502] sm:$0xff] %v500
  %s504 = scalar_lea.vmem %s0, 2016
  %v505 = vld [vmem:[%s504] sm:$0xff]
  %506 = xla_tuple %v505
  %507 = xla_tuple %506
  %v508 = vxor.u32 %v505, 2147483648
  %509 = xla_tuple %v508
  %s510 = scalar_lea.vmem %s1, 2016
  %511 = vst [vmem:[%s510] sm:$0xff] %v508
  %s512 = scalar_lea.vmem %s0, 8
  %v513 = vld [vmem:[%s512] sm:$0xff]
  %514 = xla_tuple %v513
  %515 = xla_tuple %514
  %v516 = vxor.u32 %v513, 2147483648
  %517 = xla_tuple %v516
  %s518 = scalar_lea.vmem %s1, 8
  %519 = vst [vmem:[%s518] sm:$0xff] %v516
  %s520 = scalar_lea.vmem %s0, 40
  %v521 = vld [vmem:[%s520] sm:$0xff]
  %522 = xla_tuple %v521
  %523 = xla_tuple %522
  %v524 = vxor.u32 %v521, 2147483648
  %525 = xla_tuple %v524
  %s526 = scalar_lea.vmem %s1, 40
  %527 = vst [vmem:[%s526] sm:$0xff] %v524
  %s528 = scalar_lea.vmem %s0, 72
  %v529 = vld [vmem:[%s528] sm:$0xff]
  %530 = xla_tuple %v529
  %531 = xla_tuple %530
  %v532 = vxor.u32 %v529, 2147483648
  %533 = xla_tuple %v532
  %s534 = scalar_lea.vmem %s1, 72
  %535 = vst [vmem:[%s534] sm:$0xff] %v532
  %s536 = scalar_lea.vmem %s0, 104
  %v537 = vld [vmem:[%s536] sm:$0xff]
  %538 = xla_tuple %v537
  %539 = xla_tuple %538
  %v540 = vxor.u32 %v537, 2147483648
  %541 = xla_tuple %v540
  %s542 = scalar_lea.vmem %s1, 104
  %543 = vst [vmem:[%s542] sm:$0xff] %v540
  %s544 = scalar_lea.vmem %s0, 136
  %v545 = vld [vmem:[%s544] sm:$0xff]
  %546 = xla_tuple %v545
  %547 = xla_tuple %546
  %v548 = vxor.u32 %v545, 2147483648
  %549 = xla_tuple %v548
  %s550 = scalar_lea.vmem %s1, 136
  %551 = vst [vmem:[%s550] sm:$0xff] %v548
  %s552 = scalar_lea.vmem %s0, 168
  %v553 = vld [vmem:[%s552] sm:$0xff]
  %554 = xla_tuple %v553
  %555 = xla_tuple %554
  %v556 = vxor.u32 %v553, 2147483648
  %557 = xla_tuple %v556
  %s558 = scalar_lea.vmem %s1, 168
  %559 = vst [vmem:[%s558] sm:$0xff] %v556
  %s560 = scalar_lea.vmem %s0, 200
  %v561 = vld [vmem:[%s560] sm:$0xff]
  %562 = xla_tuple %v561
  %563 = xla_tuple %562
  %v564 = vxor.u32 %v561, 2147483648
  %565 = xla_tuple %v564
  %s566 = scalar_lea.vmem %s1, 200
  %567 = vst [vmem:[%s566] sm:$0xff] %v564
  %s568 = scalar_lea.vmem %s0, 232
  %v569 = vld [vmem:[%s568] sm:$0xff]
  %570 = xla_tuple %v569
  %571 = xla_tuple %570
  %v572 = vxor.u32 %v569, 2147483648
  %573 = xla_tuple %v572
  %s574 = scalar_lea.vmem %s1, 232
  %575 = vst [vmem:[%s574] sm:$0xff] %v572
  %s576 = scalar_lea.vmem %s0, 264
  %v577 = vld [vmem:[%s576] sm:$0xff]
  %578 = xla_tuple %v577
  %579 = xla_tuple %578
  %v580 = vxor.u32 %v577, 2147483648
  %581 = xla_tuple %v580
  %s582 = scalar_lea.vmem %s1, 264
  %583 = vst [vmem:[%s582] sm:$0xff] %v580
  %s584 = scalar_lea.vmem %s0, 296
  %v585 = vld [vmem:[%s584] sm:$0xff]
  %586 = xla_tuple %v585
  %587 = xla_tuple %586
  %v588 = vxor.u32 %v585, 2147483648
  %589 = xla_tuple %v588
  %s590 = scalar_lea.vmem %s1, 296
  %591 = vst [vmem:[%s590] sm:$0xff] %v588
  %s592 = scalar_lea.vmem %s0, 328
  %v593 = vld [vmem:[%s592] sm:$0xff]
  %594 = xla_tuple %v593
  %595 = xla_tuple %594
  %v596 = vxor.u32 %v593, 2147483648
  %597 = xla_tuple %v596
  %s598 = scalar_lea.vmem %s1, 328
  %599 = vst [vmem:[%s598] sm:$0xff] %v596
  %s600 = scalar_lea.vmem %s0, 360
  %v601 = vld [vmem:[%s600] sm:$0xff]
  %602 = xla_tuple %v601
  %603 = xla_tuple %602
  %v604 = vxor.u32 %v601, 2147483648
  %605 = xla_tuple %v604
  %s606 = scalar_lea.vmem %s1, 360
  %607 = vst [vmem:[%s606] sm:$0xff] %v604
  %s608 = scalar_lea.vmem %s0, 392
  %v609 = vld [vmem:[%s608] sm:$0xff]
  %610 = xla_tuple %v609
  %611 = xla_tuple %610
  %v612 = vxor.u32 %v609, 2147483648
  %613 = xla_tuple %v612
  %s614 = scalar_lea.vmem %s1, 392
  %615 = vst [vmem:[%s614] sm:$0xff] %v612
  %s616 = scalar_lea.vmem %s0, 424
  %v617 = vld [vmem:[%s616] sm:$0xff]
  %618 = xla_tuple %v617
  %619 = xla_tuple %618
  %v620 = vxor.u32 %v617, 2147483648
  %621 = xla_tuple %v620
  %s622 = scalar_lea.vmem %s1, 424
  %623 = vst [vmem:[%s622] sm:$0xff] %v620
  %s624 = scalar_lea.vmem %s0, 456
  %v625 = vld [vmem:[%s624] sm:$0xff]
  %626 = xla_tuple %v625
  %627 = xla_tuple %626
  %v628 = vxor.u32 %v625, 2147483648
  %629 = xla_tuple %v628
  %s630 = scalar_lea.vmem %s1, 456
  %631 = vst [vmem:[%s630] sm:$0xff] %v628
  %s632 = scalar_lea.vmem %s0, 488
  %v633 = vld [vmem:[%s632] sm:$0xff]
  %634 = xla_tuple %v633
  %635 = xla_tuple %634
  %v636 = vxor.u32 %v633, 2147483648
  %637 = xla_tuple %v636
  %s638 = scalar_lea.vmem %s1, 488
  %639 = vst [vmem:[%s638] sm:$0xff] %v636
  %s640 = scalar_lea.vmem %s0, 520
  %v641 = vld [vmem:[%s640] sm:$0xff]
  %642 = xla_tuple %v641
  %643 = xla_tuple %642
  %v644 = vxor.u32 %v641, 2147483648
  %645 = xla_tuple %v644
  %s646 = scalar_lea.vmem %s1, 520
  %647 = vst [vmem:[%s646] sm:$0xff] %v644
  %s648 = scalar_lea.vmem %s0, 552
  %v649 = vld [vmem:[%s648] sm:$0xff]
  %650 = xla_tuple %v649
  %651 = xla_tuple %650
  %v652 = vxor.u32 %v649, 2147483648
  %653 = xla_tuple %v652
  %s654 = scalar_lea.vmem %s1, 552
  %655 = vst [vmem:[%s654] sm:$0xff] %v652
  %s656 = scalar_lea.vmem %s0, 584
  %v657 = vld [vmem:[%s656] sm:$0xff]
  %658 = xla_tuple %v657
  %659 = xla_tuple %658
  %v660 = vxor.u32 %v657, 2147483648
  %661 = xla_tuple %v660
  %s662 = scalar_lea.vmem %s1, 584
  %663 = vst [vmem:[%s662] sm:$0xff] %v660
  %s664 = scalar_lea.vmem %s0, 616
  %v665 = vld [vmem:[%s664] sm:$0xff]
  %666 = xla_tuple %v665
  %667 = xla_tuple %666
  %v668 = vxor.u32 %v665, 2147483648
  %669 = xla_tuple %v668
  %s670 = scalar_lea.vmem %s1, 616
  %671 = vst [vmem:[%s670] sm:$0xff] %v668
  %s672 = scalar_lea.vmem %s0, 648
  %v673 = vld [vmem:[%s672] sm:$0xff]
  %674 = xla_tuple %v673
  %675 = xla_tuple %674
  %v676 = vxor.u32 %v673, 2147483648
  %677 = xla_tuple %v676
  %s678 = scalar_lea.vmem %s1, 648
  %679 = vst [vmem:[%s678] sm:$0xff] %v676
  %s680 = scalar_lea.vmem %s0, 680
  %v681 = vld [vmem:[%s680] sm:$0xff]
  %682 = xla_tuple %v681
  %683 = xla_tuple %682
  %v684 = vxor.u32 %v681, 2147483648
  %685 = xla_tuple %v684
  %s686 = scalar_lea.vmem %s1, 680
  %687 = vst [vmem:[%s686] sm:$0xff] %v684
  %s688 = scalar_lea.vmem %s0, 712
  %v689 = vld [vmem:[%s688] sm:$0xff]
  %690 = xla_tuple %v689
  %691 = xla_tuple %690
  %v692 = vxor.u32 %v689, 2147483648
  %693 = xla_tuple %v692
  %s694 = scalar_lea.vmem %s1, 712
  %695 = vst [vmem:[%s694] sm:$0xff] %v692
  %s696 = scalar_lea.vmem %s0, 744
  %v697 = vld [vmem:[%s696] sm:$0xff]
  %698 = xla_tuple %v697
  %699 = xla_tuple %698
  %v700 = vxor.u32 %v697, 2147483648
  %701 = xla_tuple %v700
  %s702 = scalar_lea.vmem %s1, 744
  %703 = vst [vmem:[%s702] sm:$0xff] %v700
  %s704 = scalar_lea.vmem %s0, 776
  %v705 = vld [vmem:[%s704] sm:$0xff]
  %706 = xla_tuple %v705
  %707 = xla_tuple %706
  %v708 = vxor.u32 %v705, 2147483648
  %709 = xla_tuple %v708
  %s710 = scalar_lea.vmem %s1, 776
  %711 = vst [vmem:[%s710] sm:$0xff] %v708
  %s712 = scalar_lea.vmem %s0, 808
  %v713 = vld [vmem:[%s712] sm:$0xff]
  %714 = xla_tuple %v713
  %715 = xla_tuple %714
  %v716 = vxor.u32 %v713, 2147483648
  %717 = xla_tuple %v716
  %s718 = scalar_lea.vmem %s1, 808
  %719 = vst [vmem:[%s718] sm:$0xff] %v716
  %s720 = scalar_lea.vmem %s0, 840
  %v721 = vld [vmem:[%s720] sm:$0xff]
  %722 = xla_tuple %v721
  %723 = xla_tuple %722
  %v724 = vxor.u32 %v721, 2147483648
  %725 = xla_tuple %v724
  %s726 = scalar_lea.vmem %s1, 840
  %727 = vst [vmem:[%s726] sm:$0xff] %v724
  %s728 = scalar_lea.vmem %s0, 872
  %v729 = vld [vmem:[%s728] sm:$0xff]
  %730 = xla_tuple %v729
  %731 = xla_tuple %730
  %v732 = vxor.u32 %v729, 2147483648
  %733 = xla_tuple %v732
  %s734 = scalar_lea.vmem %s1, 872
  %735 = vst [vmem:[%s734] sm:$0xff] %v732
  %s736 = scalar_lea.vmem %s0, 904
  %v737 = vld [vmem:[%s736] sm:$0xff]
  %738 = xla_tuple %v737
  %739 = xla_tuple %738
  %v740 = vxor.u32 %v737, 2147483648
  %741 = xla_tuple %v740
  %s742 = scalar_lea.vmem %s1, 904
  %743 = vst [vmem:[%s742] sm:$0xff] %v740
  %s744 = scalar_lea.vmem %s0, 936
  %v745 = vld [vmem:[%s744] sm:$0xff]
  %746 = xla_tuple %v745
  %747 = xla_tuple %746
  %v748 = vxor.u32 %v745, 2147483648
  %749 = xla_tuple %v748
  %s750 = scalar_lea.vmem %s1, 936
  %751 = vst [vmem:[%s750] sm:$0xff] %v748
  %s752 = scalar_lea.vmem %s0, 968
  %v753 = vld [vmem:[%s752] sm:$0xff]
  %754 = xla_tuple %v753
  %755 = xla_tuple %754
  %v756 = vxor.u32 %v753, 2147483648
  %757 = xla_tuple %v756
  %s758 = scalar_lea.vmem %s1, 968
  %759 = vst [vmem:[%s758] sm:$0xff] %v756
  %s760 = scalar_lea.vmem %s0, 1000
  %v761 = vld [vmem:[%s760] sm:$0xff]
  %762 = xla_tuple %v761
  %763 = xla_tuple %762
  %v764 = vxor.u32 %v761, 2147483648
  %765 = xla_tuple %v764
  %s766 = scalar_lea.vmem %s1, 1000
  %767 = vst [vmem:[%s766] sm:$0xff] %v764
  %s768 = scalar_lea.vmem %s0, 1032
  %v769 = vld [vmem:[%s768] sm:$0xff]
  %770 = xla_tuple %v769
  %771 = xla_tuple %770
  %v772 = vxor.u32 %v769, 2147483648
  %773 = xla_tuple %v772
  %s774 = scalar_lea.vmem %s1, 1032
  %775 = vst [vmem:[%s774] sm:$0xff] %v772
  %s776 = scalar_lea.vmem %s0, 1064
  %v777 = vld [vmem:[%s776] sm:$0xff]
  %778 = xla_tuple %v777
  %779 = xla_tuple %778
  %v780 = vxor.u32 %v777, 2147483648
  %781 = xla_tuple %v780
  %s782 = scalar_lea.vmem %s1, 1064
  %783 = vst [vmem:[%s782] sm:$0xff] %v780
  %s784 = scalar_lea.vmem %s0, 1096
  %v785 = vld [vmem:[%s784] sm:$0xff]
  %786 = xla_tuple %v785
  %787 = xla_tuple %786
  %v788 = vxor.u32 %v785, 2147483648
  %789 = xla_tuple %v788
  %s790 = scalar_lea.vmem %s1, 1096
  %791 = vst [vmem:[%s790] sm:$0xff] %v788
  %s792 = scalar_lea.vmem %s0, 1128
  %v793 = vld [vmem:[%s792] sm:$0xff]
  %794 = xla_tuple %v793
  %795 = xla_tuple %794
  %v796 = vxor.u32 %v793, 2147483648
  %797 = xla_tuple %v796
  %s798 = scalar_lea.vmem %s1, 1128
  %799 = vst [vmem:[%s798] sm:$0xff] %v796
  %s800 = scalar_lea.vmem %s0, 1160
  %v801 = vld [vmem:[%s800] sm:$0xff]
  %802 = xla_tuple %v801
  %803 = xla_tuple %802
  %v804 = vxor.u32 %v801, 2147483648
  %805 = xla_tuple %v804
  %s806 = scalar_lea.vmem %s1, 1160
  %807 = vst [vmem:[%s806] sm:$0xff] %v804
  %s808 = scalar_lea.vmem %s0, 1192
  %v809 = vld [vmem:[%s808] sm:$0xff]
  %810 = xla_tuple %v809
  %811 = xla_tuple %810
  %v812 = vxor.u32 %v809, 2147483648
  %813 = xla_tuple %v812
  %s814 = scalar_lea.vmem %s1, 1192
  %815 = vst [vmem:[%s814] sm:$0xff] %v812
  %s816 = scalar_lea.vmem %s0, 1224
  %v817 = vld [vmem:[%s816] sm:$0xff]
  %818 = xla_tuple %v817
  %819 = xla_tuple %818
  %v820 = vxor.u32 %v817, 2147483648
  %821 = xla_tuple %v820
  %s822 = scalar_lea.vmem %s1, 1224
  %823 = vst [vmem:[%s822] sm:$0xff] %v820
  %s824 = scalar_lea.vmem %s0, 1256
  %v825 = vld [vmem:[%s824] sm:$0xff]
  %826 = xla_tuple %v825
  %827 = xla_tuple %826
  %v828 = vxor.u32 %v825, 2147483648
  %829 = xla_tuple %v828
  %s830 = scalar_lea.vmem %s1, 1256
  %831 = vst [vmem:[%s830] sm:$0xff] %v828
  %s832 = scalar_lea.vmem %s0, 1288
  %v833 = vld [vmem:[%s832] sm:$0xff]
  %834 = xla_tuple %v833
  %835 = xla_tuple %834
  %v836 = vxor.u32 %v833, 2147483648
  %837 = xla_tuple %v836
  %s838 = scalar_lea.vmem %s1, 1288
  %839 = vst [vmem:[%s838] sm:$0xff] %v836
  %s840 = scalar_lea.vmem %s0, 1320
  %v841 = vld [vmem:[%s840] sm:$0xff]
  %842 = xla_tuple %v841
  %843 = xla_tuple %842
  %v844 = vxor.u32 %v841, 2147483648
  %845 = xla_tuple %v844
  %s846 = scalar_lea.vmem %s1, 1320
  %847 = vst [vmem:[%s846] sm:$0xff] %v844
  %s848 = scalar_lea.vmem %s0, 1352
  %v849 = vld [vmem:[%s848] sm:$0xff]
  %850 = xla_tuple %v849
  %851 = xla_tuple %850
  %v852 = vxor.u32 %v849, 2147483648
  %853 = xla_tuple %v852
  %s854 = scalar_lea.vmem %s1, 1352
  %855 = vst [vmem:[%s854] sm:$0xff] %v852
  %s856 = scalar_lea.vmem %s0, 1384
  %v857 = vld [vmem:[%s856] sm:$0xff]
  %858 = xla_tuple %v857
  %859 = xla_tuple %858
  %v860 = vxor.u32 %v857, 2147483648
  %861 = xla_tuple %v860
  %s862 = scalar_lea.vmem %s1, 1384
  %863 = vst [vmem:[%s862] sm:$0xff] %v860
  %s864 = scalar_lea.vmem %s0, 1416
  %v865 = vld [vmem:[%s864] sm:$0xff]
  %866 = xla_tuple %v865
  %867 = xla_tuple %866
  %v868 = vxor.u32 %v865, 2147483648
  %869 = xla_tuple %v868
  %s870 = scalar_lea.vmem %s1, 1416
  %871 = vst [vmem:[%s870] sm:$0xff] %v868
  %s872 = scalar_lea.vmem %s0, 1448
  %v873 = vld [vmem:[%s872] sm:$0xff]
  %874 = xla_tuple %v873
  %875 = xla_tuple %874
  %v876 = vxor.u32 %v873, 2147483648
  %877 = xla_tuple %v876
  %s878 = scalar_lea.vmem %s1, 1448
  %879 = vst [vmem:[%s878] sm:$0xff] %v876
  %s880 = scalar_lea.vmem %s0, 1480
  %v881 = vld [vmem:[%s880] sm:$0xff]
  %882 = xla_tuple %v881
  %883 = xla_tuple %882
  %v884 = vxor.u32 %v881, 2147483648
  %885 = xla_tuple %v884
  %s886 = scalar_lea.vmem %s1, 1480
  %887 = vst [vmem:[%s886] sm:$0xff] %v884
  %s888 = scalar_lea.vmem %s0, 1512
  %v889 = vld [vmem:[%s888] sm:$0xff]
  %890 = xla_tuple %v889
  %891 = xla_tuple %890
  %v892 = vxor.u32 %v889, 2147483648
  %893 = xla_tuple %v892
  %s894 = scalar_lea.vmem %s1, 1512
  %895 = vst [vmem:[%s894] sm:$0xff] %v892
  %s896 = scalar_lea.vmem %s0, 1544
  %v897 = vld [vmem:[%s896] sm:$0xff]
  %898 = xla_tuple %v897
  %899 = xla_tuple %898
  %v900 = vxor.u32 %v897, 2147483648
  %901 = xla_tuple %v900
  %s902 = scalar_lea.vmem %s1, 1544
  %903 = vst [vmem:[%s902] sm:$0xff] %v900
  %s904 = scalar_lea.vmem %s0, 1576
  %v905 = vld [vmem:[%s904] sm:$0xff]
  %906 = xla_tuple %v905
  %907 = xla_tuple %906
  %v908 = vxor.u32 %v905, 2147483648
  %909 = xla_tuple %v908
  %s910 = scalar_lea.vmem %s1, 1576
  %911 = vst [vmem:[%s910] sm:$0xff] %v908
  %s912 = scalar_lea.vmem %s0, 1608
  %v913 = vld [vmem:[%s912] sm:$0xff]
  %914 = xla_tuple %v913
  %915 = xla_tuple %914
  %v916 = vxor.u32 %v913, 2147483648
  %917 = xla_tuple %v916
  %s918 = scalar_lea.vmem %s1, 1608
  %919 = vst [vmem:[%s918] sm:$0xff] %v916
  %s920 = scalar_lea.vmem %s0, 1640
  %v921 = vld [vmem:[%s920] sm:$0xff]
  %922 = xla_tuple %v921
  %923 = xla_tuple %922
  %v924 = vxor.u32 %v921, 2147483648
  %925 = xla_tuple %v924
  %s926 = scalar_lea.vmem %s1, 1640
  %927 = vst [vmem:[%s926] sm:$0xff] %v924
  %s928 = scalar_lea.vmem %s0, 1672
  %v929 = vld [vmem:[%s928] sm:$0xff]
  %930 = xla_tuple %v929
  %931 = xla_tuple %930
  %v932 = vxor.u32 %v929, 2147483648
  %933 = xla_tuple %v932
  %s934 = scalar_lea.vmem %s1, 1672
  %935 = vst [vmem:[%s934] sm:$0xff] %v932
  %s936 = scalar_lea.vmem %s0, 1704
  %v937 = vld [vmem:[%s936] sm:$0xff]
  %938 = xla_tuple %v937
  %939 = xla_tuple %938
  %v940 = vxor.u32 %v937, 2147483648
  %941 = xla_tuple %v940
  %s942 = scalar_lea.vmem %s1, 1704
  %943 = vst [vmem:[%s942] sm:$0xff] %v940
  %s944 = scalar_lea.vmem %s0, 1736
  %v945 = vld [vmem:[%s944] sm:$0xff]
  %946 = xla_tuple %v945
  %947 = xla_tuple %946
  %v948 = vxor.u32 %v945, 2147483648
  %949 = xla_tuple %v948
  %s950 = scalar_lea.vmem %s1, 1736
  %951 = vst [vmem:[%s950] sm:$0xff] %v948
  %s952 = scalar_lea.vmem %s0, 1768
  %v953 = vld [vmem:[%s952] sm:$0xff]
  %954 = xla_tuple %v953
  %955 = xla_tuple %954
  %v956 = vxor.u32 %v953, 2147483648
  %957 = xla_tuple %v956
  %s958 = scalar_lea.vmem %s1, 1768
  %959 = vst [vmem:[%s958] sm:$0xff] %v956
  %s960 = scalar_lea.vmem %s0, 1800
  %v961 = vld [vmem:[%s960] sm:$0xff]
  %962 = xla_tuple %v961
  %963 = xla_tuple %962
  %v964 = vxor.u32 %v961, 2147483648
  %965 = xla_tuple %v964
  %s966 = scalar_lea.vmem %s1, 1800
  %967 = vst [vmem:[%s966] sm:$0xff] %v964
  %s968 = scalar_lea.vmem %s0, 1832
  %v969 = vld [vmem:[%s968] sm:$0xff]
  %970 = xla_tuple %v969
  %971 = xla_tuple %970
  %v972 = vxor.u32 %v969, 2147483648
  %973 = xla_tuple %v972
  %s974 = scalar_lea.vmem %s1, 1832
  %975 = vst [vmem:[%s974] sm:$0xff] %v972
  %s976 = scalar_lea.vmem %s0, 1864
  %v977 = vld [vmem:[%s976] sm:$0xff]
  %978 = xla_tuple %v977
  %979 = xla_tuple %978
  %v980 = vxor.u32 %v977, 2147483648
  %981 = xla_tuple %v980
  %s982 = scalar_lea.vmem %s1, 1864
  %983 = vst [vmem:[%s982] sm:$0xff] %v980
  %s984 = scalar_lea.vmem %s0, 1896
  %v985 = vld [vmem:[%s984] sm:$0xff]
  %986 = xla_tuple %v985
  %987 = xla_tuple %986
  %v988 = vxor.u32 %v985, 2147483648
  %989 = xla_tuple %v988
  %s990 = scalar_lea.vmem %s1, 1896
  %991 = vst [vmem:[%s990] sm:$0xff] %v988
  %s992 = scalar_lea.vmem %s0, 1928
  %v993 = vld [vmem:[%s992] sm:$0xff]
  %994 = xla_tuple %v993
  %995 = xla_tuple %994
  %v996 = vxor.u32 %v993, 2147483648
  %997 = xla_tuple %v996
  %s998 = scalar_lea.vmem %s1, 1928
  %999 = vst [vmem:[%s998] sm:$0xff] %v996
  %s1000 = scalar_lea.vmem %s0, 1960
  %v1001 = vld [vmem:[%s1000] sm:$0xff]
  %1002 = xla_tuple %v1001
  %1003 = xla_tuple %1002
  %v1004 = vxor.u32 %v1001, 2147483648
  %1005 = xla_tuple %v1004
  %s1006 = scalar_lea.vmem %s1, 1960
  %1007 = vst [vmem:[%s1006] sm:$0xff] %v1004
  %s1008 = scalar_lea.vmem %s0, 1992
  %v1009 = vld [vmem:[%s1008] sm:$0xff]
  %1010 = xla_tuple %v1009
  %1011 = xla_tuple %1010
  %v1012 = vxor.u32 %v1009, 2147483648
  %1013 = xla_tuple %v1012
  %s1014 = scalar_lea.vmem %s1, 1992
  %1015 = vst [vmem:[%s1014] sm:$0xff] %v1012
  %s1016 = scalar_lea.vmem %s0, 2024
  %v1017 = vld [vmem:[%s1016] sm:$0xff]
  %1018 = xla_tuple %v1017
  %1019 = xla_tuple %1018
  %v1020 = vxor.u32 %v1017, 2147483648
  %1021 = xla_tuple %v1020
  %s1022 = scalar_lea.vmem %s1, 2024
  %1023 = vst [vmem:[%s1022] sm:$0xff] %v1020
  %s1024 = scalar_lea.vmem %s0, 16
  %v1025 = vld [vmem:[%s1024] sm:$0xff]
  %1026 = xla_tuple %v1025
  %1027 = xla_tuple %1026
  %v1028 = vxor.u32 %v1025, 2147483648
  %1029 = xla_tuple %v1028
  %s1030 = scalar_lea.vmem %s1, 16
  %1031 = vst [vmem:[%s1030] sm:$0xff] %v1028
  %s1032 = scalar_lea.vmem %s0, 48
  %v1033 = vld [vmem:[%s1032] sm:$0xff]
  %1034 = xla_tuple %v1033
  %1035 = xla_tuple %1034
  %v1036 = vxor.u32 %v1033, 2147483648
  %1037 = xla_tuple %v1036
  %s1038 = scalar_lea.vmem %s1, 48
  %1039 = vst [vmem:[%s1038] sm:$0xff] %v1036
  %s1040 = scalar_lea.vmem %s0, 80
  %v1041 = vld [vmem:[%s1040] sm:$0xff]
  %1042 = xla_tuple %v1041
  %1043 = xla_tuple %1042
  %v1044 = vxor.u32 %v1041, 2147483648
  %1045 = xla_tuple %v1044
  %s1046 = scalar_lea.vmem %s1, 80
  %1047 = vst [vmem:[%s1046] sm:$0xff] %v1044
  %s1048 = scalar_lea.vmem %s0, 112
  %v1049 = vld [vmem:[%s1048] sm:$0xff]
  %1050 = xla_tuple %v1049
  %1051 = xla_tuple %1050
  %v1052 = vxor.u32 %v1049, 2147483648
  %1053 = xla_tuple %v1052
  %s1054 = scalar_lea.vmem %s1, 112
  %1055 = vst [vmem:[%s1054] sm:$0xff] %v1052
  %s1056 = scalar_lea.vmem %s0, 144
  %v1057 = vld [vmem:[%s1056] sm:$0xff]
  %1058 = xla_tuple %v1057
  %1059 = xla_tuple %1058
  %v1060 = vxor.u32 %v1057, 2147483648
  %1061 = xla_tuple %v1060
  %s1062 = scalar_lea.vmem %s1, 144
  %1063 = vst [vmem:[%s1062] sm:$0xff] %v1060
  %s1064 = scalar_lea.vmem %s0, 176
  %v1065 = vld [vmem:[%s1064] sm:$0xff]
  %1066 = xla_tuple %v1065
  %1067 = xla_tuple %1066
  %v1068 = vxor.u32 %v1065, 2147483648
  %1069 = xla_tuple %v1068
  %s1070 = scalar_lea.vmem %s1, 176
  %1071 = vst [vmem:[%s1070] sm:$0xff] %v1068
  %s1072 = scalar_lea.vmem %s0, 208
  %v1073 = vld [vmem:[%s1072] sm:$0xff]
  %1074 = xla_tuple %v1073
  %1075 = xla_tuple %1074
  %v1076 = vxor.u32 %v1073, 2147483648
  %1077 = xla_tuple %v1076
  %s1078 = scalar_lea.vmem %s1, 208
  %1079 = vst [vmem:[%s1078] sm:$0xff] %v1076
  %s1080 = scalar_lea.vmem %s0, 240
  %v1081 = vld [vmem:[%s1080] sm:$0xff]
  %1082 = xla_tuple %v1081
  %1083 = xla_tuple %1082
  %v1084 = vxor.u32 %v1081, 2147483648
  %1085 = xla_tuple %v1084
  %s1086 = scalar_lea.vmem %s1, 240
  %1087 = vst [vmem:[%s1086] sm:$0xff] %v1084
  %s1088 = scalar_lea.vmem %s0, 272
  %v1089 = vld [vmem:[%s1088] sm:$0xff]
  %1090 = xla_tuple %v1089
  %1091 = xla_tuple %1090
  %v1092 = vxor.u32 %v1089, 2147483648
  %1093 = xla_tuple %v1092
  %s1094 = scalar_lea.vmem %s1, 272
  %1095 = vst [vmem:[%s1094] sm:$0xff] %v1092
  %s1096 = scalar_lea.vmem %s0, 304
  %v1097 = vld [vmem:[%s1096] sm:$0xff]
  %1098 = xla_tuple %v1097
  %1099 = xla_tuple %1098
  %v1100 = vxor.u32 %v1097, 2147483648
  %1101 = xla_tuple %v1100
  %s1102 = scalar_lea.vmem %s1, 304
  %1103 = vst [vmem:[%s1102] sm:$0xff] %v1100
  %s1104 = scalar_lea.vmem %s0, 336
  %v1105 = vld [vmem:[%s1104] sm:$0xff]
  %1106 = xla_tuple %v1105
  %1107 = xla_tuple %1106
  %v1108 = vxor.u32 %v1105, 2147483648
  %1109 = xla_tuple %v1108
  %s1110 = scalar_lea.vmem %s1, 336
  %1111 = vst [vmem:[%s1110] sm:$0xff] %v1108
  %s1112 = scalar_lea.vmem %s0, 368
  %v1113 = vld [vmem:[%s1112] sm:$0xff]
  %1114 = xla_tuple %v1113
  %1115 = xla_tuple %1114
  %v1116 = vxor.u32 %v1113, 2147483648
  %1117 = xla_tuple %v1116
  %s1118 = scalar_lea.vmem %s1, 368
  %1119 = vst [vmem:[%s1118] sm:$0xff] %v1116
  %s1120 = scalar_lea.vmem %s0, 400
  %v1121 = vld [vmem:[%s1120] sm:$0xff]
  %1122 = xla_tuple %v1121
  %1123 = xla_tuple %1122
  %v1124 = vxor.u32 %v1121, 2147483648
  %1125 = xla_tuple %v1124
  %s1126 = scalar_lea.vmem %s1, 400
  %1127 = vst [vmem:[%s1126] sm:$0xff] %v1124
  %s1128 = scalar_lea.vmem %s0, 432
  %v1129 = vld [vmem:[%s1128] sm:$0xff]
  %1130 = xla_tuple %v1129
  %1131 = xla_tuple %1130
  %v1132 = vxor.u32 %v1129, 2147483648
  %1133 = xla_tuple %v1132
  %s1134 = scalar_lea.vmem %s1, 432
  %1135 = vst [vmem:[%s1134] sm:$0xff] %v1132
  %s1136 = scalar_lea.vmem %s0, 464
  %v1137 = vld [vmem:[%s1136] sm:$0xff]
  %1138 = xla_tuple %v1137
  %1139 = xla_tuple %1138
  %v1140 = vxor.u32 %v1137, 2147483648
  %1141 = xla_tuple %v1140
  %s1142 = scalar_lea.vmem %s1, 464
  %1143 = vst [vmem:[%s1142] sm:$0xff] %v1140
  %s1144 = scalar_lea.vmem %s0, 496
  %v1145 = vld [vmem:[%s1144] sm:$0xff]
  %1146 = xla_tuple %v1145
  %1147 = xla_tuple %1146
  %v1148 = vxor.u32 %v1145, 2147483648
  %1149 = xla_tuple %v1148
  %s1150 = scalar_lea.vmem %s1, 496
  %1151 = vst [vmem:[%s1150] sm:$0xff] %v1148
  %s1152 = scalar_lea.vmem %s0, 528
  %v1153 = vld [vmem:[%s1152] sm:$0xff]
  %1154 = xla_tuple %v1153
  %1155 = xla_tuple %1154
  %v1156 = vxor.u32 %v1153, 2147483648
  %1157 = xla_tuple %v1156
  %s1158 = scalar_lea.vmem %s1, 528
  %1159 = vst [vmem:[%s1158] sm:$0xff] %v1156
  %s1160 = scalar_lea.vmem %s0, 560
  %v1161 = vld [vmem:[%s1160] sm:$0xff]
  %1162 = xla_tuple %v1161
  %1163 = xla_tuple %1162
  %v1164 = vxor.u32 %v1161, 2147483648
  %1165 = xla_tuple %v1164
  %s1166 = scalar_lea.vmem %s1, 560
  %1167 = vst [vmem:[%s1166] sm:$0xff] %v1164
  %s1168 = scalar_lea.vmem %s0, 592
  %v1169 = vld [vmem:[%s1168] sm:$0xff]
  %1170 = xla_tuple %v1169
  %1171 = xla_tuple %1170
  %v1172 = vxor.u32 %v1169, 2147483648
  %1173 = xla_tuple %v1172
  %s1174 = scalar_lea.vmem %s1, 592
  %1175 = vst [vmem:[%s1174] sm:$0xff] %v1172
  %s1176 = scalar_lea.vmem %s0, 624
  %v1177 = vld [vmem:[%s1176] sm:$0xff]
  %1178 = xla_tuple %v1177
  %1179 = xla_tuple %1178
  %v1180 = vxor.u32 %v1177, 2147483648
  %1181 = xla_tuple %v1180
  %s1182 = scalar_lea.vmem %s1, 624
  %1183 = vst [vmem:[%s1182] sm:$0xff] %v1180
  %s1184 = scalar_lea.vmem %s0, 656
  %v1185 = vld [vmem:[%s1184] sm:$0xff]
  %1186 = xla_tuple %v1185
  %1187 = xla_tuple %1186
  %v1188 = vxor.u32 %v1185, 2147483648
  %1189 = xla_tuple %v1188
  %s1190 = scalar_lea.vmem %s1, 656
  %1191 = vst [vmem:[%s1190] sm:$0xff] %v1188
  %s1192 = scalar_lea.vmem %s0, 688
  %v1193 = vld [vmem:[%s1192] sm:$0xff]
  %1194 = xla_tuple %v1193
  %1195 = xla_tuple %1194
  %v1196 = vxor.u32 %v1193, 2147483648
  %1197 = xla_tuple %v1196
  %s1198 = scalar_lea.vmem %s1, 688
  %1199 = vst [vmem:[%s1198] sm:$0xff] %v1196
  %s1200 = scalar_lea.vmem %s0, 720
  %v1201 = vld [vmem:[%s1200] sm:$0xff]
  %1202 = xla_tuple %v1201
  %1203 = xla_tuple %1202
  %v1204 = vxor.u32 %v1201, 2147483648
  %1205 = xla_tuple %v1204
  %s1206 = scalar_lea.vmem %s1, 720
  %1207 = vst [vmem:[%s1206] sm:$0xff] %v1204
  %s1208 = scalar_lea.vmem %s0, 752
  %v1209 = vld [vmem:[%s1208] sm:$0xff]
  %1210 = xla_tuple %v1209
  %1211 = xla_tuple %1210
  %v1212 = vxor.u32 %v1209, 2147483648
  %1213 = xla_tuple %v1212
  %s1214 = scalar_lea.vmem %s1, 752
  %1215 = vst [vmem:[%s1214] sm:$0xff] %v1212
  %s1216 = scalar_lea.vmem %s0, 784
  %v1217 = vld [vmem:[%s1216] sm:$0xff]
  %1218 = xla_tuple %v1217
  %1219 = xla_tuple %1218
  %v1220 = vxor.u32 %v1217, 2147483648
  %1221 = xla_tuple %v1220
  %s1222 = scalar_lea.vmem %s1, 784
  %1223 = vst [vmem:[%s1222] sm:$0xff] %v1220
  %s1224 = scalar_lea.vmem %s0, 816
  %v1225 = vld [vmem:[%s1224] sm:$0xff]
  %1226 = xla_tuple %v1225
  %1227 = xla_tuple %1226
  %v1228 = vxor.u32 %v1225, 2147483648
  %1229 = xla_tuple %v1228
  %s1230 = scalar_lea.vmem %s1, 816
  %1231 = vst [vmem:[%s1230] sm:$0xff] %v1228
  %s1232 = scalar_lea.vmem %s0, 848
  %v1233 = vld [vmem:[%s1232] sm:$0xff]
  %1234 = xla_tuple %v1233
  %1235 = xla_tuple %1234
  %v1236 = vxor.u32 %v1233, 2147483648
  %1237 = xla_tuple %v1236
  %s1238 = scalar_lea.vmem %s1, 848
  %1239 = vst [vmem:[%s1238] sm:$0xff] %v1236
  %s1240 = scalar_lea.vmem %s0, 880
  %v1241 = vld [vmem:[%s1240] sm:$0xff]
  %1242 = xla_tuple %v1241
  %1243 = xla_tuple %1242
  %v1244 = vxor.u32 %v1241, 2147483648
  %1245 = xla_tuple %v1244
  %s1246 = scalar_lea.vmem %s1, 880
  %1247 = vst [vmem:[%s1246] sm:$0xff] %v1244
  %s1248 = scalar_lea.vmem %s0, 912
  %v1249 = vld [vmem:[%s1248] sm:$0xff]
  %1250 = xla_tuple %v1249
  %1251 = xla_tuple %1250
  %v1252 = vxor.u32 %v1249, 2147483648
  %1253 = xla_tuple %v1252
  %s1254 = scalar_lea.vmem %s1, 912
  %1255 = vst [vmem:[%s1254] sm:$0xff] %v1252
  %s1256 = scalar_lea.vmem %s0, 944
  %v1257 = vld [vmem:[%s1256] sm:$0xff]
  %1258 = xla_tuple %v1257
  %1259 = xla_tuple %1258
  %v1260 = vxor.u32 %v1257, 2147483648
  %1261 = xla_tuple %v1260
  %s1262 = scalar_lea.vmem %s1, 944
  %1263 = vst [vmem:[%s1262] sm:$0xff] %v1260
  %s1264 = scalar_lea.vmem %s0, 976
  %v1265 = vld [vmem:[%s1264] sm:$0xff]
  %1266 = xla_tuple %v1265
  %1267 = xla_tuple %1266
  %v1268 = vxor.u32 %v1265, 2147483648
  %1269 = xla_tuple %v1268
  %s1270 = scalar_lea.vmem %s1, 976
  %1271 = vst [vmem:[%s1270] sm:$0xff] %v1268
  %s1272 = scalar_lea.vmem %s0, 1008
  %v1273 = vld [vmem:[%s1272] sm:$0xff]
  %1274 = xla_tuple %v1273
  %1275 = xla_tuple %1274
  %v1276 = vxor.u32 %v1273, 2147483648
  %1277 = xla_tuple %v1276
  %s1278 = scalar_lea.vmem %s1, 1008
  %1279 = vst [vmem:[%s1278] sm:$0xff] %v1276
  %s1280 = scalar_lea.vmem %s0, 1040
  %v1281 = vld [vmem:[%s1280] sm:$0xff]
  %1282 = xla_tuple %v1281
  %1283 = xla_tuple %1282
  %v1284 = vxor.u32 %v1281, 2147483648
  %1285 = xla_tuple %v1284
  %s1286 = scalar_lea.vmem %s1, 1040
  %1287 = vst [vmem:[%s1286] sm:$0xff] %v1284
  %s1288 = scalar_lea.vmem %s0, 1072
  %v1289 = vld [vmem:[%s1288] sm:$0xff]
  %1290 = xla_tuple %v1289
  %1291 = xla_tuple %1290
  %v1292 = vxor.u32 %v1289, 2147483648
  %1293 = xla_tuple %v1292
  %s1294 = scalar_lea.vmem %s1, 1072
  %1295 = vst [vmem:[%s1294] sm:$0xff] %v1292
  %s1296 = scalar_lea.vmem %s0, 1104
  %v1297 = vld [vmem:[%s1296] sm:$0xff]
  %1298 = xla_tuple %v1297
  %1299 = xla_tuple %1298
  %v1300 = vxor.u32 %v1297, 2147483648
  %1301 = xla_tuple %v1300
  %s1302 = scalar_lea.vmem %s1, 1104
  %1303 = vst [vmem:[%s1302] sm:$0xff] %v1300
  %s1304 = scalar_lea.vmem %s0, 1136
  %v1305 = vld [vmem:[%s1304] sm:$0xff]
  %1306 = xla_tuple %v1305
  %1307 = xla_tuple %1306
  %v1308 = vxor.u32 %v1305, 2147483648
  %1309 = xla_tuple %v1308
  %s1310 = scalar_lea.vmem %s1, 1136
  %1311 = vst [vmem:[%s1310] sm:$0xff] %v1308
  %s1312 = scalar_lea.vmem %s0, 1168
  %v1313 = vld [vmem:[%s1312] sm:$0xff]
  %1314 = xla_tuple %v1313
  %1315 = xla_tuple %1314
  %v1316 = vxor.u32 %v1313, 2147483648
  %1317 = xla_tuple %v1316
  %s1318 = scalar_lea.vmem %s1, 1168
  %1319 = vst [vmem:[%s1318] sm:$0xff] %v1316
  %s1320 = scalar_lea.vmem %s0, 1200
  %v1321 = vld [vmem:[%s1320] sm:$0xff]
  %1322 = xla_tuple %v1321
  %1323 = xla_tuple %1322
  %v1324 = vxor.u32 %v1321, 2147483648
  %1325 = xla_tuple %v1324
  %s1326 = scalar_lea.vmem %s1, 1200
  %1327 = vst [vmem:[%s1326] sm:$0xff] %v1324
  %s1328 = scalar_lea.vmem %s0, 1232
  %v1329 = vld [vmem:[%s1328] sm:$0xff]
  %1330 = xla_tuple %v1329
  %1331 = xla_tuple %1330
  %v1332 = vxor.u32 %v1329, 2147483648
  %1333 = xla_tuple %v1332
  %s1334 = scalar_lea.vmem %s1, 1232
  %1335 = vst [vmem:[%s1334] sm:$0xff] %v1332
  %s1336 = scalar_lea.vmem %s0, 1264
  %v1337 = vld [vmem:[%s1336] sm:$0xff]
  %1338 = xla_tuple %v1337
  %1339 = xla_tuple %1338
  %v1340 = vxor.u32 %v1337, 2147483648
  %1341 = xla_tuple %v1340
  %s1342 = scalar_lea.vmem %s1, 1264
  %1343 = vst [vmem:[%s1342] sm:$0xff] %v1340
  %s1344 = scalar_lea.vmem %s0, 1296
  %v1345 = vld [vmem:[%s1344] sm:$0xff]
  %1346 = xla_tuple %v1345
  %1347 = xla_tuple %1346
  %v1348 = vxor.u32 %v1345, 2147483648
  %1349 = xla_tuple %v1348
  %s1350 = scalar_lea.vmem %s1, 1296
  %1351 = vst [vmem:[%s1350] sm:$0xff] %v1348
  %s1352 = scalar_lea.vmem %s0, 1328
  %v1353 = vld [vmem:[%s1352] sm:$0xff]
  %1354 = xla_tuple %v1353
  %1355 = xla_tuple %1354
  %v1356 = vxor.u32 %v1353, 2147483648
  %1357 = xla_tuple %v1356
  %s1358 = scalar_lea.vmem %s1, 1328
  %1359 = vst [vmem:[%s1358] sm:$0xff] %v1356
  %s1360 = scalar_lea.vmem %s0, 1360
  %v1361 = vld [vmem:[%s1360] sm:$0xff]
  %1362 = xla_tuple %v1361
  %1363 = xla_tuple %1362
  %v1364 = vxor.u32 %v1361, 2147483648
  %1365 = xla_tuple %v1364
  %s1366 = scalar_lea.vmem %s1, 1360
  %1367 = vst [vmem:[%s1366] sm:$0xff] %v1364
  %s1368 = scalar_lea.vmem %s0, 1392
  %v1369 = vld [vmem:[%s1368] sm:$0xff]
  %1370 = xla_tuple %v1369
  %1371 = xla_tuple %1370
  %v1372 = vxor.u32 %v1369, 2147483648
  %1373 = xla_tuple %v1372
  %s1374 = scalar_lea.vmem %s1, 1392
  %1375 = vst [vmem:[%s1374] sm:$0xff] %v1372
  %s1376 = scalar_lea.vmem %s0, 1424
  %v1377 = vld [vmem:[%s1376] sm:$0xff]
  %1378 = xla_tuple %v1377
  %1379 = xla_tuple %1378
  %v1380 = vxor.u32 %v1377, 2147483648
  %1381 = xla_tuple %v1380
  %s1382 = scalar_lea.vmem %s1, 1424
  %1383 = vst [vmem:[%s1382] sm:$0xff] %v1380
  %s1384 = scalar_lea.vmem %s0, 1456
  %v1385 = vld [vmem:[%s1384] sm:$0xff]
  %1386 = xla_tuple %v1385
  %1387 = xla_tuple %1386
  %v1388 = vxor.u32 %v1385, 2147483648
  %1389 = xla_tuple %v1388
  %s1390 = scalar_lea.vmem %s1, 1456
  %1391 = vst [vmem:[%s1390] sm:$0xff] %v1388
  %s1392 = scalar_lea.vmem %s0, 1488
  %v1393 = vld [vmem:[%s1392] sm:$0xff]
  %1394 = xla_tuple %v1393
  %1395 = xla_tuple %1394
  %v1396 = vxor.u32 %v1393, 2147483648
  %1397 = xla_tuple %v1396
  %s1398 = scalar_lea.vmem %s1, 1488
  %1399 = vst [vmem:[%s1398] sm:$0xff] %v1396
  %s1400 = scalar_lea.vmem %s0, 1520
  %v1401 = vld [vmem:[%s1400] sm:$0xff]
  %1402 = xla_tuple %v1401
  %1403 = xla_tuple %1402
  %v1404 = vxor.u32 %v1401, 2147483648
  %1405 = xla_tuple %v1404
  %s1406 = scalar_lea.vmem %s1, 1520
  %1407 = vst [vmem:[%s1406] sm:$0xff] %v1404
  %s1408 = scalar_lea.vmem %s0, 1552
  %v1409 = vld [vmem:[%s1408] sm:$0xff]
  %1410 = xla_tuple %v1409
  %1411 = xla_tuple %1410
  %v1412 = vxor.u32 %v1409, 2147483648
  %1413 = xla_tuple %v1412
  %s1414 = scalar_lea.vmem %s1, 1552
  %1415 = vst [vmem:[%s1414] sm:$0xff] %v1412
  %s1416 = scalar_lea.vmem %s0, 1584
  %v1417 = vld [vmem:[%s1416] sm:$0xff]
  %1418 = xla_tuple %v1417
  %1419 = xla_tuple %1418
  %v1420 = vxor.u32 %v1417, 2147483648
  %1421 = xla_tuple %v1420
  %s1422 = scalar_lea.vmem %s1, 1584
  %1423 = vst [vmem:[%s1422] sm:$0xff] %v1420
  %s1424 = scalar_lea.vmem %s0, 1616
  %v1425 = vld [vmem:[%s1424] sm:$0xff]
  %1426 = xla_tuple %v1425
  %1427 = xla_tuple %1426
  %v1428 = vxor.u32 %v1425, 2147483648
  %1429 = xla_tuple %v1428
  %s1430 = scalar_lea.vmem %s1, 1616
  %1431 = vst [vmem:[%s1430] sm:$0xff] %v1428
  %s1432 = scalar_lea.vmem %s0, 1648
  %v1433 = vld [vmem:[%s1432] sm:$0xff]
  %1434 = xla_tuple %v1433
  %1435 = xla_tuple %1434
  %v1436 = vxor.u32 %v1433, 2147483648
  %1437 = xla_tuple %v1436
  %s1438 = scalar_lea.vmem %s1, 1648
  %1439 = vst [vmem:[%s1438] sm:$0xff] %v1436
  %s1440 = scalar_lea.vmem %s0, 1680
  %v1441 = vld [vmem:[%s1440] sm:$0xff]
  %1442 = xla_tuple %v1441
  %1443 = xla_tuple %1442
  %v1444 = vxor.u32 %v1441, 2147483648
  %1445 = xla_tuple %v1444
  %s1446 = scalar_lea.vmem %s1, 1680
  %1447 = vst [vmem:[%s1446] sm:$0xff] %v1444
  %s1448 = scalar_lea.vmem %s0, 1712
  %v1449 = vld [vmem:[%s1448] sm:$0xff]
  %1450 = xla_tuple %v1449
  %1451 = xla_tuple %1450
  %v1452 = vxor.u32 %v1449, 2147483648
  %1453 = xla_tuple %v1452
  %s1454 = scalar_lea.vmem %s1, 1712
  %1455 = vst [vmem:[%s1454] sm:$0xff] %v1452
  %s1456 = scalar_lea.vmem %s0, 1744
  %v1457 = vld [vmem:[%s1456] sm:$0xff]
  %1458 = xla_tuple %v1457
  %1459 = xla_tuple %1458
  %v1460 = vxor.u32 %v1457, 2147483648
  %1461 = xla_tuple %v1460
  %s1462 = scalar_lea.vmem %s1, 1744
  %1463 = vst [vmem:[%s1462] sm:$0xff] %v1460
  %s1464 = scalar_lea.vmem %s0, 1776
  %v1465 = vld [vmem:[%s1464] sm:$0xff]
  %1466 = xla_tuple %v1465
  %1467 = xla_tuple %1466
  %v1468 = vxor.u32 %v1465, 2147483648
  %1469 = xla_tuple %v1468
  %s1470 = scalar_lea.vmem %s1, 1776
  %1471 = vst [vmem:[%s1470] sm:$0xff] %v1468
  %s1472 = scalar_lea.vmem %s0, 1808
  %v1473 = vld [vmem:[%s1472] sm:$0xff]
  %1474 = xla_tuple %v1473
  %1475 = xla_tuple %1474
  %v1476 = vxor.u32 %v1473, 2147483648
  %1477 = xla_tuple %v1476
  %s1478 = scalar_lea.vmem %s1, 1808
  %1479 = vst [vmem:[%s1478] sm:$0xff] %v1476
  %s1480 = scalar_lea.vmem %s0, 1840
  %v1481 = vld [vmem:[%s1480] sm:$0xff]
  %1482 = xla_tuple %v1481
  %1483 = xla_tuple %1482
  %v1484 = vxor.u32 %v1481, 2147483648
  %1485 = xla_tuple %v1484
  %s1486 = scalar_lea.vmem %s1, 1840
  %1487 = vst [vmem:[%s1486] sm:$0xff] %v1484
  %s1488 = scalar_lea.vmem %s0, 1872
  %v1489 = vld [vmem:[%s1488] sm:$0xff]
  %1490 = xla_tuple %v1489
  %1491 = xla_tuple %1490
  %v1492 = vxor.u32 %v1489, 2147483648
  %1493 = xla_tuple %v1492
  %s1494 = scalar_lea.vmem %s1, 1872
  %1495 = vst [vmem:[%s1494] sm:$0xff] %v1492
  %s1496 = scalar_lea.vmem %s0, 1904
  %v1497 = vld [vmem:[%s1496] sm:$0xff]
  %1498 = xla_tuple %v1497
  %1499 = xla_tuple %1498
  %v1500 = vxor.u32 %v1497, 2147483648
  %1501 = xla_tuple %v1500
  %s1502 = scalar_lea.vmem %s1, 1904
  %1503 = vst [vmem:[%s1502] sm:$0xff] %v1500
  %s1504 = scalar_lea.vmem %s0, 1936
  %v1505 = vld [vmem:[%s1504] sm:$0xff]
  %1506 = xla_tuple %v1505
  %1507 = xla_tuple %1506
  %v1508 = vxor.u32 %v1505, 2147483648
  %1509 = xla_tuple %v1508
  %s1510 = scalar_lea.vmem %s1, 1936
  %1511 = vst [vmem:[%s1510] sm:$0xff] %v1508
  %s1512 = scalar_lea.vmem %s0, 1968
  %v1513 = vld [vmem:[%s1512] sm:$0xff]
  %1514 = xla_tuple %v1513
  %1515 = xla_tuple %1514
  %v1516 = vxor.u32 %v1513, 2147483648
  %1517 = xla_tuple %v1516
  %s1518 = scalar_lea.vmem %s1, 1968
  %1519 = vst [vmem:[%s1518] sm:$0xff] %v1516
  %s1520 = scalar_lea.vmem %s0, 2000
  %v1521 = vld [vmem:[%s1520] sm:$0xff]
  %1522 = xla_tuple %v1521
  %1523 = xla_tuple %1522
  %v1524 = vxor.u32 %v1521, 2147483648
  %1525 = xla_tuple %v1524
  %s1526 = scalar_lea.vmem %s1, 2000
  %1527 = vst [vmem:[%s1526] sm:$0xff] %v1524
  %s1528 = scalar_lea.vmem %s0, 2032
  %v1529 = vld [vmem:[%s1528] sm:$0xff]
  %1530 = xla_tuple %v1529
  %1531 = xla_tuple %1530
  %v1532 = vxor.u32 %v1529, 2147483648
  %1533 = xla_tuple %v1532
  %s1534 = scalar_lea.vmem %s1, 2032
  %1535 = vst [vmem:[%s1534] sm:$0xff] %v1532
  %s1536 = scalar_lea.vmem %s0, 24
  %v1537 = vld [vmem:[%s1536] sm:$0xff]
  %1538 = xla_tuple %v1537
  %1539 = xla_tuple %1538
  %v1540 = vxor.u32 %v1537, 2147483648
  %1541 = xla_tuple %v1540
  %s1542 = scalar_lea.vmem %s1, 24
  %1543 = vst [vmem:[%s1542] sm:$0xff] %v1540
  %s1544 = scalar_lea.vmem %s0, 56
  %v1545 = vld [vmem:[%s1544] sm:$0xff]
  %1546 = xla_tuple %v1545
  %1547 = xla_tuple %1546
  %v1548 = vxor.u32 %v1545, 2147483648
  %1549 = xla_tuple %v1548
  %s1550 = scalar_lea.vmem %s1, 56
  %1551 = vst [vmem:[%s1550] sm:$0xff] %v1548
  %s1552 = scalar_lea.vmem %s0, 88
  %v1553 = vld [vmem:[%s1552] sm:$0xff]
  %1554 = xla_tuple %v1553
  %1555 = xla_tuple %1554
  %v1556 = vxor.u32 %v1553, 2147483648
  %1557 = xla_tuple %v1556
  %s1558 = scalar_lea.vmem %s1, 88
  %1559 = vst [vmem:[%s1558] sm:$0xff] %v1556
  %s1560 = scalar_lea.vmem %s0, 120
  %v1561 = vld [vmem:[%s1560] sm:$0xff]
  %1562 = xla_tuple %v1561
  %1563 = xla_tuple %1562
  %v1564 = vxor.u32 %v1561, 2147483648
  %1565 = xla_tuple %v1564
  %s1566 = scalar_lea.vmem %s1, 120
  %1567 = vst [vmem:[%s1566] sm:$0xff] %v1564
  %s1568 = scalar_lea.vmem %s0, 152
  %v1569 = vld [vmem:[%s1568] sm:$0xff]
  %1570 = xla_tuple %v1569
  %1571 = xla_tuple %1570
  %v1572 = vxor.u32 %v1569, 2147483648
  %1573 = xla_tuple %v1572
  %s1574 = scalar_lea.vmem %s1, 152
  %1575 = vst [vmem:[%s1574] sm:$0xff] %v1572
  %s1576 = scalar_lea.vmem %s0, 184
  %v1577 = vld [vmem:[%s1576] sm:$0xff]
  %1578 = xla_tuple %v1577
  %1579 = xla_tuple %1578
  %v1580 = vxor.u32 %v1577, 2147483648
  %1581 = xla_tuple %v1580
  %s1582 = scalar_lea.vmem %s1, 184
  %1583 = vst [vmem:[%s1582] sm:$0xff] %v1580
  %s1584 = scalar_lea.vmem %s0, 216
  %v1585 = vld [vmem:[%s1584] sm:$0xff]
  %1586 = xla_tuple %v1585
  %1587 = xla_tuple %1586
  %v1588 = vxor.u32 %v1585, 2147483648
  %1589 = xla_tuple %v1588
  %s1590 = scalar_lea.vmem %s1, 216
  %1591 = vst [vmem:[%s1590] sm:$0xff] %v1588
  %s1592 = scalar_lea.vmem %s0, 248
  %v1593 = vld [vmem:[%s1592] sm:$0xff]
  %1594 = xla_tuple %v1593
  %1595 = xla_tuple %1594
  %v1596 = vxor.u32 %v1593, 2147483648
  %1597 = xla_tuple %v1596
  %s1598 = scalar_lea.vmem %s1, 248
  %1599 = vst [vmem:[%s1598] sm:$0xff] %v1596
  %s1600 = scalar_lea.vmem %s0, 280
  %v1601 = vld [vmem:[%s1600] sm:$0xff]
  %1602 = xla_tuple %v1601
  %1603 = xla_tuple %1602
  %v1604 = vxor.u32 %v1601, 2147483648
  %1605 = xla_tuple %v1604
  %s1606 = scalar_lea.vmem %s1, 280
  %1607 = vst [vmem:[%s1606] sm:$0xff] %v1604
  %s1608 = scalar_lea.vmem %s0, 312
  %v1609 = vld [vmem:[%s1608] sm:$0xff]
  %1610 = xla_tuple %v1609
  %1611 = xla_tuple %1610
  %v1612 = vxor.u32 %v1609, 2147483648
  %1613 = xla_tuple %v1612
  %s1614 = scalar_lea.vmem %s1, 312
  %1615 = vst [vmem:[%s1614] sm:$0xff] %v1612
  %s1616 = scalar_lea.vmem %s0, 344
  %v1617 = vld [vmem:[%s1616] sm:$0xff]
  %1618 = xla_tuple %v1617
  %1619 = xla_tuple %1618
  %v1620 = vxor.u32 %v1617, 2147483648
  %1621 = xla_tuple %v1620
  %s1622 = scalar_lea.vmem %s1, 344
  %1623 = vst [vmem:[%s1622] sm:$0xff] %v1620
  %s1624 = scalar_lea.vmem %s0, 376
  %v1625 = vld [vmem:[%s1624] sm:$0xff]
  %1626 = xla_tuple %v1625
  %1627 = xla_tuple %1626
  %v1628 = vxor.u32 %v1625, 2147483648
  %1629 = xla_tuple %v1628
  %s1630 = scalar_lea.vmem %s1, 376
  %1631 = vst [vmem:[%s1630] sm:$0xff] %v1628
  %s1632 = scalar_lea.vmem %s0, 408
  %v1633 = vld [vmem:[%s1632] sm:$0xff]
  %1634 = xla_tuple %v1633
  %1635 = xla_tuple %1634
  %v1636 = vxor.u32 %v1633, 2147483648
  %1637 = xla_tuple %v1636
  %s1638 = scalar_lea.vmem %s1, 408
  %1639 = vst [vmem:[%s1638] sm:$0xff] %v1636
  %s1640 = scalar_lea.vmem %s0, 440
  %v1641 = vld [vmem:[%s1640] sm:$0xff]
  %1642 = xla_tuple %v1641
  %1643 = xla_tuple %1642
  %v1644 = vxor.u32 %v1641, 2147483648
  %1645 = xla_tuple %v1644
  %s1646 = scalar_lea.vmem %s1, 440
  %1647 = vst [vmem:[%s1646] sm:$0xff] %v1644
  %s1648 = scalar_lea.vmem %s0, 472
  %v1649 = vld [vmem:[%s1648] sm:$0xff]
  %1650 = xla_tuple %v1649
  %1651 = xla_tuple %1650
  %v1652 = vxor.u32 %v1649, 2147483648
  %1653 = xla_tuple %v1652
  %s1654 = scalar_lea.vmem %s1, 472
  %1655 = vst [vmem:[%s1654] sm:$0xff] %v1652
  %s1656 = scalar_lea.vmem %s0, 504
  %v1657 = vld [vmem:[%s1656] sm:$0xff]
  %1658 = xla_tuple %v1657
  %1659 = xla_tuple %1658
  %v1660 = vxor.u32 %v1657, 2147483648
  %1661 = xla_tuple %v1660
  %s1662 = scalar_lea.vmem %s1, 504
  %1663 = vst [vmem:[%s1662] sm:$0xff] %v1660
  %s1664 = scalar_lea.vmem %s0, 536
  %v1665 = vld [vmem:[%s1664] sm:$0xff]
  %1666 = xla_tuple %v1665
  %1667 = xla_tuple %1666
  %v1668 = vxor.u32 %v1665, 2147483648
  %1669 = xla_tuple %v1668
  %s1670 = scalar_lea.vmem %s1, 536
  %1671 = vst [vmem:[%s1670] sm:$0xff] %v1668
  %s1672 = scalar_lea.vmem %s0, 568
  %v1673 = vld [vmem:[%s1672] sm:$0xff]
  %1674 = xla_tuple %v1673
  %1675 = xla_tuple %1674
  %v1676 = vxor.u32 %v1673, 2147483648
  %1677 = xla_tuple %v1676
  %s1678 = scalar_lea.vmem %s1, 568
  %1679 = vst [vmem:[%s1678] sm:$0xff] %v1676
  %s1680 = scalar_lea.vmem %s0, 600
  %v1681 = vld [vmem:[%s1680] sm:$0xff]
  %1682 = xla_tuple %v1681
  %1683 = xla_tuple %1682
  %v1684 = vxor.u32 %v1681, 2147483648
  %1685 = xla_tuple %v1684
  %s1686 = scalar_lea.vmem %s1, 600
  %1687 = vst [vmem:[%s1686] sm:$0xff] %v1684
  %s1688 = scalar_lea.vmem %s0, 632
  %v1689 = vld [vmem:[%s1688] sm:$0xff]
  %1690 = xla_tuple %v1689
  %1691 = xla_tuple %1690
  %v1692 = vxor.u32 %v1689, 2147483648
  %1693 = xla_tuple %v1692
  %s1694 = scalar_lea.vmem %s1, 632
  %1695 = vst [vmem:[%s1694] sm:$0xff] %v1692
  %s1696 = scalar_lea.vmem %s0, 664
  %v1697 = vld [vmem:[%s1696] sm:$0xff]
  %1698 = xla_tuple %v1697
  %1699 = xla_tuple %1698
  %v1700 = vxor.u32 %v1697, 2147483648
  %1701 = xla_tuple %v1700
  %s1702 = scalar_lea.vmem %s1, 664
  %1703 = vst [vmem:[%s1702] sm:$0xff] %v1700
  %s1704 = scalar_lea.vmem %s0, 696
  %v1705 = vld [vmem:[%s1704] sm:$0xff]
  %1706 = xla_tuple %v1705
  %1707 = xla_tuple %1706
  %v1708 = vxor.u32 %v1705, 2147483648
  %1709 = xla_tuple %v1708
  %s1710 = scalar_lea.vmem %s1, 696
  %1711 = vst [vmem:[%s1710] sm:$0xff] %v1708
  %s1712 = scalar_lea.vmem %s0, 728
  %v1713 = vld [vmem:[%s1712] sm:$0xff]
  %1714 = xla_tuple %v1713
  %1715 = xla_tuple %1714
  %v1716 = vxor.u32 %v1713, 2147483648
  %1717 = xla_tuple %v1716
  %s1718 = scalar_lea.vmem %s1, 728
  %1719 = vst [vmem:[%s1718] sm:$0xff] %v1716
  %s1720 = scalar_lea.vmem %s0, 760
  %v1721 = vld [vmem:[%s1720] sm:$0xff]
  %1722 = xla_tuple %v1721
  %1723 = xla_tuple %1722
  %v1724 = vxor.u32 %v1721, 2147483648
  %1725 = xla_tuple %v1724
  %s1726 = scalar_lea.vmem %s1, 760
  %1727 = vst [vmem:[%s1726] sm:$0xff] %v1724
  %s1728 = scalar_lea.vmem %s0, 792
  %v1729 = vld [vmem:[%s1728] sm:$0xff]
  %1730 = xla_tuple %v1729
  %1731 = xla_tuple %1730
  %v1732 = vxor.u32 %v1729, 2147483648
  %1733 = xla_tuple %v1732
  %s1734 = scalar_lea.vmem %s1, 792
  %1735 = vst [vmem:[%s1734] sm:$0xff] %v1732
  %s1736 = scalar_lea.vmem %s0, 824
  %v1737 = vld [vmem:[%s1736] sm:$0xff]
  %1738 = xla_tuple %v1737
  %1739 = xla_tuple %1738
  %v1740 = vxor.u32 %v1737, 2147483648
  %1741 = xla_tuple %v1740
  %s1742 = scalar_lea.vmem %s1, 824
  %1743 = vst [vmem:[%s1742] sm:$0xff] %v1740
  %s1744 = scalar_lea.vmem %s0, 856
  %v1745 = vld [vmem:[%s1744] sm:$0xff]
  %1746 = xla_tuple %v1745
  %1747 = xla_tuple %1746
  %v1748 = vxor.u32 %v1745, 2147483648
  %1749 = xla_tuple %v1748
  %s1750 = scalar_lea.vmem %s1, 856
  %1751 = vst [vmem:[%s1750] sm:$0xff] %v1748
  %s1752 = scalar_lea.vmem %s0, 888
  %v1753 = vld [vmem:[%s1752] sm:$0xff]
  %1754 = xla_tuple %v1753
  %1755 = xla_tuple %1754
  %v1756 = vxor.u32 %v1753, 2147483648
  %1757 = xla_tuple %v1756
  %s1758 = scalar_lea.vmem %s1, 888
  %1759 = vst [vmem:[%s1758] sm:$0xff] %v1756
  %s1760 = scalar_lea.vmem %s0, 920
  %v1761 = vld [vmem:[%s1760] sm:$0xff]
  %1762 = xla_tuple %v1761
  %1763 = xla_tuple %1762
  %v1764 = vxor.u32 %v1761, 2147483648
  %1765 = xla_tuple %v1764
  %s1766 = scalar_lea.vmem %s1, 920
  %1767 = vst [vmem:[%s1766] sm:$0xff] %v1764
  %s1768 = scalar_lea.vmem %s0, 952
  %v1769 = vld [vmem:[%s1768] sm:$0xff]
  %1770 = xla_tuple %v1769
  %1771 = xla_tuple %1770
  %v1772 = vxor.u32 %v1769, 2147483648
  %1773 = xla_tuple %v1772
  %s1774 = scalar_lea.vmem %s1, 952
  %1775 = vst [vmem:[%s1774] sm:$0xff] %v1772
  %s1776 = scalar_lea.vmem %s0, 984
  %v1777 = vld [vmem:[%s1776] sm:$0xff]
  %1778 = xla_tuple %v1777
  %1779 = xla_tuple %1778
  %v1780 = vxor.u32 %v1777, 2147483648
  %1781 = xla_tuple %v1780
  %s1782 = scalar_lea.vmem %s1, 984
  %1783 = vst [vmem:[%s1782] sm:$0xff] %v1780
  %s1784 = scalar_lea.vmem %s0, 1016
  %v1785 = vld [vmem:[%s1784] sm:$0xff]
  %1786 = xla_tuple %v1785
  %1787 = xla_tuple %1786
  %v1788 = vxor.u32 %v1785, 2147483648
  %1789 = xla_tuple %v1788
  %s1790 = scalar_lea.vmem %s1, 1016
  %1791 = vst [vmem:[%s1790] sm:$0xff] %v1788
  %s1792 = scalar_lea.vmem %s0, 1048
  %v1793 = vld [vmem:[%s1792] sm:$0xff]
  %1794 = xla_tuple %v1793
  %1795 = xla_tuple %1794
  %v1796 = vxor.u32 %v1793, 2147483648
  %1797 = xla_tuple %v1796
  %s1798 = scalar_lea.vmem %s1, 1048
  %1799 = vst [vmem:[%s1798] sm:$0xff] %v1796
  %s1800 = scalar_lea.vmem %s0, 1080
  %v1801 = vld [vmem:[%s1800] sm:$0xff]
  %1802 = xla_tuple %v1801
  %1803 = xla_tuple %1802
  %v1804 = vxor.u32 %v1801, 2147483648
  %1805 = xla_tuple %v1804
  %s1806 = scalar_lea.vmem %s1, 1080
  %1807 = vst [vmem:[%s1806] sm:$0xff] %v1804
  %s1808 = scalar_lea.vmem %s0, 1112
  %v1809 = vld [vmem:[%s1808] sm:$0xff]
  %1810 = xla_tuple %v1809
  %1811 = xla_tuple %1810
  %v1812 = vxor.u32 %v1809, 2147483648
  %1813 = xla_tuple %v1812
  %s1814 = scalar_lea.vmem %s1, 1112
  %1815 = vst [vmem:[%s1814] sm:$0xff] %v1812
  %s1816 = scalar_lea.vmem %s0, 1144
  %v1817 = vld [vmem:[%s1816] sm:$0xff]
  %1818 = xla_tuple %v1817
  %1819 = xla_tuple %1818
  %v1820 = vxor.u32 %v1817, 2147483648
  %1821 = xla_tuple %v1820
  %s1822 = scalar_lea.vmem %s1, 1144
  %1823 = vst [vmem:[%s1822] sm:$0xff] %v1820
  %s1824 = scalar_lea.vmem %s0, 1176
  %v1825 = vld [vmem:[%s1824] sm:$0xff]
  %1826 = xla_tuple %v1825
  %1827 = xla_tuple %1826
  %v1828 = vxor.u32 %v1825, 2147483648
  %1829 = xla_tuple %v1828
  %s1830 = scalar_lea.vmem %s1, 1176
  %1831 = vst [vmem:[%s1830] sm:$0xff] %v1828
  %s1832 = scalar_lea.vmem %s0, 1208
  %v1833 = vld [vmem:[%s1832] sm:$0xff]
  %1834 = xla_tuple %v1833
  %1835 = xla_tuple %1834
  %v1836 = vxor.u32 %v1833, 2147483648
  %1837 = xla_tuple %v1836
  %s1838 = scalar_lea.vmem %s1, 1208
  %1839 = vst [vmem:[%s1838] sm:$0xff] %v1836
  %s1840 = scalar_lea.vmem %s0, 1240
  %v1841 = vld [vmem:[%s1840] sm:$0xff]
  %1842 = xla_tuple %v1841
  %1843 = xla_tuple %1842
  %v1844 = vxor.u32 %v1841, 2147483648
  %1845 = xla_tuple %v1844
  %s1846 = scalar_lea.vmem %s1, 1240
  %1847 = vst [vmem:[%s1846] sm:$0xff] %v1844
  %s1848 = scalar_lea.vmem %s0, 1272
  %v1849 = vld [vmem:[%s1848] sm:$0xff]
  %1850 = xla_tuple %v1849
  %1851 = xla_tuple %1850
  %v1852 = vxor.u32 %v1849, 2147483648
  %1853 = xla_tuple %v1852
  %s1854 = scalar_lea.vmem %s1, 1272
  %1855 = vst [vmem:[%s1854] sm:$0xff] %v1852
  %s1856 = scalar_lea.vmem %s0, 1304
  %v1857 = vld [vmem:[%s1856] sm:$0xff]
  %1858 = xla_tuple %v1857
  %1859 = xla_tuple %1858
  %v1860 = vxor.u32 %v1857, 2147483648
  %1861 = xla_tuple %v1860
  %s1862 = scalar_lea.vmem %s1, 1304
  %1863 = vst [vmem:[%s1862] sm:$0xff] %v1860
  %s1864 = scalar_lea.vmem %s0, 1336
  %v1865 = vld [vmem:[%s1864] sm:$0xff]
  %1866 = xla_tuple %v1865
  %1867 = xla_tuple %1866
  %v1868 = vxor.u32 %v1865, 2147483648
  %1869 = xla_tuple %v1868
  %s1870 = scalar_lea.vmem %s1, 1336
  %1871 = vst [vmem:[%s1870] sm:$0xff] %v1868
  %s1872 = scalar_lea.vmem %s0, 1368
  %v1873 = vld [vmem:[%s1872] sm:$0xff]
  %1874 = xla_tuple %v1873
  %1875 = xla_tuple %1874
  %v1876 = vxor.u32 %v1873, 2147483648
  %1877 = xla_tuple %v1876
  %s1878 = scalar_lea.vmem %s1, 1368
  %1879 = vst [vmem:[%s1878] sm:$0xff] %v1876
  %s1880 = scalar_lea.vmem %s0, 1400
  %v1881 = vld [vmem:[%s1880] sm:$0xff]
  %1882 = xla_tuple %v1881
  %1883 = xla_tuple %1882
  %v1884 = vxor.u32 %v1881, 2147483648
  %1885 = xla_tuple %v1884
  %s1886 = scalar_lea.vmem %s1, 1400
  %1887 = vst [vmem:[%s1886] sm:$0xff] %v1884
  %s1888 = scalar_lea.vmem %s0, 1432
  %v1889 = vld [vmem:[%s1888] sm:$0xff]
  %1890 = xla_tuple %v1889
  %1891 = xla_tuple %1890
  %v1892 = vxor.u32 %v1889, 2147483648
  %1893 = xla_tuple %v1892
  %s1894 = scalar_lea.vmem %s1, 1432
  %1895 = vst [vmem:[%s1894] sm:$0xff] %v1892
  %s1896 = scalar_lea.vmem %s0, 1464
  %v1897 = vld [vmem:[%s1896] sm:$0xff]
  %1898 = xla_tuple %v1897
  %1899 = xla_tuple %1898
  %v1900 = vxor.u32 %v1897, 2147483648
  %1901 = xla_tuple %v1900
  %s1902 = scalar_lea.vmem %s1, 1464
  %1903 = vst [vmem:[%s1902] sm:$0xff] %v1900
  %s1904 = scalar_lea.vmem %s0, 1496
  %v1905 = vld [vmem:[%s1904] sm:$0xff]
  %1906 = xla_tuple %v1905
  %1907 = xla_tuple %1906
  %v1908 = vxor.u32 %v1905, 2147483648
  %1909 = xla_tuple %v1908
  %s1910 = scalar_lea.vmem %s1, 1496
  %1911 = vst [vmem:[%s1910] sm:$0xff] %v1908
  %s1912 = scalar_lea.vmem %s0, 1528
  %v1913 = vld [vmem:[%s1912] sm:$0xff]
  %1914 = xla_tuple %v1913
  %1915 = xla_tuple %1914
  %v1916 = vxor.u32 %v1913, 2147483648
  %1917 = xla_tuple %v1916
  %s1918 = scalar_lea.vmem %s1, 1528
  %1919 = vst [vmem:[%s1918] sm:$0xff] %v1916
  %s1920 = scalar_lea.vmem %s0, 1560
  %v1921 = vld [vmem:[%s1920] sm:$0xff]
  %1922 = xla_tuple %v1921
  %1923 = xla_tuple %1922
  %v1924 = vxor.u32 %v1921, 2147483648
  %1925 = xla_tuple %v1924
  %s1926 = scalar_lea.vmem %s1, 1560
  %1927 = vst [vmem:[%s1926] sm:$0xff] %v1924
  %s1928 = scalar_lea.vmem %s0, 1592
  %v1929 = vld [vmem:[%s1928] sm:$0xff]
  %1930 = xla_tuple %v1929
  %1931 = xla_tuple %1930
  %v1932 = vxor.u32 %v1929, 2147483648
  %1933 = xla_tuple %v1932
  %s1934 = scalar_lea.vmem %s1, 1592
  %1935 = vst [vmem:[%s1934] sm:$0xff] %v1932
  %s1936 = scalar_lea.vmem %s0, 1624
  %v1937 = vld [vmem:[%s1936] sm:$0xff]
  %1938 = xla_tuple %v1937
  %1939 = xla_tuple %1938
  %v1940 = vxor.u32 %v1937, 2147483648
  %1941 = xla_tuple %v1940
  %s1942 = scalar_lea.vmem %s1, 1624
  %1943 = vst [vmem:[%s1942] sm:$0xff] %v1940
  %s1944 = scalar_lea.vmem %s0, 1656
  %v1945 = vld [vmem:[%s1944] sm:$0xff]
  %1946 = xla_tuple %v1945
  %1947 = xla_tuple %1946
  %v1948 = vxor.u32 %v1945, 2147483648
  %1949 = xla_tuple %v1948
  %s1950 = scalar_lea.vmem %s1, 1656
  %1951 = vst [vmem:[%s1950] sm:$0xff] %v1948
  %s1952 = scalar_lea.vmem %s0, 1688
  %v1953 = vld [vmem:[%s1952] sm:$0xff]
  %1954 = xla_tuple %v1953
  %1955 = xla_tuple %1954
  %v1956 = vxor.u32 %v1953, 2147483648
  %1957 = xla_tuple %v1956
  %s1958 = scalar_lea.vmem %s1, 1688
  %1959 = vst [vmem:[%s1958] sm:$0xff] %v1956
  %s1960 = scalar_lea.vmem %s0, 1720
  %v1961 = vld [vmem:[%s1960] sm:$0xff]
  %1962 = xla_tuple %v1961
  %1963 = xla_tuple %1962
  %v1964 = vxor.u32 %v1961, 2147483648
  %1965 = xla_tuple %v1964
  %s1966 = scalar_lea.vmem %s1, 1720
  %1967 = vst [vmem:[%s1966] sm:$0xff] %v1964
  %s1968 = scalar_lea.vmem %s0, 1752
  %v1969 = vld [vmem:[%s1968] sm:$0xff]
  %1970 = xla_tuple %v1969
  %1971 = xla_tuple %1970
  %v1972 = vxor.u32 %v1969, 2147483648
  %1973 = xla_tuple %v1972
  %s1974 = scalar_lea.vmem %s1, 1752
  %1975 = vst [vmem:[%s1974] sm:$0xff] %v1972
  %s1976 = scalar_lea.vmem %s0, 1784
  %v1977 = vld [vmem:[%s1976] sm:$0xff]
  %1978 = xla_tuple %v1977
  %1979 = xla_tuple %1978
  %v1980 = vxor.u32 %v1977, 2147483648
  %1981 = xla_tuple %v1980
  %s1982 = scalar_lea.vmem %s1, 1784
  %1983 = vst [vmem:[%s1982] sm:$0xff] %v1980
  %s1984 = scalar_lea.vmem %s0, 1816
  %v1985 = vld [vmem:[%s1984] sm:$0xff]
  %1986 = xla_tuple %v1985
  %1987 = xla_tuple %1986
  %v1988 = vxor.u32 %v1985, 2147483648
  %1989 = xla_tuple %v1988
  %s1990 = scalar_lea.vmem %s1, 1816
  %1991 = vst [vmem:[%s1990] sm:$0xff] %v1988
  %s1992 = scalar_lea.vmem %s0, 1848
  %v1993 = vld [vmem:[%s1992] sm:$0xff]
  %1994 = xla_tuple %v1993
  %1995 = xla_tuple %1994
  %v1996 = vxor.u32 %v1993, 2147483648
  %1997 = xla_tuple %v1996
  %s1998 = scalar_lea.vmem %s1, 1848
  %1999 = vst [vmem:[%s1998] sm:$0xff] %v1996
  %s2000 = scalar_lea.vmem %s0, 1880
  %v2001 = vld [vmem:[%s2000] sm:$0xff]
  %2002 = xla_tuple %v2001
  %2003 = xla_tuple %2002
  %v2004 = vxor.u32 %v2001, 2147483648
  %2005 = xla_tuple %v2004
  %s2006 = scalar_lea.vmem %s1, 1880
  %2007 = vst [vmem:[%s2006] sm:$0xff] %v2004
  %s2008 = scalar_lea.vmem %s0, 1912
  %v2009 = vld [vmem:[%s2008] sm:$0xff]
  %2010 = xla_tuple %v2009
  %2011 = xla_tuple %2010
  %v2012 = vxor.u32 %v2009, 2147483648
  %2013 = xla_tuple %v2012
  %s2014 = scalar_lea.vmem %s1, 1912
  %2015 = vst [vmem:[%s2014] sm:$0xff] %v2012
  %s2016 = scalar_lea.vmem %s0, 1944
  %v2017 = vld [vmem:[%s2016] sm:$0xff]
  %2018 = xla_tuple %v2017
  %2019 = xla_tuple %2018
  %v2020 = vxor.u32 %v2017, 2147483648
  %2021 = xla_tuple %v2020
  %s2022 = scalar_lea.vmem %s1, 1944
  %2023 = vst [vmem:[%s2022] sm:$0xff] %v2020
  %s2024 = scalar_lea.vmem %s0, 1976
  %v2025 = vld [vmem:[%s2024] sm:$0xff]
  %2026 = xla_tuple %v2025
  %2027 = xla_tuple %2026
  %v2028 = vxor.u32 %v2025, 2147483648
  %2029 = xla_tuple %v2028
  %s2030 = scalar_lea.vmem %s1, 1976
  %2031 = vst [vmem:[%s2030] sm:$0xff] %v2028
  %s2032 = scalar_lea.vmem %s0, 2008
  %v2033 = vld [vmem:[%s2032] sm:$0xff]
  %2034 = xla_tuple %v2033
  %2035 = xla_tuple %2034
  %v2036 = vxor.u32 %v2033, 2147483648
  %2037 = xla_tuple %v2036
  %s2038 = scalar_lea.vmem %s1, 2008
  %2039 = vst [vmem:[%s2038] sm:$0xff] %v2036
  %s2040 = scalar_lea.vmem %s0, 2040
  %v2041 = vld [vmem:[%s2040] sm:$0xff]
  %2042 = xla_tuple %v2041
  %2043 = xla_tuple %2042
  %v2044 = vxor.u32 %v2041, 2147483648
  %2045 = xla_tuple %v2044
  %s2046 = scalar_lea.vmem %s1, 2040
  %2047 = vst [vmem:[%s2046] sm:$0xff] %v2044

// kernel: closed_call.21
$region0: #{closed_call.21}
  #allocation0 [shape = 'u32[]', space=smem, size = 0x4, offset = 0x4, fixed_abs, tag = 'smem constant byte address 0x4 - core index']
  #allocation1 [shape = 'u32[144,128]{1,0:T(1,128)}', space=vmem, size = 0x12000, scoped, tag = 'internal scratch']
  %s0 = inlined_call_operand.vmem [shape: f32[64,128], index: 0, kind: input, shape index: {}]
  %s1 = inlined_call_operand.vmem [shape: f32[64,2,64], index: 1, kind: input, shape index: {}]
  %s2 = inlined_call_operand.vmem [shape: f32[64,64,64], index: 2, kind: input, shape index: {}]
  %s3 = inlined_call_operand.vmem [shape: f32[256,64], index: 3, kind: input, shape index: {}]
  %s4 = inlined_call_operand.vmem [shape: f32[256,64], index: 4, kind: input, shape index: {}]
  %s5 = inlined_call_operand.vmem [shape: f32[64,256], index: 5, kind: input, shape index: {}]
  %s6 = inlined_call_operand.vmem [shape: f32[64,256], index: 6, kind: input, shape index: {}]
  %s7 = inlined_call_operand.vmem [shape: f32[32,32], index: 7, kind: input, shape index: {}]
  %s8 = inlined_call_operand.vmem [shape: f32[1,32], index: 8, kind: input, shape index: {}]
  %s9 = inlined_call_operand.vmem [shape: f32[32,32], index: 9, kind: input, shape index: {}]
  %s10 = inlined_call_operand.vmem [shape: f32[1,32], index: 10, kind: input, shape index: {}]
  %s11 = inlined_call_operand.vmem [shape: f32[64,128], index: 11, kind: output, shape index: {}]
  %s12 = sld [smem:[#allocation0]]
  $region54: #{closed_call.21} parent=0
    _
  %s14 = ssub.s32 1, %s12
  %s15 = scalar_select 0, %s14, %s12
  // Predicated region
  $region2: #{closed_call.21} parent=0 // pred_check
    _
  $region3: #{closed_call.21} parent=0 // pred_check_branch
    %17 = sbr.rel (0) target = $region5
  $region4: #{closed_call.21} parent=0 // pred_region
    _
  $region5: #{closed_call.21} parent=0 // pred_fallthru
    _
  // Predicated region
  $region6: #{closed_call.21} parent=0 // pred_check
    _
  $region7: #{closed_call.21} parent=0 // pred_check_branch
    %19 = sbr.rel (0) target = $region9
  $region8: #{closed_call.21} parent=0 // pred_region
    _
  $region9: #{closed_call.21} parent=0 // pred_fallthru
    _
  // Predicated region
  $region10: #{closed_call.21} parent=0 // pred_check
    _
  $region11: #{closed_call.21} parent=0 // pred_check_branch
    %21 = sbr.rel (0) target = $region13
  $region12: #{closed_call.21} parent=0 // pred_region
    _
  $region13: #{closed_call.21} parent=0 // pred_fallthru
    _
  // Predicated region
  $region14: #{closed_call.21} parent=0 // pred_check
    _
  $region15: #{closed_call.21} parent=0 // pred_check_branch
    %23 = sbr.rel (0) target = $region17
  $region16: #{closed_call.21} parent=0 // pred_region
    _
  $region17: #{closed_call.21} parent=0 // pred_fallthru
    _
  // Predicated region
  $region18: #{closed_call.21} parent=0 // pred_check
    _
  $region19: #{closed_call.21} parent=0 // pred_check_branch
    %25 = sbr.rel (0) target = $region21
  $region20: #{closed_call.21} parent=0 // pred_region
    _
  $region21: #{closed_call.21} parent=0 // pred_fallthru
    _
  // Predicated region
  $region22: #{closed_call.21} parent=0 // pred_check
    _
  $region23: #{closed_call.21} parent=0 // pred_check_branch
    %27 = sbr.rel (0) target = $region25
  $region24: #{closed_call.21} parent=0 // pred_region
    _
  $region25: #{closed_call.21} parent=0 // pred_fallthru
    _
  // Predicated region
  $region26: #{closed_call.21} parent=0 // pred_check
    _
  $region27: #{closed_call.21} parent=0 // pred_check_branch
    %29 = sbr.rel (0) target = $region29
  $region28: #{closed_call.21} parent=0 // pred_region
    _
  $region29: #{closed_call.21} parent=0 // pred_fallthru
    _
  // Predicated region
  $region30: #{closed_call.21} parent=0 // pred_check
    _
  $region31: #{closed_call.21} parent=0 // pred_check_branch
    %31 = sbr.rel (0) target = $region33
  $region32: #{closed_call.21} parent=0 // pred_region
    _
  $region33: #{closed_call.21} parent=0 // pred_fallthru
    _
  // Predicated region
  $region34: #{closed_call.21} parent=0 // pred_check
    _
  $region35: #{closed_call.21} parent=0 // pred_check_branch
    %33 = sbr.rel (0) target = $region37
  $region36: #{closed_call.21} parent=0 // pred_region
    _
  $region37: #{closed_call.21} parent=0 // pred_fallthru
    _
  // Predicated region
  $region38: #{closed_call.21} parent=0 // pred_check
    _
  $region39: #{closed_call.21} parent=0 // pred_check_branch
    %35 = sbr.rel (0) target = $region41
  $region40: #{closed_call.21} parent=0 // pred_region
    _
  $region41: #{closed_call.21} parent=0 // pred_fallthru
    _
  // Predicated region
  $region42: #{closed_call.21} parent=0 // pred_check
    _
  $region43: #{closed_call.21} parent=0 // pred_check_branch
    %37 = sbr.rel (0) target = $region45
  $region44: #{closed_call.21} parent=0 // pred_region
    _
  $region45: #{closed_call.21} parent=0 // pred_fallthru
    _
  %v38 = vld [vmem:[%s1] sm:$0x3]
  %v39 = vld [vmem:[%s1 + $0x2] sm:$0x3]
  %v40 = vld [vmem:[%s1 + $0x4] sm:$0x3]
  %v41 = vld [vmem:[%s1 + $0x6] sm:$0x3]
  %v42 = vld [vmem:[%s1 + $0x8] sm:$0x3]
  %v43 = vld [vmem:[%s1 + $0xa] sm:$0x3]
  %v44 = vld [vmem:[%s1 + $0xc] sm:$0x3]
  %v45 = vld [vmem:[%s1 + $0xe] sm:$0x3]
  %v46 = vld [vmem:[%s1 + $0x10] sm:$0x3]
  %v47 = vld [vmem:[%s1 + $0x12] sm:$0x3]
  %v48 = vld [vmem:[%s1 + $0x14] sm:$0x3]
  %v49 = vld [vmem:[%s1 + $0x16] sm:$0x3]
  %v50 = vld [vmem:[%s1 + $0x18] sm:$0x3]
  %v51 = vld [vmem:[%s1 + $0x1a] sm:$0x3]
  %v52 = vld [vmem:[%s1 + $0x1c] sm:$0x3]
  %v53 = vld [vmem:[%s1 + $0x1e] sm:$0x3]
  %v54 = vld [vmem:[%s1 + $0x20] sm:$0x3]
  %v55 = vld [vmem:[%s1 + $0x22] sm:$0x3]
  %v56 = vld [vmem:[%s1 + $0x24] sm:$0x3]
  %v57 = vld [vmem:[%s1 + $0x26] sm:$0x3]
  %v58 = vld [vmem:[%s1 + $0x28] sm:$0x3]
  %v59 = vld [vmem:[%s1 + $0x2a] sm:$0x3]
  %v60 = vld [vmem:[%s1 + $0x2c] sm:$0x3]
  %v61 = vld [vmem:[%s1 + $0x2e] sm:$0x3]
  %v62 = vld [vmem:[%s1 + $0x30] sm:$0x3]
  %v63 = vld [vmem:[%s1 + $0x32] sm:$0x3]
  %v64 = vld [vmem:[%s1 + $0x34] sm:$0x3]
  %v65 = vld [vmem:[%s1 + $0x36] sm:$0x3]
  %v66 = vld [vmem:[%s1 + $0x38] sm:$0x3]
  %v67 = vld [vmem:[%s1 + $0x3a] sm:$0x3]
  %v68 = vld [vmem:[%s1 + $0x3c] sm:$0x3]
  %v69 = vld [vmem:[%s1 + $0x3e] sm:$0x3]
  %v70 = vld [vmem:[%s1 + $0x40] sm:$0x3]
  %v71 = vld [vmem:[%s1 + $0x42] sm:$0x3]
  %v72 = vld [vmem:[%s1 + $0x44] sm:$0x3]
  %v73 = vld [vmem:[%s1 + $0x46] sm:$0x3]
  %v74 = vld [vmem:[%s1 + $0x48] sm:$0x3]
  %v75 = vld [vmem:[%s1 + $0x4a] sm:$0x3]
  %v76 = vld [vmem:[%s1 + $0x4c] sm:$0x3]
  %v77 = vld [vmem:[%s1 + $0x4e] sm:$0x3]
  %v78 = vld [vmem:[%s1 + $0x50] sm:$0x3]
  %v79 = vld [vmem:[%s1 + $0x52] sm:$0x3]
  %v80 = vld [vmem:[%s1 + $0x54] sm:$0x3]
  %v81 = vld [vmem:[%s1 + $0x56] sm:$0x3]
  %v82 = vld [vmem:[%s1 + $0x58] sm:$0x3]
  %v83 = vld [vmem:[%s1 + $0x5a] sm:$0x3]
  %v84 = vld [vmem:[%s1 + $0x5c] sm:$0x3]
  %v85 = vld [vmem:[%s1 + $0x5e] sm:$0x3]
  %v86 = vld [vmem:[%s1 + $0x60] sm:$0x3]
  %v87 = vld [vmem:[%s1 + $0x62] sm:$0x3]
  %v88 = vld [vmem:[%s1 + $0x64] sm:$0x3]
  %v89 = vld [vmem:[%s1 + $0x66] sm:$0x3]
  %v90 = vld [vmem:[%s1 + $0x68] sm:$0x3]
  %v91 = vld [vmem:[%s1 + $0x6a] sm:$0x3]
  %v92 = vld [vmem:[%s1 + $0x6c] sm:$0x3]
  %v93 = vld [vmem:[%s1 + $0x6e] sm:$0x3]
  %v94 = vld [vmem:[%s1 + $0x70] sm:$0x3]
  %v95 = vld [vmem:[%s1 + $0x72] sm:$0x3]
  %v96 = vld [vmem:[%s1 + $0x74] sm:$0x3]
  %v97 = vld [vmem:[%s1 + $0x76] sm:$0x3]
  %v98 = vld [vmem:[%s1 + $0x78] sm:$0x3]
  %v99 = vld [vmem:[%s1 + $0x7a] sm:$0x3]
  %v100 = vld [vmem:[%s1 + $0x7c] sm:$0x3]
  %v101 = vld [vmem:[%s1 + $0x7e] sm:$0x3]
  %v102 = vld [vmem:[%s2] sm:$0xff]
  %v103 = vld [vmem:[%s2 + $0x8] sm:$0xff]
  %v104 = vld [vmem:[%s2 + $0x10] sm:$0xff]
  %v105 = vld [vmem:[%s2 + $0x18] sm:$0xff]
  %v106 = vld [vmem:[%s2 + $0x20] sm:$0xff]
  %v107 = vld [vmem:[%s2 + $0x28] sm:$0xff]
  %v108 = vld [vmem:[%s2 + $0x30] sm:$0xff]
  %v109 = vld [vmem:[%s2 + $0x38] sm:$0xff]
  %v110 = vld [vmem:[%s2 + $0x40] sm:$0xff]
  %v111 = vld [vmem:[%s2 + $0x48] sm:$0xff]
  %v112 = vld [vmem:[%s2 + $0x50] sm:$0xff]
  %v113 = vld [vmem:[%s2 + $0x58] sm:$0xff]
  %v114 = vld [vmem:[%s2 + $0x60] sm:$0xff]
  %v115 = vld [vmem:[%s2 + $0x68] sm:$0xff]
  %v116 = vld [vmem:[%s2 + $0x70] sm:$0xff]
  %v117 = vld [vmem:[%s2 + $0x78] sm:$0xff]
  %v118 = vld [vmem:[%s2 + $0x80] sm:$0xff]
  %v119 = vld [vmem:[%s2 + $0x88] sm:$0xff]
  %v120 = vld [vmem:[%s2 + $0x90] sm:$0xff]
  %v121 = vld [vmem:[%s2 + $0x98] sm:$0xff]
  %v122 = vld [vmem:[%s2 + $0xa0] sm:$0xff]
  %v123 = vld [vmem:[%s2 + $0xa8] sm:$0xff]
  %v124 = vld [vmem:[%s2 + $0xb0] sm:$0xff]
  %v125 = vld [vmem:[%s2 + $0xb8] sm:$0xff]
  %v126 = vld [vmem:[%s2 + $0xc0] sm:$0xff]
  %v127 = vld [vmem:[%s2 + $0xc8] sm:$0xff]
  %v128 = vld [vmem:[%s2 + $0xd0] sm:$0xff]
  %v129 = vld [vmem:[%s2 + $0xd8] sm:$0xff]
  %v130 = vld [vmem:[%s2 + $0xe0] sm:$0xff]
  %v131 = vld [vmem:[%s2 + $0xe8] sm:$0xff]
  %v132 = vld [vmem:[%s2 + $0xf0] sm:$0xff]
  %v133 = vld [vmem:[%s2 + $0xf8] sm:$0xff]
  %v134 = vld [vmem:[%s2 + $0x100] sm:$0xff]
  %v135 = vld [vmem:[%s2 + $0x108] sm:$0xff]
  %v136 = vld [vmem:[%s2 + $0x110] sm:$0xff]
  %v137 = vld [vmem:[%s2 + $0x118] sm:$0xff]
  %v138 = vld [vmem:[%s2 + $0x120] sm:$0xff]
  %v139 = vld [vmem:[%s2 + $0x128] sm:$0xff]
  %v140 = vld [vmem:[%s2 + $0x130] sm:$0xff]
  %v141 = vld [vmem:[%s2 + $0x138] sm:$0xff]
  %v142 = vld [vmem:[%s2 + $0x140] sm:$0xff]
  %v143 = vld [vmem:[%s2 + $0x148] sm:$0xff]
  %v144 = vld [vmem:[%s2 + $0x150] sm:$0xff]
  %v145 = vld [vmem:[%s2 + $0x158] sm:$0xff]
  %v146 = vld [vmem:[%s2 + $0x160] sm:$0xff]
  %v147 = vld [vmem:[%s2 + $0x168] sm:$0xff]
  %v148 = vld [vmem:[%s2 + $0x170] sm:$0xff]
  %v149 = vld [vmem:[%s2 + $0x178] sm:$0xff]
  %v150 = vld [vmem:[%s2 + $0x180] sm:$0xff]
  %v151 = vld [vmem:[%s2 + $0x188] sm:$0xff]
  %v152 = vld [vmem:[%s2 + $0x190] sm:$0xff]
  %v153 = vld [vmem:[%s2 + $0x198] sm:$0xff]
  %v154 = vld [vmem:[%s2 + $0x1a0] sm:$0xff]
  %v155 = vld [vmem:[%s2 + $0x1a8] sm:$0xff]
  %v156 = vld [vmem:[%s2 + $0x1b0] sm:$0xff]
  %v157 = vld [vmem:[%s2 + $0x1b8] sm:$0xff]
  %v158 = vld [vmem:[%s2 + $0x1c0] sm:$0xff]
  %v159 = vld [vmem:[%s2 + $0x1c8] sm:$0xff]
  %v160 = vld [vmem:[%s2 + $0x1d0] sm:$0xff]
  %v161 = vld [vmem:[%s2 + $0x1d8] sm:$0xff]
  %v162 = vld [vmem:[%s2 + $0x1e0] sm:$0xff]
  %v163 = vld [vmem:[%s2 + $0x1e8] sm:$0xff]
  %v164 = vld [vmem:[%s2 + $0x1f0] sm:$0xff]
  %v165 = vld [vmem:[%s2 + $0x1f8] sm:$0xff]
  %v166 = vld [vmem:[%s2 + $0x200] sm:$0xff]
  %v167 = vld [vmem:[%s2 + $0x208] sm:$0xff]
  %v168 = vld [vmem:[%s2 + $0x210] sm:$0xff]
  %v169 = vld [vmem:[%s2 + $0x218] sm:$0xff]
  %v170 = vld [vmem:[%s2 + $0x220] sm:$0xff]
  %v171 = vld [vmem:[%s2 + $0x228] sm:$0xff]
  %v172 = vld [vmem:[%s2 + $0x230] sm:$0xff]
  %v173 = vld [vmem:[%s2 + $0x238] sm:$0xff]
  %v174 = vld [vmem:[%s2 + $0x240] sm:$0xff]
  %v175 = vld [vmem:[%s2 + $0x248] sm:$0xff]
  %v176 = vld [vmem:[%s2 + $0x250] sm:$0xff]
  %v177 = vld [vmem:[%s2 + $0x258] sm:$0xff]
  %v178 = vld [vmem:[%s2 + $0x260] sm:$0xff]
  %v179 = vld [vmem:[%s2 + $0x268] sm:$0xff]
  %v180 = vld [vmem:[%s2 + $0x270] sm:$0xff]
  %v181 = vld [vmem:[%s2 + $0x278] sm:$0xff]
  %v182 = vld [vmem:[%s2 + $0x280] sm:$0xff]
  %v183 = vld [vmem:[%s2 + $0x288] sm:$0xff]
  %v184 = vld [vmem:[%s2 + $0x290] sm:$0xff]
  %v185 = vld [vmem:[%s2 + $0x298] sm:$0xff]
  %v186 = vld [vmem:[%s2 + $0x2a0] sm:$0xff]
  %v187 = vld [vmem:[%s2 + $0x2a8] sm:$0xff]
  %v188 = vld [vmem:[%s2 + $0x2b0] sm:$0xff]
  %v189 = vld [vmem:[%s2 + $0x2b8] sm:$0xff]
  %v190 = vld [vmem:[%s2 + $0x2c0] sm:$0xff]
  %v191 = vld [vmem:[%s2 + $0x2c8] sm:$0xff]
  %v192 = vld [vmem:[%s2 + $0x2d0] sm:$0xff]
  %v193 = vld [vmem:[%s2 + $0x2d8] sm:$0xff]
  %v194 = vld [vmem:[%s2 + $0x2e0] sm:$0xff]
  %v195 = vld [vmem:[%s2 + $0x2e8] sm:$0xff]
  %v196 = vld [vmem:[%s2 + $0x2f0] sm:$0xff]
  %v197 = vld [vmem:[%s2 + $0x2f8] sm:$0xff]
  %v198 = vld [vmem:[%s2 + $0x300] sm:$0xff]
  %v199 = vld [vmem:[%s2 + $0x308] sm:$0xff]
  %v200 = vld [vmem:[%s2 + $0x310] sm:$0xff]
  %v201 = vld [vmem:[%s2 + $0x318] sm:$0xff]
  %v202 = vld [vmem:[%s2 + $0x320] sm:$0xff]
  %v203 = vld [vmem:[%s2 + $0x328] sm:$0xff]
  %v204 = vld [vmem:[%s2 + $0x330] sm:$0xff]
  %v205 = vld [vmem:[%s2 + $0x338] sm:$0xff]
  %v206 = vld [vmem:[%s2 + $0x340] sm:$0xff]
  %v207 = vld [vmem:[%s2 + $0x348] sm:$0xff]
  %v208 = vld [vmem:[%s2 + $0x350] sm:$0xff]
  %v209 = vld [vmem:[%s2 + $0x358] sm:$0xff]
  %v210 = vld [vmem:[%s2 + $0x360] sm:$0xff]
  %v211 = vld [vmem:[%s2 + $0x368] sm:$0xff]
  %v212 = vld [vmem:[%s2 + $0x370] sm:$0xff]
  %v213 = vld [vmem:[%s2 + $0x378] sm:$0xff]
  %v214 = vld [vmem:[%s2 + $0x380] sm:$0xff]
  %v215 = vld [vmem:[%s2 + $0x388] sm:$0xff]
  %v216 = vld [vmem:[%s2 + $0x390] sm:$0xff]
  %v217 = vld [vmem:[%s2 + $0x398] sm:$0xff]
  %v218 = vld [vmem:[%s2 + $0x3a0] sm:$0xff]
  %v219 = vld [vmem:[%s2 + $0x3a8] sm:$0xff]
  %v220 = vld [vmem:[%s2 + $0x3b0] sm:$0xff]
  %v221 = vld [vmem:[%s2 + $0x3b8] sm:$0xff]
  %v222 = vld [vmem:[%s2 + $0x3c0] sm:$0xff]
  %v223 = vld [vmem:[%s2 + $0x3c8] sm:$0xff]
  %v224 = vld [vmem:[%s2 + $0x3d0] sm:$0xff]
  %v225 = vld [vmem:[%s2 + $0x3d8] sm:$0xff]
  %v226 = vld [vmem:[%s2 + $0x3e0] sm:$0xff]
  %v227 = vld [vmem:[%s2 + $0x3e8] sm:$0xff]
  %v228 = vld [vmem:[%s2 + $0x3f0] sm:$0xff]
  %v229 = vld [vmem:[%s2 + $0x3f8] sm:$0xff]
  %v230 = vld [vmem:[%s2 + $0x400] sm:$0xff]
  %v231 = vld [vmem:[%s2 + $0x408] sm:$0xff]
  %v232 = vld [vmem:[%s2 + $0x410] sm:$0xff]
  %v233 = vld [vmem:[%s2 + $0x418] sm:$0xff]
  %v234 = vld [vmem:[%s2 + $0x420] sm:$0xff]
  %v235 = vld [vmem:[%s2 + $0x428] sm:$0xff]
  %v236 = vld [vmem:[%s2 + $0x430] sm:$0xff]
  %v237 = vld [vmem:[%s2 + $0x438] sm:$0xff]
  %v238 = vld [vmem:[%s2 + $0x440] sm:$0xff]
  %v239 = vld [vmem:[%s2 + $0x448] sm:$0xff]
  %v240 = vld [vmem:[%s2 + $0x450] sm:$0xff]
  %v241 = vld [vmem:[%s2 + $0x458] sm:$0xff]
  %v242 = vld [vmem:[%s2 + $0x460] sm:$0xff]
  %v243 = vld [vmem:[%s2 + $0x468] sm:$0xff]
  %v244 = vld [vmem:[%s2 + $0x470] sm:$0xff]
  %v245 = vld [vmem:[%s2 + $0x478] sm:$0xff]
  %v246 = vld [vmem:[%s2 + $0x480] sm:$0xff]
  %v247 = vld [vmem:[%s2 + $0x488] sm:$0xff]
  %v248 = vld [vmem:[%s2 + $0x490] sm:$0xff]
  %v249 = vld [vmem:[%s2 + $0x498] sm:$0xff]
  %v250 = vld [vmem:[%s2 + $0x4a0] sm:$0xff]
  %v251 = vld [vmem:[%s2 + $0x4a8] sm:$0xff]
  %v252 = vld [vmem:[%s2 + $0x4b0] sm:$0xff]
  %v253 = vld [vmem:[%s2 + $0x4b8] sm:$0xff]
  %v254 = vld [vmem:[%s2 + $0x4c0] sm:$0xff]
  %v255 = vld [vmem:[%s2 + $0x4c8] sm:$0xff]
  %v256 = vld [vmem:[%s2 + $0x4d0] sm:$0xff]
  %v257 = vld [vmem:[%s2 + $0x4d8] sm:$0xff]
  %v258 = vld [vmem:[%s2 + $0x4e0] sm:$0xff]
  %v259 = vld [vmem:[%s2 + $0x4e8] sm:$0xff]
  %v260 = vld [vmem:[%s2 + $0x4f0] sm:$0xff]
  %v261 = vld [vmem:[%s2 + $0x4f8] sm:$0xff]
  %v262 = vld [vmem:[%s2 + $0x500] sm:$0xff]
  %v263 = vld [vmem:[%s2 + $0x508] sm:$0xff]
  %v264 = vld [vmem:[%s2 + $0x510] sm:$0xff]
  %v265 = vld [vmem:[%s2 + $0x518] sm:$0xff]
  %v266 = vld [vmem:[%s2 + $0x520] sm:$0xff]
  %v267 = vld [vmem:[%s2 + $0x528] sm:$0xff]
  %v268 = vld [vmem:[%s2 + $0x530] sm:$0xff]
  %v269 = vld [vmem:[%s2 + $0x538] sm:$0xff]
  %v270 = vld [vmem:[%s2 + $0x540] sm:$0xff]
  %v271 = vld [vmem:[%s2 + $0x548] sm:$0xff]
  %v272 = vld [vmem:[%s2 + $0x550] sm:$0xff]
  %v273 = vld [vmem:[%s2 + $0x558] sm:$0xff]
  %v274 = vld [vmem:[%s2 + $0x560] sm:$0xff]
  %v275 = vld [vmem:[%s2 + $0x568] sm:$0xff]
  %v276 = vld [vmem:[%s2 + $0x570] sm:$0xff]
  %v277 = vld [vmem:[%s2 + $0x578] sm:$0xff]
  %v278 = vld [vmem:[%s2 + $0x580] sm:$0xff]
  %v279 = vld [vmem:[%s2 + $0x588] sm:$0xff]
  %v280 = vld [vmem:[%s2 + $0x590] sm:$0xff]
  %v281 = vld [vmem:[%s2 + $0x598] sm:$0xff]
  %v282 = vld [vmem:[%s2 + $0x5a0] sm:$0xff]
  %v283 = vld [vmem:[%s2 + $0x5a8] sm:$0xff]
  %v284 = vld [vmem:[%s2 + $0x5b0] sm:$0xff]
  %v285 = vld [vmem:[%s2 + $0x5b8] sm:$0xff]
  %v286 = vld [vmem:[%s2 + $0x5c0] sm:$0xff]
  %v287 = vld [vmem:[%s2 + $0x5c8] sm:$0xff]
  %v288 = vld [vmem:[%s2 + $0x5d0] sm:$0xff]
  %v289 = vld [vmem:[%s2 + $0x5d8] sm:$0xff]
  %v290 = vld [vmem:[%s2 + $0x5e0] sm:$0xff]
  %v291 = vld [vmem:[%s2 + $0x5e8] sm:$0xff]
  %v292 = vld [vmem:[%s2 + $0x5f0] sm:$0xff]
  %v293 = vld [vmem:[%s2 + $0x5f8] sm:$0xff]
  %v294 = vld [vmem:[%s2 + $0x600] sm:$0xff]
  %v295 = vld [vmem:[%s2 + $0x608] sm:$0xff]
  %v296 = vld [vmem:[%s2 + $0x610] sm:$0xff]
  %v297 = vld [vmem:[%s2 + $0x618] sm:$0xff]
  %v298 = vld [vmem:[%s2 + $0x620] sm:$0xff]
  %v299 = vld [vmem:[%s2 + $0x628] sm:$0xff]
  %v300 = vld [vmem:[%s2 + $0x630] sm:$0xff]
  %v301 = vld [vmem:[%s2 + $0x638] sm:$0xff]
  %v302 = vld [vmem:[%s2 + $0x640] sm:$0xff]
  %v303 = vld [vmem:[%s2 + $0x648] sm:$0xff]
  %v304 = vld [vmem:[%s2 + $0x650] sm:$0xff]
  %v305 = vld [vmem:[%s2 + $0x658] sm:$0xff]
  %v306 = vld [vmem:[%s2 + $0x660] sm:$0xff]
  %v307 = vld [vmem:[%s2 + $0x668] sm:$0xff]
  %v308 = vld [vmem:[%s2 + $0x670] sm:$0xff]
  %v309 = vld [vmem:[%s2 + $0x678] sm:$0xff]
  %v310 = vld [vmem:[%s2 + $0x680] sm:$0xff]
  %v311 = vld [vmem:[%s2 + $0x688] sm:$0xff]
  %v312 = vld [vmem:[%s2 + $0x690] sm:$0xff]
  %v313 = vld [vmem:[%s2 + $0x698] sm:$0xff]
  %v314 = vld [vmem:[%s2 + $0x6a0] sm:$0xff]
  %v315 = vld [vmem:[%s2 + $0x6a8] sm:$0xff]
  %v316 = vld [vmem:[%s2 + $0x6b0] sm:$0xff]
  %v317 = vld [vmem:[%s2 + $0x6b8] sm:$0xff]
  %v318 = vld [vmem:[%s2 + $0x6c0] sm:$0xff]
  %v319 = vld [vmem:[%s2 + $0x6c8] sm:$0xff]
  %v320 = vld [vmem:[%s2 + $0x6d0] sm:$0xff]
  %v321 = vld [vmem:[%s2 + $0x6d8] sm:$0xff]
  %v322 = vld [vmem:[%s2 + $0x6e0] sm:$0xff]
  %v323 = vld [vmem:[%s2 + $0x6e8] sm:$0xff]
  %v324 = vld [vmem:[%s2 + $0x6f0] sm:$0xff]
  %v325 = vld [vmem:[%s2 + $0x6f8] sm:$0xff]
  %v326 = vld [vmem:[%s2 + $0x700] sm:$0xff]
  %v327 = vld [vmem:[%s2 + $0x708] sm:$0xff]
  %v328 = vld [vmem:[%s2 + $0x710] sm:$0xff]
  %v329 = vld [vmem:[%s2 + $0x718] sm:$0xff]
  %v330 = vld [vmem:[%s2 + $0x720] sm:$0xff]
  %v331 = vld [vmem:[%s2 + $0x728] sm:$0xff]
  %v332 = vld [vmem:[%s2 + $0x730] sm:$0xff]
  %v333 = vld [vmem:[%s2 + $0x738] sm:$0xff]
  %v334 = vld [vmem:[%s2 + $0x740] sm:$0xff]
  %v335 = vld [vmem:[%s2 + $0x748] sm:$0xff]
  %v336 = vld [vmem:[%s2 + $0x750] sm:$0xff]
  %v337 = vld [vmem:[%s2 + $0x758] sm:$0xff]
  %v338 = vld [vmem:[%s2 + $0x760] sm:$0xff]
  %v339 = vld [vmem:[%s2 + $0x768] sm:$0xff]
  %v340 = vld [vmem:[%s2 + $0x770] sm:$0xff]
  %v341 = vld [vmem:[%s2 + $0x778] sm:$0xff]
  %v342 = vld [vmem:[%s2 + $0x780] sm:$0xff]
  %v343 = vld [vmem:[%s2 + $0x788] sm:$0xff]
  %v344 = vld [vmem:[%s2 + $0x790] sm:$0xff]
  %v345 = vld [vmem:[%s2 + $0x798] sm:$0xff]
  %v346 = vld [vmem:[%s2 + $0x7a0] sm:$0xff]
  %v347 = vld [vmem:[%s2 + $0x7a8] sm:$0xff]
  %v348 = vld [vmem:[%s2 + $0x7b0] sm:$0xff]
  %v349 = vld [vmem:[%s2 + $0x7b8] sm:$0xff]
  %v350 = vld [vmem:[%s2 + $0x7c0] sm:$0xff]
  %v351 = vld [vmem:[%s2 + $0x7c8] sm:$0xff]
  %v352 = vld [vmem:[%s2 + $0x7d0] sm:$0xff]
  %v353 = vld [vmem:[%s2 + $0x7d8] sm:$0xff]
  %v354 = vld [vmem:[%s2 + $0x7e0] sm:$0xff]
  %v355 = vld [vmem:[%s2 + $0x7e8] sm:$0xff]
  %v356 = vld [vmem:[%s2 + $0x7f0] sm:$0xff]
  %v357 = vld [vmem:[%s2 + $0x7f8] sm:$0xff]
  %v358 = vld [vmem:[%s2 + $0x800] sm:$0xff]
  %v359 = vld [vmem:[%s2 + $0x808] sm:$0xff]
  %v360 = vld [vmem:[%s2 + $0x810] sm:$0xff]
  %v361 = vld [vmem:[%s2 + $0x818] sm:$0xff]
  %v362 = vld [vmem:[%s2 + $0x820] sm:$0xff]
  %v363 = vld [vmem:[%s2 + $0x828] sm:$0xff]
  %v364 = vld [vmem:[%s2 + $0x830] sm:$0xff]
  %v365 = vld [vmem:[%s2 + $0x838] sm:$0xff]
  %v366 = vld [vmem:[%s2 + $0x840] sm:$0xff]
  %v367 = vld [vmem:[%s2 + $0x848] sm:$0xff]
  %v368 = vld [vmem:[%s2 + $0x850] sm:$0xff]
  %v369 = vld [vmem:[%s2 + $0x858] sm:$0xff]
  %v370 = vld [vmem:[%s2 + $0x860] sm:$0xff]
  %v371 = vld [vmem:[%s2 + $0x868] sm:$0xff]
  %v372 = vld [vmem:[%s2 + $0x870] sm:$0xff]
  %v373 = vld [vmem:[%s2 + $0x878] sm:$0xff]
  %v374 = vld [vmem:[%s2 + $0x880] sm:$0xff]
  %v375 = vld [vmem:[%s2 + $0x888] sm:$0xff]
  %v376 = vld [vmem:[%s2 + $0x890] sm:$0xff]
  %v377 = vld [vmem:[%s2 + $0x898] sm:$0xff]
  %v378 = vld [vmem:[%s2 + $0x8a0] sm:$0xff]
  %v379 = vld [vmem:[%s2 + $0x8a8] sm:$0xff]
  %v380 = vld [vmem:[%s2 + $0x8b0] sm:$0xff]
  %v381 = vld [vmem:[%s2 + $0x8b8] sm:$0xff]
  %v382 = vld [vmem:[%s2 + $0x8c0] sm:$0xff]
  %v383 = vld [vmem:[%s2 + $0x8c8] sm:$0xff]
  %v384 = vld [vmem:[%s2 + $0x8d0] sm:$0xff]
  %v385 = vld [vmem:[%s2 + $0x8d8] sm:$0xff]
  %v386 = vld [vmem:[%s2 + $0x8e0] sm:$0xff]
  %v387 = vld [vmem:[%s2 + $0x8e8] sm:$0xff]
  %v388 = vld [vmem:[%s2 + $0x8f0] sm:$0xff]
  %v389 = vld [vmem:[%s2 + $0x8f8] sm:$0xff]
  %v390 = vld [vmem:[%s2 + $0x900] sm:$0xff]
  %v391 = vld [vmem:[%s2 + $0x908] sm:$0xff]
  %v392 = vld [vmem:[%s2 + $0x910] sm:$0xff]
  %v393 = vld [vmem:[%s2 + $0x918] sm:$0xff]
  %v394 = vld [vmem:[%s2 + $0x920] sm:$0xff]
  %v395 = vld [vmem:[%s2 + $0x928] sm:$0xff]
  %v396 = vld [vmem:[%s2 + $0x930] sm:$0xff]
  %v397 = vld [vmem:[%s2 + $0x938] sm:$0xff]
  %v398 = vld [vmem:[%s2 + $0x940] sm:$0xff]
  %v399 = vld [vmem:[%s2 + $0x948] sm:$0xff]
  %v400 = vld [vmem:[%s2 + $0x950] sm:$0xff]
  %v401 = vld [vmem:[%s2 + $0x958] sm:$0xff]
  %v402 = vld [vmem:[%s2 + $0x960] sm:$0xff]
  %v403 = vld [vmem:[%s2 + $0x968] sm:$0xff]
  %v404 = vld [vmem:[%s2 + $0x970] sm:$0xff]
  %v405 = vld [vmem:[%s2 + $0x978] sm:$0xff]
  %v406 = vld [vmem:[%s2 + $0x980] sm:$0xff]
  %v407 = vld [vmem:[%s2 + $0x988] sm:$0xff]
  %v408 = vld [vmem:[%s2 + $0x990] sm:$0xff]
  %v409 = vld [vmem:[%s2 + $0x998] sm:$0xff]
  %v410 = vld [vmem:[%s2 + $0x9a0] sm:$0xff]
  %v411 = vld [vmem:[%s2 + $0x9a8] sm:$0xff]
  %v412 = vld [vmem:[%s2 + $0x9b0] sm:$0xff]
  %v413 = vld [vmem:[%s2 + $0x9b8] sm:$0xff]
  %v414 = vld [vmem:[%s2 + $0x9c0] sm:$0xff]
  %v415 = vld [vmem:[%s2 + $0x9c8] sm:$0xff]
  %v416 = vld [vmem:[%s2 + $0x9d0] sm:$0xff]
  %v417 = vld [vmem:[%s2 + $0x9d8] sm:$0xff]
  %v418 = vld [vmem:[%s2 + $0x9e0] sm:$0xff]
  %v419 = vld [vmem:[%s2 + $0x9e8] sm:$0xff]
  %v420 = vld [vmem:[%s2 + $0x9f0] sm:$0xff]
  %v421 = vld [vmem:[%s2 + $0x9f8] sm:$0xff]
  %v422 = vld [vmem:[%s2 + $0xa00] sm:$0xff]
  %v423 = vld [vmem:[%s2 + $0xa08] sm:$0xff]
  %v424 = vld [vmem:[%s2 + $0xa10] sm:$0xff]
  %v425 = vld [vmem:[%s2 + $0xa18] sm:$0xff]
  %v426 = vld [vmem:[%s2 + $0xa20] sm:$0xff]
  %v427 = vld [vmem:[%s2 + $0xa28] sm:$0xff]
  %v428 = vld [vmem:[%s2 + $0xa30] sm:$0xff]
  %v429 = vld [vmem:[%s2 + $0xa38] sm:$0xff]
  %v430 = vld [vmem:[%s2 + $0xa40] sm:$0xff]
  %v431 = vld [vmem:[%s2 + $0xa48] sm:$0xff]
  %v432 = vld [vmem:[%s2 + $0xa50] sm:$0xff]
  %v433 = vld [vmem:[%s2 + $0xa58] sm:$0xff]
  %v434 = vld [vmem:[%s2 + $0xa60] sm:$0xff]
  %v435 = vld [vmem:[%s2 + $0xa68] sm:$0xff]
  %v436 = vld [vmem:[%s2 + $0xa70] sm:$0xff]
  %v437 = vld [vmem:[%s2 + $0xa78] sm:$0xff]
  %v438 = vld [vmem:[%s2 + $0xa80] sm:$0xff]
  %v439 = vld [vmem:[%s2 + $0xa88] sm:$0xff]
  %v440 = vld [vmem:[%s2 + $0xa90] sm:$0xff]
  %v441 = vld [vmem:[%s2 + $0xa98] sm:$0xff]
  %v442 = vld [vmem:[%s2 + $0xaa0] sm:$0xff]
  %v443 = vld [vmem:[%s2 + $0xaa8] sm:$0xff]
  %v444 = vld [vmem:[%s2 + $0xab0] sm:$0xff]
  %v445 = vld [vmem:[%s2 + $0xab8] sm:$0xff]
  %v446 = vld [vmem:[%s2 + $0xac0] sm:$0xff]
  %v447 = vld [vmem:[%s2 + $0xac8] sm:$0xff]
  %v448 = vld [vmem:[%s2 + $0xad0] sm:$0xff]
  %v449 = vld [vmem:[%s2 + $0xad8] sm:$0xff]
  %v450 = vld [vmem:[%s2 + $0xae0] sm:$0xff]
  %v451 = vld [vmem:[%s2 + $0xae8] sm:$0xff]
  %v452 = vld [vmem:[%s2 + $0xaf0] sm:$0xff]
  %v453 = vld [vmem:[%s2 + $0xaf8] sm:$0xff]
  %v454 = vld [vmem:[%s2 + $0xb00] sm:$0xff]
  %v455 = vld [vmem:[%s2 + $0xb08] sm:$0xff]
  %v456 = vld [vmem:[%s2 + $0xb10] sm:$0xff]
  %v457 = vld [vmem:[%s2 + $0xb18] sm:$0xff]
  %v458 = vld [vmem:[%s2 + $0xb20] sm:$0xff]
  %v459 = vld [vmem:[%s2 + $0xb28] sm:$0xff]
  %v460 = vld [vmem:[%s2 + $0xb30] sm:$0xff]
  %v461 = vld [vmem:[%s2 + $0xb38] sm:$0xff]
  %v462 = vld [vmem:[%s2 + $0xb40] sm:$0xff]
  %v463 = vld [vmem:[%s2 + $0xb48] sm:$0xff]
  %v464 = vld [vmem:[%s2 + $0xb50] sm:$0xff]
  %v465 = vld [vmem:[%s2 + $0xb58] sm:$0xff]
  %v466 = vld [vmem:[%s2 + $0xb60] sm:$0xff]
  %v467 = vld [vmem:[%s2 + $0xb68] sm:$0xff]
  %v468 = vld [vmem:[%s2 + $0xb70] sm:$0xff]
  %v469 = vld [vmem:[%s2 + $0xb78] sm:$0xff]
  %v470 = vld [vmem:[%s2 + $0xb80] sm:$0xff]
  %v471 = vld [vmem:[%s2 + $0xb88] sm:$0xff]
  %v472 = vld [vmem:[%s2 + $0xb90] sm:$0xff]
  %v473 = vld [vmem:[%s2 + $0xb98] sm:$0xff]
  %v474 = vld [vmem:[%s2 + $0xba0] sm:$0xff]
  %v475 = vld [vmem:[%s2 + $0xba8] sm:$0xff]
  %v476 = vld [vmem:[%s2 + $0xbb0] sm:$0xff]
  %v477 = vld [vmem:[%s2 + $0xbb8] sm:$0xff]
  %v478 = vld [vmem:[%s2 + $0xbc0] sm:$0xff]
  %v479 = vld [vmem:[%s2 + $0xbc8] sm:$0xff]
  %v480 = vld [vmem:[%s2 + $0xbd0] sm:$0xff]
  %v481 = vld [vmem:[%s2 + $0xbd8] sm:$0xff]
  %v482 = vld [vmem:[%s2 + $0xbe0] sm:$0xff]
  %v483 = vld [vmem:[%s2 + $0xbe8] sm:$0xff]
  %v484 = vld [vmem:[%s2 + $0xbf0] sm:$0xff]
  %v485 = vld [vmem:[%s2 + $0xbf8] sm:$0xff]
  %v486 = vld [vmem:[%s2 + $0xc00] sm:$0xff]
  %v487 = vld [vmem:[%s2 + $0xc08] sm:$0xff]
  %v488 = vld [vmem:[%s2 + $0xc10] sm:$0xff]
  %v489 = vld [vmem:[%s2 + $0xc18] sm:$0xff]
  %v490 = vld [vmem:[%s2 + $0xc20] sm:$0xff]
  %v491 = vld [vmem:[%s2 + $0xc28] sm:$0xff]
  %v492 = vld [vmem:[%s2 + $0xc30] sm:$0xff]
  %v493 = vld [vmem:[%s2 + $0xc38] sm:$0xff]
  %v494 = vld [vmem:[%s2 + $0xc40] sm:$0xff]
  %v495 = vld [vmem:[%s2 + $0xc48] sm:$0xff]
  %v496 = vld [vmem:[%s2 + $0xc50] sm:$0xff]
  %v497 = vld [vmem:[%s2 + $0xc58] sm:$0xff]
  %v498 = vld [vmem:[%s2 + $0xc60] sm:$0xff]
  %v499 = vld [vmem:[%s2 + $0xc68] sm:$0xff]
  %v500 = vld [vmem:[%s2 + $0xc70] sm:$0xff]
  %v501 = vld [vmem:[%s2 + $0xc78] sm:$0xff]
  %v502 = vld [vmem:[%s2 + $0xc80] sm:$0xff]
  %v503 = vld [vmem:[%s2 + $0xc88] sm:$0xff]
  %v504 = vld [vmem:[%s2 + $0xc90] sm:$0xff]
  %v505 = vld [vmem:[%s2 + $0xc98] sm:$0xff]
  %v506 = vld [vmem:[%s2 + $0xca0] sm:$0xff]
  %v507 = vld [vmem:[%s2 + $0xca8] sm:$0xff]
  %v508 = vld [vmem:[%s2 + $0xcb0] sm:$0xff]
  %v509 = vld [vmem:[%s2 + $0xcb8] sm:$0xff]
  %v510 = vld [vmem:[%s2 + $0xcc0] sm:$0xff]
  %v511 = vld [vmem:[%s2 + $0xcc8] sm:$0xff]
  %v512 = vld [vmem:[%s2 + $0xcd0] sm:$0xff]
  %v513 = vld [vmem:[%s2 + $0xcd8] sm:$0xff]
  %v514 = vld [vmem:[%s2 + $0xce0] sm:$0xff]
  %v515 = vld [vmem:[%s2 + $0xce8] sm:$0xff]
  %v516 = vld [vmem:[%s2 + $0xcf0] sm:$0xff]
  %v517 = vld [vmem:[%s2 + $0xcf8] sm:$0xff]
  %v518 = vld [vmem:[%s2 + $0xd00] sm:$0xff]
  %v519 = vld [vmem:[%s2 + $0xd08] sm:$0xff]
  %v520 = vld [vmem:[%s2 + $0xd10] sm:$0xff]
  %v521 = vld [vmem:[%s2 + $0xd18] sm:$0xff]
  %v522 = vld [vmem:[%s2 + $0xd20] sm:$0xff]
  %v523 = vld [vmem:[%s2 + $0xd28] sm:$0xff]
  %v524 = vld [vmem:[%s2 + $0xd30] sm:$0xff]
  %v525 = vld [vmem:[%s2 + $0xd38] sm:$0xff]
  %v526 = vld [vmem:[%s2 + $0xd40] sm:$0xff]
  %v527 = vld [vmem:[%s2 + $0xd48] sm:$0xff]
  %v528 = vld [vmem:[%s2 + $0xd50] sm:$0xff]
  %v529 = vld [vmem:[%s2 + $0xd58] sm:$0xff]
  %v530 = vld [vmem:[%s2 + $0xd60] sm:$0xff]
  %v531 = vld [vmem:[%s2 + $0xd68] sm:$0xff]
  %v532 = vld [vmem:[%s2 + $0xd70] sm:$0xff]
  %v533 = vld [vmem:[%s2 + $0xd78] sm:$0xff]
  %v534 = vld [vmem:[%s2 + $0xd80] sm:$0xff]
  %v535 = vld [vmem:[%s2 + $0xd88] sm:$0xff]
  %v536 = vld [vmem:[%s2 + $0xd90] sm:$0xff]
  %v537 = vld [vmem:[%s2 + $0xd98] sm:$0xff]
  %v538 = vld [vmem:[%s2 + $0xda0] sm:$0xff]
  %v539 = vld [vmem:[%s2 + $0xda8] sm:$0xff]
  %v540 = vld [vmem:[%s2 + $0xdb0] sm:$0xff]
  %v541 = vld [vmem:[%s2 + $0xdb8] sm:$0xff]
  %v542 = vld [vmem:[%s2 + $0xdc0] sm:$0xff]
  %v543 = vld [vmem:[%s2 + $0xdc8] sm:$0xff]
  %v544 = vld [vmem:[%s2 + $0xdd0] sm:$0xff]
  %v545 = vld [vmem:[%s2 + $0xdd8] sm:$0xff]
  %v546 = vld [vmem:[%s2 + $0xde0] sm:$0xff]
  %v547 = vld [vmem:[%s2 + $0xde8] sm:$0xff]
  %v548 = vld [vmem:[%s2 + $0xdf0] sm:$0xff]
  %v549 = vld [vmem:[%s2 + $0xdf8] sm:$0xff]
  %v550 = vld [vmem:[%s2 + $0xe00] sm:$0xff]
  %v551 = vld [vmem:[%s2 + $0xe08] sm:$0xff]
  %v552 = vld [vmem:[%s2 + $0xe10] sm:$0xff]
  %v553 = vld [vmem:[%s2 + $0xe18] sm:$0xff]
  %v554 = vld [vmem:[%s2 + $0xe20] sm:$0xff]
  %v555 = vld [vmem:[%s2 + $0xe28] sm:$0xff]
  %v556 = vld [vmem:[%s2 + $0xe30] sm:$0xff]
  %v557 = vld [vmem:[%s2 + $0xe38] sm:$0xff]
  %v558 = vld [vmem:[%s2 + $0xe40] sm:$0xff]
  %v559 = vld [vmem:[%s2 + $0xe48] sm:$0xff]
  %v560 = vld [vmem:[%s2 + $0xe50] sm:$0xff]
  %v561 = vld [vmem:[%s2 + $0xe58] sm:$0xff]
  %v562 = vld [vmem:[%s2 + $0xe60] sm:$0xff]
  %v563 = vld [vmem:[%s2 + $0xe68] sm:$0xff]
  %v564 = vld [vmem:[%s2 + $0xe70] sm:$0xff]
  %v565 = vld [vmem:[%s2 + $0xe78] sm:$0xff]
  %v566 = vld [vmem:[%s2 + $0xe80] sm:$0xff]
  %v567 = vld [vmem:[%s2 + $0xe88] sm:$0xff]
  %v568 = vld [vmem:[%s2 + $0xe90] sm:$0xff]
  %v569 = vld [vmem:[%s2 + $0xe98] sm:$0xff]
  %v570 = vld [vmem:[%s2 + $0xea0] sm:$0xff]
  %v571 = vld [vmem:[%s2 + $0xea8] sm:$0xff]
  %v572 = vld [vmem:[%s2 + $0xeb0] sm:$0xff]
  %v573 = vld [vmem:[%s2 + $0xeb8] sm:$0xff]
  %v574 = vld [vmem:[%s2 + $0xec0] sm:$0xff]
  %v575 = vld [vmem:[%s2 + $0xec8] sm:$0xff]
  %v576 = vld [vmem:[%s2 + $0xed0] sm:$0xff]
  %v577 = vld [vmem:[%s2 + $0xed8] sm:$0xff]
  %v578 = vld [vmem:[%s2 + $0xee0] sm:$0xff]
  %v579 = vld [vmem:[%s2 + $0xee8] sm:$0xff]
  %v580 = vld [vmem:[%s2 + $0xef0] sm:$0xff]
  %v581 = vld [vmem:[%s2 + $0xef8] sm:$0xff]
  %v582 = vld [vmem:[%s2 + $0xf00] sm:$0xff]
  %v583 = vld [vmem:[%s2 + $0xf08] sm:$0xff]
  %v584 = vld [vmem:[%s2 + $0xf10] sm:$0xff]
  %v585 = vld [vmem:[%s2 + $0xf18] sm:$0xff]
  %v586 = vld [vmem:[%s2 + $0xf20] sm:$0xff]
  %v587 = vld [vmem:[%s2 + $0xf28] sm:$0xff]
  %v588 = vld [vmem:[%s2 + $0xf30] sm:$0xff]
  %v589 = vld [vmem:[%s2 + $0xf38] sm:$0xff]
  %v590 = vld [vmem:[%s2 + $0xf40] sm:$0xff]
  %v591 = vld [vmem:[%s2 + $0xf48] sm:$0xff]
  %v592 = vld [vmem:[%s2 + $0xf50] sm:$0xff]
  %v593 = vld [vmem:[%s2 + $0xf58] sm:$0xff]
  %v594 = vld [vmem:[%s2 + $0xf60] sm:$0xff]
  %v595 = vld [vmem:[%s2 + $0xf68] sm:$0xff]
  %v596 = vld [vmem:[%s2 + $0xf70] sm:$0xff]
  %v597 = vld [vmem:[%s2 + $0xf78] sm:$0xff]
  %v598 = vld [vmem:[%s2 + $0xf80] sm:$0xff]
  %v599 = vld [vmem:[%s2 + $0xf88] sm:$0xff]
  %v600 = vld [vmem:[%s2 + $0xf90] sm:$0xff]
  %v601 = vld [vmem:[%s2 + $0xf98] sm:$0xff]
  %v602 = vld [vmem:[%s2 + $0xfa0] sm:$0xff]
  %v603 = vld [vmem:[%s2 + $0xfa8] sm:$0xff]
  %v604 = vld [vmem:[%s2 + $0xfb0] sm:$0xff]
  %v605 = vld [vmem:[%s2 + $0xfb8] sm:$0xff]
  %v606 = vld [vmem:[%s2 + $0xfc0] sm:$0xff]
  %v607 = vld [vmem:[%s2 + $0xfc8] sm:$0xff]
  %v608 = vld [vmem:[%s2 + $0xfd0] sm:$0xff]
  %v609 = vld [vmem:[%s2 + $0xfd8] sm:$0xff]
  %v610 = vld [vmem:[%s2 + $0xfe0] sm:$0xff]
  %v611 = vld [vmem:[%s2 + $0xfe8] sm:$0xff]
  %v612 = vld [vmem:[%s2 + $0xff0] sm:$0xff]
  %v613 = vld [vmem:[%s2 + $0xff8] sm:$0xff]
  %vm614 = vcmask 523264
  %v616 = vsel %vm614, %v38, 0
  %618 = vmatprep.subr.mxu0 0.0
  %619 = vmatpush1.msra.mxu0 %v102
  %620 = vmatprep.subr.mxu0 0.0
  %621 = vmatpush1.msra.mxu0 %v103
  %622 = vmatprep.subr.mxu0 0.0
  %623 = vmatpush1.msra.mxu0 %v104
  %624 = vmatprep.subr.mxu0 0.0
  %625 = vmatpush1.msra.mxu0 %v105
  %626 = vmatprep.subr.mxu0 0.0
  %627 = vmatpush1.msra.mxu0 %v106
  %628 = vmatprep.subr.mxu0 0.0
  %629 = vmatpush1.msra.mxu0 %v107
  %630 = vmatprep.subr.mxu0 0.0
  %631 = vmatpush1.msra.mxu0 %v108
  %632 = vmatprep.subr.mxu0 0.0
  %633 = vmatpush1.msra.mxu0 %v109
  %634 = vmatprep.subr.mxu0 0.0
  %635 = vmatpush1.msra.mxu0 0.0
  %636 = vmatprep.subr.mxu0 0.0
  %637 = vmatpush1.msra.mxu0 0.0
  %638 = vmatprep.subr.mxu0 0.0
  %639 = vmatpush1.msra.mxu0 0.0
  %640 = vmatprep.subr.mxu0 0.0
  %641 = vmatpush1.msra.mxu0 0.0
  %642 = vmatprep.subr.mxu0 0.0
  %643 = vmatpush1.msra.mxu0 0.0
  %644 = vmatprep.subr.mxu0 0.0
  %645 = vmatpush1.msra.mxu0 0.0
  %646 = vmatprep.subr.mxu0 0.0
  %647 = vmatpush1.msra.mxu0 0.0
  %648 = vmatprep.subr.mxu0 0.0
  %649 = vmatpush1.msra.mxu0 0.0
  %650 = vmatprep.subr.mxu0 0.0
  %651 = vmatpush1.msra.mxu0 0.0
  %652 = vmatprep.subr.mxu0 0.0
  %653 = vmatpush1.msra.mxu0 0.0
  %654 = vmatprep.subr.mxu0 0.0
  %655 = vmatpush1.msra.mxu0 0.0
  %656 = vmatprep.subr.mxu0 0.0
  %657 = vmatpush1.msra.mxu0 0.0
  %658 = vmatprep.subr.mxu0 0.0
  %659 = vmatpush1.msra.mxu0 0.0
  %660 = vmatprep.subr.mxu0 0.0
  %661 = vmatpush1.msra.mxu0 0.0
  %662 = vmatprep.subr.mxu0 0.0
  %663 = vmatpush1.msra.mxu0 0.0
  %664 = vmatprep.subr.mxu0 0.0
  %665 = vmatpush1.msra.mxu0 0.0
  %666 = vmatprep.subr.mxu0 0.0
  %667 = vmatpush1.msra.mxu0 0.0
  %668 = vmatprep.subr.mxu0 0.0
  %669 = vmatpush1.msra.mxu0 0.0
  %670 = vmatprep.subr.mxu0 0.0
  %671 = vmatpush1.msra.mxu0 0.0
  %672 = vmatprep.subr.mxu0 0.0
  %673 = vmatpush1.msra.mxu0 0.0
  %674 = vmatprep.subr.mxu0 0.0
  %675 = vmatpush1.msra.mxu0 0.0
  %676 = vmatprep.subr.mxu0 0.0
  %677 = vmatpush1.msra.mxu0 0.0
  %678 = vmatprep.subr.mxu0 0.0
  %679 = vmatpush1.msra.mxu0 0.0
  %680 = vmatprep.subr.mxu0 0.0
  %681 = vmatpush1.msra.mxu0 0.0
  %682 = vmatprep.mubr.f32.mxu0 0.0
  %683 = vmatmul.mubr.f32.gmra.mrb[0].mxu0 %v616
  %v684 = vpop.f32.mrb[0].mxu0
  %v685 = vadd.f32 0.0, %v684
  %v686 = vpop.f32.mrb[0].mxu0
  %687 = vdwg.mxu0
  %v689 = vsel %vm614, %v39, 0
  %691 = vmatprep.subr.mxu0 0.0
  %692 = vmatpush1.msra.mxu0 %v110
  %693 = vmatprep.subr.mxu0 0.0
  %694 = vmatpush1.msra.mxu0 %v111
  %695 = vmatprep.subr.mxu0 0.0
  %696 = vmatpush1.msra.mxu0 %v112
  %697 = vmatprep.subr.mxu0 0.0
  %698 = vmatpush1.msra.mxu0 %v113
  %699 = vmatprep.subr.mxu0 0.0
  %700 = vmatpush1.msra.mxu0 %v114
  %701 = vmatprep.subr.mxu0 0.0
  %702 = vmatpush1.msra.mxu0 %v115
  %703 = vmatprep.subr.mxu0 0.0
  %704 = vmatpush1.msra.mxu0 %v116
  %705 = vmatprep.subr.mxu0 0.0
  %706 = vmatpush1.msra.mxu0 %v117
  %707 = vmatprep.subr.mxu0 0.0
  %708 = vmatpush1.msra.mxu0 0.0
  %709 = vmatprep.subr.mxu0 0.0
  %710 = vmatpush1.msra.mxu0 0.0
  %711 = vmatprep.subr.mxu0 0.0
  %712 = vmatpush1.msra.mxu0 0.0
  %713 = vmatprep.subr.mxu0 0.0
  %714 = vmatpush1.msra.mxu0 0.0
  %715 = vmatprep.subr.mxu0 0.0
  %716 = vmatpush1.msra.mxu0 0.0
  %717 = vmatprep.subr.mxu0 0.0
  %718 = vmatpush1.msra.mxu0 0.0
  %719 = vmatprep.subr.mxu0 0.0
  %720 = vmatpush1.msra.mxu0 0.0
  %721 = vmatprep.subr.mxu0 0.0
  %722 = vmatpush1.msra.mxu0 0.0
  %723 = vmatprep.subr.mxu0 0.0
  %724 = vmatpush1.msra.mxu0 0.0
  %725 = vmatprep.subr.mxu0 0.0
  %726 = vmatpush1.msra.mxu0 0.0
  %727 = vmatprep.subr.mxu0 0.0
  %728 = vmatpush1.msra.mxu0 0.0
  %729 = vmatprep.subr.mxu0 0.0
  %730 = vmatpush1.msra.mxu0 0.0
  %731 = vmatprep.subr.mxu0 0.0
  %732 = vmatpush1.msra.mxu0 0.0
  %733 = vmatprep.subr.mxu0 0.0
  %734 = vmatpush1.msra.mxu0 0.0
  %735 = vmatprep.subr.mxu0 0.0
  %736 = vmatpush1.msra.mxu0 0.0
  %737 = vmatprep.subr.mxu0 0.0
  %738 = vmatpush1.msra.mxu0 0.0
  %739 = vmatprep.subr.mxu0 0.0
  %740 = vmatpush1.msra.mxu0 0.0
  %741 = vmatprep.subr.mxu0 0.0
  %742 = vmatpush1.msra.mxu0 0.0
  %743 = vmatprep.subr.mxu0 0.0
  %744 = vmatpush1.msra.mxu0 0.0
  %745 = vmatprep.subr.mxu0 0.0
  %746 = vmatpush1.msra.mxu0 0.0
  %747 = vmatprep.subr.mxu0 0.0
  %748 = vmatpush1.msra.mxu0 0.0
  %749 = vmatprep.subr.mxu0 0.0
  %750 = vmatpush1.msra.mxu0 0.0
  %751 = vmatprep.subr.mxu0 0.0
  %752 = vmatpush1.msra.mxu0 0.0
  %753 = vmatprep.subr.mxu0 0.0
  %754 = vmatpush1.msra.mxu0 0.0
  %755 = vmatprep.mubr.f32.mxu0 0.0
  %756 = vmatmul.mubr.f32.gmra.mrb[0].mxu0 %v689
  %v757 = vpop.f32.mrb[0].mxu0
  %v758 = vadd.f32 0.0, %v757
  %v759 = vpop.f32.mrb[0].mxu0
  %760 = vdwg.mxu0
  %v762 = vsel %vm614, %v40, 0
  %764 = vmatprep.subr.mxu0 0.0
  %765 = vmatpush1.msra.mxu0 %v118
  %766 = vmatprep.subr.mxu0 0.0
  %767 = vmatpush1.msra.mxu0 %v119
  %768 = vmatprep.subr.mxu0 0.0
  %769 = vmatpush1.msra.mxu0 %v120
  %770 = vmatprep.subr.mxu0 0.0
  %771 = vmatpush1.msra.mxu0 %v121
  %772 = vmatprep.subr.mxu0 0.0
  %773 = vmatpush1.msra.mxu0 %v122
  %774 = vmatprep.subr.mxu0 0.0
  %775 = vmatpush1.msra.mxu0 %v123
  %776 = vmatprep.subr.mxu0 0.0
  %777 = vmatpush1.msra.mxu0 %v124
  %778 = vmatprep.subr.mxu0 0.0
  %779 = vmatpush1.msra.mxu0 %v125
  %780 = vmatprep.subr.mxu0 0.0
  %781 = vmatpush1.msra.mxu0 0.0
  %782 = vmatprep.subr.mxu0 0.0
  %783 = vmatpush1.msra.mxu0 0.0
  %784 = vmatprep.subr.mxu0 0.0
  %785 = vmatpush1.msra.mxu0 0.0
  %786 = vmatprep.subr.mxu0 0.0
  %787 = vmatpush1.msra.mxu0 0.0
  %788 = vmatprep.subr.mxu0 0.0
  %789 = vmatpush1.msra.mxu0 0.0
  %790 = vmatprep.subr.mxu0 0.0
  %791 = vmatpush1.msra.mxu0 0.0
  %792 = vmatprep.subr.mxu0 0.0
  %793 = vmatpush1.msra.mxu0 0.0
  %794 = vmatprep.subr.mxu0 0.0
  %795 = vmatpush1.msra.mxu0 0.0
  %796 = vmatprep.subr.mxu0 0.0
  %797 = vmatpush1.msra.mxu0 0.0
  %798 = vmatprep.subr.mxu0 0.0
  %799 = vmatpush1.msra.mxu0 0.0
  %800 = vmatprep.subr.mxu0 0.0
  %801 = vmatpush1.msra.mxu0 0.0
  %802 = vmatprep.subr.mxu0 0.0
  %803 = vmatpush1.msra.mxu0 0.0
  %804 = vmatprep.subr.mxu0 0.0
  %805 = vmatpush1.msra.mxu0 0.0
  %806 = vmatprep.subr.mxu0 0.0
  %807 = vmatpush1.msra.mxu0 0.0
  %808 = vmatprep.subr.mxu0 0.0
  %809 = vmatpush1.msra.mxu0 0.0
  %810 = vmatprep.subr.mxu0 0.0
  %811 = vmatpush1.msra.mxu0 0.0
  %812 = vmatprep.subr.mxu0 0.0
  %813 = vmatpush1.msra.mxu0 0.0
  %814 = vmatprep.subr.mxu0 0.0
  %815 = vmatpush1.msra.mxu0 0.0
  %816 = vmatprep.subr.mxu0 0.0
  %817 = vmatpush1.msra.mxu0 0.0
  %818 = vmatprep.subr.mxu0 0.0
  %819 = vmatpush1.msra.mxu0 0.0
  %820 = vmatprep.subr.mxu0 0.0
  %821 = vmatpush1.msra.mxu0 0.0
  %822 = vmatprep.subr.mxu0 0.0
  %823 = vmatpush1.msra.mxu0 0.0
  %824 = vmatprep.subr.mxu0 0.0
  %825 = vmatpush1.msra.mxu0 0.0
  %826 = vmatprep.subr.mxu0 0.0
  %827 = vmatpush1.msra.mxu0 0.0
  %828 = vmatprep.mubr.f32.mxu0 0.0
  %829 = vmatmul.mubr.f32.gmra.mrb[0].mxu0 %v762
  %v830 = vpop.f32.mrb[0].mxu0
  %v831 = vadd.f32 0.0, %v830
  %v832 = vpop.f32.mrb[0].mxu0
  %833 = vdwg.mxu0
  %v835 = vsel %vm614, %v41, 0
  %837 = vmatprep.subr.mxu0 0.0
  %838 = vmatpush1.msra.mxu0 %v126
  %839 = vmatprep.subr.mxu0 0.0
  %840 = vmatpush1.msra.mxu0 %v127
  %841 = vmatprep.subr.mxu0 0.0
  %842 = vmatpush1.msra.mxu0 %v128
  %843 = vmatprep.subr.mxu0 0.0
  %844 = vmatpush1.msra.mxu0 %v129
  %845 = vmatprep.subr.mxu0 0.0
  %846 = vmatpush1.msra.mxu0 %v130
  %847 = vmatprep.subr.mxu0 0.0
  %848 = vmatpush1.msra.mxu0 %v131
  %849 = vmatprep.subr.mxu0 0.0
  %850 = vmatpush1.msra.mxu0 %v132
  %851 = vmatprep.subr.mxu0 0.0
  %852 = vmatpush1.msra.mxu0 %v133
  %853 = vmatprep.subr.mxu0 0.0
  %854 = vmatpush1.msra.mxu0 0.0
  %855 = vmatprep.subr.mxu0 0.0
  %856 = vmatpush1.msra.mxu0 0.0
  %857 = vmatprep.subr.mxu0 0.0
  %858 = vmatpush1.msra.mxu0 0.0
  %859 = vmatprep.subr.mxu0 0.0
  %860 = vmatpush1.msra.mxu0 0.0
  %861 = vmatprep.subr.mxu0 0.0
  %862 = vmatpush1.msra.mxu0 0.0
  %863 = vmatprep.subr.mxu0 0.0
  %864 = vmatpush1.msra.mxu0 0.0
  %865 = vmatprep.subr.mxu0 0.0
  %866 = vmatpush1.msra.mxu0 0.0
  %867 = vmatprep.subr.mxu0 0.0
  %868 = vmatpush1.msra.mxu0 0.0
  %869 = vmatprep.subr.mxu0 0.0
  %870 = vmatpush1.msra.mxu0 0.0
  %871 = vmatprep.subr.mxu0 0.0
  %872 = vmatpush1.msra.mxu0 0.0
  %873 = vmatprep.subr.mxu0 0.0
  %874 = vmatpush1.msra.mxu0 0.0
  %875 = vmatprep.subr.mxu0 0.0
  %876 = vmatpush1.msra.mxu0 0.0
  %877 = vmatprep.subr.mxu0 0.0
  %878 = vmatpush1.msra.mxu0 0.0
  %879 = vmatprep.subr.mxu0 0.0
  %880 = vmatpush1.msra.mxu0 0.0
  %881 = vmatprep.subr.mxu0 0.0
  %882 = vmatpush1.msra.mxu0 0.0
  %883 = vmatprep.subr.mxu0 0.0
  %884 = vmatpush1.msra.mxu0 0.0
  %885 = vmatprep.subr.mxu0 0.0
  %886 = vmatpush1.msra.mxu0 0.0
  %887 = vmatprep.subr.mxu0 0.0
  %888 = vmatpush1.msra.mxu0 0.0
  %889 = vmatprep.subr.mxu0 0.0
  %890 = vmatpush1.msra.mxu0 0.0
  %891 = vmatprep.subr.mxu0 0.0
  %892 = vmatpush1.msra.mxu0 0.0
  %893 = vmatprep.subr.mxu0 0.0
  %894 = vmatpush1.msra.mxu0 0.0
  %895 = vmatprep.subr.mxu0 0.0
  %896 = vmatpush1.msra.mxu0 0.0
  %897 = vmatprep.subr.mxu0 0.0
  %898 = vmatpush1.msra.mxu0 0.0
  %899 = vmatprep.subr.mxu0 0.0
  %900 = vmatpush1.msra.mxu0 0.0
  %901 = vmatprep.mubr.f32.mxu0 0.0
  %902 = vmatmul.mubr.f32.gmra.mrb[0].mxu0 %v835
  %v903 = vpop.f32.mrb[0].mxu0
  %v904 = vadd.f32 0.0, %v903
  %v905 = vpop.f32.mrb[0].mxu0
  %906 = vdwg.mxu0
  %v908 = vsel %vm614, %v42, 0
  %910 = vmatprep.subr.mxu0 0.0
  %911 = vmatpush1.msra.mxu0 %v134
  %912 = vmatprep.subr.mxu0 0.0
  %913 = vmatpush1.msra.mxu0 %v135
  %914 = vmatprep.subr.mxu0 0.0
  %915 = vmatpush1.msra.mxu0 %v136
  %916 = vmatprep.subr.mxu0 0.0
  %917 = vmatpush1.msra.mxu0 %v137
  %918 = vmatprep.subr.mxu0 0.0
  %919 = vmatpush1.msra.mxu0 %v138
  %920 = vmatprep.subr.mxu0 0.0
  %921 = vmatpush1.msra.mxu0 %v139
  %922 = vmatprep.subr.mxu0 0.0
  %923 = vmatpush1.msra.mxu0 %v140
  %924 = vmatprep.subr.mxu0 0.0
  %925 = vmatpush1.msra.mxu0 %v141
  %926 = vmatprep.subr.mxu0 0.0
  %927 = vmatpush1.msra.mxu0 0.0
  %928 = vmatprep.subr.mxu0 0.0
  %929 = vmatpush1.msra.mxu0 0.0
  %930 = vmatprep.subr.mxu0 0.0
  %931 = vmatpush1.msra.mxu0 0.0
  %932 = vmatprep.subr.mxu0 0.0
  %933 = vmatpush1.msra.mxu0 0.0
  %934 = vmatprep.subr.mxu0 0.0
  %935 = vmatpush1.msra.mxu0 0.0
  %936 = vmatprep.subr.mxu0 0.0
  %937 = vmatpush1.msra.mxu0 0.0
  %938 = vmatprep.subr.mxu0 0.0
  %939 = vmatpush1.msra.mxu0 0.0
  %940 = vmatprep.subr.mxu0 0.0
  %941 = vmatpush1.msra.mxu0 0.0
  %942 = vmatprep.subr.mxu0 0.0
  %943 = vmatpush1.msra.mxu0 0.0
  %944 = vmatprep.subr.mxu0 0.0
  %945 = vmatpush1.msra.mxu0 0.0
  %946 = vmatprep.subr.mxu0 0.0
  %947 = vmatpush1.msra.mxu0 0.0
  %948 = vmatprep.subr.mxu0 0.0
  %949 = vmatpush1.msra.mxu0 0.0
  %950 = vmatprep.subr.mxu0 0.0
  %951 = vmatpush1.msra.mxu0 0.0
  %952 = vmatprep.subr.mxu0 0.0
  %953 = vmatpush1.msra.mxu0 0.0
  %954 = vmatprep.subr.mxu0 0.0
  %955 = vmatpush1.msra.mxu0 0.0
  %956 = vmatprep.subr.mxu0 0.0
  %957 = vmatpush1.msra.mxu0 0.0
  %958 = vmatprep.subr.mxu0 0.0
  %959 = vmatpush1.msra.mxu0 0.0
  %960 = vmatprep.subr.mxu0 0.0
  %961 = vmatpush1.msra.mxu0 0.0
  %962 = vmatprep.subr.mxu0 0.0
  %963 = vmatpush1.msra.mxu0 0.0
  %964 = vmatprep.subr.mxu0 0.0
  %965 = vmatpush1.msra.mxu0 0.0
  %966 = vmatprep.subr.mxu0 0.0
  %967 = vmatpush1.msra.mxu0 0.0
  %968 = vmatprep.subr.mxu0 0.0
  %969 = vmatpush1.msra.mxu0 0.0
  %970 = vmatprep.subr.mxu0 0.0
  %971 = vmatpush1.msra.mxu0 0.0
  %972 = vmatprep.subr.mxu0 0.0
  %973 = vmatpush1.msra.mxu0 0.0
  %974 = vmatprep.mubr.f32.mxu0 0.0
  %975 = vmatmul.mubr.f32.gmra.mrb[0].mxu0 %v908
  %v976 = vpop.f32.mrb[0].mxu0
  %v977 = vadd.f32 0.0, %v976
  %v978 = vpop.f32.mrb[0].mxu0
  %979 = vdwg.mxu0
  %v981 = vsel %vm614, %v43, 0
  %983 = vmatprep.subr.mxu0 0.0
  %984 = vmatpush1.msra.mxu0 %v142
  %985 = vmatprep.subr.mxu0 0.0
  %986 = vmatpush1.msra.mxu0 %v143
  %987 = vmatprep.subr.mxu0 0.0
  %988 = vmatpush1.msra.mxu0 %v144
  %989 = vmatprep.subr.mxu0 0.0
  %990 = vmatpush1.msra.mxu0 %v145
  %991 = vmatprep.subr.mxu0 0.0
  %992 = vmatpush1.msra.mxu0 %v146
  %993 = vmatprep.subr.mxu0 0.0
  %994 = vmatpush1.msra.mxu0 %v147
  %995 = vmatprep.subr.mxu0 0.0
  %996 = vmatpush1.msra.mxu0 %v148
  %997 = vmatprep.subr.mxu0 0.0
  %998 = vmatpush1.msra.mxu0 %v149
  %999 = vmatprep.subr.mxu0 0.0
  %1000 = vmatpush1.msra.mxu0 0.0
  %1001 = vmatprep.subr.mxu0 0.0
  %1002 = vmatpush1.msra.mxu0 0.0
  %1003 = vmatprep.subr.mxu0 0.0
  %1004 = vmatpush1.msra.mxu0 0.0
  %1005 = vmatprep.subr.mxu0 0.0
  %1006 = vmatpush1.msra.mxu0 0.0
  %1007 = vmatprep.subr.mxu0 0.0
  %1008 = vmatpush1.msra.mxu0 0.0
  %1009 = vmatprep.subr.mxu0 0.0
  %1010 = vmatpush1.msra.mxu0 0.0
  %1011 = vmatprep.subr.mxu0 0.0
  %1012 = vmatpush1.msra.mxu0 0.0
  %1013 = vmatprep.subr.mxu0 0.0
  %1014 = vmatpush1.msra.mxu0 0.0
  %1015 = vmatprep.subr.mxu0 0.0
  %1016 = vmatpush1.msra.mxu0 0.0
  %1017 = vmatprep.subr.mxu0 0.0
  %1018 = vmatpush1.msra.mxu0 0.0
  %1019 = vmatprep.subr.mxu0 0.0
  %1020 = vmatpush1.msra.mxu0 0.0
  %1021 = vmatprep.subr.mxu0 0.0
  %1022 = vmatpush1.msra.mxu0 0.0
  %1023 = vmatprep.subr.mxu0 0.0
  %1024 = vmatpush1.msra.mxu0 0.0
  %1025 = vmatprep.subr.mxu0 0.0
  %1026 = vmatpush1.msra.mxu0 0.0
  %1027 = vmatprep.subr.mxu0 0.0
  %1028 = vmatpush1.msra.mxu0 0.0
  %1029 = vmatprep.subr.mxu0 0.0
  %1030 = vmatpush1.msra.mxu0 0.0
  %1031 = vmatprep.subr.mxu0 0.0
  %1032 = vmatpush1.msra.mxu0 0.0
  %1033 = vmatprep.subr.mxu0 0.0
  %1034 = vmatpush1.msra.mxu0 0.0
  %1035 = vmatprep.subr.mxu0 0.0
  %1036 = vmatpush1.msra.mxu0 0.0
  %1037 = vmatprep.subr.mxu0 0.0
  %1038 = vmatpush1.msra.mxu0 0.0
  %1039 = vmatprep.subr.mxu0 0.0
  %1040 = vmatpush1.msra.mxu0 0.0
  %1041 = vmatprep.subr.mxu0 0.0
  %1042 = vmatpush1.msra.mxu0 0.0
  %1043 = vmatprep.subr.mxu0 0.0
  %1044 = vmatpush1.msra.mxu0 0.0
  %1045 = vmatprep.subr.mxu0 0.0
  %1046 = vmatpush1.msra.mxu0 0.0
  %1047 = vmatprep.mubr.f32.mxu0 0.0
  %1048 = vmatmul.mubr.f32.gmra.mrb[0].mxu0 %v981
  %v1049 = vpop.f32.mrb[0].mxu0
  %v1050 = vadd.f32 0.0, %v1049
  %v1051 = vpop.f32.mrb[0].mxu0
  %1052 = vdwg.mxu0
  %v1054 = vsel %vm614, %v44, 0
  %1056 = vmatprep.subr.mxu0 0.0
  %1057 = vmatpush1.msra.mxu0 %v150
  %1058 = vmatprep.subr.mxu0 0.0
  %1059 = vmatpush1.msra.mxu0 %v151
  %1060 = vmatprep.subr.mxu0 0.0
  %1061 = vmatpush1.msra.mxu0 %v152
  %1062 = vmatprep.subr.mxu0 0.0
  %1063 = vmatpush1.msra.mxu0 %v153
  %1064 = vmatprep.subr.mxu0 0.0
  %1065 = vmatpush1.msra.mxu0 %v154
  %1066 = vmatprep.subr.mxu0 0.0
  %1067 = vmatpush1.msra.mxu0 %v155
  %1068 = vmatprep.subr.mxu0 0.0
  %1069 = vmatpush1.msra.mxu0 %v156
  %1070 = vmatprep.subr.mxu0 0.0
  %1071 = vmatpush1.msra.mxu0 %v157
  %1072 = vmatprep.subr.mxu0 0.0
  %1073 = vmatpush1.msra.mxu0 0.0
  %1074 = vmatprep.subr.mxu0 0.0
  %1075 = vmatpush1.msra.mxu0 0.0
  %1076 = vmatprep.subr.mxu0 0.0
  %1077 = vmatpush1.msra.mxu0 0.0
  %1078 = vmatprep.subr.mxu0 0.0
  %1079 = vmatpush1.msra.mxu0 0.0
  %1080 = vmatprep.subr.mxu0 0.0
  %1081 = vmatpush1.msra.mxu0 0.0
  %1082 = vmatprep.subr.mxu0 0.0
  %1083 = vmatpush1.msra.mxu0 0.0
  %1084 = vmatprep.subr.mxu0 0.0
  %1085 = vmatpush1.msra.mxu0 0.0
  %1086 = vmatprep.subr.mxu0 0.0
  %1087 = vmatpush1.msra.mxu0 0.0
  %1088 = vmatprep.subr.mxu0 0.0
  %1089 = vmatpush1.msra.mxu0 0.0
  %1090 = vmatprep.subr.mxu0 0.0
  %1091 = vmatpush1.msra.mxu0 0.0
  %1092 = vmatprep.subr.mxu0 0.0
  %1093 = vmatpush1.msra.mxu0 0.0
  %1094 = vmatprep.subr.mxu0 0.0
  %1095 = vmatpush1.msra.mxu0 0.0
  %1096 = vmatprep.subr.mxu0 0.0
  %1097 = vmatpush1.msra.mxu0 0.0
  %1098 = vmatprep.subr.mxu0 0.0
  %1099 = vmatpush1.msra.mxu0 0.0
  %1100 = vmatprep.subr.mxu0 0.0
  %1101 = vmatpush1.msra.mxu0 0.0
  %1102 = vmatprep.subr.mxu0 0.0
  %1103 = vmatpush1.msra.mxu0 0.0
  %1104 = vmatprep.subr.mxu0 0.0
  %1105 = vmatpush1.msra.mxu0 0.0
  %1106 = vmatprep.subr.mxu0 0.0
  %1107 = vmatpush1.msra.mxu0 0.0
  %1108 = vmatprep.subr.mxu0 0.0
  %1109 = vmatpush1.msra.mxu0 0.0
  %1110 = vmatprep.subr.mxu0 0.0
  %1111 = vmatpush1.msra.mxu0 0.0
  %1112 = vmatprep.subr.mxu0 0.0
  %1113 = vmatpush1.msra.mxu0 0.0
  %1114 = vmatprep.subr.mxu0 0.0
  %1115 = vmatpush1.msra.mxu0 0.0
  %1116 = vmatprep.subr.mxu0 0.0
  %1117 = vmatpush1.msra.mxu0 0.0
  %1118 = vmatprep.subr.mxu0 0.0
  %1119 = vmatpush1.msra.mxu0 0.0
  %1120 = vmatprep.mubr.f32.mxu0 0.0
  %1121 = vmatmul.mubr.f32.gmra.mrb[0].mxu0 %v1054
  %v1122 = vpop.f32.mrb[0].mxu0
  %v1123 = vadd.f32 0.0, %v1122
  %v1124 = vpop.f32.mrb[0].mxu0
  %1125 = vdwg.mxu0
  %v1127 = vsel %vm614, %v45, 0
  %1129 = vmatprep.subr.mxu0 0.0
  %1130 = vmatpush1.msra.mxu0 %v158
  %1131 = vmatprep.subr.mxu0 0.0
  %1132 = vmatpush1.msra.mxu0 %v159
  %1133 = vmatprep.subr.mxu0 0.0
  %1134 = vmatpush1.msra.mxu0 %v160
  %1135 = vmatprep.subr.mxu0 0.0
  %1136 = vmatpush1.msra.mxu0 %v161
  %1137 = vmatprep.subr.mxu0 0.0
  %1138 = vmatpush1.msra.mxu0 %v162
  %1139 = vmatprep.subr.mxu0 0.0
  %1140 = vmatpush1.msra.mxu0 %v163
  %1141 = vmatprep.subr.mxu0 0.0
  %1142 = vmatpush1.msra.mxu0 %v164
  %1143 = vmatprep.subr.mxu0 0.0
  %1144 = vmatpush1.msra.mxu0 %v165
  %1145 = vmatprep.subr.mxu0 0.0
  %1146 = vmatpush1.msra.mxu0 0.0
  %1147 = vmatprep.subr.mxu0 0.0
  %1148 = vmatpush1.msra.mxu0 0.0
  %1149 = vmatprep.subr.mxu0 0.0
  %1150 = vmatpush1.msra.mxu0 0.0
  %1151 = vmatprep.subr.mxu0 0.0
  %1152 = vmatpush1.msra.mxu0 0.0
  %1153 = vmatprep.subr.mxu0 0.0
  %1154 = vmatpush1.msra.mxu0 0.0
  %1155 = vmatprep.subr.mxu0 0.0
  %1156 = vmatpush1.msra.mxu0 0.0
  %1157 = vmatprep.subr.mxu0 0.0
  %1158 = vmatpush1.msra.mxu0 0.0
  %1159 = vmatprep.subr.mxu0 0.0
  %1160 = vmatpush1.msra.mxu0 0.0
  %1161 = vmatprep.subr.mxu0 0.0
  %1162 = vmatpush1.msra.mxu0 0.0
  %1163 = vmatprep.subr.mxu0 0.0
  %1164 = vmatpush1.msra.mxu0 0.0
  %1165 = vmatprep.subr.mxu0 0.0
  %1166 = vmatpush1.msra.mxu0 0.0
  %1167 = vmatprep.subr.mxu0 0.0
  %1168 = vmatpush1.msra.mxu0 0.0
  %1169 = vmatprep.subr.mxu0 0.0
  %1170 = vmatpush1.msra.mxu0 0.0
  %1171 = vmatprep.subr.mxu0 0.0
  %1172 = vmatpush1.msra.mxu0 0.0
  %1173 = vmatprep.subr.mxu0 0.0
  %1174 = vmatpush1.msra.mxu0 0.0
  %1175 = vmatprep.subr.mxu0 0.0
  %1176 = vmatpush1.msra.mxu0 0.0
  %1177 = vmatprep.subr.mxu0 0.0
  %1178 = vmatpush1.msra.mxu0 0.0
  %1179 = vmatprep.subr.mxu0 0.0
  %1180 = vmatpush1.msra.mxu0 0.0
  %1181 = vmatprep.subr.mxu0 0.0
  %1182 = vmatpush1.msra.mxu0 0.0
  %1183 = vmatprep.subr.mxu0 0.0
  %1184 = vmatpush1.msra.mxu0 0.0
  %1185 = vmatprep.subr.mxu0 0.0
  %1186 = vmatpush1.msra.mxu0 0.0
  %1187 = vmatprep.subr.mxu0 0.0
  %1188 = vmatpush1.msra.mxu0 0.0
  %1189 = vmatprep.subr.mxu0 0.0
  %1190 = vmatpush1.msra.mxu0 0.0
  %1191 = vmatprep.subr.mxu0 0.0
  %1192 = vmatpush1.msra.mxu0 0.0
  %1193 = vmatprep.mubr.f32.mxu0 0.0
  %1194 = vmatmul.mubr.f32.gmra.mrb[0].mxu0 %v1127
  %v1195 = vpop.f32.mrb[0].mxu0
  %v1196 = vadd.f32 0.0, %v1195
  %v1197 = vpop.f32.mrb[0].mxu0
  %1198 = vdwg.mxu0
  %v1200 = vsel %vm614, %v46, 0
  %1202 = vmatprep.subr.mxu0 0.0
  %1203 = vmatpush1.msra.mxu0 %v166
  %1204 = vmatprep.subr.mxu0 0.0
  %1205 = vmatpush1.msra.mxu0 %v167
  %1206 = vmatprep.subr.mxu0 0.0
  %1207 = vmatpush1.msra.mxu0 %v168
  %1208 = vmatprep.subr.mxu0 0.0
  %1209 = vmatpush1.msra.mxu0 %v169
  %1210 = vmatprep.subr.mxu0 0.0
  %1211 = vmatpush1.msra.mxu0 %v170
  %1212 = vmatprep.subr.mxu0 0.0
  %1213 = vmatpush1.msra.mxu0 %v171
  %1214 = vmatprep.subr.mxu0 0.0
  %1215 = vmatpush1.msra.mxu0 %v172
  %1216 = vmatprep.subr.mxu0 0.0
  %1217 = vmatpush1.msra.mxu0 %v173
  %1218 = vmatprep.subr.mxu0 0.0
  %1219 = vmatpush1.msra.mxu0 0.0
  %1220 = vmatprep.subr.mxu0 0.0
  %1221 = vmatpush1.msra.mxu0 0.0
  %1222 = vmatprep.subr.mxu0 0.0
  %1223 = vmatpush1.msra.mxu0 0.0
  %1224 = vmatprep.subr.mxu0 0.0
  %1225 = vmatpush1.msra.mxu0 0.0
  %1226 = vmatprep.subr.mxu0 0.0
  %1227 = vmatpush1.msra.mxu0 0.0
  %1228 = vmatprep.subr.mxu0 0.0
  %1229 = vmatpush1.msra.mxu0 0.0
  %1230 = vmatprep.subr.mxu0 0.0
  %1231 = vmatpush1.msra.mxu0 0.0
  %1232 = vmatprep.subr.mxu0 0.0
  %1233 = vmatpush1.msra.mxu0 0.0
  %1234 = vmatprep.subr.mxu0 0.0
  %1235 = vmatpush1.msra.mxu0 0.0
  %1236 = vmatprep.subr.mxu0 0.0
  %1237 = vmatpush1.msra.mxu0 0.0
  %1238 = vmatprep.subr.mxu0 0.0
  %1239 = vmatpush1.msra.mxu0 0.0
  %1240 = vmatprep.subr.mxu0 0.0
  %1241 = vmatpush1.msra.mxu0 0.0
  %1242 = vmatprep.subr.mxu0 0.0
  %1243 = vmatpush1.msra.mxu0 0.0
  %1244 = vmatprep.subr.mxu0 0.0
  %1245 = vmatpush1.msra.mxu0 0.0
  %1246 = vmatprep.subr.mxu0 0.0
  %1247 = vmatpush1.msra.mxu0 0.0
  %1248 = vmatprep.subr.mxu0 0.0
  %1249 = vmatpush1.msra.mxu0 0.0
  %1250 = vmatprep.subr.mxu0 0.0
  %1251 = vmatpush1.msra.mxu0 0.0
  %1252 = vmatprep.subr.mxu0 0.0
  %1253 = vmatpush1.msra.mxu0 0.0
  %1254 = vmatprep.subr.mxu0 0.0
  %1255 = vmatpush1.msra.mxu0 0.0
  %1256 = vmatprep.subr.mxu0 0.0
  %1257 = vmatpush1.msra.mxu0 0.0
  %1258 = vmatprep.subr.mxu0 0.0
  %1259 = vmatpush1.msra.mxu0 0.0
  %1260 = vmatprep.subr.mxu0 0.0
  %1261 = vmatpush1.msra.mxu0 0.0
  %1262 = vmatprep.subr.mxu0 0.0
  %1263 = vmatpush1.msra.mxu0 0.0
  %1264 = vmatprep.subr.mxu0 0.0
  %1265 = vmatpush1.msra.mxu0 0.0
  %1266 = vmatprep.mubr.f32.mxu0 0.0
  %1267 = vmatmul.mubr.f32.gmra.mrb[0].mxu0 %v1200
  %v1268 = vpop.f32.mrb[0].mxu0
  %v1269 = vadd.f32 0.0, %v1268
  %v1270 = vpop.f32.mrb[0].mxu0
  %1271 = vdwg.mxu0
  %v1273 = vsel %vm614, %v47, 0
  %1275 = vmatprep.subr.mxu0 0.0
  %1276 = vmatpush1.msra.mxu0 %v174
  %1277 = vmatprep.subr.mxu0 0.0
  %1278 = vmatpush1.msra.mxu0 %v175
  %1279 = vmatprep.subr.mxu0 0.0
  %1280 = vmatpush1.msra.mxu0 %v176
  %1281 = vmatprep.subr.mxu0 0.0
  %1282 = vmatpush1.msra.mxu0 %v177
  %1283 = vmatprep.subr.mxu0 0.0
  %1284 = vmatpush1.msra.mxu0 %v178
  %1285 = vmatprep.subr.mxu0 0.0
  %1286 = vmatpush1.msra.mxu0 %v179
  %1287 = vmatprep.subr.mxu0 0.0
  %1288 = vmatpush1.msra.mxu0 %v180
  %1289 = vmatprep.subr.mxu0 0.0
  %1290 = vmatpush1.msra.mxu0 %v181
  %1291 = vmatprep.subr.mxu0 0.0
  %1292 = vmatpush1.msra.mxu0 0.0
  %1293 = vmatprep.subr.mxu0 0.0
  %1294 = vmatpush1.msra.mxu0 0.0
  %1295 = vmatprep.subr.mxu0 0.0
  %1296 = vmatpush1.msra.mxu0 0.0
  %1297 = vmatprep.subr.mxu0 0.0
  %1298 = vmatpush1.msra.mxu0 0.0
  %1299 = vmatprep.subr.mxu0 0.0
  %1300 = vmatpush1.msra.mxu0 0.0
  %1301 = vmatprep.subr.mxu0 0.0
  %1302 = vmatpush1.msra.mxu0 0.0
  %1303 = vmatprep.subr.mxu0 0.0
  %1304 = vmatpush1.msra.mxu0 0.0
  %1305 = vmatprep.subr.mxu0 0.0
  %1306 = vmatpush1.msra.mxu0 0.0
  %1307 = vmatprep.subr.mxu0 0.0
  %1308 = vmatpush1.msra.mxu0 0.0
  %1309 = vmatprep.subr.mxu0 0.0
  %1310 = vmatpush1.msra.mxu0 0.0
  %1311 = vmatprep.subr.mxu0 0.0
  %1312 = vmatpush1.msra.mxu0 0.0
  %1313 = vmatprep.subr.mxu0 0.0
  %1314 = vmatpush1.msra.mxu0 0.0
  %1315 = vmatprep.subr.mxu0 0.0
  %1316 = vmatpush1.msra.mxu0 0.0
  %1317 = vmatprep.subr.mxu0 0.0
  %1318 = vmatpush1.msra.mxu0 0.0
  %1319 = vmatprep.subr.mxu0 0.0
  %1320 = vmatpush1.msra.mxu0 0.0
  %1321 = vmatprep.subr.mxu0 0.0
  %1322 = vmatpush1.msra.mxu0 0.0
  %1323 = vmatprep.subr.mxu0 0.0
  %1324 = vmatpush1.msra.mxu0 0.0
  %1325 = vmatprep.subr.mxu0 0.0
  %1326 = vmatpush1.msra.mxu0 0.0
  %1327 = vmatprep.subr.mxu0 0.0
  %1328 = vmatpush1.msra.mxu0 0.0
  %1329 = vmatprep.subr.mxu0 0.0
  %1330 = vmatpush1.msra.mxu0 0.0
  %1331 = vmatprep.subr.mxu0 0.0
  %1332 = vmatpush1.msra.mxu0 0.0
  %1333 = vmatprep.subr.mxu0 0.0
  %1334 = vmatpush1.msra.mxu0 0.0
  %1335 = vmatprep.subr.mxu0 0.0
  %1336 = vmatpush1.msra.mxu0 0.0
  %1337 = vmatprep.subr.mxu0 0.0
  %1338 = vmatpush1.msra.mxu0 0.0
  %1339 = vmatprep.mubr.f32.mxu0 0.0
  %1340 = vmatmul.mubr.f32.gmra.mrb[0].mxu0 %v1273
  %v1341 = vpop.f32.mrb[0].mxu0
  %v1342 = vadd.f32 0.0, %v1341
  %v1343 = vpop.f32.mrb[0].mxu0
  %1344 = vdwg.mxu0
  %v1346 = vsel %vm614, %v48, 0
  %1348 = vmatprep.subr.mxu0 0.0
  %1349 = vmatpush1.msra.mxu0 %v182
  %1350 = vmatprep.subr.mxu0 0.0
  %1351 = vmatpush1.msra.mxu0 %v183
  %1352 = vmatprep.subr.mxu0 0.0
  %1353 = vmatpush1.msra.mxu0 %v184
  %1354 = vmatprep.subr.mxu0 0.0
  %1355 = vmatpush1.msra.mxu0 %v185
  %1356 = vmatprep.subr.mxu0 0.0
  %1357 = vmatpush1.msra.mxu0 %v186
  %1358 = vmatprep.subr.mxu0 0.0
  %1359 = vmatpush1.msra.mxu0 %v187
  %1360 = vmatprep.subr.mxu0 0.0
  %1361 = vmatpush1.msra.mxu0 %v188
  %1362 = vmatprep.subr.mxu0 0.0
  %1363 = vmatpush1.msra.mxu0 %v189
  %1364 = vmatprep.subr.mxu0 0.0
  %1365 = vmatpush1.msra.mxu0 0.0
  %1366 = vmatprep.subr.mxu0 0.0
  %1367 = vmatpush1.msra.mxu0 0.0
  %1368 = vmatprep.subr.mxu0 0.0
  %1369 = vmatpush1.msra.mxu0 0.0
  %1370 = vmatprep.subr.mxu0 0.0
  %1371 = vmatpush1.msra.mxu0 0.0
  %1372 = vmatprep.subr.mxu0 0.0
  %1373 = vmatpush1.msra.mxu0 0.0
  %1374 = vmatprep.subr.mxu0 0.0
  %1375 = vmatpush1.msra.mxu0 0.0
  %1376 = vmatprep.subr.mxu0 0.0
  %1377 = vmatpush1.msra.mxu0 0.0
  %1378 = vmatprep.subr.mxu0 0.0
  %1379 = vmatpush1.msra.mxu0 0.0
  %1380 = vmatprep.subr.mxu0 0.0
  %1381 = vmatpush1.msra.mxu0 0.0
  %1382 = vmatprep.subr.mxu0 0.0
  %1383 = vmatpush1.msra.mxu0 0.0
  %1384 = vmatprep.subr.mxu0 0.0
  %1385 = vmatpush1.msra.mxu0 0.0
  %1386 = vmatprep.subr.mxu0 0.0
  %1387 = vmatpush1.msra.mxu0 0.0
  %1388 = vmatprep.subr.mxu0 0.0
  %1389 = vmatpush1.msra.mxu0 0.0
  %1390 = vmatprep.subr.mxu0 0.0
  %1391 = vmatpush1.msra.mxu0 0.0
  %1392 = vmatprep.subr.mxu0 0.0
  %1393 = vmatpush1.msra.mxu0 0.0
  %1394 = vmatprep.subr.mxu0 0.0
  %1395 = vmatpush1.msra.mxu0 0.0
  %1396 = vmatprep.subr.mxu0 0.0
  %1397 = vmatpush1.msra.mxu0 0.0
  %1398 = vmatprep.subr.mxu0 0.0
  %1399 = vmatpush1.msra.mxu0 0.0
  %1400 = vmatprep.subr.mxu0 0.0
  %1401 = vmatpush1.msra.mxu0 0.0
  %1402 = vmatprep.subr.mxu0 0.0
  %1403 = vmatpush1.msra.mxu0 0.0
  %1404 = vmatprep.subr.mxu0 0.0
  %1405 = vmatpush1.msra.mxu0 0.0
  %1406 = vmatprep.subr.mxu0 0.0
  %1407 = vmatpush1.msra.mxu0 0.0
  %1408 = vmatprep.subr.mxu0 0.0
  %1409 = vmatpush1.msra.mxu0 0.0
  %1410 = vmatprep.subr.mxu0 0.0
  %1411 = vmatpush1.msra.mxu0 0.0
  %1412 = vmatprep.mubr.f32.mxu0 0.0
  %1413 = vmatmul.mubr.f32.gmra.mrb[0].mxu0 %v1346
  %v1414 = vpop.f32.mrb[0].mxu0
  %v1415 = vadd.f32 0.0, %v1414
  %v1416 = vpop.f32.mrb[0].mxu0
  %1417 = vdwg.mxu0
  %v1419 = vsel %vm614, %v49, 0
  %1421 = vmatprep.subr.mxu0 0.0
  %1422 = vmatpush1.msra.mxu0 %v190
  %1423 = vmatprep.subr.mxu0 0.0
  %1424 = vmatpush1.msra.mxu0 %v191
  %1425 = vmatprep.subr.mxu0 0.0
  %1426 = vmatpush1.msra.mxu0 %v192
  %1427 = vmatprep.subr.mxu0 0.0
  %1428 = vmatpush1.msra.mxu0 %v193
  %1429 = vmatprep.subr.mxu0 0.0
  %1430 = vmatpush1.msra.mxu0 %v194
  %1431 = vmatprep.subr.mxu0 0.0
  %1432 = vmatpush1.msra.mxu0 %v195
  %1433 = vmatprep.subr.mxu0 0.0
  %1434 = vmatpush1.msra.mxu0 %v196
  %1435 = vmatprep.subr.mxu0 0.0
  %1436 = vmatpush1.msra.mxu0 %v197
  %1437 = vmatprep.subr.mxu0 0.0
  %1438 = vmatpush1.msra.mxu0 0.0
  %1439 = vmatprep.subr.mxu0 0.0
  %1440 = vmatpush1.msra.mxu0 0.0
  %1441 = vmatprep.subr.mxu0 0.0
  %1442 = vmatpush1.msra.mxu0 0.0
  %1443 = vmatprep.subr.mxu0 0.0
  %1444 = vmatpush1.msra.mxu0 0.0
  %1445 = vmatprep.subr.mxu0 0.0
  %1446 = vmatpush1.msra.mxu0 0.0
  %1447 = vmatprep.subr.mxu0 0.0
  %1448 = vmatpush1.msra.mxu0 0.0
  %1449 = vmatprep.subr.mxu0 0.0
  %1450 = vmatpush1.msra.mxu0 0.0
  %1451 = vmatprep.subr.mxu0 0.0
  %1452 = vmatpush1.msra.mxu0 0.0
  %1453 = vmatprep.subr.mxu0 0.0
  %1454 = vmatpush1.msra.mxu0 0.0
  %1455 = vmatprep.subr.mxu0 0.0
  %1456 = vmatpush1.msra.mxu0 0.0
  %1457 = vmatprep.subr.mxu0 0.0
  %1458 = vmatpush1.msra.mxu0 0.0
  %1459 = vmatprep.subr.mxu0 0.0
  %1460 = vmatpush1.msra.mxu0 0.0
  %1461 = vmatprep.subr.mxu0 0.0
  %1462 = vmatpush1.msra.mxu0 0.0
  %1463 = vmatprep.subr.mxu0 0.0
  %1464 = vmatpush1.msra.mxu0 0.0
  %1465 = vmatprep.subr.mxu0 0.0
  %1466 = vmatpush1.msra.mxu0 0.0
  %1467 = vmatprep.subr.mxu0 0.0
  %1468 = vmatpush1.msra.mxu0 0.0
  %1469 = vmatprep.subr.mxu0 0.0
  %1470 = vmatpush1.msra.mxu0 0.0
  %1471 = vmatprep.subr.mxu0 0.0
  %1472 = vmatpush1.msra.mxu0 0.0
  %1473 = vmatprep.subr.mxu0 0.0
  %1474 = vmatpush1.msra.mxu0 0.0
  %1475 = vmatprep.subr.mxu0 0.0
  %1476 = vmatpush1.msra.mxu0 0.0
  %1477 = vmatprep.subr.mxu0 0.0
  %1478 = vmatpush1.msra.mxu0 0.0
  %1479 = vmatprep.subr.mxu0 0.0
  %1480 = vmatpush1.msra.mxu0 0.0
  %1481 = vmatprep.subr.mxu0 0.0
  %1482 = vmatpush1.msra.mxu0 0.0
  %1483 = vmatprep.subr.mxu0 0.0
  %1484 = vmatpush1.msra.mxu0 0.0
  %1485 = vmatprep.mubr.f32.mxu0 0.0
  %1486 = vmatmul.mubr.f32.gmra.mrb[0].mxu0 %v1419
  %v1487 = vpop.f32.mrb[0].mxu0
  %v1488 = vadd.f32 0.0, %v1487
  %v1489 = vpop.f32.mrb[0].mxu0
  %1490 = vdwg.mxu0
  %v1492 = vsel %vm614, %v50, 0
  %1494 = vmatprep.subr.mxu0 0.0
  %1495 = vmatpush1.msra.mxu0 %v198
  %1496 = vmatprep.subr.mxu0 0.0
  %1497 = vmatpush1.msra.mxu0 %v199
  %1498 = vmatprep.subr.mxu0 0.0
  %1499 = vmatpush1.msra.mxu0 %v200
  %1500 = vmatprep.subr.mxu0 0.0
  %1501 = vmatpush1.msra.mxu0 %v201
  %1502 = vmatprep.subr.mxu0 0.0
  %1503 = vmatpush1.msra.mxu0 %v202
  %1504 = vmatprep.subr.mxu0 0.0
  %1505 = vmatpush1.msra.mxu0 %v203
  %1506 = vmatprep.subr.mxu0 0.0
  %1507 = vmatpush1.msra.mxu0 %v204
  %1508 = vmatprep.subr.mxu0 0.0
  %1509 = vmatpush1.msra.mxu0 %v205
  %1510 = vmatprep.subr.mxu0 0.0
  %1511 = vmatpush1.msra.mxu0 0.0
  %1512 = vmatprep.subr.mxu0 0.0
  %1513 = vmatpush1.msra.mxu0 0.0
  %1514 = vmatprep.subr.mxu0 0.0
  %1515 = vmatpush1.msra.mxu0 0.0
  %1516 = vmatprep.subr.mxu0 0.0
  %1517 = vmatpush1.msra.mxu0 0.0
  %1518 = vmatprep.subr.mxu0 0.0
  %1519 = vmatpush1.msra.mxu0 0.0
  %1520 = vmatprep.subr.mxu0 0.0
  %1521 = vmatpush1.msra.mxu0 0.0
  %1522 = vmatprep.subr.mxu0 0.0
  %1523 = vmatpush1.msra.mxu0 0.0
  %1524 = vmatprep.subr.mxu0 0.0
  %1525 = vmatpush1.msra.mxu0 0.0
  %1526 = vmatprep.subr.mxu0 0.0
  %1527 = vmatpush1.msra.mxu0 0.0
  %1528 = vmatprep.subr.mxu0 0.0
  %1529 = vmatpush1.msra.mxu0 0.0
  %1530 = vmatprep.subr.mxu0 0.0
  %1531 = vmatpush1.msra.mxu0 0.0
  %1532 = vmatprep.subr.mxu0 0.0
  %1533 = vmatpush1.msra.mxu0 0.0
  %1534 = vmatprep.subr.mxu0 0.0
  %1535 = vmatpush1.msra.mxu0 0.0
  %1536 = vmatprep.subr.mxu0 0.0
  %1537 = vmatpush1.msra.mxu0 0.0
  %1538 = vmatprep.subr.mxu0 0.0
  %1539 = vmatpush1.msra.mxu0 0.0
  %1540 = vmatprep.subr.mxu0 0.0
  %1541 = vmatpush1.msra.mxu0 0.0
  %1542 = vmatprep.subr.mxu0 0.0
  %1543 = vmatpush1.msra.mxu0 0.0
  %1544 = vmatprep.subr.mxu0 0.0
  %1545 = vmatpush1.msra.mxu0 0.0
  %1546 = vmatprep.subr.mxu0 0.0
  %1547 = vmatpush1.msra.mxu0 0.0
  %1548 = vmatprep.subr.mxu0 0.0
  %1549 = vmatpush1.msra.mxu0 0.0
  %1550 = vmatprep.subr.mxu0 0.0
  %1551 = vmatpush1.msra.mxu0 0.0
  %1552 = vmatprep.subr.mxu0 0.0
  %1553 = vmatpush1.msra.mxu0 0.0
  %1554 = vmatprep.subr.mxu0 0.0
  %1555 = vmatpush1.msra.mxu0 0.0
  %1556 = vmatprep.subr.mxu0 0.0
  %1557 = vmatpush1.msra.mxu0 0.0
  %1558 = vmatprep.mubr.f32.mxu0 0.0
  %1559 = vmatmul.mubr.f32.gmra.mrb[0].mxu0 %v1492
  %v1560 = vpop.f32.mrb[0].mxu0
  %v1561 = vadd.f32 0.0, %v1560
  %v1562 = vpop.f32.mrb[0].mxu0
  %1563 = vdwg.mxu0
  %v1565 = vsel %vm614, %v51, 0
  %1567 = vmatprep.subr.mxu0 0.0
  %1568 = vmatpush1.msra.mxu0 %v206
  %1569 = vmatprep.subr.mxu0 0.0
  %1570 = vmatpush1.msra.mxu0 %v207
  %1571 = vmatprep.subr.mxu0 0.0
  %1572 = vmatpush1.msra.mxu0 %v208
  %1573 = vmatprep.subr.mxu0 0.0
  %1574 = vmatpush1.msra.mxu0 %v209
  %1575 = vmatprep.subr.mxu0 0.0
  %1576 = vmatpush1.msra.mxu0 %v210
  %1577 = vmatprep.subr.mxu0 0.0
  %1578 = vmatpush1.msra.mxu0 %v211
  %1579 = vmatprep.subr.mxu0 0.0
  %1580 = vmatpush1.msra.mxu0 %v212
  %1581 = vmatprep.subr.mxu0 0.0
  %1582 = vmatpush1.msra.mxu0 %v213
  %1583 = vmatprep.subr.mxu0 0.0
  %1584 = vmatpush1.msra.mxu0 0.0
  %1585 = vmatprep.subr.mxu0 0.0
  %1586 = vmatpush1.msra.mxu0 0.0
  %1587 = vmatprep.subr.mxu0 0.0
  %1588 = vmatpush1.msra.mxu0 0.0
  %1589 = vmatprep.subr.mxu0 0.0
  %1590 = vmatpush1.msra.mxu0 0.0
  %1591 = vmatprep.subr.mxu0 0.0
  %1592 = vmatpush1.msra.mxu0 0.0
  %1593 = vmatprep.subr.mxu0 0.0
  %1594 = vmatpush1.msra.mxu0 0.0
  %1595 = vmatprep.subr.mxu0 0.0
  %1596 = vmatpush1.msra.mxu0 0.0
  %1597 = vmatprep.subr.mxu0 0.0
  %1598 = vmatpush1.msra.mxu0 0.0
  %1599 = vmatprep.subr.mxu0 0.0
  %1600 = vmatpush1.msra.mxu0 0.0
  %1601 = vmatprep.subr.mxu0 0.0
  %1602 = vmatpush1.msra.mxu0 0.0
  %1603 = vmatprep.subr.mxu0 0.0
  %1604 = vmatpush1.msra.mxu0 0.0
  %1605 = vmatprep.subr.mxu0 0.0
  %1606 = vmatpush1.msra.mxu0 0.0
  %1607 = vmatprep.subr.mxu0 0.0
  %1608 = vmatpush1.msra.mxu0 0.0
  %1609 = vmatprep.subr.mxu0 0.0
  %1610 = vmatpush1.msra.mxu0 0.0
  %1611 = vmatprep.subr.mxu0 0.0
  %1612 = vmatpush1.msra.mxu0 0.0
  %1613 = vmatprep.subr.mxu0 0.0
  %1614 = vmatpush1.msra.mxu0 0.0
  %1615 = vmatprep.subr.mxu0 0.0
  %1616 = vmatpush1.msra.mxu0 0.0
  %1617 = vmatprep.subr.mxu0 0.0
  %1618 = vmatpush1.msra.mxu0 0.0
  %1619 = vmatprep.subr.mxu0 0.0
  %1620 = vmatpush1.msra.mxu0 0.0
  %1621 = vmatprep.subr.mxu0 0.0
  %1622 = vmatpush1.msra.mxu0 0.0
  %1623 = vmatprep.subr.mxu0 0.0
  %1624 = vmatpush1.msra.mxu0 0.0
  %1625 = vmatprep.subr.mxu0 0.0
  %1626 = vmatpush1.msra.mxu0 0.0
  %1627 = vmatprep.subr.mxu0 0.0
  %1628 = vmatpush1.msra.mxu0 0.0
  %1629 = vmatprep.subr.mxu0 0.0
  %1630 = vmatpush1.msra.mxu0 0.0
  %1631 = vmatprep.mubr.f32.mxu0 0.0
  %1632 = vmatmul.mubr.f32.gmra.mrb[0].mxu0 %v1565
  %v1633 = vpop.f32.mrb[0].mxu0
  %v1634 = vadd.f32 0.0, %v1633
  %v1635 = vpop.f32.mrb[0].mxu0
  %1636 = vdwg.mxu0
  %v1638 = vsel %vm614, %v52, 0
  %1640 = vmatprep.subr.mxu0 0.0
  %1641 = vmatpush1.msra.mxu0 %v214
  %1642 = vmatprep.subr.mxu0 0.0
  %1643 = vmatpush1.msra.mxu0 %v215
  %1644 = vmatprep.subr.mxu0 0.0
  %1645 = vmatpush1.msra.mxu0 %v216
  %1646 = vmatprep.subr.mxu0 0.0
  %1647 = vmatpush1.msra.mxu0 %v217
  %1648 = vmatprep.subr.mxu0 0.0
  %1649 = vmatpush1.msra.mxu0 %v218
  %1650 = vmatprep.subr.mxu0 0.0
  %1651 = vmatpush1.msra.mxu0 %v219
  %1652 = vmatprep.subr.mxu0 0.0
  %1653 = vmatpush1.msra.mxu0 %v220
  %1654 = vmatprep.subr.mxu0 0.0
  %1655 = vmatpush1.msra.mxu0 %v221
  %1656 = vmatprep.subr.mxu0 0.0
  %1657 = vmatpush1.msra.mxu0 0.0
  %1658 = vmatprep.subr.mxu0 0.0
  %1659 = vmatpush1.msra.mxu0 0.0
  %1660 = vmatprep.subr.mxu0 0.0
  %1661 = vmatpush1.msra.mxu0 0.0
  %1662 = vmatprep.subr.mxu0 0.0
  %1663 = vmatpush1.msra.mxu0 0.0
  %1664 = vmatprep.subr.mxu0 0.0
  %1665 = vmatpush1.msra.mxu0 0.0
  %1666 = vmatprep.subr.mxu0 0.0
  %1667 = vmatpush1.msra.mxu0 0.0
  %1668 = vmatprep.subr.mxu0 0.0
  %1669 = vmatpush1.msra.mxu0 0.0
  %1670 = vmatprep.subr.mxu0 0.0
  %1671 = vmatpush1.msra.mxu0 0.0
  %1672 = vmatprep.subr.mxu0 0.0
  %1673 = vmatpush1.msra.mxu0 0.0
  %1674 = vmatprep.subr.mxu0 0.0
  %1675 = vmatpush1.msra.mxu0 0.0
  %1676 = vmatprep.subr.mxu0 0.0
  %1677 = vmatpush1.msra.mxu0 0.0
  %1678 = vmatprep.subr.mxu0 0.0
  %1679 = vmatpush1.msra.mxu0 0.0
  %1680 = vmatprep.subr.mxu0 0.0
  %1681 = vmatpush1.msra.mxu0 0.0
  %1682 = vmatprep.subr.mxu0 0.0
  %1683 = vmatpush1.msra.mxu0 0.0
  %1684 = vmatprep.subr.mxu0 0.0
  %1685 = vmatpush1.msra.mxu0 0.0
  %1686 = vmatprep.subr.mxu0 0.0
  %1687 = vmatpush1.msra.mxu0 0.0
  %1688 = vmatprep.subr.mxu0 0.0
  %1689 = vmatpush1.msra.mxu0 0.0
  %1690 = vmatprep.subr.mxu0 0.0
  %1691 = vmatpush1.msra.mxu0 0.0
  %1692 = vmatprep.subr.mxu0 0.0
  %1693 = vmatpush1.msra.mxu0 0.0
  %1694 = vmatprep.subr.mxu0 0.0
  %1695 = vmatpush1.msra.mxu0 0.0
  %1696 = vmatprep.subr.mxu0 0.0
  %1697 = vmatpush1.msra.mxu0 0.0
  %1698 = vmatprep.subr.mxu0 0.0
  %1699 = vmatpush1.msra.mxu0 0.0
  %1700 = vmatprep.subr.mxu0 0.0
  %1701 = vmatpush1.msra.mxu0 0.0
  %1702 = vmatprep.subr.mxu0 0.0
  %1703 = vmatpush1.msra.mxu0 0.0
  %1704 = vmatprep.mubr.f32.mxu0 0.0
  %1705 = vmatmul.mubr.f32.gmra.mrb[0].mxu0 %v1638
  %v1706 = vpop.f32.mrb[0].mxu0
  %v1707 = vadd.f32 0.0, %v1706
  %v1708 = vpop.f32.mrb[0].mxu0
  %1709 = vdwg.mxu0
  %v1711 = vsel %vm614, %v53, 0
  %1713 = vmatprep.subr.mxu0 0.0
  %1714 = vmatpush1.msra.mxu0 %v222
  %1715 = vmatprep.subr.mxu0 0.0
  %1716 = vmatpush1.msra.mxu0 %v223
  %1717 = vmatprep.subr.mxu0 0.0
  %1718 = vmatpush1.msra.mxu0 %v224
  %1719 = vmatprep.subr.mxu0 0.0
  %1720 = vmatpush1.msra.mxu0 %v225
  %1721 = vmatprep.subr.mxu0 0.0
  %1722 = vmatpush1.msra.mxu0 %v226
  %1723 = vmatprep.subr.mxu0 0.0
  %1724 = vmatpush1.msra.mxu0 %v227
  %1725 = vmatprep.subr.mxu0 0.0
  %1726 = vmatpush1.msra.mxu0 %v228
  %1727 = vmatprep.subr.mxu0 0.0
  %1728 = vmatpush1.msra.mxu0 %v229
  %1729 = vmatprep.subr.mxu0 0.0
  %1730 = vmatpush1.msra.mxu0 0.0
  %1731 = vmatprep.subr.mxu0 0.0
  %1732 = vmatpush1.msra.mxu0 0.0
  %1733 = vmatprep.subr.mxu0 0.0
  %1734 = vmatpush1.msra.mxu0 0.0
  %1735 = vmatprep.subr.mxu0 0.0
  %1736 = vmatpush1.msra.mxu0 0.0
  %1737 = vmatprep.subr.mxu0 0.0
  %1738 = vmatpush1.msra.mxu0 0.0
  %1739 = vmatprep.subr.mxu0 0.0
  %1740 = vmatpush1.msra.mxu0 0.0
  %1741 = vmatprep.subr.mxu0 0.0
  %1742 = vmatpush1.msra.mxu0 0.0
  %1743 = vmatprep.subr.mxu0 0.0
  %1744 = vmatpush1.msra.mxu0 0.0
  %1745 = vmatprep.subr.mxu0 0.0
  %1746 = vmatpush1.msra.mxu0 0.0
  %1747 = vmatprep.subr.mxu0 0.0
  %1748 = vmatpush1.msra.mxu0 0.0
  %1749 = vmatprep.subr.mxu0 0.0
  %1750 = vmatpush1.msra.mxu0 0.0
  %1751 = vmatprep.subr.mxu0 0.0
  %1752 = vmatpush1.msra.mxu0 0.0
  %1753 = vmatprep.subr.mxu0 0.0
  %1754 = vmatpush1.msra.mxu0 0.0
  %1755 = vmatprep.subr.mxu0 0.0
  %1756 = vmatpush1.msra.mxu0 0.0
  %1757 = vmatprep.subr.mxu0 0.0
  %1758 = vmatpush1.msra.mxu0 0.0
  %1759 = vmatprep.subr.mxu0 0.0
  %1760 = vmatpush1.msra.mxu0 0.0
  %1761 = vmatprep.subr.mxu0 0.0
  %1762 = vmatpush1.msra.mxu0 0.0
  %1763 = vmatprep.subr.mxu0 0.0
  %1764 = vmatpush1.msra.mxu0 0.0
  %1765 = vmatprep.subr.mxu0 0.0
  %1766 = vmatpush1.msra.mxu0 0.0
  %1767 = vmatprep.subr.mxu0 0.0
  %1768 = vmatpush1.msra.mxu0 0.0
  %1769 = vmatprep.subr.mxu0 0.0
  %1770 = vmatpush1.msra.mxu0 0.0
  %1771 = vmatprep.subr.mxu0 0.0
  %1772 = vmatpush1.msra.mxu0 0.0
  %1773 = vmatprep.subr.mxu0 0.0
  %1774 = vmatpush1.msra.mxu0 0.0
  %1775 = vmatprep.subr.mxu0 0.0
  %1776 = vmatpush1.msra.mxu0 0.0
  %1777 = vmatprep.mubr.f32.mxu0 0.0
  %1778 = vmatmul.mubr.f32.gmra.mrb[0].mxu0 %v1711
  %v1779 = vpop.f32.mrb[0].mxu0
  %v1780 = vadd.f32 0.0, %v1779
  %v1781 = vpop.f32.mrb[0].mxu0
  %1782 = vdwg.mxu0
  %v1784 = vsel %vm614, %v54, 0
  %1786 = vmatprep.subr.mxu0 0.0
  %1787 = vmatpush1.msra.mxu0 %v230
  %1788 = vmatprep.subr.mxu0 0.0
  %1789 = vmatpush1.msra.mxu0 %v231
  %1790 = vmatprep.subr.mxu0 0.0
  %1791 = vmatpush1.msra.mxu0 %v232
  %1792 = vmatprep.subr.mxu0 0.0
  %1793 = vmatpush1.msra.mxu0 %v233
  %1794 = vmatprep.subr.mxu0 0.0
  %1795 = vmatpush1.msra.mxu0 %v234
  %1796 = vmatprep.subr.mxu0 0.0
  %1797 = vmatpush1.msra.mxu0 %v235
  %1798 = vmatprep.subr.mxu0 0.0
  %1799 = vmatpush1.msra.mxu0 %v236
  %1800 = vmatprep.subr.mxu0 0.0
  %1801 = vmatpush1.msra.mxu0 %v237
  %1802 = vmatprep.subr.mxu0 0.0
  %1803 = vmatpush1.msra.mxu0 0.0
  %1804 = vmatprep.subr.mxu0 0.0
  %1805 = vmatpush1.msra.mxu0 0.0
  %1806 = vmatprep.subr.mxu0 0.0
  %1807 = vmatpush1.msra.mxu0 0.0
  %1808 = vmatprep.subr.mxu0 0.0
  %1809 = vmatpush1.msra.mxu0 0.0
  %1810 = vmatprep.subr.mxu0 0.0
  %1811 = vmatpush1.msra.mxu0 0.0
  %1812 = vmatprep.subr.mxu0 0.0
  %1813 = vmatpush1.msra.mxu0 0.0
  %1814 = vmatprep.subr.mxu0 0.0
  %1815 = vmatpush1.msra.mxu0 0.0
  %1816 = vmatprep.subr.mxu0 0.0
  %1817 = vmatpush1.msra.mxu0 0.0
  %1818 = vmatprep.subr.mxu0 0.0
  %1819 = vmatpush1.msra.mxu0 0.0
  %1820 = vmatprep.subr.mxu0 0.0
  %1821 = vmatpush1.msra.mxu0 0.0
  %1822 = vmatprep.subr.mxu0 0.0
  %1823 = vmatpush1.msra.mxu0 0.0
  %1824 = vmatprep.subr.mxu0 0.0
  %1825 = vmatpush1.msra.mxu0 0.0
  %1826 = vmatprep.subr.mxu0 0.0
  %1827 = vmatpush1.msra.mxu0 0.0
  %1828 = vmatprep.subr.mxu0 0.0
  %1829 = vmatpush1.msra.mxu0 0.0
  %1830 = vmatprep.subr.mxu0 0.0
  %1831 = vmatpush1.msra.mxu0 0.0
  %1832 = vmatprep.subr.mxu0 0.0
  %1833 = vmatpush1.msra.mxu0 0.0
  %1834 = vmatprep.subr.mxu0 0.0
  %1835 = vmatpush1.msra.mxu0 0.0
  %1836 = vmatprep.subr.mxu0 0.0
  %1837 = vmatpush1.msra.mxu0 0.0
  %1838 = vmatprep.subr.mxu0 0.0
  %1839 = vmatpush1.msra.mxu0 0.0
  %1840 = vmatprep.subr.mxu0 0.0
  %1841 = vmatpush1.msra.mxu0 0.0
  %1842 = vmatprep.subr.mxu0 0.0
  %1843 = vmatpush1.msra.mxu0 0.0
  %1844 = vmatprep.subr.mxu0 0.0
  %1845 = vmatpush1.msra.mxu0 0.0
  %1846 = vmatprep.subr.mxu0 0.0
  %1847 = vmatpush1.msra.mxu0 0.0
  %1848 = vmatprep.subr.mxu0 0.0
  %1849 = vmatpush1.msra.mxu0 0.0
  %1850 = vmatprep.mubr.f32.mxu0 0.0
  %1851 = vmatmul.mubr.f32.gmra.mrb[0].mxu0 %v1784
  %v1852 = vpop.f32.mrb[0].mxu0
  %v1853 = vadd.f32 0.0, %v1852
  %v1854 = vpop.f32.mrb[0].mxu0
  %1855 = vdwg.mxu0
  %v1857 = vsel %vm614, %v55, 0
  %1859 = vmatprep.subr.mxu0 0.0
  %1860 = vmatpush1.msra.mxu0 %v238
  %1861 = vmatprep.subr.mxu0 0.0
  %1862 = vmatpush1.msra.mxu0 %v239
  %1863 = vmatprep.subr.mxu0 0.0
  %1864 = vmatpush1.msra.mxu0 %v240
  %1865 = vmatprep.subr.mxu0 0.0
  %1866 = vmatpush1.msra.mxu0 %v241
  %1867 = vmatprep.subr.mxu0 0.0
  %1868 = vmatpush1.msra.mxu0 %v242
  %1869 = vmatprep.subr.mxu0 0.0
  %1870 = vmatpush1.msra.mxu0 %v243
  %1871 = vmatprep.subr.mxu0 0.0
  %1872 = vmatpush1.msra.mxu0 %v244
  %1873 = vmatprep.subr.mxu0 0.0
  %1874 = vmatpush1.msra.mxu0 %v245
  %1875 = vmatprep.subr.mxu0 0.0
  %1876 = vmatpush1.msra.mxu0 0.0
  %1877 = vmatprep.subr.mxu0 0.0
  %1878 = vmatpush1.msra.mxu0 0.0
  %1879 = vmatprep.subr.mxu0 0.0
  %1880 = vmatpush1.msra.mxu0 0.0
  %1881 = vmatprep.subr.mxu0 0.0
  %1882 = vmatpush1.msra.mxu0 0.0
  %1883 = vmatprep.subr.mxu0 0.0
  %1884 = vmatpush1.msra.mxu0 0.0
  %1885 = vmatprep.subr.mxu0 0.0
  %1886 = vmatpush1.msra.mxu0 0.0
  %1887 = vmatprep.subr.mxu0 0.0
  %1888 = vmatpush1.msra.mxu0 0.0
  %1889 = vmatprep.subr.mxu0 0.0
  %1890 = vmatpush1.msra.mxu0 0.0
  %1891 = vmatprep.subr.mxu0 0.0
  %1892 = vmatpush1.msra.mxu0 0.0
  %1893 = vmatprep.subr.mxu0 0.0
  %1894 = vmatpush1.msra.mxu0 0.0
  %1895 = vmatprep.subr.mxu0 0.0
  %1896 = vmatpush1.msra.mxu0 0.0
  %1897 = vmatprep.subr.mxu0 0.0
  %1898 = vmatpush1.msra.mxu0 0.0
  %1899 = vmatprep.subr.mxu0 0.0
  %1900 = vmatpush1.msra.mxu0 0.0
  %1901 = vmatprep.subr.mxu0 0.0
  %1902 = vmatpush1.msra.mxu0 0.0
  %1903 = vmatprep.subr.mxu0 0.0
  %1904 = vmatpush1.msra.mxu0 0.0
  %1905 = vmatprep.subr.mxu0 0.0
  %1906 = vmatpush1.msra.mxu0 0.0
  %1907 = vmatprep.subr.mxu0 0.0
  %1908 = vmatpush1.msra.mxu0 0.0
  %1909 = vmatprep.subr.mxu0 0.0
  %1910 = vmatpush1.msra.mxu0 0.0
  %1911 = vmatprep.subr.mxu0 0.0
  %1912 = vmatpush1.msra.mxu0 0.0
  %1913 = vmatprep.subr.mxu0 0.0
  %1914 = vmatpush1.msra.mxu0 0.0
  %1915 = vmatprep.subr.mxu0 0.0
  %1916 = vmatpush1.msra.mxu0 0.0
  %1917 = vmatprep.subr.mxu0 0.0
  %1918 = vmatpush1.msra.mxu0 0.0
  %1919 = vmatprep.subr.mxu0 0.0
  %1920 = vmatpush1.msra.mxu0 0.0
  %1921 = vmatprep.subr.mxu0 0.0
  %1922 = vmatpush1.msra.mxu0 0.0
  %1923 = vmatprep.mubr.f32.mxu0 0.0
  %1924 = vmatmul.mubr.f32.gmra.mrb[0].mxu0 %v1857
  %v1925 = vpop.f32.mrb[0].mxu0
  %v1926 = vadd.f32 0.0, %v1925
  %v1927 = vpop.f32.mrb[0].mxu0
  %1928 = vdwg.mxu0
  %v1930 = vsel %vm614, %v56, 0
  %1932 = vmatprep.subr.mxu0 0.0
  %1933 = vmatpush1.msra.mxu0 %v246
  %1934 = vmatprep.subr.mxu0 0.0
  %1935 = vmatpush1.msra.mxu0 %v247
  %1936 = vmatprep.subr.mxu0 0.0
  %1937 = vmatpush1.msra.mxu0 %v248
  %1938 = vmatprep.subr.mxu0 0.0
  %1939 = vmatpush1.msra.mxu0 %v249
  %1940 = vmatprep.subr.mxu0 0.0
  %1941 = vmatpush1.msra.mxu0 %v250
  %1942 = vmatprep.subr.mxu0 0.0
  %1943 = vmatpush1.msra.mxu0 %v251
  %1944 = vmatprep.subr.mxu0 0.0
  %1945 = vmatpush1.msra.mxu0 %v252
  %1946 = vmatprep.subr.mxu0 0.0
  %1947 = vmatpush1.msra.mxu0 %v253
  %1948 = vmatprep.subr.mxu0 0.0
  %1949 = vmatpush1.msra.mxu0 0.0
  %1950 = vmatprep.subr.mxu0 0.0
  %1951 = vmatpush1.msra.mxu0 0.0
  %1952 = vmatprep.subr.mxu0 0.0
  %1953 = vmatpush1.msra.mxu0 0.0
  %1954 = vmatprep.subr.mxu0 0.0
  %1955 = vmatpush1.msra.mxu0 0.0
  %1956 = vmatprep.subr.mxu0 0.0
  %1957 = vmatpush1.msra.mxu0 0.0
  %1958 = vmatprep.subr.mxu0 0.0
  %1959 = vmatpush1.msra.mxu0 0.0
  %1960 = vmatprep.subr.mxu0 0.0
  %1961 = vmatpush1.msra.mxu0 0.0
  %1962 = vmatprep.subr.mxu0 0.0
  %1963 = vmatpush1.msra.mxu0 0.0
  %1964 = vmatprep.subr.mxu0 0.0
  %1965 = vmatpush1.msra.mxu0 0.0
  %1966 = vmatprep.subr.mxu0 0.0
  %1967 = vmatpush1.msra.mxu0 0.0
  %1968 = vmatprep.subr.mxu0 0.0
  %1969 = vmatpush1.msra.mxu0 0.0
  %1970 = vmatprep.subr.mxu0 0.0
  %1971 = vmatpush1.msra.mxu0 0.0
  %1972 = vmatprep.subr.mxu0 0.0
  %1973 = vmatpush1.msra.mxu0 0.0
  %1974 = vmatprep.subr.mxu0 0.0
  %1975 = vmatpush1.msra.mxu0 0.0
  %1976 = vmatprep.subr.mxu0 0.0
  %1977 = vmatpush1.msra.mxu0 0.0
  %1978 = vmatprep.subr.mxu0 0.0
  %1979 = vmatpush1.msra.mxu0 0.0
  %1980 = vmatprep.subr.mxu0 0.0
  %1981 = vmatpush1.msra.mxu0 0.0
  %1982 = vmatprep.subr.mxu0 0.0
  %1983 = vmatpush1.msra.mxu0 0.0
  %1984 = vmatprep.subr.mxu0 0.0
  %1985 = vmatpush1.msra.mxu0 0.0
  %1986 = vmatprep.subr.mxu0 0.0
  %1987 = vmatpush1.msra.mxu0 0.0
  %1988 = vmatprep.subr.mxu0 0.0
  %1989 = vmatpush1.msra.mxu0 0.0
  %1990 = vmatprep.subr.mxu0 0.0
  %1991 = vmatpush1.msra.mxu0 0.0
  %1992 = vmatprep.subr.mxu0 0.0
  %1993 = vmatpush1.msra.mxu0 0.0
  %1994 = vmatprep.subr.mxu0 0.0
  %1995 = vmatpush1.msra.mxu0 0.0
  %1996 = vmatprep.mubr.f32.mxu0 0.0
  %1997 = vmatmul.mubr.f32.gmra.mrb[0].mxu0 %v1930
  %v1998 = vpop.f32.mrb[0].mxu0
  %v1999 = vadd.f32 0.0, %v1998
  %v2000 = vpop.f32.mrb[0].mxu0
  %2001 = vdwg.mxu0
  %v2003 = vsel %vm614, %v57, 0
  %2005 = vmatprep.subr.mxu0 0.0
  %2006 = vmatpush1.msra.mxu0 %v254
  %2007 = vmatprep.subr.mxu0 0.0
  %2008 = vmatpush1.msra.mxu0 %v255
  %2009 = vmatprep.subr.mxu0 0.0
  %2010 = vmatpush1.msra.mxu0 %v256
  %2011 = vmatprep.subr.mxu0 0.0
  %2012 = vmatpush1.msra.mxu0 %v257
  %2013 = vmatprep.subr.mxu0 0.0
  %2014 = vmatpush1.msra.mxu0 %v258
  %2015 = vmatprep.subr.mxu0 0.0
  %2016 = vmatpush1.msra.mxu0 %v259
  %2017 = vmatprep.subr.mxu0 0.0
  %2018 = vmatpush1.msra.mxu0 %v260
  %2019 = vmatprep.subr.mxu0 0.0
  %2020 = vmatpush1.msra.mxu0 %v261
  %2021 = vmatprep.subr.mxu0 0.0
  %2022 = vmatpush1.msra.mxu0 0.0
  %2023 = vmatprep.subr.mxu0 0.0
  %2024 = vmatpush1.msra.mxu0 0.0
  %2025 = vmatprep.subr.mxu0 0.0
  %2026 = vmatpush1.msra.mxu0 0.0
  %2027 = vmatprep.subr.mxu0 0.0
  %2028 = vmatpush1.msra.mxu0 0.0
  %2029 = vmatprep.subr.mxu0 0.0
  %2030 = vmatpush1.msra.mxu0 0.0
  %2031 = vmatprep.subr.mxu0 0.0
  %2032 = vmatpush1.msra.mxu0 0.0
  %2033 = vmatprep.subr.mxu0 0.0
  %2034 = vmatpush1.msra.mxu0 0.0
  %2035 = vmatprep.subr.mxu0 0.0
  %2036 = vmatpush1.msra.mxu0 0.0
  %2037 = vmatprep.subr.mxu0 0.0
  %2038 = vmatpush1.msra.mxu0 0.0
  %2039 = vmatprep.subr.mxu0 0.0
  %2040 = vmatpush1.msra.mxu0 0.0
  %2041 = vmatprep.subr.mxu0 0.0
  %2042 = vmatpush1.msra.mxu0 0.0
  %2043 = vmatprep.subr.mxu0 0.0
  %2044 = vmatpush1.msra.mxu0 0.0
  %2045 = vmatprep.subr.mxu0 0.0
  %2046 = vmatpush1.msra.mxu0 0.0
  %2047 = vmatprep.subr.mxu0 0.0
  %2048 = vmatpush1.msra.mxu0 0.0
  %2049 = vmatprep.subr.mxu0 0.0
  %2050 = vmatpush1.msra.mxu0 0.0
  %2051 = vmatprep.subr.mxu0 0.0
  %2052 = vmatpush1.msra.mxu0 0.0
  %2053 = vmatprep.subr.mxu0 0.0
  %2054 = vmatpush1.msra.mxu0 0.0
  %2055 = vmatprep.subr.mxu0 0.0
  %2056 = vmatpush1.msra.mxu0 0.0
  %2057 = vmatprep.subr.mxu0 0.0
  %2058 = vmatpush1.msra.mxu0 0.0
  %2059 = vmatprep.subr.mxu0 0.0
  %2060 = vmatpush1.msra.mxu0 0.0
  %2061 = vmatprep.subr.mxu0 0.0
  %2062 = vmatpush1.msra.mxu0 0.0
  %2063 = vmatprep.subr.mxu0 0.0
  %2064 = vmatpush1.msra.mxu0 0.0
  %2065 = vmatprep.subr.mxu0 0.0
  %2066 = vmatpush1.msra.mxu0 0.0
  %2067 = vmatprep.subr.mxu0 0.0
  %2068 = vmatpush1.msra.mxu0 0.0
  %2069 = vmatprep.mubr.f32.mxu0 0.0
  %2070 = vmatmul.mubr.f32.gmra.mrb[0].mxu0 %v2003
  %v2071 = vpop.f32.mrb[0].mxu0
  %v2072 = vadd.f32 0.0, %v2071
  %v2073 = vpop.f32.mrb[0].mxu0
  %2074 = vdwg.mxu0
  %v2076 = vsel %vm614, %v58, 0
  %2078 = vmatprep.subr.mxu0 0.0
  %2079 = vmatpush1.msra.mxu0 %v262
  %2080 = vmatprep.subr.mxu0 0.0
  %2081 = vmatpush1.msra.mxu0 %v263
  %2082 = vmatprep.subr.mxu0 0.0
  %2083 = vmatpush1.msra.mxu0 %v264
  %2084 = vmatprep.subr.mxu0 0.0
  %2085 = vmatpush1.msra.mxu0 %v265
  %2086 = vmatprep.subr.mxu0 0.0
  %2087 = vmatpush1.msra.mxu0 %v266
  %2088 = vmatprep.subr.mxu0 0.0
  %2089 = vmatpush1.msra.mxu0 %v267
  %2090 = vmatprep.subr.mxu0 0.0
  %2091 = vmatpush1.msra.mxu0 %v268
  %2092 = vmatprep.subr.mxu0 0.0
  %2093 = vmatpush1.msra.mxu0 %v269
  %2094 = vmatprep.subr.mxu0 0.0
  %2095 = vmatpush1.msra.mxu0 0.0
  %2096 = vmatprep.subr.mxu0 0.0
  %2097 = vmatpush1.msra.mxu0 0.0
  %2098 = vmatprep.subr.mxu0 0.0
  %2099 = vmatpush1.msra.mxu0 0.0
  %2100 = vmatprep.subr.mxu0 0.0
  %2101 = vmatpush1.msra.mxu0 0.0
  %2102 = vmatprep.subr.mxu0 0.0
  %2103 = vmatpush1.msra.mxu0 0.0
  %2104 = vmatprep.subr.mxu0 0.0
  %2105 = vmatpush1.msra.mxu0 0.0
  %2106 = vmatprep.subr.mxu0 0.0
  %2107 = vmatpush1.msra.mxu0 0.0
  %2108 = vmatprep.subr.mxu0 0.0
  %2109 = vmatpush1.msra.mxu0 0.0
  %2110 = vmatprep.subr.mxu0 0.0
  %2111 = vmatpush1.msra.mxu0 0.0
  %2112 = vmatprep.subr.mxu0 0.0
  %2113 = vmatpush1.msra.mxu0 0.0
  %2114 = vmatprep.subr.mxu0 0.0
  %2115 = vmatpush1.msra.mxu0 0.0
  %2116 = vmatprep.subr.mxu0 0.0
  %2117 = vmatpush1.msra.mxu0 0.0
  %2118 = vmatprep.subr.mxu0 0.0
  %2119 = vmatpush1.msra.mxu0 0.0
  %2120 = vmatprep.subr.mxu0 0.0
  %2121 = vmatpush1.msra.mxu0 0.0
  %2122 = vmatprep.subr.mxu0 0.0
  %2123 = vmatpush1.msra.mxu0 0.0
  %2124 = vmatprep.subr.mxu0 0.0
  %2125 = vmatpush1.msra.mxu0 0.0
  %2126 = vmatprep.subr.mxu0 0.0
  %2127 = vmatpush1.msra.mxu0 0.0
  %2128 = vmatprep.subr.mxu0 0.0
  %2129 = vmatpush1.msra.mxu0 0.0
  %2130 = vmatprep.subr.mxu0 0.0
  %2131 = vmatpush1.msra.mxu0 0.0
  %2132 = vmatprep.subr.mxu0 0.0
  %2133 = vmatpush1.msra.mxu0 0.0
  %2134 = vmatprep.subr.mxu0 0.0
  %2135 = vmatpush1.msra.mxu0 0.0
  %2136 = vmatprep.subr.mxu0 0.0
  %2137 = vmatpush1.msra.mxu0 0.0
  %2138 = vmatprep.subr.mxu0 0.0
  %2139 = vmatpush1.msra.mxu0 0.0
  %2140 = vmatprep.subr.mxu0 0.0
  %2141 = vmatpush1.msra.mxu0 0.0
  %2142 = vmatprep.mubr.f32.mxu0 0.0
  %2143 = vmatmul.mubr.f32.gmra.mrb[0].mxu0 %v2076
  %v2144 = vpop.f32.mrb[0].mxu0
  %v2145 = vadd.f32 0.0, %v2144
  %v2146 = vpop.f32.mrb[0].mxu0
  %2147 = vdwg.mxu0
  %v2149 = vsel %vm614, %v59, 0
  %2151 = vmatprep.subr.mxu0 0.0
  %2152 = vmatpush1.msra.mxu0 %v270
  %2153 = vmatprep.subr.mxu0 0.0
  %2154 = vmatpush1.msra.mxu0 %v271
  %2155 = vmatprep.subr.mxu0 0.0
  %2156 = vmatpush1.msra.mxu0 %v272
  %2157 = vmatprep.subr.mxu0 0.0
  %2158 = vmatpush1.msra.mxu0 %v273
  %2159 = vmatprep.subr.mxu0 0.0
  %2160 = vmatpush1.msra.mxu0 %v274
  %2161 = vmatprep.subr.mxu0 0.0
  %2162 = vmatpush1.msra.mxu0 %v275
  %2163 = vmatprep.subr.mxu0 0.0
  %2164 = vmatpush1.msra.mxu0 %v276
  %2165 = vmatprep.subr.mxu0 0.0
  %2166 = vmatpush1.msra.mxu0 %v277
  %2167 = vmatprep.subr.mxu0 0.0
  %2168 = vmatpush1.msra.mxu0 0.0
  %2169 = vmatprep.subr.mxu0 0.0
  %2170 = vmatpush1.msra.mxu0 0.0
  %2171 = vmatprep.subr.mxu0 0.0
  %2172 = vmatpush1.msra.mxu0 0.0
  %2173 = vmatprep.subr.mxu0 0.0
  %2174 = vmatpush1.msra.mxu0 0.0
  %2175 = vmatprep.subr.mxu0 0.0
  %2176 = vmatpush1.msra.mxu0 0.0
  %2177 = vmatprep.subr.mxu0 0.0
  %2178 = vmatpush1.msra.mxu0 0.0
  %2179 = vmatprep.subr.mxu0 0.0
  %2180 = vmatpush1.msra.mxu0 0.0
  %2181 = vmatprep.subr.mxu0 0.0
  %2182 = vmatpush1.msra.mxu0 0.0
  %2183 = vmatprep.subr.mxu0 0.0
  %2184 = vmatpush1.msra.mxu0 0.0
  %2185 = vmatprep.subr.mxu0 0.0
  %2186 = vmatpush1.msra.mxu0 0.0
  %2187 = vmatprep.subr.mxu0 0.0
  %2188 = vmatpush1.msra.mxu0 0.0
  %2189 = vmatprep.subr.mxu0 0.0
  %2190 = vmatpush1.msra.mxu0 0.0
  %2191 = vmatprep.subr.mxu0 0.0
  %2192 = vmatpush1.msra.mxu0 0.0
  %2193 = vmatprep.subr.mxu0 0.0
  %2194 = vmatpush1.msra.mxu0 0.0
  %2195 = vmatprep.subr.mxu0 0.0
  %2196 = vmatpush1.msra.mxu0 0.0
  %2197 = vmatprep.subr.mxu0 0.0
  %2198 = vmatpush1.msra.mxu0 0.0
  %2199 = vmatprep.subr.mxu0 0.0
  %2200 = vmatpush1.msra.mxu0 0.0
  %2201 = vmatprep.subr.mxu0 0.0
  %2202 = vmatpush1.msra.mxu0 0.0
  %2203 = vmatprep.subr.mxu0 0.0
  %2204 = vmatpush1.msra.mxu0 0.0
  %2205 = vmatprep.subr.mxu0 0.0
  %2206 = vmatpush1.msra.mxu0 0.0
  %2207 = vmatprep.subr.mxu0 0.0
  %2208 = vmatpush1.msra.mxu0 0.0
  %2209 = vmatprep.subr.mxu0 0.0
  %2210 = vmatpush1.msra.mxu0 0.0
  %2211 = vmatprep.subr.mxu0 0.0
  %2212 = vmatpush1.msra.mxu0 0.0
  %2213 = vmatprep.subr.mxu0 0.0
  %2214 = vmatpush1.msra.mxu0 0.0
  %2215 = vmatprep.mubr.f32.mxu0 0.0
  %2216 = vmatmul.mubr.f32.gmra.mrb[0].mxu0 %v2149
  %v2217 = vpop.f32.mrb[0].mxu0
  %v2218 = vadd.f32 0.0, %v2217
  %v2219 = vpop.f32.mrb[0].mxu0
  %2220 = vdwg.mxu0
  %v2222 = vsel %vm614, %v60, 0
  %2224 = vmatprep.subr.mxu0 0.0
  %2225 = vmatpush1.msra.mxu0 %v278
  %2226 = vmatprep.subr.mxu0 0.0
  %2227 = vmatpush1.msra.mxu0 %v279
  %2228 = vmatprep.subr.mxu0 0.0
  %2229 = vmatpush1.msra.mxu0 %v280
  %2230 = vmatprep.subr.mxu0 0.0
  %2231 = vmatpush1.msra.mxu0 %v281
  %2232 = vmatprep.subr.mxu0 0.0
  %2233 = vmatpush1.msra.mxu0 %v282
  %2234 = vmatprep.subr.mxu0 0.0
  %2235 = vmatpush1.msra.mxu0 %v283
  %2236 = vmatprep.subr.mxu0 0.0
  %2237 = vmatpush1.msra.mxu0 %v284
  %2238 = vmatprep.subr.mxu0 0.0
  %2239 = vmatpush1.msra.mxu0 %v285
  %2240 = vmatprep.subr.mxu0 0.0
  %2241 = vmatpush1.msra.mxu0 0.0
  %2242 = vmatprep.subr.mxu0 0.0
  %2243 = vmatpush1.msra.mxu0 0.0
  %2244 = vmatprep.subr.mxu0 0.0
  %2245 = vmatpush1.msra.mxu0 0.0
  %2246 = vmatprep.subr.mxu0 0.0
  %2247 = vmatpush1.msra.mxu0 0.0
  %2248 = vmatprep.subr.mxu0 0.0
  %2249 = vmatpush1.msra.mxu0 0.0
  %2250 = vmatprep.subr.mxu0 0.0
  %2251 = vmatpush1.msra.mxu0 0.0
  %2252 = vmatprep.subr.mxu0 0.0
  %2253 = vmatpush1.msra.mxu0 0.0
  %2254 = vmatprep.subr.mxu0 0.0
  %2255 = vmatpush1.msra.mxu0 0.0
  %2256 = vmatprep.subr.mxu0 0.0
  %2257 = vmatpush1.msra.mxu0 0.0
  %2258 = vmatprep.subr.mxu0 0.0
  %2259 = vmatpush1.msra.mxu0 0.0
  %2260 = vmatprep.subr.mxu0 0.0
  %2261 = vmatpush1.msra.mxu0 0.0
  %2262 = vmatprep.subr.mxu0 0.0
  %2263 = vmatpush1.msra.mxu0 0.0
  %2264 = vmatprep.subr.mxu0 0.0
  %2265 = vmatpush1.msra.mxu0 0.0
  %2266 = vmatprep.subr.mxu0 0.0
  %2267 = vmatpush1.msra.mxu0 0.0
  %2268 = vmatprep.subr.mxu0 0.0
  %2269 = vmatpush1.msra.mxu0 0.0
  %2270 = vmatprep.subr.mxu0 0.0
  %2271 = vmatpush1.msra.mxu0 0.0
  %2272 = vmatprep.subr.mxu0 0.0
  %2273 = vmatpush1.msra.mxu0 0.0
  %2274 = vmatprep.subr.mxu0 0.0
  %2275 = vmatpush1.msra.mxu0 0.0
  %2276 = vmatprep.subr.mxu0 0.0
  %2277 = vmatpush1.msra.mxu0 0.0
  %2278 = vmatprep.subr.mxu0 0.0
  %2279 = vmatpush1.msra.mxu0 0.0
  %2280 = vmatprep.subr.mxu0 0.0
  %2281 = vmatpush1.msra.mxu0 0.0
  %2282 = vmatprep.subr.mxu0 0.0
  %2283 = vmatpush1.msra.mxu0 0.0
  %2284 = vmatprep.subr.mxu0 0.0
  %2285 = vmatpush1.msra.mxu0 0.0
  %2286 = vmatprep.subr.mxu0 0.0
  %2287 = vmatpush1.msra.mxu0 0.0
  %2288 = vmatprep.mubr.f32.mxu0 0.0
  %2289 = vmatmul.mubr.f32.gmra.mrb[0].mxu0 %v2222
  %v2290 = vpop.f32.mrb[0].mxu0
  %v2291 = vadd.f32 0.0, %v2290
  %v2292 = vpop.f32.mrb[0].mxu0
  %2293 = vdwg.mxu0
  %v2295 = vsel %vm614, %v61, 0
  %2297 = vmatprep.subr.mxu0 0.0
  %2298 = vmatpush1.msra.mxu0 %v286
  %2299 = vmatprep.subr.mxu0 0.0
  %2300 = vmatpush1.msra.mxu0 %v287
  %2301 = vmatprep.subr.mxu0 0.0
  %2302 = vmatpush1.msra.mxu0 %v288
  %2303 = vmatprep.subr.mxu0 0.0
  %2304 = vmatpush1.msra.mxu0 %v289
  %2305 = vmatprep.subr.mxu0 0.0
  %2306 = vmatpush1.msra.mxu0 %v290
  %2307 = vmatprep.subr.mxu0 0.0
  %2308 = vmatpush1.msra.mxu0 %v291
  %2309 = vmatprep.subr.mxu0 0.0
  %2310 = vmatpush1.msra.mxu0 %v292
  %2311 = vmatprep.subr.mxu0 0.0
  %2312 = vmatpush1.msra.mxu0 %v293
  %2313 = vmatprep.subr.mxu0 0.0
  %2314 = vmatpush1.msra.mxu0 0.0
  %2315 = vmatprep.subr.mxu0 0.0
  %2316 = vmatpush1.msra.mxu0 0.0
  %2317 = vmatprep.subr.mxu0 0.0
  %2318 = vmatpush1.msra.mxu0 0.0
  %2319 = vmatprep.subr.mxu0 0.0
  %2320 = vmatpush1.msra.mxu0 0.0
  %2321 = vmatprep.subr.mxu0 0.0
  %2322 = vmatpush1.msra.mxu0 0.0
  %2323 = vmatprep.subr.mxu0 0.0
  %2324 = vmatpush1.msra.mxu0 0.0
  %2325 = vmatprep.subr.mxu0 0.0
  %2326 = vmatpush1.msra.mxu0 0.0
  %2327 = vmatprep.subr.mxu0 0.0
  %2328 = vmatpush1.msra.mxu0 0.0
  %2329 = vmatprep.subr.mxu0 0.0
  %2330 = vmatpush1.msra.mxu0 0.0
  %2331 = vmatprep.subr.mxu0 0.0
  %2332 = vmatpush1.msra.mxu0 0.0
  %2333 = vmatprep.subr.mxu0 0.0
  %2334 = vmatpush1.msra.mxu0 0.0
  %2335 = vmatprep.subr.mxu0 0.0
  %2336 = vmatpush1.msra.mxu0 0.0
  %2337 = vmatprep.subr.mxu0 0.0
  %2338 = vmatpush1.msra.mxu0 0.0
  %2339 = vmatprep.subr.mxu0 0.0
  %2340 = vmatpush1.msra.mxu0 0.0
  %2341 = vmatprep.subr.mxu0 0.0
  %2342 = vmatpush1.msra.mxu0 0.0
  %2343 = vmatprep.subr.mxu0 0.0
  %2344 = vmatpush1.msra.mxu0 0.0
  %2345 = vmatprep.subr.mxu0 0.0
  %2346 = vmatpush1.msra.mxu0 0.0
  %2347 = vmatprep.subr.mxu0 0.0
  %2348 = vmatpush1.msra.mxu0 0.0
  %2349 = vmatprep.subr.mxu0 0.0
  %2350 = vmatpush1.msra.mxu0 0.0
  %2351 = vmatprep.subr.mxu0 0.0
  %2352 = vmatpush1.msra.mxu0 0.0
  %2353 = vmatprep.subr.mxu0 0.0
  %2354 = vmatpush1.msra.mxu0 0.0
  %2355 = vmatprep.subr.mxu0 0.0
  %2356 = vmatpush1.msra.mxu0 0.0
  %2357 = vmatprep.subr.mxu0 0.0
  %2358 = vmatpush1.msra.mxu0 0.0
  %2359 = vmatprep.subr.mxu0 0.0
  %2360 = vmatpush1.msra.mxu0 0.0
  %2361 = vmatprep.mubr.f32.mxu0 0.0
  %2362 = vmatmul.mubr.f32.gmra.mrb[0].mxu0 %v2295
  %v2363 = vpop.f32.mrb[0].mxu0
  %v2364 = vadd.f32 0.0, %v2363
  %v2365 = vpop.f32.mrb[0].mxu0
  %2366 = vdwg.mxu0
  %v2368 = vsel %vm614, %v62, 0
  %2370 = vmatprep.subr.mxu0 0.0
  %2371 = vmatpush1.msra.mxu0 %v294
  %2372 = vmatprep.subr.mxu0 0.0
  %2373 = vmatpush1.msra.mxu0 %v295
  %2374 = vmatprep.subr.mxu0 0.0
  %2375 = vmatpush1.msra.mxu0 %v296
  %2376 = vmatprep.subr.mxu0 0.0
  %2377 = vmatpush1.msra.mxu0 %v297
  %2378 = vmatprep.subr.mxu0 0.0
  %2379 = vmatpush1.msra.mxu0 %v298
  %2380 = vmatprep.subr.mxu0 0.0
  %2381 = vmatpush1.msra.mxu0 %v299
  %2382 = vmatprep.subr.mxu0 0.0
  %2383 = vmatpush1.msra.mxu0 %v300
  %2384 = vmatprep.subr.mxu0 0.0
  %2385 = vmatpush1.msra.mxu0 %v301
  %2386 = vmatprep.subr.mxu0 0.0
  %2387 = vmatpush1.msra.mxu0 0.0
  %2388 = vmatprep.subr.mxu0 0.0
  %2389 = vmatpush1.msra.mxu0 0.0
  %2390 = vmatprep.subr.mxu0 0.0
  %2391 = vmatpush1.msra.mxu0 0.0
  %2392 = vmatprep.subr.mxu0 0.0
  %2393 = vmatpush1.msra.mxu0 0.0
  %2394 = vmatprep.subr.mxu0 0.0
  %2395 = vmatpush1.msra.mxu0 0.0
  %2396 = vmatprep.subr.mxu0 0.0
  %2397 = vmatpush1.msra.mxu0 0.0
  %2398 = vmatprep.subr.mxu0 0.0
  %2399 = vmatpush1.msra.mxu0 0.0
  %2400 = vmatprep.subr.mxu0 0.0
  %2401 = vmatpush1.msra.mxu0 0.0
  %2402 = vmatprep.subr.mxu0 0.0
  %2403 = vmatpush1.msra.mxu0 0.0
  %2404 = vmatprep.subr.mxu0 0.0
  %2405 = vmatpush1.msra.mxu0 0.0
  %2406 = vmatprep.subr.mxu0 0.0
  %2407 = vmatpush1.msra.mxu0 0.0
  %2408 = vmatprep.subr.mxu0 0.0
  %2409 = vmatpush1.msra.mxu0 0.0
  %2410 = vmatprep.subr.mxu0 0.0
  %2411 = vmatpush1.msra.mxu0 0.0
  %2412 = vmatprep.subr.mxu0 0.0
  %2413 = vmatpush1.msra.mxu0 0.0
  %2414 = vmatprep.subr.mxu0 0.0
  %2415 = vmatpush1.msra.mxu0 0.0
  %2416 = vmatprep.subr.mxu0 0.0
  %2417 = vmatpush1.msra.mxu0 0.0
  %2418 = vmatprep.subr.mxu0 0.0
  %2419 = vmatpush1.msra.mxu0 0.0
  %2420 = vmatprep.subr.mxu0 0.0
  %2421 = vmatpush1.msra.mxu0 0.0
  %2422 = vmatprep.subr.mxu0 0.0
  %2423 = vmatpush1.msra.mxu0 0.0
  %2424 = vmatprep.subr.mxu0 0.0
  %2425 = vmatpush1.msra.mxu0 0.0
  %2426 = vmatprep.subr.mxu0 0.0
  %2427 = vmatpush1.msra.mxu0 0.0
  %2428 = vmatprep.subr.mxu0 0.0
  %2429 = vmatpush1.msra.mxu0 0.0
  %2430 = vmatprep.subr.mxu0 0.0
  %2431 = vmatpush1.msra.mxu0 0.0
  %2432 = vmatprep.subr.mxu0 0.0
  %2433 = vmatpush1.msra.mxu0 0.0
  %2434 = vmatprep.mubr.f32.mxu0 0.0
  %2435 = vmatmul.mubr.f32.gmra.mrb[0].mxu0 %v2368
  %v2436 = vpop.f32.mrb[0].mxu0
  %v2437 = vadd.f32 0.0, %v2436
  %v2438 = vpop.f32.mrb[0].mxu0
  %2439 = vdwg.mxu0
  %v2441 = vsel %vm614, %v63, 0
  %2443 = vmatprep.subr.mxu0 0.0
  %2444 = vmatpush1.msra.mxu0 %v302
  %2445 = vmatprep.subr.mxu0 0.0
  %2446 = vmatpush1.msra.mxu0 %v303
  %2447 = vmatprep.subr.mxu0 0.0
  %2448 = vmatpush1.msra.mxu0 %v304
  %2449 = vmatprep.subr.mxu0 0.0
  %2450 = vmatpush1.msra.mxu0 %v305
  %2451 = vmatprep.subr.mxu0 0.0
  %2452 = vmatpush1.msra.mxu0 %v306
  %2453 = vmatprep.subr.mxu0 0.0
  %2454 = vmatpush1.msra.mxu0 %v307
  %2455 = vmatprep.subr.mxu0 0.0
  %2456 = vmatpush1.msra.mxu0 %v308
  %2457 = vmatprep.subr.mxu0 0.0
  %2458 = vmatpush1.msra.mxu0 %v309
  %2459 = vmatprep.subr.mxu0 0.0
  %2460 = vmatpush1.msra.mxu0 0.0
  %2461 = vmatprep.subr.mxu0 0.0
  %2462 = vmatpush1.msra.mxu0 0.0
  %2463 = vmatprep.subr.mxu0 0.0
  %2464 = vmatpush1.msra.mxu0 0.0
  %2465 = vmatprep.subr.mxu0 0.0
  %2466 = vmatpush1.msra.mxu0 0.0
  %2467 = vmatprep.subr.mxu0 0.0
  %2468 = vmatpush1.msra.mxu0 0.0
  %2469 = vmatprep.subr.mxu0 0.0
  %2470 = vmatpush1.msra.mxu0 0.0
  %2471 = vmatprep.subr.mxu0 0.0
  %2472 = vmatpush1.msra.mxu0 0.0
  %2473 = vmatprep.subr.mxu0 0.0
  %2474 = vmatpush1.msra.mxu0 0.0
  %2475 = vmatprep.subr.mxu0 0.0
  %2476 = vmatpush1.msra.mxu0 0.0
  %2477 = vmatprep.subr.mxu0 0.0
  %2478 = vmatpush1.msra.mxu0 0.0
  %2479 = vmatprep.subr.mxu0 0.0
  %2480 = vmatpush1.msra.mxu0 0.0
  %2481 = vmatprep.subr.mxu0 0.0
  %2482 = vmatpush1.msra.mxu0 0.0
  %2483 = vmatprep.subr.mxu0 0.0
  %2484 = vmatpush1.msra.mxu0 0.0
  %2485 = vmatprep.subr.mxu0 0.0
  %2486 = vmatpush1.msra.mxu0 0.0
  %2487 = vmatprep.subr.mxu0 0.0
  %2488 = vmatpush1.msra.mxu0 0.0
  %2489 = vmatprep.subr.mxu0 0.0
  %2490 = vmatpush1.msra.mxu0 0.0
  %2491 = vmatprep.subr.mxu0 0.0
  %2492 = vmatpush1.msra.mxu0 0.0
  %2493 = vmatprep.subr.mxu0 0.0
  %2494 = vmatpush1.msra.mxu0 0.0
  %2495 = vmatprep.subr.mxu0 0.0
  %2496 = vmatpush1.msra.mxu0 0.0
  %2497 = vmatprep.subr.mxu0 0.0
  %2498 = vmatpush1.msra.mxu0 0.0
  %2499 = vmatprep.subr.mxu0 0.0
  %2500 = vmatpush1.msra.mxu0 0.0
  %2501 = vmatprep.subr.mxu0 0.0
  %2502 = vmatpush1.msra.mxu0 0.0
  %2503 = vmatprep.subr.mxu0 0.0
  %2504 = vmatpush1.msra.mxu0 0.0
  %2505 = vmatprep.subr.mxu0 0.0
  %2506 = vmatpush1.msra.mxu0 0.0
  %2507 = vmatprep.mubr.f32.mxu0 0.0
  %2508 = vmatmul.mubr.f32.gmra.mrb[0].mxu0 %v2441
  %v2509 = vpop.f32.mrb[0].mxu0
  %v2510 = vadd.f32 0.0, %v2509
  %v2511 = vpop.f32.mrb[0].mxu0
  %2512 = vdwg.mxu0
  %v2514 = vsel %vm614, %v64, 0
  %2516 = vmatprep.subr.mxu0 0.0
  %2517 = vmatpush1.msra.mxu0 %v310
  %2518 = vmatprep.subr.mxu0 0.0
  %2519 = vmatpush1.msra.mxu0 %v311
  %2520 = vmatprep.subr.mxu0 0.0
  %2521 = vmatpush1.msra.mxu0 %v312
  %2522 = vmatprep.subr.mxu0 0.0
  %2523 = vmatpush1.msra.mxu0 %v313
  %2524 = vmatprep.subr.mxu0 0.0
  %2525 = vmatpush1.msra.mxu0 %v314
  %2526 = vmatprep.subr.mxu0 0.0
  %2527 = vmatpush1.msra.mxu0 %v315
  %2528 = vmatprep.subr.mxu0 0.0
  %2529 = vmatpush1.msra.mxu0 %v316
  %2530 = vmatprep.subr.mxu0 0.0
  %2531 = vmatpush1.msra.mxu0 %v317
  %2532 = vmatprep.subr.mxu0 0.0
  %2533 = vmatpush1.msra.mxu0 0.0
  %2534 = vmatprep.subr.mxu0 0.0
  %2535 = vmatpush1.msra.mxu0 0.0
  %2536 = vmatprep.subr.mxu0 0.0
  %2537 = vmatpush1.msra.mxu0 0.0
  %2538 = vmatprep.subr.mxu0 0.0
  %2539 = vmatpush1.msra.mxu0 0.0
  %2540 = vmatprep.subr.mxu0 0.0
  %2541 = vmatpush1.msra.mxu0 0.0
  %2542 = vmatprep.subr.mxu0 0.0
  %2543 = vmatpush1.msra.mxu0 0.0
  %2544 = vmatprep.subr.mxu0 0.0
  %2545 = vmatpush1.msra.mxu0 0.0
  %2546 = vmatprep.subr.mxu0 0.0
  %2547 = vmatpush1.msra.mxu0 0.0
  %2548 = vmatprep.subr.mxu0 0.0
  %2549 = vmatpush1.msra.mxu0 0.0
  %2550 = vmatprep.subr.mxu0 0.0
  %2551 = vmatpush1.msra.mxu0 0.0
  %2552 = vmatprep.subr.mxu0 0.0
  %2553 = vmatpush1.msra.mxu0 0.0
  %2554 = vmatprep.subr.mxu0 0.0
  %2555 = vmatpush1.msra.mxu0 0.0
  %2556 = vmatprep.subr.mxu0 0.0
  %2557 = vmatpush1.msra.mxu0 0.0
  %2558 = vmatprep.subr.mxu0 0.0
  %2559 = vmatpush1.msra.mxu0 0.0
  %2560 = vmatprep.subr.mxu0 0.0
  %2561 = vmatpush1.msra.mxu0 0.0
  %2562 = vmatprep.subr.mxu0 0.0
  %2563 = vmatpush1.msra.mxu0 0.0
  %2564 = vmatprep.subr.mxu0 0.0
  %2565 = vmatpush1.msra.mxu0 0.0
  %2566 = vmatprep.subr.mxu0 0.0
  %2567 = vmatpush1.msra.mxu0 0.0
  %2568 = vmatprep.subr.mxu0 0.0
  %2569 = vmatpush1.msra.mxu0 0.0
  %2570 = vmatprep.subr.mxu0 0.0
  %2571 = vmatpush1.msra.mxu0 0.0
  %2572 = vmatprep.subr.mxu0 0.0
  %2573 = vmatpush1.msra.mxu0 0.0
  %2574 = vmatprep.subr.mxu0 0.0
  %2575 = vmatpush1.msra.mxu0 0.0
  %2576 = vmatprep.subr.mxu0 0.0
  %2577 = vmatpush1.msra.mxu0 0.0
  %2578 = vmatprep.subr.mxu0 0.0
  %2579 = vmatpush1.msra.mxu0 0.0
  %2580 = vmatprep.mubr.f32.mxu0 0.0
  %2581 = vmatmul.mubr.f32.gmra.mrb[0].mxu0 %v2514
  %v2582 = vpop.f32.mrb[0].mxu0
  %v2583 = vadd.f32 0.0, %v2582
  %v2584 = vpop.f32.mrb[0].mxu0
  %2585 = vdwg.mxu0
  %v2587 = vsel %vm614, %v65, 0
  %2589 = vmatprep.subr.mxu0 0.0
  %2590 = vmatpush1.msra.mxu0 %v318
  %2591 = vmatprep.subr.mxu0 0.0
  %2592 = vmatpush1.msra.mxu0 %v319
  %2593 = vmatprep.subr.mxu0 0.0
  %2594 = vmatpush1.msra.mxu0 %v320
  %2595 = vmatprep.subr.mxu0 0.0
  %2596 = vmatpush1.msra.mxu0 %v321
  %2597 = vmatprep.subr.mxu0 0.0
  %2598 = vmatpush1.msra.mxu0 %v322
  %2599 = vmatprep.subr.mxu0 0.0
  %2600 = vmatpush1.msra.mxu0 %v323
  %2601 = vmatprep.subr.mxu0 0.0
  %2602 = vmatpush1.msra.mxu0 %v324
  %2603 = vmatprep.subr.mxu0 0.0
  %2604 = vmatpush1.msra.mxu0 %v325
  %2605 = vmatprep.subr.mxu0 0.0
  %2606 = vmatpush1.msra.mxu0 0.0
  %2607 = vmatprep.subr.mxu0 0.0
  %2608 = vmatpush1.msra.mxu0 0.0
  %2609 = vmatprep.subr.mxu0 0.0
  %2610 = vmatpush1.msra.mxu0 0.0
  %2611 = vmatprep.subr.mxu0 0.0
  %2612 = vmatpush1.msra.mxu0 0.0
  %2613 = vmatprep.subr.mxu0 0.0
  %2614 = vmatpush1.msra.mxu0 0.0
  %2615 = vmatprep.subr.mxu0 0.0
  %2616 = vmatpush1.msra.mxu0 0.0
  %2617 = vmatprep.subr.mxu0 0.0
  %2618 = vmatpush1.msra.mxu0 0.0
  %2619 = vmatprep.subr.mxu0 0.0
  %2620 = vmatpush1.msra.mxu0 0.0
  %2621 = vmatprep.subr.mxu0 0.0
  %2622 = vmatpush1.msra.mxu0 0.0
  %2623 = vmatprep.subr.mxu0 0.0
  %2624 = vmatpush1.msra.mxu0 0.0
  %2625 = vmatprep.subr.mxu0 0.0
  %2626 = vmatpush1.msra.mxu0 0.0
  %2627 = vmatprep.subr.mxu0 0.0
  %2628 = vmatpush1.msra.mxu0 0.0
  %2629 = vmatprep.subr.mxu0 0.0
  %2630 = vmatpush1.msra.mxu0 0.0
  %2631 = vmatprep.subr.mxu0 0.0
  %2632 = vmatpush1.msra.mxu0 0.0
  %2633 = vmatprep.subr.mxu0 0.0
  %2634 = vmatpush1.msra.mxu0 0.0
  %2635 = vmatprep.subr.mxu0 0.0
  %2636 = vmatpush1.msra.mxu0 0.0
  %2637 = vmatprep.subr.mxu0 0.0
  %2638 = vmatpush1.msra.mxu0 0.0
  %2639 = vmatprep.subr.mxu0 0.0
  %2640 = vmatpush1.msra.mxu0 0.0
  %2641 = vmatprep.subr.mxu0 0.0
  %2642 = vmatpush1.msra.mxu0 0.0
  %2643 = vmatprep.subr.mxu0 0.0
  %2644 = vmatpush1.msra.mxu0 0.0
  %2645 = vmatprep.subr.mxu0 0.0
  %2646 = vmatpush1.msra.mxu0 0.0
  %2647 = vmatprep.subr.mxu0 0.0
  %2648 = vmatpush1.msra.mxu0 0.0
  %2649 = vmatprep.subr.mxu0 0.0
  %2650 = vmatpush1.msra.mxu0 0.0
  %2651 = vmatprep.subr.mxu0 0.0
  %2652 = vmatpush1.msra.mxu0 0.0
  %2653 = vmatprep.mubr.f32.mxu0 0.0
  %2654 = vmatmul.mubr.f32.gmra.mrb[0].mxu0 %v2587
  %v2655 = vpop.f32.mrb[0].mxu0
  %v2656 = vadd.f32 0.0, %v2655
  %v2657 = vpop.f32.mrb[0].mxu0
  %2658 = vdwg.mxu0
  %v2660 = vsel %vm614, %v66, 0
  %2662 = vmatprep.subr.mxu0 0.0
  %2663 = vmatpush1.msra.mxu0 %v326
  %2664 = vmatprep.subr.mxu0 0.0
  %2665 = vmatpush1.msra.mxu0 %v327
  %2666 = vmatprep.subr.mxu0 0.0
  %2667 = vmatpush1.msra.mxu0 %v328
  %2668 = vmatprep.subr.mxu0 0.0
  %2669 = vmatpush1.msra.mxu0 %v329
  %2670 = vmatprep.subr.mxu0 0.0
  %2671 = vmatpush1.msra.mxu0 %v330
  %2672 = vmatprep.subr.mxu0 0.0
  %2673 = vmatpush1.msra.mxu0 %v331
  %2674 = vmatprep.subr.mxu0 0.0
  %2675 = vmatpush1.msra.mxu0 %v332
  %2676 = vmatprep.subr.mxu0 0.0
  %2677 = vmatpush1.msra.mxu0 %v333
  %2678 = vmatprep.subr.mxu0 0.0
  %2679 = vmatpush1.msra.mxu0 0.0
  %2680 = vmatprep.subr.mxu0 0.0
  %2681 = vmatpush1.msra.mxu0 0.0
  %2682 = vmatprep.subr.mxu0 0.0
  %2683 = vmatpush1.msra.mxu0 0.0
  %2684 = vmatprep.subr.mxu0 0.0
  %2685 = vmatpush1.msra.mxu0 0.0
  %2686 = vmatprep.subr.mxu0 0.0
  %2687 = vmatpush1.msra.mxu0 0.0
  %2688 = vmatprep.subr.mxu0 0.0
  %2689 = vmatpush1.msra.mxu0 0.0
  %2690 = vmatprep.subr.mxu0 0.0
  %2691 = vmatpush1.msra.mxu0 0.0
  %2692 = vmatprep.subr.mxu0 0.0
  %2693 = vmatpush1.msra.mxu0 0.0
  %2694 = vmatprep.subr.mxu0 0.0
  %2695 = vmatpush1.msra.mxu0 0.0
  %2696 = vmatprep.subr.mxu0 0.0
  %2697 = vmatpush1.msra.mxu0 0.0
  %2698 = vmatprep.subr.mxu0 0.0
  %2699 = vmatpush1.msra.mxu0 0.0
  %2700 = vmatprep.subr.mxu0 0.0
  %2701 = vmatpush1.msra.mxu0 0.0
  %2702 = vmatprep.subr.mxu0 0.0
  %2703 = vmatpush1.msra.mxu0 0.0
  %2704 = vmatprep.subr.mxu0 0.0
  %2705 = vmatpush1.msra.mxu0 0.0
  %2706 = vmatprep.subr.mxu0 0.0
  %2707 = vmatpush1.msra.mxu0 0.0
  %2708 = vmatprep.subr.mxu0 0.0
  %2709 = vmatpush1.msra.mxu0 0.0
  %2710 = vmatprep.subr.mxu0 0.0
  %2711 = vmatpush1.msra.mxu0 0.0
  %2712 = vmatprep.subr.mxu0 0.0
  %2713 = vmatpush1.msra.mxu0 0.0
  %2714 = vmatprep.subr.mxu0 0.0
  %2715 = vmatpush1.msra.mxu0 0.0
  %2716 = vmatprep.subr.mxu0 0.0
  %2717 = vmatpush1.msra.mxu0 0.0
  %2718 = vmatprep.subr.mxu0 0.0
  %2719 = vmatpush1.msra.mxu0 0.0
  %2720 = vmatprep.subr.mxu0 0.0
  %2721 = vmatpush1.msra.mxu0 0.0
  %2722 = vmatprep.subr.mxu0 0.0
  %2723 = vmatpush1.msra.mxu0 0.0
  %2724 = vmatprep.subr.mxu0 0.0
  %2725 = vmatpush1.msra.mxu0 0.0
  %2726 = vmatprep.mubr.f32.mxu0 0.0
  %2727 = vmatmul.mubr.f32.gmra.mrb[0].mxu0 %v2660
  %v2728 = vpop.f32.mrb[0].mxu0
  %v2729 = vadd.f32 0.0, %v2728
  %v2730 = vpop.f32.mrb[0].mxu0
  %2731 = vdwg.mxu0
  %v2733 = vsel %vm614, %v67, 0
  %2735 = vmatprep.subr.mxu0 0.0
  %2736 = vmatpush1.msra.mxu0 %v334
  %2737 = vmatprep.subr.mxu0 0.0
  %2738 = vmatpush1.msra.mxu0 %v335
  %2739 = vmatprep.subr.mxu0 0.0
  %2740 = vmatpush1.msra.mxu0 %v336
  %2741 = vmatprep.subr.mxu0 0.0
  %2742 = vmatpush1.msra.mxu0 %v337
  %2743 = vmatprep.subr.mxu0 0.0
  %2744 = vmatpush1.msra.mxu0 %v338
  %2745 = vmatprep.subr.mxu0 0.0
  %2746 = vmatpush1.msra.mxu0 %v339
  %2747 = vmatprep.subr.mxu0 0.0
  %2748 = vmatpush1.msra.mxu0 %v340
  %2749 = vmatprep.subr.mxu0 0.0
  %2750 = vmatpush1.msra.mxu0 %v341
  %2751 = vmatprep.subr.mxu0 0.0
  %2752 = vmatpush1.msra.mxu0 0.0
  %2753 = vmatprep.subr.mxu0 0.0
  %2754 = vmatpush1.msra.mxu0 0.0
  %2755 = vmatprep.subr.mxu0 0.0
  %2756 = vmatpush1.msra.mxu0 0.0
  %2757 = vmatprep.subr.mxu0 0.0
  %2758 = vmatpush1.msra.mxu0 0.0
  %2759 = vmatprep.subr.mxu0 0.0
  %2760 = vmatpush1.msra.mxu0 0.0
  %2761 = vmatprep.subr.mxu0 0.0
  %2762 = vmatpush1.msra.mxu0 0.0
  %2763 = vmatprep.subr.mxu0 0.0
  %2764 = vmatpush1.msra.mxu0 0.0
  %2765 = vmatprep.subr.mxu0 0.0
  %2766 = vmatpush1.msra.mxu0 0.0
  %2767 = vmatprep.subr.mxu0 0.0
  %2768 = vmatpush1.msra.mxu0 0.0
  %2769 = vmatprep.subr.mxu0 0.0
  %2770 = vmatpush1.msra.mxu0 0.0
  %2771 = vmatprep.subr.mxu0 0.0
  %2772 = vmatpush1.msra.mxu0 0.0
  %2773 = vmatprep.subr.mxu0 0.0
  %2774 = vmatpush1.msra.mxu0 0.0
  %2775 = vmatprep.subr.mxu0 0.0
  %2776 = vmatpush1.msra.mxu0 0.0
  %2777 = vmatprep.subr.mxu0 0.0
  %2778 = vmatpush1.msra.mxu0 0.0
  %2779 = vmatprep.subr.mxu0 0.0
  %2780 = vmatpush1.msra.mxu0 0.0
  %2781 = vmatprep.subr.mxu0 0.0
  %2782 = vmatpush1.msra.mxu0 0.0
  %2783 = vmatprep.subr.mxu0 0.0
  %2784 = vmatpush1.msra.mxu0 0.0
  %2785 = vmatprep.subr.mxu0 0.0
  %2786 = vmatpush1.msra.mxu0 0.0
  %2787 = vmatprep.subr.mxu0 0.0
  %2788 = vmatpush1.msra.mxu0 0.0
  %2789 = vmatprep.subr.mxu0 0.0
  %2790 = vmatpush1.msra.mxu0 0.0
  %2791 = vmatprep.subr.mxu0 0.0
  %2792 = vmatpush1.msra.mxu0 0.0
  %2793 = vmatprep.subr.mxu0 0.0
  %2794 = vmatpush1.msra.mxu0 0.0
  %2795 = vmatprep.subr.mxu0 0.0
  %2796 = vmatpush1.msra.mxu0 0.0
  %2797 = vmatprep.subr.mxu0 0.0
  %2798 = vmatpush1.msra.mxu0 0.0
  %2799 = vmatprep.mubr.f32.mxu0 0.0
  %2800 = vmatmul.mubr.f32.gmra.mrb[0].mxu0 %v2733
  %v2801 = vpop.f32.mrb[0].mxu0
  %v2802 = vadd.f32 0.0, %v2801
  %v2803 = vpop.f32.mrb[0].mxu0
  %2804 = vdwg.mxu0
  %v2806 = vsel %vm614, %v68, 0
  %2808 = vmatprep.subr.mxu0 0.0
  %2809 = vmatpush1.msra.mxu0 %v342
  %2810 = vmatprep.subr.mxu0 0.0
  %2811 = vmatpush1.msra.mxu0 %v343
  %2812 = vmatprep.subr.mxu0 0.0
  %2813 = vmatpush1.msra.mxu0 %v344
  %2814 = vmatprep.subr.mxu0 0.0
  %2815 = vmatpush1.msra.mxu0 %v345
  %2816 = vmatprep.subr.mxu0 0.0
  %2817 = vmatpush1.msra.mxu0 %v346
  %2818 = vmatprep.subr.mxu0 0.0
  %2819 = vmatpush1.msra.mxu0 %v347
  %2820 = vmatprep.subr.mxu0 0.0
  %2821 = vmatpush1.msra.mxu0 %v348
  %2822 = vmatprep.subr.mxu0 0.0
  %2823 = vmatpush1.msra.mxu0 %v349
  %2824 = vmatprep.subr.mxu0 0.0
  %2825 = vmatpush1.msra.mxu0 0.0
  %2826 = vmatprep.subr.mxu0 0.0
  %2827 = vmatpush1.msra.mxu0 0.0
  %2828 = vmatprep.subr.mxu0 0.0
  %2829 = vmatpush1.msra.mxu0 0.0
  %2830 = vmatprep.subr.mxu0 0.0
  %2831 = vmatpush1.msra.mxu0 0.0
  %2832 = vmatprep.subr.mxu0 0.0
  %2833 = vmatpush1.msra.mxu0 0.0
  %2834 = vmatprep.subr.mxu0 0.0
  %2835 = vmatpush1.msra.mxu0 0.0
  %2836 = vmatprep.subr.mxu0 0.0
  %2837 = vmatpush1.msra.mxu0 0.0
  %2838 = vmatprep.subr.mxu0 0.0
  %2839 = vmatpush1.msra.mxu0 0.0
  %2840 = vmatprep.subr.mxu0 0.0
  %2841 = vmatpush1.msra.mxu0 0.0
  %2842 = vmatprep.subr.mxu0 0.0
  %2843 = vmatpush1.msra.mxu0 0.0
  %2844 = vmatprep.subr.mxu0 0.0
  %2845 = vmatpush1.msra.mxu0 0.0
  %2846 = vmatprep.subr.mxu0 0.0
  %2847 = vmatpush1.msra.mxu0 0.0
  %2848 = vmatprep.subr.mxu0 0.0
  %2849 = vmatpush1.msra.mxu0 0.0
  %2850 = vmatprep.subr.mxu0 0.0
  %2851 = vmatpush1.msra.mxu0 0.0
  %2852 = vmatprep.subr.mxu0 0.0
  %2853 = vmatpush1.msra.mxu0 0.0
  %2854 = vmatprep.subr.mxu0 0.0
  %2855 = vmatpush1.msra.mxu0 0.0
  %2856 = vmatprep.subr.mxu0 0.0
  %2857 = vmatpush1.msra.mxu0 0.0
  %2858 = vmatprep.subr.mxu0 0.0
  %2859 = vmatpush1.msra.mxu0 0.0
  %2860 = vmatprep.subr.mxu0 0.0
  %2861 = vmatpush1.msra.mxu0 0.0
  %2862 = vmatprep.subr.mxu0 0.0
  %2863 = vmatpush1.msra.mxu0 0.0
  %2864 = vmatprep.subr.mxu0 0.0
  %2865 = vmatpush1.msra.mxu0 0.0
  %2866 = vmatprep.subr.mxu0 0.0
  %2867 = vmatpush1.msra.mxu0 0.0
  %2868 = vmatprep.subr.mxu0 0.0
  %2869 = vmatpush1.msra.mxu0 0.0
  %2870 = vmatprep.subr.mxu0 0.0
  %2871 = vmatpush1.msra.mxu0 0.0
  %2872 = vmatprep.mubr.f32.mxu0 0.0
  %2873 = vmatmul.mubr.f32.gmra.mrb[0].mxu0 %v2806
  %v2874 = vpop.f32.mrb[0].mxu0
  %v2875 = vadd.f32 0.0, %v2874
  %v2876 = vpop.f32.mrb[0].mxu0
  %2877 = vdwg.mxu0
  %v2879 = vsel %vm614, %v69, 0
  %2881 = vmatprep.subr.mxu0 0.0
  %2882 = vmatpush1.msra.mxu0 %v350
  %2883 = vmatprep.subr.mxu0 0.0
  %2884 = vmatpush1.msra.mxu0 %v351
  %2885 = vmatprep.subr.mxu0 0.0
  %2886 = vmatpush1.msra.mxu0 %v352
  %2887 = vmatprep.subr.mxu0 0.0
  %2888 = vmatpush1.msra.mxu0 %v353
  %2889 = vmatprep.subr.mxu0 0.0
  %2890 = vmatpush1.msra.mxu0 %v354
  %2891 = vmatprep.subr.mxu0 0.0
  %2892 = vmatpush1.msra.mxu0 %v355
  %2893 = vmatprep.subr.mxu0 0.0
  %2894 = vmatpush1.msra.mxu0 %v356
  %2895 = vmatprep.subr.mxu0 0.0
  %2896 = vmatpush1.msra.mxu0 %v357
  %2897 = vmatprep.subr.mxu0 0.0
  %2898 = vmatpush1.msra.mxu0 0.0
  %2899 = vmatprep.subr.mxu0 0.0
  %2900 = vmatpush1.msra.mxu0 0.0
  %2901 = vmatprep.subr.mxu0 0.0
  %2902 = vmatpush1.msra.mxu0 0.0
  %2903 = vmatprep.subr.mxu0 0.0
  %2904 = vmatpush1.msra.mxu0 0.0
  %2905 = vmatprep.subr.mxu0 0.0
  %2906 = vmatpush1.msra.mxu0 0.0
  %2907 = vmatprep.subr.mxu0 0.0
  %2908 = vmatpush1.msra.mxu0 0.0
  %2909 = vmatprep.subr.mxu0 0.0
  %2910 = vmatpush1.msra.mxu0 0.0
  %2911 = vmatprep.subr.mxu0 0.0
  %2912 = vmatpush1.msra.mxu0 0.0
  %2913 = vmatprep.subr.mxu0 0.0
  %2914 = vmatpush1.msra.mxu0 0.0
  %2915 = vmatprep.subr.mxu0 0.0
  %2916 = vmatpush1.msra.mxu0 0.0
  %2917 = vmatprep.subr.mxu0 0.0
  %2918 = vmatpush1.msra.mxu0 0.0
  %2919 = vmatprep.subr.mxu0 0.0
  %2920 = vmatpush1.msra.mxu0 0.0
  %2921 = vmatprep.subr.mxu0 0.0
  %2922 = vmatpush1.msra.mxu0 0.0
  %2923 = vmatprep.subr.mxu0 0.0
  %2924 = vmatpush1.msra.mxu0 0.0
  %2925 = vmatprep.subr.mxu0 0.0
  %2926 = vmatpush1.msra.mxu0 0.0
  %2927 = vmatprep.subr.mxu0 0.0
  %2928 = vmatpush1.msra.mxu0 0.0
  %2929 = vmatprep.subr.mxu0 0.0
  %2930 = vmatpush1.msra.mxu0 0.0
  %2931 = vmatprep.subr.mxu0 0.0
  %2932 = vmatpush1.msra.mxu0 0.0
  %2933 = vmatprep.subr.mxu0 0.0
  %2934 = vmatpush1.msra.mxu0 0.0
  %2935 = vmatprep.subr.mxu0 0.0
  %2936 = vmatpush1.msra.mxu0 0.0
  %2937 = vmatprep.subr.mxu0 0.0
  %2938 = vmatpush1.msra.mxu0 0.0
  %2939 = vmatprep.subr.mxu0 0.0
  %2940 = vmatpush1.msra.mxu0 0.0
  %2941 = vmatprep.subr.mxu0 0.0
  %2942 = vmatpush1.msra.mxu0 0.0
  %2943 = vmatprep.subr.mxu0 0.0
  %2944 = vmatpush1.msra.mxu0 0.0
  %2945 = vmatprep.mubr.f32.mxu0 0.0
  %2946 = vmatmul.mubr.f32.gmra.mrb[0].mxu0 %v2879
  %v2947 = vpop.f32.mrb[0].mxu0
  %v2948 = vadd.f32 0.0, %v2947
  %v2949 = vpop.f32.mrb[0].mxu0
  %2950 = vdwg.mxu0
  %v2952 = vsel %vm614, %v70, 0
  %2954 = vmatprep.subr.mxu0 0.0
  %2955 = vmatpush1.msra.mxu0 %v358
  %2956 = vmatprep.subr.mxu0 0.0
  %2957 = vmatpush1.msra.mxu0 %v359
  %2958 = vmatprep.subr.mxu0 0.0
  %2959 = vmatpush1.msra.mxu0 %v360
  %2960 = vmatprep.subr.mxu0 0.0
  %2961 = vmatpush1.msra.mxu0 %v361
  %2962 = vmatprep.subr.mxu0 0.0
  %2963 = vmatpush1.msra.mxu0 %v362
  %2964 = vmatprep.subr.mxu0 0.0
  %2965 = vmatpush1.msra.mxu0 %v363
  %2966 = vmatprep.subr.mxu0 0.0
  %2967 = vmatpush1.msra.mxu0 %v364
  %2968 = vmatprep.subr.mxu0 0.0
  %2969 = vmatpush1.msra.mxu0 %v365
  %2970 = vmatprep.subr.mxu0 0.0
  %2971 = vmatpush1.msra.mxu0 0.0
  %2972 = vmatprep.subr.mxu0 0.0
  %2973 = vmatpush1.msra.mxu0 0.0
  %2974 = vmatprep.subr.mxu0 0.0
  %2975 = vmatpush1.msra.mxu0 0.0
  %2976 = vmatprep.subr.mxu0 0.0
  %2977 = vmatpush1.msra.mxu0 0.0
  %2978 = vmatprep.subr.mxu0 0.0
  %2979 = vmatpush1.msra.mxu0 0.0
  %2980 = vmatprep.subr.mxu0 0.0
  %2981 = vmatpush1.msra.mxu0 0.0
  %2982 = vmatprep.subr.mxu0 0.0
  %2983 = vmatpush1.msra.mxu0 0.0
  %2984 = vmatprep.subr.mxu0 0.0
  %2985 = vmatpush1.msra.mxu0 0.0
  %2986 = vmatprep.subr.mxu0 0.0
  %2987 = vmatpush1.msra.mxu0 0.0
  %2988 = vmatprep.subr.mxu0 0.0
  %2989 = vmatpush1.msra.mxu0 0.0
  %2990 = vmatprep.subr.mxu0 0.0
  %2991 = vmatpush1.msra.mxu0 0.0
  %2992 = vmatprep.subr.mxu0 0.0
  %2993 = vmatpush1.msra.mxu0 0.0
  %2994 = vmatprep.subr.mxu0 0.0
  %2995 = vmatpush1.msra.mxu0 0.0
  %2996 = vmatprep.subr.mxu0 0.0
  %2997 = vmatpush1.msra.mxu0 0.0
  %2998 = vmatprep.subr.mxu0 0.0
  %2999 = vmatpush1.msra.mxu0 0.0
  %3000 = vmatprep.subr.mxu0 0.0
  %3001 = vmatpush1.msra.mxu0 0.0
  %3002 = vmatprep.subr.mxu0 0.0
  %3003 = vmatpush1.msra.mxu0 0.0
  %3004 = vmatprep.subr.mxu0 0.0
  %3005 = vmatpush1.msra.mxu0 0.0
  %3006 = vmatprep.subr.mxu0 0.0
  %3007 = vmatpush1.msra.mxu0 0.0
  %3008 = vmatprep.subr.mxu0 0.0
  %3009 = vmatpush1.msra.mxu0 0.0
  %3010 = vmatprep.subr.mxu0 0.0
  %3011 = vmatpush1.msra.mxu0 0.0
  %3012 = vmatprep.subr.mxu0 0.0
  %3013 = vmatpush1.msra.mxu0 0.0
  %3014 = vmatprep.subr.mxu0 0.0
  %3015 = vmatpush1.msra.mxu0 0.0
  %3016 = vmatprep.subr.mxu0 0.0
  %3017 = vmatpush1.msra.mxu0 0.0
  %3018 = vmatprep.mubr.f32.mxu0 0.0
  %3019 = vmatmul.mubr.f32.gmra.mrb[0].mxu0 %v2952
  %v3020 = vpop.f32.mrb[0].mxu0
  %v3021 = vadd.f32 0.0, %v3020
  %v3022 = vpop.f32.mrb[0].mxu0
  %3023 = vdwg.mxu0
  %v3025 = vsel %vm614, %v71, 0
  %3027 = vmatprep.subr.mxu0 0.0
  %3028 = vmatpush1.msra.mxu0 %v366
  %3029 = vmatprep.subr.mxu0 0.0
  %3030 = vmatpush1.msra.mxu0 %v367
  %3031 = vmatprep.subr.mxu0 0.0
  %3032 = vmatpush1.msra.mxu0 %v368
  %3033 = vmatprep.subr.mxu0 0.0
  %3034 = vmatpush1.msra.mxu0 %v369
  %3035 = vmatprep.subr.mxu0 0.0
  %3036 = vmatpush1.msra.mxu0 %v370
  %3037 = vmatprep.subr.mxu0 0.0
  %3038 = vmatpush1.msra.mxu0 %v371
  %3039 = vmatprep.subr.mxu0 0.0
  %3040 = vmatpush1.msra.mxu0 %v372
  %3041 = vmatprep.subr.mxu0 0.0
  %3042 = vmatpush1.msra.mxu0 %v373
  %3043 = vmatprep.subr.mxu0 0.0
  %3044 = vmatpush1.msra.mxu0 0.0
  %3045 = vmatprep.subr.mxu0 0.0
  %3046 = vmatpush1.msra.mxu0 0.0
  %3047 = vmatprep.subr.mxu0 0.0
  %3048 = vmatpush1.msra.mxu0 0.0
  %3049 = vmatprep.subr.mxu0 0.0
  %3050 = vmatpush1.msra.mxu0 0.0
  %3051 = vmatprep.subr.mxu0 0.0
  %3052 = vmatpush1.msra.mxu0 0.0
  %3053 = vmatprep.subr.mxu0 0.0
  %3054 = vmatpush1.msra.mxu0 0.0
  %3055 = vmatprep.subr.mxu0 0.0
  %3056 = vmatpush1.msra.mxu0 0.0
  %3057 = vmatprep.subr.mxu0 0.0
  %3058 = vmatpush1.msra.mxu0 0.0
  %3059 = vmatprep.subr.mxu0 0.0
  %3060 = vmatpush1.msra.mxu0 0.0
  %3061 = vmatprep.subr.mxu0 0.0
  %3062 = vmatpush1.msra.mxu0 0.0
  %3063 = vmatprep.subr.mxu0 0.0
  %3064 = vmatpush1.msra.mxu0 0.0
  %3065 = vmatprep.subr.mxu0 0.0
  %3066 = vmatpush1.msra.mxu0 0.0
  %3067 = vmatprep.subr.mxu0 0.0
  %3068 = vmatpush1.msra.mxu0 0.0
  %3069 = vmatprep.subr.mxu0 0.0
  %3070 = vmatpush1.msra.mxu0 0.0
  %3071 = vmatprep.subr.mxu0 0.0
  %3072 = vmatpush1.msra.mxu0 0.0
  %3073 = vmatprep.subr.mxu0 0.0
  %3074 = vmatpush1.msra.mxu0 0.0
  %3075 = vmatprep.subr.mxu0 0.0
  %3076 = vmatpush1.msra.mxu0 0.0
  %3077 = vmatprep.subr.mxu0 0.0
  %3078 = vmatpush1.msra.mxu0 0.0
  %3079 = vmatprep.subr.mxu0 0.0
  %3080 = vmatpush1.msra.mxu0 0.0
  %3081 = vmatprep.subr.mxu0 0.0
  %3082 = vmatpush1.msra.mxu0 0.0
  %3083 = vmatprep.subr.mxu0 0.0
  %3084 = vmatpush1.msra.mxu0 0.0
  %3085 = vmatprep.subr.mxu0 0.0
  %3086 = vmatpush1.msra.mxu0 0.0
  %3087 = vmatprep.subr.mxu0 0.0
  %3088 = vmatpush1.msra.mxu0 0.0
  %3089 = vmatprep.subr.mxu0 0.0
  %3090 = vmatpush1.msra.mxu0 0.0
  %3091 = vmatprep.mubr.f32.mxu0 0.0
  %3092 = vmatmul.mubr.f32.gmra.mrb[0].mxu0 %v3025
  %v3093 = vpop.f32.mrb[0].mxu0
  %v3094 = vadd.f32 0.0, %v3093
  %v3095 = vpop.f32.mrb[0].mxu0
  %3096 = vdwg.mxu0
  %v3098 = vsel %vm614, %v72, 0
  %3100 = vmatprep.subr.mxu0 0.0
  %3101 = vmatpush1.msra.mxu0 %v374
  %3102 = vmatprep.subr.mxu0 0.0
  %3103 = vmatpush1.msra.mxu0 %v375
  %3104 = vmatprep.subr.mxu0 0.0
  %3105 = vmatpush1.msra.mxu0 %v376
  %3106 = vmatprep.subr.mxu0 0.0
  %3107 = vmatpush1.msra.mxu0 %v377
  %3108 = vmatprep.subr.mxu0 0.0
  %3109 = vmatpush1.msra.mxu0 %v378
  %3110 = vmatprep.subr.mxu0 0.0
  %3111 = vmatpush1.msra.mxu0 %v379
  %3112 = vmatprep.subr.mxu0 0.0
  %3113 = vmatpush1.msra.mxu0 %v380
  %3114 = vmatprep.subr.mxu0 0.0
  %3115 = vmatpush1.msra.mxu0 %v381
  %3116 = vmatprep.subr.mxu0 0.0
  %3117 = vmatpush1.msra.mxu0 0.0
  %3118 = vmatprep.subr.mxu0 0.0
  %3119 = vmatpush1.msra.mxu0 0.0
  %3120 = vmatprep.subr.mxu0 0.0
  %3121 = vmatpush1.msra.mxu0 0.0
  %3122 = vmatprep.subr.mxu0 0.0
  %3123 = vmatpush1.msra.mxu0 0.0
  %3124 = vmatprep.subr.mxu0 0.0
  %3125 = vmatpush1.msra.mxu0 0.0
  %3126 = vmatprep.subr.mxu0 0.0
  %3127 = vmatpush1.msra.mxu0 0.0
  %3128 = vmatprep.subr.mxu0 0.0
  %3129 = vmatpush1.msra.mxu0 0.0
  %3130 = vmatprep.subr.mxu0 0.0
  %3131 = vmatpush1.msra.mxu0 0.0
  %3132 = vmatprep.subr.mxu0 0.0
  %3133 = vmatpush1.msra.mxu0 0.0
  %3134 = vmatprep.subr.mxu0 0.0
  %3135 = vmatpush1.msra.mxu0 0.0
  %3136 = vmatprep.subr.mxu0 0.0
  %3137 = vmatpush1.msra.mxu0 0.0
  %3138 = vmatprep.subr.mxu0 0.0
  %3139 = vmatpush1.msra.mxu0 0.0
  %3140 = vmatprep.subr.mxu0 0.0
  %3141 = vmatpush1.msra.mxu0 0.0
  %3142 = vmatprep.subr.mxu0 0.0
  %3143 = vmatpush1.msra.mxu0 0.0
  %3144 = vmatprep.subr.mxu0 0.0
  %3145 = vmatpush1.msra.mxu0 0.0
  %3146 = vmatprep.subr.mxu0 0.0
  %3147 = vmatpush1.msra.mxu0 0.0
  %3148 = vmatprep.subr.mxu0 0.0
  %3149 = vmatpush1.msra.mxu0 0.0
  %3150 = vmatprep.subr.mxu0 0.0
  %3151 = vmatpush1.msra.mxu0 0.0
  %3152 = vmatprep.subr.mxu0 0.0
  %3153 = vmatpush1.msra.mxu0 0.0
  %3154 = vmatprep.subr.mxu0 0.0
  %3155 = vmatpush1.msra.mxu0 0.0
  %3156 = vmatprep.subr.mxu0 0.0
  %3157 = vmatpush1.msra.mxu0 0.0
  %3158 = vmatprep.subr.mxu0 0.0
  %3159 = vmatpush1.msra.mxu0 0.0
  %3160 = vmatprep.subr.mxu0 0.0
  %3161 = vmatpush1.msra.mxu0 0.0
  %3162 = vmatprep.subr.mxu0 0.0
  %3163 = vmatpush1.msra.mxu0 0.0
  %3164 = vmatprep.mubr.f32.mxu0 0.0
  %3165 = vmatmul.mubr.f32.gmra.mrb[0].mxu0 %v3098
  %v3166 = vpop.f32.mrb[0].mxu0
  %v3167 = vadd.f32 0.0, %v3166
  %v3168 = vpop.f32.mrb[0].mxu0
  %3169 = vdwg.mxu0
  %v3171 = vsel %vm614, %v73, 0
  %3173 = vmatprep.subr.mxu0 0.0
  %3174 = vmatpush1.msra.mxu0 %v382
  %3175 = vmatprep.subr.mxu0 0.0
  %3176 = vmatpush1.msra.mxu0 %v383
  %3177 = vmatprep.subr.mxu0 0.0
  %3178 = vmatpush1.msra.mxu0 %v384
  %3179 = vmatprep.subr.mxu0 0.0
  %3180 = vmatpush1.msra.mxu0 %v385
  %3181 = vmatprep.subr.mxu0 0.0
  %3182 = vmatpush1.msra.mxu0 %v386
  %3183 = vmatprep.subr.mxu0 0.0
  %3184 = vmatpush1.msra.mxu0 %v387
  %3185 = vmatprep.subr.mxu0 0.0
  %3186 = vmatpush1.msra.mxu0 %v388
  %3187 = vmatprep.subr.mxu0 0.0
  %3188 = vmatpush1.msra.mxu0 %v389
  %3189 = vmatprep.subr.mxu0 0.0
  %3190 = vmatpush1.msra.mxu0 0.0
  %3191 = vmatprep.subr.mxu0 0.0
  %3192 = vmatpush1.msra.mxu0 0.0
  %3193 = vmatprep.subr.mxu0 0.0
  %3194 = vmatpush1.msra.mxu0 0.0
  %3195 = vmatprep.subr.mxu0 0.0
  %3196 = vmatpush1.msra.mxu0 0.0
  %3197 = vmatprep.subr.mxu0 0.0
  %3198 = vmatpush1.msra.mxu0 0.0
  %3199 = vmatprep.subr.mxu0 0.0
  %3200 = vmatpush1.msra.mxu0 0.0
  %3201 = vmatprep.subr.mxu0 0.0
  %3202 = vmatpush1.msra.mxu0 0.0
  %3203 = vmatprep.subr.mxu0 0.0
  %3204 = vmatpush1.msra.mxu0 0.0
  %3205 = vmatprep.subr.mxu0 0.0
  %3206 = vmatpush1.msra.mxu0 0.0
  %3207 = vmatprep.subr.mxu0 0.0
  %3208 = vmatpush1.msra.mxu0 0.0
  %3209 = vmatprep.subr.mxu0 0.0
  %3210 = vmatpush1.msra.mxu0 0.0
  %3211 = vmatprep.subr.mxu0 0.0
  %3212 = vmatpush1.msra.mxu0 0.0
  %3213 = vmatprep.subr.mxu0 0.0
  %3214 = vmatpush1.msra.mxu0 0.0
  %3215 = vmatprep.subr.mxu0 0.0
  %3216 = vmatpush1.msra.mxu0 0.0
  %3217 = vmatprep.subr.mxu0 0.0
  %3218 = vmatpush1.msra.mxu0 0.0
  %3219 = vmatprep.subr.mxu0 0.0
  %3220 = vmatpush1.msra.mxu0 0.0
  %3221 = vmatprep.subr.mxu0 0.0
  %3222 = vmatpush1.msra.mxu0 0.0
  %3223 = vmatprep.subr.mxu0 0.0
  %3224 = vmatpush1.msra.mxu0 0.0
  %3225 = vmatprep.subr.mxu0 0.0
  %3226 = vmatpush1.msra.mxu0 0.0
  %3227 = vmatprep.subr.mxu0 0.0
  %3228 = vmatpush1.msra.mxu0 0.0
  %3229 = vmatprep.subr.mxu0 0.0
  %3230 = vmatpush1.msra.mxu0 0.0
  %3231 = vmatprep.subr.mxu0 0.0
  %3232 = vmatpush1.msra.mxu0 0.0
  %3233 = vmatprep.subr.mxu0 0.0
  %3234 = vmatpush1.msra.mxu0 0.0
  %3235 = vmatprep.subr.mxu0 0.0
  %3236 = vmatpush1.msra.mxu0 0.0
  %3237 = vmatprep.mubr.f32.mxu0 0.0
  %3238 = vmatmul.mubr.f32.gmra.mrb[0].mxu0 %v3171
  %v3239 = vpop.f32.mrb[0].mxu0
  %v3240 = vadd.f32 0.0, %v3239
  %v3241 = vpop.f32.mrb[0].mxu0
  %3242 = vdwg.mxu0
  %v3244 = vsel %vm614, %v74, 0
  %3246 = vmatprep.subr.mxu0 0.0
  %3247 = vmatpush1.msra.mxu0 %v390
  %3248 = vmatprep.subr.mxu0 0.0
  %3249 = vmatpush1.msra.mxu0 %v391
  %3250 = vmatprep.subr.mxu0 0.0
  %3251 = vmatpush1.msra.mxu0 %v392
  %3252 = vmatprep.subr.mxu0 0.0
  %3253 = vmatpush1.msra.mxu0 %v393
  %3254 = vmatprep.subr.mxu0 0.0
  %3255 = vmatpush1.msra.mxu0 %v394
  %3256 = vmatprep.subr.mxu0 0.0
  %3257 = vmatpush1.msra.mxu0 %v395
  %3258 = vmatprep.subr.mxu0 0.0
  %3259 = vmatpush1.msra.mxu0 %v396
  %3260 = vmatprep.subr.mxu0 0.0
  %3261 = vmatpush1.msra.mxu0 %v397
  %3262 = vmatprep.subr.mxu0 0.0
  %3263 = vmatpush1.msra.mxu0 0.0
  %3264 = vmatprep.subr.mxu0 0.0
  %3265 = vmatpush1.msra.mxu0 0.0
  %3266 = vmatprep.subr.mxu0 0.0
  %3267 = vmatpush1.msra.mxu0 0.0
  %3268 = vmatprep.subr.mxu0 0.0
  %3269 = vmatpush1.msra.mxu0 0.0
  %3270 = vmatprep.subr.mxu0 0.0
  %3271 = vmatpush1.msra.mxu0 0.0
  %3272 = vmatprep.subr.mxu0 0.0
  %3273 = vmatpush1.msra.mxu0 0.0
  %3274 = vmatprep.subr.mxu0 0.0
  %3275 = vmatpush1.msra.mxu0 0.0
  %3276 = vmatprep.subr.mxu0 0.0
  %3277 = vmatpush1.msra.mxu0 0.0
  %3278 = vmatprep.subr.mxu0 0.0
  %3279 = vmatpush1.msra.mxu0 0.0
  %3280 = vmatprep.subr.mxu0 0.0
  %3281 = vmatpush1.msra.mxu0 0.0
  %3282 = vmatprep.subr.mxu0 0.0
  %3283 = vmatpush1.msra.mxu0 0.0
  %3284 = vmatprep.subr.mxu0 0.0
  %3285 = vmatpush1.msra.mxu0 0.0
  %3286 = vmatprep.subr.mxu0 0.0
  %3287 = vmatpush1.msra.mxu0 0.0
  %3288 = vmatprep.subr.mxu0 0.0
  %3289 = vmatpush1.msra.mxu0 0.0
  %3290 = vmatprep.subr.mxu0 0.0
  %3291 = vmatpush1.msra.mxu0 0.0
  %3292 = vmatprep.subr.mxu0 0.0
  %3293 = vmatpush1.msra.mxu0 0.0
  %3294 = vmatprep.subr.mxu0 0.0
  %3295 = vmatpush1.msra.mxu0 0.0
  %3296 = vmatprep.subr.mxu0 0.0
  %3297 = vmatpush1.msra.mxu0 0.0
  %3298 = vmatprep.subr.mxu0 0.0
  %3299 = vmatpush1.msra.mxu0 0.0
  %3300 = vmatprep.subr.mxu0 0.0
  %3301 = vmatpush1.msra.mxu0 0.0
  %3302 = vmatprep.subr.mxu0 0.0
  %3303 = vmatpush1.msra.mxu0 0.0
  %3304 = vmatprep.subr.mxu0 0.0
  %3305 = vmatpush1.msra.mxu0 0.0
  %3306 = vmatprep.subr.mxu0 0.0
  %3307 = vmatpush1.msra.mxu0 0.0
  %3308 = vmatprep.subr.mxu0 0.0
  %3309 = vmatpush1.msra.mxu0 0.0
  %3310 = vmatprep.mubr.f32.mxu0 0.0
  %3311 = vmatmul.mubr.f32.gmra.mrb[0].mxu0 %v3244
  %v3312 = vpop.f32.mrb[0].mxu0
  %v3313 = vadd.f32 0.0, %v3312
  %v3314 = vpop.f32.mrb[0].mxu0
  %3315 = vdwg.mxu0
  %v3317 = vsel %vm614, %v75, 0
  %3319 = vmatprep.subr.mxu0 0.0
  %3320 = vmatpush1.msra.mxu0 %v398
  %3321 = vmatprep.subr.mxu0 0.0
  %3322 = vmatpush1.msra.mxu0 %v399
  %3323 = vmatprep.subr.mxu0 0.0
  %3324 = vmatpush1.msra.mxu0 %v400
  %3325 = vmatprep.subr.mxu0 0.0
  %3326 = vmatpush1.msra.mxu0 %v401
  %3327 = vmatprep.subr.mxu0 0.0
  %3328 = vmatpush1.msra.mxu0 %v402
  %3329 = vmatprep.subr.mxu0 0.0
  %3330 = vmatpush1.msra.mxu0 %v403
  %3331 = vmatprep.subr.mxu0 0.0
  %3332 = vmatpush1.msra.mxu0 %v404
  %3333 = vmatprep.subr.mxu0 0.0
  %3334 = vmatpush1.msra.mxu0 %v405
  %3335 = vmatprep.subr.mxu0 0.0
  %3336 = vmatpush1.msra.mxu0 0.0
  %3337 = vmatprep.subr.mxu0 0.0
  %3338 = vmatpush1.msra.mxu0 0.0
  %3339 = vmatprep.subr.mxu0 0.0
  %3340 = vmatpush1.msra.mxu0 0.0
  %3341 = vmatprep.subr.mxu0 0.0
  %3342 = vmatpush1.msra.mxu0 0.0
  %3343 = vmatprep.subr.mxu0 0.0
  %3344 = vmatpush1.msra.mxu0 0.0
  %3345 = vmatprep.subr.mxu0 0.0
  %3346 = vmatpush1.msra.mxu0 0.0
  %3347 = vmatprep.subr.mxu0 0.0
  %3348 = vmatpush1.msra.mxu0 0.0
  %3349 = vmatprep.subr.mxu0 0.0
  %3350 = vmatpush1.msra.mxu0 0.0
  %3351 = vmatprep.subr.mxu0 0.0
  %3352 = vmatpush1.msra.mxu0 0.0
  %3353 = vmatprep.subr.mxu0 0.0
  %3354 = vmatpush1.msra.mxu0 0.0
  %3355 = vmatprep.subr.mxu0 0.0
  %3356 = vmatpush1.msra.mxu0 0.0
  %3357 = vmatprep.subr.mxu0 0.0
  %3358 = vmatpush1.msra.mxu0 0.0
  %3359 = vmatprep.subr.mxu0 0.0
  %3360 = vmatpush1.msra.mxu0 0.0
  %3361 = vmatprep.subr.mxu0 0.0
  %3362 = vmatpush1.msra.mxu0 0.0
  %3363 = vmatprep.subr.mxu0 0.0
  %3364 = vmatpush1.msra.mxu0 0.0
  %3365 = vmatprep.subr.mxu0 0.0
  %3366 = vmatpush1.msra.mxu0 0.0
  %3367 = vmatprep.subr.mxu0 0.0
  %3368 = vmatpush1.msra.mxu0 0.0
  %3369 = vmatprep.subr.mxu0 0.0
  %3370 = vmatpush1.msra.mxu0 0.0
  %3371 = vmatprep.subr.mxu0 0.0
  %3372 = vmatpush1.msra.mxu0 0.0
  %3373 = vmatprep.subr.mxu0 0.0
  %3374 = vmatpush1.msra.mxu0 0.0
  %3375 = vmatprep.subr.mxu0 0.0
  %3376 = vmatpush1.msra.mxu0 0.0
  %3377 = vmatprep.subr.mxu0 0.0
  %3378 = vmatpush1.msra.mxu0 0.0
  %3379 = vmatprep.subr.mxu0 0.0
  %3380 = vmatpush1.msra.mxu0 0.0
  %3381 = vmatprep.subr.mxu0 0.0
  %3382 = vmatpush1.msra.mxu0 0.0
  %3383 = vmatprep.mubr.f32.mxu0 0.0
  %3384 = vmatmul.mubr.f32.gmra.mrb[0].mxu0 %v3317
  %v3385 = vpop.f32.mrb[0].mxu0
  %v3386 = vadd.f32 0.0, %v3385
  %v3387 = vpop.f32.mrb[0].mxu0
  %3388 = vdwg.mxu0
  %v3390 = vsel %vm614, %v76, 0
  %3392 = vmatprep.subr.mxu0 0.0
  %3393 = vmatpush1.msra.mxu0 %v406
  %3394 = vmatprep.subr.mxu0 0.0
  %3395 = vmatpush1.msra.mxu0 %v407
  %3396 = vmatprep.subr.mxu0 0.0
  %3397 = vmatpush1.msra.mxu0 %v408
  %3398 = vmatprep.subr.mxu0 0.0
  %3399 = vmatpush1.msra.mxu0 %v409
  %3400 = vmatprep.subr.mxu0 0.0
  %3401 = vmatpush1.msra.mxu0 %v410
  %3402 = vmatprep.subr.mxu0 0.0
  %3403 = vmatpush1.msra.mxu0 %v411
  %3404 = vmatprep.subr.mxu0 0.0
  %3405 = vmatpush1.msra.mxu0 %v412
  %3406 = vmatprep.subr.mxu0 0.0
  %3407 = vmatpush1.msra.mxu0 %v413
  %3408 = vmatprep.subr.mxu0 0.0
  %3409 = vmatpush1.msra.mxu0 0.0
  %3410 = vmatprep.subr.mxu0 0.0
  %3411 = vmatpush1.msra.mxu0 0.0
  %3412 = vmatprep.subr.mxu0 0.0
  %3413 = vmatpush1.msra.mxu0 0.0
  %3414 = vmatprep.subr.mxu0 0.0
  %3415 = vmatpush1.msra.mxu0 0.0
  %3416 = vmatprep.subr.mxu0 0.0
  %3417 = vmatpush1.msra.mxu0 0.0
  %3418 = vmatprep.subr.mxu0 0.0
  %3419 = vmatpush1.msra.mxu0 0.0
  %3420 = vmatprep.subr.mxu0 0.0
  %3421 = vmatpush1.msra.mxu0 0.0
  %3422 = vmatprep.subr.mxu0 0.0
  %3423 = vmatpush1.msra.mxu0 0.0
  %3424 = vmatprep.subr.mxu0 0.0
  %3425 = vmatpush1.msra.mxu0 0.0
  %3426 = vmatprep.subr.mxu0 0.0
  %3427 = vmatpush1.msra.mxu0 0.0
  %3428 = vmatprep.subr.mxu0 0.0
  %3429 = vmatpush1.msra.mxu0 0.0
  %3430 = vmatprep.subr.mxu0 0.0
  %3431 = vmatpush1.msra.mxu0 0.0
  %3432 = vmatprep.subr.mxu0 0.0
  %3433 = vmatpush1.msra.mxu0 0.0
  %3434 = vmatprep.subr.mxu0 0.0
  %3435 = vmatpush1.msra.mxu0 0.0
  %3436 = vmatprep.subr.mxu0 0.0
  %3437 = vmatpush1.msra.mxu0 0.0
  %3438 = vmatprep.subr.mxu0 0.0
  %3439 = vmatpush1.msra.mxu0 0.0
  %3440 = vmatprep.subr.mxu0 0.0
  %3441 = vmatpush1.msra.mxu0 0.0
  %3442 = vmatprep.subr.mxu0 0.0
  %3443 = vmatpush1.msra.mxu0 0.0
  %3444 = vmatprep.subr.mxu0 0.0
  %3445 = vmatpush1.msra.mxu0 0.0
  %3446 = vmatprep.subr.mxu0 0.0
  %3447 = vmatpush1.msra.mxu0 0.0
  %3448 = vmatprep.subr.mxu0 0.0
  %3449 = vmatpush1.msra.mxu0 0.0
  %3450 = vmatprep.subr.mxu0 0.0
  %3451 = vmatpush1.msra.mxu0 0.0
  %3452 = vmatprep.subr.mxu0 0.0
  %3453 = vmatpush1.msra.mxu0 0.0
  %3454 = vmatprep.subr.mxu0 0.0
  %3455 = vmatpush1.msra.mxu0 0.0
  %3456 = vmatprep.mubr.f32.mxu0 0.0
  %3457 = vmatmul.mubr.f32.gmra.mrb[0].mxu0 %v3390
  %v3458 = vpop.f32.mrb[0].mxu0
  %v3459 = vadd.f32 0.0, %v3458
  %v3460 = vpop.f32.mrb[0].mxu0
  %3461 = vdwg.mxu0
  %v3463 = vsel %vm614, %v77, 0
  %3465 = vmatprep.subr.mxu0 0.0
  %3466 = vmatpush1.msra.mxu0 %v414
  %3467 = vmatprep.subr.mxu0 0.0
  %3468 = vmatpush1.msra.mxu0 %v415
  %3469 = vmatprep.subr.mxu0 0.0
  %3470 = vmatpush1.msra.mxu0 %v416
  %3471 = vmatprep.subr.mxu0 0.0
  %3472 = vmatpush1.msra.mxu0 %v417
  %3473 = vmatprep.subr.mxu0 0.0
  %3474 = vmatpush1.msra.mxu0 %v418
  %3475 = vmatprep.subr.mxu0 0.0
  %3476 = vmatpush1.msra.mxu0 %v419
  %3477 = vmatprep.subr.mxu0 0.0
  %3478 = vmatpush1.msra.mxu0 %v420
  %3479 = vmatprep.subr.mxu0 0.0
  %3480 = vmatpush1.msra.mxu0 %v421
  %3481 = vmatprep.subr.mxu0 0.0
  %3482 = vmatpush1.msra.mxu0 0.0
  %3483 = vmatprep.subr.mxu0 0.0
  %3484 = vmatpush1.msra.mxu0 0.0
  %3485 = vmatprep.subr.mxu0 0.0
  %3486 = vmatpush1.msra.mxu0 0.0
  %3487 = vmatprep.subr.mxu0 0.0
  %3488 = vmatpush1.msra.mxu0 0.0
  %3489 = vmatprep.subr.mxu0 0.0
  %3490 = vmatpush1.msra.mxu0 0.0
  %3491 = vmatprep.subr.mxu0 0.0
  %3492 = vmatpush1.msra.mxu0 0.0
  %3493 = vmatprep.subr.mxu0 0.0
  %3494 = vmatpush1.msra.mxu0 0.0
  %3495 = vmatprep.subr.mxu0 0.0
  %3496 = vmatpush1.msra.mxu0 0.0
  %3497 = vmatprep.subr.mxu0 0.0
  %3498 = vmatpush1.msra.mxu0 0.0
  %3499 = vmatprep.subr.mxu0 0.0
  %3500 = vmatpush1.msra.mxu0 0.0
  %3501 = vmatprep.subr.mxu0 0.0
  %3502 = vmatpush1.msra.mxu0 0.0
  %3503 = vmatprep.subr.mxu0 0.0
  %3504 = vmatpush1.msra.mxu0 0.0
  %3505 = vmatprep.subr.mxu0 0.0
  %3506 = vmatpush1.msra.mxu0 0.0
  %3507 = vmatprep.subr.mxu0 0.0
  %3508 = vmatpush1.msra.mxu0 0.0
  %3509 = vmatprep.subr.mxu0 0.0
  %3510 = vmatpush1.msra.mxu0 0.0
  %3511 = vmatprep.subr.mxu0 0.0
  %3512 = vmatpush1.msra.mxu0 0.0
  %3513 = vmatprep.subr.mxu0 0.0
  %3514 = vmatpush1.msra.mxu0 0.0
  %3515 = vmatprep.subr.mxu0 0.0
  %3516 = vmatpush1.msra.mxu0 0.0
  %3517 = vmatprep.subr.mxu0 0.0
  %3518 = vmatpush1.msra.mxu0 0.0
  %3519 = vmatprep.subr.mxu0 0.0
  %3520 = vmatpush1.msra.mxu0 0.0
  %3521 = vmatprep.subr.mxu0 0.0
  %3522 = vmatpush1.msra.mxu0 0.0
  %3523 = vmatprep.subr.mxu0 0.0
  %3524 = vmatpush1.msra.mxu0 0.0
  %3525 = vmatprep.subr.mxu0 0.0
  %3526 = vmatpush1.msra.mxu0 0.0
  %3527 = vmatprep.subr.mxu0 0.0
  %3528 = vmatpush1.msra.mxu0 0.0
  %3529 = vmatprep.mubr.f32.mxu0 0.0
  %3530 = vmatmul.mubr.f32.gmra.mrb[0].mxu0 %v3463
  %v3531 = vpop.f32.mrb[0].mxu0
  %v3532 = vadd.f32 0.0, %v3531
  %v3533 = vpop.f32.mrb[0].mxu0
  %3534 = vdwg.mxu0
  %v3536 = vsel %vm614, %v78, 0
  %3538 = vmatprep.subr.mxu0 0.0
  %3539 = vmatpush1.msra.mxu0 %v422
  %3540 = vmatprep.subr.mxu0 0.0
  %3541 = vmatpush1.msra.mxu0 %v423
  %3542 = vmatprep.subr.mxu0 0.0
  %3543 = vmatpush1.msra.mxu0 %v424
  %3544 = vmatprep.subr.mxu0 0.0
  %3545 = vmatpush1.msra.mxu0 %v425
  %3546 = vmatprep.subr.mxu0 0.0
  %3547 = vmatpush1.msra.mxu0 %v426
  %3548 = vmatprep.subr.mxu0 0.0
  %3549 = vmatpush1.msra.mxu0 %v427
  %3550 = vmatprep.subr.mxu0 0.0
  %3551 = vmatpush1.msra.mxu0 %v428
  %3552 = vmatprep.subr.mxu0 0.0
  %3553 = vmatpush1.msra.mxu0 %v429
  %3554 = vmatprep.subr.mxu0 0.0
  %3555 = vmatpush1.msra.mxu0 0.0
  %3556 = vmatprep.subr.mxu0 0.0
  %3557 = vmatpush1.msra.mxu0 0.0
  %3558 = vmatprep.subr.mxu0 0.0
  %3559 = vmatpush1.msra.mxu0 0.0
  %3560 = vmatprep.subr.mxu0 0.0
  %3561 = vmatpush1.msra.mxu0 0.0
  %3562 = vmatprep.subr.mxu0 0.0
  %3563 = vmatpush1.msra.mxu0 0.0
  %3564 = vmatprep.subr.mxu0 0.0
  %3565 = vmatpush1.msra.mxu0 0.0
  %3566 = vmatprep.subr.mxu0 0.0
  %3567 = vmatpush1.msra.mxu0 0.0
  %3568 = vmatprep.subr.mxu0 0.0
  %3569 = vmatpush1.msra.mxu0 0.0
  %3570 = vmatprep.subr.mxu0 0.0
  %3571 = vmatpush1.msra.mxu0 0.0
  %3572 = vmatprep.subr.mxu0 0.0
  %3573 = vmatpush1.msra.mxu0 0.0
  %3574 = vmatprep.subr.mxu0 0.0
  %3575 = vmatpush1.msra.mxu0 0.0
  %3576 = vmatprep.subr.mxu0 0.0
  %3577 = vmatpush1.msra.mxu0 0.0
  %3578 = vmatprep.subr.mxu0 0.0
  %3579 = vmatpush1.msra.mxu0 0.0
  %3580 = vmatprep.subr.mxu0 0.0
  %3581 = vmatpush1.msra.mxu0 0.0
  %3582 = vmatprep.subr.mxu0 0.0
  %3583 = vmatpush1.msra.mxu0 0.0
  %3584 = vmatprep.subr.mxu0 0.0
  %3585 = vmatpush1.msra.mxu0 0.0
  %3586 = vmatprep.subr.mxu0 0.0
  %3587 = vmatpush1.msra.mxu0 0.0
  %3588 = vmatprep.subr.mxu0 0.0
  %3589 = vmatpush1.msra.mxu0 0.0
  %3590 = vmatprep.subr.mxu0 0.0
  %3591 = vmatpush1.msra.mxu0 0.0
  %3592 = vmatprep.subr.mxu0 0.0
  %3593 = vmatpush1.msra.mxu0 0.0
  %3594 = vmatprep.subr.mxu0 0.0
  %3595 = vmatpush1.msra.mxu0 0.0
  %3596 = vmatprep.subr.mxu0 0.0
  %3597 = vmatpush1.msra.mxu0 0.0
  %3598 = vmatprep.subr.mxu0 0.0
  %3599 = vmatpush1.msra.mxu0 0.0
  %3600 = vmatprep.subr.mxu0 0.0
  %3601 = vmatpush1.msra.mxu0 0.0
  %3602 = vmatprep.mubr.f32.mxu0 0.0
  %3603 = vmatmul.mubr.f32.gmra.mrb[0].mxu0 %v3536
  %v3604 = vpop.f32.mrb[0].mxu0
  %v3605 = vadd.f32 0.0, %v3604
  %v3606 = vpop.f32.mrb[0].mxu0
  %3607 = vdwg.mxu0
  %v3609 = vsel %vm614, %v79, 0
  %3611 = vmatprep.subr.mxu0 0.0
  %3612 = vmatpush1.msra.mxu0 %v430
  %3613 = vmatprep.subr.mxu0 0.0
  %3614 = vmatpush1.msra.mxu0 %v431
  %3615 = vmatprep.subr.mxu0 0.0
  %3616 = vmatpush1.msra.mxu0 %v432
  %3617 = vmatprep.subr.mxu0 0.0
  %3618 = vmatpush1.msra.mxu0 %v433
  %3619 = vmatprep.subr.mxu0 0.0
  %3620 = vmatpush1.msra.mxu0 %v434
  %3621 = vmatprep.subr.mxu0 0.0
  %3622 = vmatpush1.msra.mxu0 %v435
  %3623 = vmatprep.subr.mxu0 0.0
  %3624 = vmatpush1.msra.mxu0 %v436
  %3625 = vmatprep.subr.mxu0 0.0
  %3626 = vmatpush1.msra.mxu0 %v437
  %3627 = vmatprep.subr.mxu0 0.0
  %3628 = vmatpush1.msra.mxu0 0.0
  %3629 = vmatprep.subr.mxu0 0.0
  %3630 = vmatpush1.msra.mxu0 0.0
  %3631 = vmatprep.subr.mxu0 0.0
  %3632 = vmatpush1.msra.mxu0 0.0
  %3633 = vmatprep.subr.mxu0 0.0
  %3634 = vmatpush1.msra.mxu0 0.0
  %3635 = vmatprep.subr.mxu0 0.0
  %3636 = vmatpush1.msra.mxu0 0.0
  %3637 = vmatprep.subr.mxu0 0.0
  %3638 = vmatpush1.msra.mxu0 0.0
  %3639 = vmatprep.subr.mxu0 0.0
  %3640 = vmatpush1.msra.mxu0 0.0
  %3641 = vmatprep.subr.mxu0 0.0
  %3642 = vmatpush1.msra.mxu0 0.0
  %3643 = vmatprep.subr.mxu0 0.0
  %3644 = vmatpush1.msra.mxu0 0.0
  %3645 = vmatprep.subr.mxu0 0.0
  %3646 = vmatpush1.msra.mxu0 0.0
  %3647 = vmatprep.subr.mxu0 0.0
  %3648 = vmatpush1.msra.mxu0 0.0
  %3649 = vmatprep.subr.mxu0 0.0
  %3650 = vmatpush1.msra.mxu0 0.0
  %3651 = vmatprep.subr.mxu0 0.0
  %3652 = vmatpush1.msra.mxu0 0.0
  %3653 = vmatprep.subr.mxu0 0.0
  %3654 = vmatpush1.msra.mxu0 0.0
  %3655 = vmatprep.subr.mxu0 0.0
  %3656 = vmatpush1.msra.mxu0 0.0
  %3657 = vmatprep.subr.mxu0 0.0
  %3658 = vmatpush1.msra.mxu0 0.0
  %3659 = vmatprep.subr.mxu0 0.0
  %3660 = vmatpush1.msra.mxu0 0.0
  %3661 = vmatprep.subr.mxu0 0.0
  %3662 = vmatpush1.msra.mxu0 0.0
  %3663 = vmatprep.subr.mxu0 0.0
  %3664 = vmatpush1.msra.mxu0 0.0
  %3665 = vmatprep.subr.mxu0 0.0
  %3666 = vmatpush1.msra.mxu0 0.0
  %3667 = vmatprep.subr.mxu0 0.0
  %3668 = vmatpush1.msra.mxu0 0.0
  %3669 = vmatprep.subr.mxu0 0.0
  %3670 = vmatpush1.msra.mxu0 0.0
  %3671 = vmatprep.subr.mxu0 0.0
  %3672 = vmatpush1.msra.mxu0 0.0
  %3673 = vmatprep.subr.mxu0 0.0
  %3674 = vmatpush1.msra.mxu0 0.0
  %3675 = vmatprep.mubr.f32.mxu0 0.0
  %3676 = vmatmul.mubr.f32.gmra.mrb[0].mxu0 %v3609
  %v3677 = vpop.f32.mrb[0].mxu0
  %v3678 = vadd.f32 0.0, %v3677
  %v3679 = vpop.f32.mrb[0].mxu0
  %3680 = vdwg.mxu0
  %v3682 = vsel %vm614, %v80, 0
  %3684 = vmatprep.subr.mxu0 0.0
  %3685 = vmatpush1.msra.mxu0 %v438
  %3686 = vmatprep.subr.mxu0 0.0
  %3687 = vmatpush1.msra.mxu0 %v439
  %3688 = vmatprep.subr.mxu0 0.0
  %3689 = vmatpush1.msra.mxu0 %v440
  %3690 = vmatprep.subr.mxu0 0.0
  %3691 = vmatpush1.msra.mxu0 %v441
  %3692 = vmatprep.subr.mxu0 0.0
  %3693 = vmatpush1.msra.mxu0 %v442
  %3694 = vmatprep.subr.mxu0 0.0
  %3695 = vmatpush1.msra.mxu0 %v443
  %3696 = vmatprep.subr.mxu0 0.0
  %3697 = vmatpush1.msra.mxu0 %v444
  %3698 = vmatprep.subr.mxu0 0.0
  %3699 = vmatpush1.msra.mxu0 %v445
  %3700 = vmatprep.subr.mxu0 0.0
  %3701 = vmatpush1.msra.mxu0 0.0
  %3702 = vmatprep.subr.mxu0 0.0
  %3703 = vmatpush1.msra.mxu0 0.0
  %3704 = vmatprep.subr.mxu0 0.0
  %3705 = vmatpush1.msra.mxu0 0.0
  %3706 = vmatprep.subr.mxu0 0.0
  %3707 = vmatpush1.msra.mxu0 0.0
  %3708 = vmatprep.subr.mxu0 0.0
  %3709 = vmatpush1.msra.mxu0 0.0
  %3710 = vmatprep.subr.mxu0 0.0
  %3711 = vmatpush1.msra.mxu0 0.0
  %3712 = vmatprep.subr.mxu0 0.0
  %3713 = vmatpush1.msra.mxu0 0.0
  %3714 = vmatprep.subr.mxu0 0.0
  %3715 = vmatpush1.msra.mxu0 0.0
  %3716 = vmatprep.subr.mxu0 0.0
  %3717 = vmatpush1.msra.mxu0 0.0
  %3718 = vmatprep.subr.mxu0 0.0
  %3719 = vmatpush1.msra.mxu0 0.0
  %3720 = vmatprep.subr.mxu0 0.0
  %3721 = vmatpush1.msra.mxu0 0.0
  %3722 = vmatprep.subr.mxu0 0.0
  %3723 = vmatpush1.msra.mxu0 0.0
  %3724 = vmatprep.subr.mxu0 0.0
  %3725 = vmatpush1.msra.mxu0 0.0
  %3726 = vmatprep.subr.mxu0 0.0
  %3727 = vmatpush1.msra.mxu0 0.0
  %3728 = vmatprep.subr.mxu0 0.0
  %3729 = vmatpush1.msra.mxu0 0.0
  %3730 = vmatprep.subr.mxu0 0.0
  %3731 = vmatpush1.msra.mxu0 0.0
  %3732 = vmatprep.subr.mxu0 0.0
  %3733 = vmatpush1.msra.mxu0 0.0
  %3734 = vmatprep.subr.mxu0 0.0
  %3735 = vmatpush1.msra.mxu0 0.0
  %3736 = vmatprep.subr.mxu0 0.0
  %3737 = vmatpush1.msra.mxu0 0.0
  %3738 = vmatprep.subr.mxu0 0.0
  %3739 = vmatpush1.msra.mxu0 0.0
  %3740 = vmatprep.subr.mxu0 0.0
  %3741 = vmatpush1.msra.mxu0 0.0
  %3742 = vmatprep.subr.mxu0 0.0
  %3743 = vmatpush1.msra.mxu0 0.0
  %3744 = vmatprep.subr.mxu0 0.0
  %3745 = vmatpush1.msra.mxu0 0.0
  %3746 = vmatprep.subr.mxu0 0.0
  %3747 = vmatpush1.msra.mxu0 0.0
  %3748 = vmatprep.mubr.f32.mxu0 0.0
  %3749 = vmatmul.mubr.f32.gmra.mrb[0].mxu0 %v3682
  %v3750 = vpop.f32.mrb[0].mxu0
  %v3751 = vadd.f32 0.0, %v3750
  %v3752 = vpop.f32.mrb[0].mxu0
  %3753 = vdwg.mxu0
  %v3755 = vsel %vm614, %v81, 0
  %3757 = vmatprep.subr.mxu0 0.0
  %3758 = vmatpush1.msra.mxu0 %v446
  %3759 = vmatprep.subr.mxu0 0.0
  %3760 = vmatpush1.msra.mxu0 %v447
  %3761 = vmatprep.subr.mxu0 0.0
  %3762 = vmatpush1.msra.mxu0 %v448
  %3763 = vmatprep.subr.mxu0 0.0
  %3764 = vmatpush1.msra.mxu0 %v449
  %3765 = vmatprep.subr.mxu0 0.0
  %3766 = vmatpush1.msra.mxu0 %v450
  %3767 = vmatprep.subr.mxu0 0.0
  %3768 = vmatpush1.msra.mxu0 %v451
  %3769 = vmatprep.subr.mxu0 0.0
  %3770 = vmatpush1.msra.mxu0 %v452
  %3771 = vmatprep.subr.mxu0 0.0
  %3772 = vmatpush1.msra.mxu0 %v453
  %3773 = vmatprep.subr.mxu0 0.0
  %3774 = vmatpush1.msra.mxu0 0.0
  %3775 = vmatprep.subr.mxu0 0.0
  %3776 = vmatpush1.msra.mxu0 0.0
  %3777 = vmatprep.subr.mxu0 0.0
  %3778 = vmatpush1.msra.mxu0 0.0
  %3779 = vmatprep.subr.mxu0 0.0
  %3780 = vmatpush1.msra.mxu0 0.0
  %3781 = vmatprep.subr.mxu0 0.0
  %3782 = vmatpush1.msra.mxu0 0.0
  %3783 = vmatprep.subr.mxu0 0.0
  %3784 = vmatpush1.msra.mxu0 0.0
  %3785 = vmatprep.subr.mxu0 0.0
  %3786 = vmatpush1.msra.mxu0 0.0
  %3787 = vmatprep.subr.mxu0 0.0
  %3788 = vmatpush1.msra.mxu0 0.0
  %3789 = vmatprep.subr.mxu0 0.0
  %3790 = vmatpush1.msra.mxu0 0.0
  %3791 = vmatprep.subr.mxu0 0.0
  %3792 = vmatpush1.msra.mxu0 0.0
  %3793 = vmatprep.subr.mxu0 0.0
  %3794 = vmatpush1.msra.mxu0 0.0
  %3795 = vmatprep.subr.mxu0 0.0
  %3796 = vmatpush1.msra.mxu0 0.0
  %3797 = vmatprep.subr.mxu0 0.0
  %3798 = vmatpush1.msra.mxu0 0.0
  %3799 = vmatprep.subr.mxu0 0.0
  %3800 = vmatpush1.msra.mxu0 0.0
  %3801 = vmatprep.subr.mxu0 0.0
  %3802 = vmatpush1.msra.mxu0 0.0
  %3803 = vmatprep.subr.mxu0 0.0
  %3804 = vmatpush1.msra.mxu0 0.0
  %3805 = vmatprep.subr.mxu0 0.0
  %3806 = vmatpush1.msra.mxu0 0.0
  %3807 = vmatprep.subr.mxu0 0.0
  %3808 = vmatpush1.msra.mxu0 0.0
  %3809 = vmatprep.subr.mxu0 0.0
  %3810 = vmatpush1.msra.mxu0 0.0
  %3811 = vmatprep.subr.mxu0 0.0
  %3812 = vmatpush1.msra.mxu0 0.0
  %3813 = vmatprep.subr.mxu0 0.0
  %3814 = vmatpush1.msra.mxu0 0.0
  %3815 = vmatprep.subr.mxu0 0.0
  %3816 = vmatpush1.msra.mxu0 0.0
  %3817 = vmatprep.subr.mxu0 0.0
  %3818 = vmatpush1.msra.mxu0 0.0
  %3819 = vmatprep.subr.mxu0 0.0
  %3820 = vmatpush1.msra.mxu0 0.0
  %3821 = vmatprep.mubr.f32.mxu0 0.0
  %3822 = vmatmul.mubr.f32.gmra.mrb[0].mxu0 %v3755
  %v3823 = vpop.f32.mrb[0].mxu0
  %v3824 = vadd.f32 0.0, %v3823
  %v3825 = vpop.f32.mrb[0].mxu0
  %3826 = vdwg.mxu0
  %v3828 = vsel %vm614, %v82, 0
  %3830 = vmatprep.subr.mxu0 0.0
  %3831 = vmatpush1.msra.mxu0 %v454
  %3832 = vmatprep.subr.mxu0 0.0
  %3833 = vmatpush1.msra.mxu0 %v455
  %3834 = vmatprep.subr.mxu0 0.0
  %3835 = vmatpush1.msra.mxu0 %v456
  %3836 = vmatprep.subr.mxu0 0.0
  %3837 = vmatpush1.msra.mxu0 %v457
  %3838 = vmatprep.subr.mxu0 0.0
  %3839 = vmatpush1.msra.mxu0 %v458
  %3840 = vmatprep.subr.mxu0 0.0
  %3841 = vmatpush1.msra.mxu0 %v459
  %3842 = vmatprep.subr.mxu0 0.0
  %3843 = vmatpush1.msra.mxu0 %v460
  %3844 = vmatprep.subr.mxu0 0.0
  %3845 = vmatpush1.msra.mxu0 %v461
  %3846 = vmatprep.subr.mxu0 0.0
  %3847 = vmatpush1.msra.mxu0 0.0
  %3848 = vmatprep.subr.mxu0 0.0
  %3849 = vmatpush1.msra.mxu0 0.0
  %3850 = vmatprep.subr.mxu0 0.0
  %3851 = vmatpush1.msra.mxu0 0.0
  %3852 = vmatprep.subr.mxu0 0.0
  %3853 = vmatpush1.msra.mxu0 0.0
  %3854 = vmatprep.subr.mxu0 0.0
  %3855 = vmatpush1.msra.mxu0 0.0
  %3856 = vmatprep.subr.mxu0 0.0
  %3857 = vmatpush1.msra.mxu0 0.0
  %3858 = vmatprep.subr.mxu0 0.0
  %3859 = vmatpush1.msra.mxu0 0.0
  %3860 = vmatprep.subr.mxu0 0.0
  %3861 = vmatpush1.msra.mxu0 0.0
  %3862 = vmatprep.subr.mxu0 0.0
  %3863 = vmatpush1.msra.mxu0 0.0
  %3864 = vmatprep.subr.mxu0 0.0
  %3865 = vmatpush1.msra.mxu0 0.0
  %3866 = vmatprep.subr.mxu0 0.0
  %3867 = vmatpush1.msra.mxu0 0.0
  %3868 = vmatprep.subr.mxu0 0.0
  %3869 = vmatpush1.msra.mxu0 0.0
  %3870 = vmatprep.subr.mxu0 0.0
  %3871 = vmatpush1.msra.mxu0 0.0
  %3872 = vmatprep.subr.mxu0 0.0
  %3873 = vmatpush1.msra.mxu0 0.0
  %3874 = vmatprep.subr.mxu0 0.0
  %3875 = vmatpush1.msra.mxu0 0.0
  %3876 = vmatprep.subr.mxu0 0.0
  %3877 = vmatpush1.msra.mxu0 0.0
  %3878 = vmatprep.subr.mxu0 0.0
  %3879 = vmatpush1.msra.mxu0 0.0
  %3880 = vmatprep.subr.mxu0 0.0
  %3881 = vmatpush1.msra.mxu0 0.0
  %3882 = vmatprep.subr.mxu0 0.0
  %3883 = vmatpush1.msra.mxu0 0.0
  %3884 = vmatprep.subr.mxu0 0.0
  %3885 = vmatpush1.msra.mxu0 0.0
  %3886 = vmatprep.subr.mxu0 0.0
  %3887 = vmatpush1.msra.mxu0 0.0
  %3888 = vmatprep.subr.mxu0 0.0
  %3889 = vmatpush1.msra.mxu0 0.0
  %3890 = vmatprep.subr.mxu0 0.0
  %3891 = vmatpush1.msra.mxu0 0.0
  %3892 = vmatprep.subr.mxu0 0.0
  %3893 = vmatpush1.msra.mxu0 0.0
  %3894 = vmatprep.mubr.f32.mxu0 0.0
  %3895 = vmatmul.mubr.f32.gmra.mrb[0].mxu0 %v3828
  %v3896 = vpop.f32.mrb[0].mxu0
  %v3897 = vadd.f32 0.0, %v3896
  %v3898 = vpop.f32.mrb[0].mxu0
  %3899 = vdwg.mxu0
  %v3901 = vsel %vm614, %v83, 0
  %3903 = vmatprep.subr.mxu0 0.0
  %3904 = vmatpush1.msra.mxu0 %v462
  %3905 = vmatprep.subr.mxu0 0.0
  %3906 = vmatpush1.msra.mxu0 %v463
  %3907 = vmatprep.subr.mxu0 0.0
  %3908 = vmatpush1.msra.mxu0 %v464
  %3909 = vmatprep.subr.mxu0 0.0
  %3910 = vmatpush1.msra.mxu0 %v465
  %3911 = vmatprep.subr.mxu0 0.0
  %3912 = vmatpush1.msra.mxu0 %v466
  %3913 = vmatprep.subr.mxu0 0.0
  %3914 = vmatpush1.msra.mxu0 %v467
  %3915 = vmatprep.subr.mxu0 0.0
  %3916 = vmatpush1.msra.mxu0 %v468
  %3917 = vmatprep.subr.mxu0 0.0
  %3918 = vmatpush1.msra.mxu0 %v469
  %3919 = vmatprep.subr.mxu0 0.0
  %3920 = vmatpush1.msra.mxu0 0.0
  %3921 = vmatprep.subr.mxu0 0.0
  %3922 = vmatpush1.msra.mxu0 0.0
  %3923 = vmatprep.subr.mxu0 0.0
  %3924 = vmatpush1.msra.mxu0 0.0
  %3925 = vmatprep.subr.mxu0 0.0
  %3926 = vmatpush1.msra.mxu0 0.0
  %3927 = vmatprep.subr.mxu0 0.0
  %3928 = vmatpush1.msra.mxu0 0.0
  %3929 = vmatprep.subr.mxu0 0.0
  %3930 = vmatpush1.msra.mxu0 0.0
  %3931 = vmatprep.subr.mxu0 0.0
  %3932 = vmatpush1.msra.mxu0 0.0
  %3933 = vmatprep.subr.mxu0 0.0
  %3934 = vmatpush1.msra.mxu0 0.0
  %3935 = vmatprep.subr.mxu0 0.0
  %3936 = vmatpush1.msra.mxu0 0.0
  %3937 = vmatprep.subr.mxu0 0.0
  %3938 = vmatpush1.msra.mxu0 0.0
  %3939 = vmatprep.subr.mxu0 0.0
  %3940 = vmatpush1.msra.mxu0 0.0
  %3941 = vmatprep.subr.mxu0 0.0
  %3942 = vmatpush1.msra.mxu0 0.0
  %3943 = vmatprep.subr.mxu0 0.0
  %3944 = vmatpush1.msra.mxu0 0.0
  %3945 = vmatprep.subr.mxu0 0.0
  %3946 = vmatpush1.msra.mxu0 0.0
  %3947 = vmatprep.subr.mxu0 0.0
  %3948 = vmatpush1.msra.mxu0 0.0
  %3949 = vmatprep.subr.mxu0 0.0
  %3950 = vmatpush1.msra.mxu0 0.0
  %3951 = vmatprep.subr.mxu0 0.0
  %3952 = vmatpush1.msra.mxu0 0.0
  %3953 = vmatprep.subr.mxu0 0.0
  %3954 = vmatpush1.msra.mxu0 0.0
  %3955 = vmatprep.subr.mxu0 0.0
  %3956 = vmatpush1.msra.mxu0 0.0
  %3957 = vmatprep.subr.mxu0 0.0
  %3958 = vmatpush1.msra.mxu0 0.0
  %3959 = vmatprep.subr.mxu0 0.0
  %3960 = vmatpush1.msra.mxu0 0.0
  %3961 = vmatprep.subr.mxu0 0.0
  %3962 = vmatpush1.msra.mxu0 0.0
  %3963 = vmatprep.subr.mxu0 0.0
  %3964 = vmatpush1.msra.mxu0 0.0
  %3965 = vmatprep.subr.mxu0 0.0
  %3966 = vmatpush1.msra.mxu0 0.0
  %3967 = vmatprep.mubr.f32.mxu0 0.0
  %3968 = vmatmul.mubr.f32.gmra.mrb[0].mxu0 %v3901
  %v3969 = vpop.f32.mrb[0].mxu0
  %v3970 = vadd.f32 0.0, %v3969
  %v3971 = vpop.f32.mrb[0].mxu0
  %3972 = vdwg.mxu0
  %v3974 = vsel %vm614, %v84, 0
  %3976 = vmatprep.subr.mxu0 0.0
  %3977 = vmatpush1.msra.mxu0 %v470
  %3978 = vmatprep.subr.mxu0 0.0
  %3979 = vmatpush1.msra.mxu0 %v471
  %3980 = vmatprep.subr.mxu0 0.0
  %3981 = vmatpush1.msra.mxu0 %v472
  %3982 = vmatprep.subr.mxu0 0.0
  %3983 = vmatpush1.msra.mxu0 %v473
  %3984 = vmatprep.subr.mxu0 0.0
  %3985 = vmatpush1.msra.mxu0 %v474
  %3986 = vmatprep.subr.mxu0 0.0
  %3987 = vmatpush1.msra.mxu0 %v475
  %3988 = vmatprep.subr.mxu0 0.0
  %3989 = vmatpush1.msra.mxu0 %v476
  %3990 = vmatprep.subr.mxu0 0.0
  %3991 = vmatpush1.msra.mxu0 %v477
  %3992 = vmatprep.subr.mxu0 0.0
  %3993 = vmatpush1.msra.mxu0 0.0
  %3994 = vmatprep.subr.mxu0 0.0
  %3995 = vmatpush1.msra.mxu0 0.0
  %3996 = vmatprep.subr.mxu0 0.0
  %3997 = vmatpush1.msra.mxu0 0.0
  %3998 = vmatprep.subr.mxu0 0.0
  %3999 = vmatpush1.msra.mxu0 0.0
  %4000 = vmatprep.subr.mxu0 0.0
  %4001 = vmatpush1.msra.mxu0 0.0
  %4002 = vmatprep.subr.mxu0 0.0
  %4003 = vmatpush1.msra.mxu0 0.0
  %4004 = vmatprep.subr.mxu0 0.0
  %4005 = vmatpush1.msra.mxu0 0.0
  %4006 = vmatprep.subr.mxu0 0.0
  %4007 = vmatpush1.msra.mxu0 0.0
  %4008 = vmatprep.subr.mxu0 0.0
  %4009 = vmatpush1.msra.mxu0 0.0
  %4010 = vmatprep.subr.mxu0 0.0
  %4011 = vmatpush1.msra.mxu0 0.0
  %4012 = vmatprep.subr.mxu0 0.0
  %4013 = vmatpush1.msra.mxu0 0.0
  %4014 = vmatprep.subr.mxu0 0.0
  %4015 = vmatpush1.msra.mxu0 0.0
  %4016 = vmatprep.subr.mxu0 0.0
  %4017 = vmatpush1.msra.mxu0 0.0
  %4018 = vmatprep.subr.mxu0 0.0
  %4019 = vmatpush1.msra.mxu0 0.0
  %4020 = vmatprep.subr.mxu0 0.0
  %4021 = vmatpush1.msra.mxu0 0.0
  %4022 = vmatprep.subr.mxu0 0.0
  %4023 = vmatpush1.msra.mxu0 0.0
  %4024 = vmatprep.subr.mxu0 0.0
  %4025 = vmatpush1.msra.mxu0 0.0
  %4026 = vmatprep.subr.mxu0 0.0
  %4027 = vmatpush1.msra.mxu0 0.0
  %4028 = vmatprep.subr.mxu0 0.0
  %4029 = vmatpush1.msra.mxu0 0.0
  %4030 = vmatprep.subr.mxu0 0.0
  %4031 = vmatpush1.msra.mxu0 0.0
  %4032 = vmatprep.subr.mxu0 0.0
  %4033 = vmatpush1.msra.mxu0 0.0
  %4034 = vmatprep.subr.mxu0 0.0
  %4035 = vmatpush1.msra.mxu0 0.0
  %4036 = vmatprep.subr.mxu0 0.0
  %4037 = vmatpush1.msra.mxu0 0.0
  %4038 = vmatprep.subr.mxu0 0.0
  %4039 = vmatpush1.msra.mxu0 0.0
  %4040 = vmatprep.mubr.f32.mxu0 0.0
  %4041 = vmatmul.mubr.f32.gmra.mrb[0].mxu0 %v3974
  %v4042 = vpop.f32.mrb[0].mxu0
  %v4043 = vadd.f32 0.0, %v4042
  %v4044 = vpop.f32.mrb[0].mxu0
  %4045 = vdwg.mxu0
  %v4047 = vsel %vm614, %v85, 0
  %4049 = vmatprep.subr.mxu0 0.0
  %4050 = vmatpush1.msra.mxu0 %v478
  %4051 = vmatprep.subr.mxu0 0.0
  %4052 = vmatpush1.msra.mxu0 %v479
  %4053 = vmatprep.subr.mxu0 0.0
  %4054 = vmatpush1.msra.mxu0 %v480
  %4055 = vmatprep.subr.mxu0 0.0
  %4056 = vmatpush1.msra.mxu0 %v481
  %4057 = vmatprep.subr.mxu0 0.0
  %4058 = vmatpush1.msra.mxu0 %v482
  %4059 = vmatprep.subr.mxu0 0.0
  %4060 = vmatpush1.msra.mxu0 %v483
  %4061 = vmatprep.subr.mxu0 0.0
  %4062 = vmatpush1.msra.mxu0 %v484
  %4063 = vmatprep.subr.mxu0 0.0
  %4064 = vmatpush1.msra.mxu0 %v485
  %4065 = vmatprep.subr.mxu0 0.0
  %4066 = vmatpush1.msra.mxu0 0.0
  %4067 = vmatprep.subr.mxu0 0.0
  %4068 = vmatpush1.msra.mxu0 0.0
  %4069 = vmatprep.subr.mxu0 0.0
  %4070 = vmatpush1.msra.mxu0 0.0
  %4071 = vmatprep.subr.mxu0 0.0
  %4072 = vmatpush1.msra.mxu0 0.0
  %4073 = vmatprep.subr.mxu0 0.0
  %4074 = vmatpush1.msra.mxu0 0.0
  %4075 = vmatprep.subr.mxu0 0.0
  %4076 = vmatpush1.msra.mxu0 0.0
  %4077 = vmatprep.subr.mxu0 0.0
  %4078 = vmatpush1.msra.mxu0 0.0
  %4079 = vmatprep.subr.mxu0 0.0
  %4080 = vmatpush1.msra.mxu0 0.0
  %4081 = vmatprep.subr.mxu0 0.0
  %4082 = vmatpush1.msra.mxu0 0.0
  %4083 = vmatprep.subr.mxu0 0.0
  %4084 = vmatpush1.msra.mxu0 0.0
  %4085 = vmatprep.subr.mxu0 0.0
  %4086 = vmatpush1.msra.mxu0 0.0
  %4087 = vmatprep.subr.mxu0 0.0
  %4088 = vmatpush1.msra.mxu0 0.0
  %4089 = vmatprep.subr.mxu0 0.0
  %4090 = vmatpush1.msra.mxu0 0.0
  %4091 = vmatprep.subr.mxu0 0.0
  %4092 = vmatpush1.msra.mxu0 0.0
  %4093 = vmatprep.subr.mxu0 0.0
  %4094 = vmatpush1.msra.mxu0 0.0
  %4095 = vmatprep.subr.mxu0 0.0
  %4096 = vmatpush1.msra.mxu0 0.0
  %4097 = vmatprep.subr.mxu0 0.0
  %4098 = vmatpush1.msra.mxu0 0.0
  %4099 = vmatprep.subr.mxu0 0.0
  %4100 = vmatpush1.msra.mxu0 0.0
  %4101 = vmatprep.subr.mxu0 0.0
  %4102 = vmatpush1.msra.mxu0 0.0
  %4103 = vmatprep.subr.mxu0 0.0
  %4104 = vmatpush1.msra.mxu0 0.0
  %4105 = vmatprep.subr.mxu0 0.0
  %4106 = vmatpush1.msra.mxu0 0.0
  %4107 = vmatprep.subr.mxu0 0.0
  %4108 = vmatpush1.msra.mxu0 0.0
  %4109 = vmatprep.subr.mxu0 0.0
  %4110 = vmatpush1.msra.mxu0 0.0
  %4111 = vmatprep.subr.mxu0 0.0
  %4112 = vmatpush1.msra.mxu0 0.0
  %4113 = vmatprep.mubr.f32.mxu0 0.0
  %4114 = vmatmul.mubr.f32.gmra.mrb[0].mxu0 %v4047
  %v4115 = vpop.f32.mrb[0].mxu0
  %v4116 = vadd.f32 0.0, %v4115
  %v4117 = vpop.f32.mrb[0].mxu0
  %4118 = vdwg.mxu0
  %v4120 = vsel %vm614, %v86, 0
  %4122 = vmatprep.subr.mxu0 0.0
  %4123 = vmatpush1.msra.mxu0 %v486
  %4124 = vmatprep.subr.mxu0 0.0
  %4125 = vmatpush1.msra.mxu0 %v487
  %4126 = vmatprep.subr.mxu0 0.0
  %4127 = vmatpush1.msra.mxu0 %v488
  %4128 = vmatprep.subr.mxu0 0.0
  %4129 = vmatpush1.msra.mxu0 %v489
  %4130 = vmatprep.subr.mxu0 0.0
  %4131 = vmatpush1.msra.mxu0 %v490
  %4132 = vmatprep.subr.mxu0 0.0
  %4133 = vmatpush1.msra.mxu0 %v491
  %4134 = vmatprep.subr.mxu0 0.0
  %4135 = vmatpush1.msra.mxu0 %v492
  %4136 = vmatprep.subr.mxu0 0.0
  %4137 = vmatpush1.msra.mxu0 %v493
  %4138 = vmatprep.subr.mxu0 0.0
  %4139 = vmatpush1.msra.mxu0 0.0
  %4140 = vmatprep.subr.mxu0 0.0
  %4141 = vmatpush1.msra.mxu0 0.0
  %4142 = vmatprep.subr.mxu0 0.0
  %4143 = vmatpush1.msra.mxu0 0.0
  %4144 = vmatprep.subr.mxu0 0.0
  %4145 = vmatpush1.msra.mxu0 0.0
  %4146 = vmatprep.subr.mxu0 0.0
  %4147 = vmatpush1.msra.mxu0 0.0
  %4148 = vmatprep.subr.mxu0 0.0
  %4149 = vmatpush1.msra.mxu0 0.0
  %4150 = vmatprep.subr.mxu0 0.0
  %4151 = vmatpush1.msra.mxu0 0.0
  %4152 = vmatprep.subr.mxu0 0.0
  %4153 = vmatpush1.msra.mxu0 0.0
  %4154 = vmatprep.subr.mxu0 0.0
  %4155 = vmatpush1.msra.mxu0 0.0
  %4156 = vmatprep.subr.mxu0 0.0
  %4157 = vmatpush1.msra.mxu0 0.0
  %4158 = vmatprep.subr.mxu0 0.0
  %4159 = vmatpush1.msra.mxu0 0.0
  %4160 = vmatprep.subr.mxu0 0.0
  %4161 = vmatpush1.msra.mxu0 0.0
  %4162 = vmatprep.subr.mxu0 0.0
  %4163 = vmatpush1.msra.mxu0 0.0
  %4164 = vmatprep.subr.mxu0 0.0
  %4165 = vmatpush1.msra.mxu0 0.0
  %4166 = vmatprep.subr.mxu0 0.0
  %4167 = vmatpush1.msra.mxu0 0.0
  %4168 = vmatprep.subr.mxu0 0.0
  %4169 = vmatpush1.msra.mxu0 0.0
  %4170 = vmatprep.subr.mxu0 0.0
  %4171 = vmatpush1.msra.mxu0 0.0
  %4172 = vmatprep.subr.mxu0 0.0
  %4173 = vmatpush1.msra.mxu0 0.0
  %4174 = vmatprep.subr.mxu0 0.0
  %4175 = vmatpush1.msra.mxu0 0.0
  %4176 = vmatprep.subr.mxu0 0.0
  %4177 = vmatpush1.msra.mxu0 0.0
  %4178 = vmatprep.subr.mxu0 0.0
  %4179 = vmatpush1.msra.mxu0 0.0
  %4180 = vmatprep.subr.mxu0 0.0
  %4181 = vmatpush1.msra.mxu0 0.0
  %4182 = vmatprep.subr.mxu0 0.0
  %4183 = vmatpush1.msra.mxu0 0.0
  %4184 = vmatprep.subr.mxu0 0.0
  %4185 = vmatpush1.msra.mxu0 0.0
  %4186 = vmatprep.mubr.f32.mxu0 0.0
  %4187 = vmatmul.mubr.f32.gmra.mrb[0].mxu0 %v4120
  %v4188 = vpop.f32.mrb[0].mxu0
  %v4189 = vadd.f32 0.0, %v4188
  %v4190 = vpop.f32.mrb[0].mxu0
  %4191 = vdwg.mxu0
  %v4193 = vsel %vm614, %v87, 0
  %4195 = vmatprep.subr.mxu0 0.0
  %4196 = vmatpush1.msra.mxu0 %v494
  %4197 = vmatprep.subr.mxu0 0.0
  %4198 = vmatpush1.msra.mxu0 %v495
  %4199 = vmatprep.subr.mxu0 0.0
  %4200 = vmatpush1.msra.mxu0 %v496
  %4201 = vmatprep.subr.mxu0 0.0
  %4202 = vmatpush1.msra.mxu0 %v497
  %4203 = vmatprep.subr.mxu0 0.0
  %4204 = vmatpush1.msra.mxu0 %v498
  %4205 = vmatprep.subr.mxu0 0.0
  %4206 = vmatpush1.msra.mxu0 %v499
  %4207 = vmatprep.subr.mxu0 0.0
  %4208 = vmatpush1.msra.mxu0 %v500
  %4209 = vmatprep.subr.mxu0 0.0
  %4210 = vmatpush1.msra.mxu0 %v501
  %4211 = vmatprep.subr.mxu0 0.0
  %4212 = vmatpush1.msra.mxu0 0.0
  %4213 = vmatprep.subr.mxu0 0.0
  %4214 = vmatpush1.msra.mxu0 0.0
  %4215 = vmatprep.subr.mxu0 0.0
  %4216 = vmatpush1.msra.mxu0 0.0
  %4217 = vmatprep.subr.mxu0 0.0
  %4218 = vmatpush1.msra.mxu0 0.0
  %4219 = vmatprep.subr.mxu0 0.0
  %4220 = vmatpush1.msra.mxu0 0.0
  %4221 = vmatprep.subr.mxu0 0.0
  %4222 = vmatpush1.msra.mxu0 0.0
  %4223 = vmatprep.subr.mxu0 0.0
  %4224 = vmatpush1.msra.mxu0 0.0
  %4225 = vmatprep.subr.mxu0 0.0
  %4226 = vmatpush1.msra.mxu0 0.0
  %4227 = vmatprep.subr.mxu0 0.0
  %4228 = vmatpush1.msra.mxu0 0.0
  %4229 = vmatprep.subr.mxu0 0.0
  %4230 = vmatpush1.msra.mxu0 0.0
  %4231 = vmatprep.subr.mxu0 0.0
  %4232 = vmatpush1.msra.mxu0 0.0
  %4233 = vmatprep.subr.mxu0 0.0
  %4234 = vmatpush1.msra.mxu0 0.0
  %4235 = vmatprep.subr.mxu0 0.0
  %4236 = vmatpush1.msra.mxu0 0.0
  %4237 = vmatprep.subr.mxu0 0.0
  %4238 = vmatpush1.msra.mxu0 0.0
  %4239 = vmatprep.subr.mxu0 0.0
  %4240 = vmatpush1.msra.mxu0 0.0
  %4241 = vmatprep.subr.mxu0 0.0
  %4242 = vmatpush1.msra.mxu0 0.0
  %4243 = vmatprep.subr.mxu0 0.0
  %4244 = vmatpush1.msra.mxu0 0.0
  %4245 = vmatprep.subr.mxu0 0.0
  %4246 = vmatpush1.msra.mxu0 0.0
  %4247 = vmatprep.subr.mxu0 0.0
  %4248 = vmatpush1.msra.mxu0 0.0
  %4249 = vmatprep.subr.mxu0 0.0
  %4250 = vmatpush1.msra.mxu0 0.0
  %4251 = vmatprep.subr.mxu0 0.0
  %4252 = vmatpush1.msra.mxu0 0.0
  %4253 = vmatprep.subr.mxu0 0.0
  %4254 = vmatpush1.msra.mxu0 0.0
  %4255 = vmatprep.subr.mxu0 0.0
  %4256 = vmatpush1.msra.mxu0 0.0
  %4257 = vmatprep.subr.mxu0 0.0
  %4258 = vmatpush1.msra.mxu0 0.0
  %4259 = vmatprep.mubr.f32.mxu0 0.0
  %4260 = vmatmul.mubr.f32.gmra.mrb[0].mxu0 %v4193
  %v4261 = vpop.f32.mrb[0].mxu0
  %v4262 = vadd.f32 0.0, %v4261
  %v4263 = vpop.f32.mrb[0].mxu0
  %4264 = vdwg.mxu0
  %v4266 = vsel %vm614, %v88, 0
  %4268 = vmatprep.subr.mxu0 0.0
  %4269 = vmatpush1.msra.mxu0 %v502
  %4270 = vmatprep.subr.mxu0 0.0
  %4271 = vmatpush1.msra.mxu0 %v503
  %4272 = vmatprep.subr.mxu0 0.0
  %4273 = vmatpush1.msra.mxu0 %v504
  %4274 = vmatprep.subr.mxu0 0.0
  %4275 = vmatpush1.msra.mxu0 %v505
  %4276 = vmatprep.subr.mxu0 0.0
  %4277 = vmatpush1.msra.mxu0 %v506
  %4278 = vmatprep.subr.mxu0 0.0
  %4279 = vmatpush1.msra.mxu0 %v507
  %4280 = vmatprep.subr.mxu0 0.0
  %4281 = vmatpush1.msra.mxu0 %v508
  %4282 = vmatprep.subr.mxu0 0.0
  %4283 = vmatpush1.msra.mxu0 %v509
  %4284 = vmatprep.subr.mxu0 0.0
  %4285 = vmatpush1.msra.mxu0 0.0
  %4286 = vmatprep.subr.mxu0 0.0
  %4287 = vmatpush1.msra.mxu0 0.0
  %4288 = vmatprep.subr.mxu0 0.0
  %4289 = vmatpush1.msra.mxu0 0.0
  %4290 = vmatprep.subr.mxu0 0.0
  %4291 = vmatpush1.msra.mxu0 0.0
  %4292 = vmatprep.subr.mxu0 0.0
  %4293 = vmatpush1.msra.mxu0 0.0
  %4294 = vmatprep.subr.mxu0 0.0
  %4295 = vmatpush1.msra.mxu0 0.0
  %4296 = vmatprep.subr.mxu0 0.0
  %4297 = vmatpush1.msra.mxu0 0.0
  %4298 = vmatprep.subr.mxu0 0.0
  %4299 = vmatpush1.msra.mxu0 0.0
  %4300 = vmatprep.subr.mxu0 0.0
  %4301 = vmatpush1.msra.mxu0 0.0
  %4302 = vmatprep.subr.mxu0 0.0
  %4303 = vmatpush1.msra.mxu0 0.0
  %4304 = vmatprep.subr.mxu0 0.0
  %4305 = vmatpush1.msra.mxu0 0.0
  %4306 = vmatprep.subr.mxu0 0.0
  %4307 = vmatpush1.msra.mxu0 0.0
  %4308 = vmatprep.subr.mxu0 0.0
  %4309 = vmatpush1.msra.mxu0 0.0
  %4310 = vmatprep.subr.mxu0 0.0
  %4311 = vmatpush1.msra.mxu0 0.0
  %4312 = vmatprep.subr.mxu0 0.0
  %4313 = vmatpush1.msra.mxu0 0.0
  %4314 = vmatprep.subr.mxu0 0.0
  %4315 = vmatpush1.msra.mxu0 0.0
  %4316 = vmatprep.subr.mxu0 0.0
  %4317 = vmatpush1.msra.mxu0 0.0
  %4318 = vmatprep.subr.mxu0 0.0
  %4319 = vmatpush1.msra.mxu0 0.0
  %4320 = vmatprep.subr.mxu0 0.0
  %4321 = vmatpush1.msra.mxu0 0.0
  %4322 = vmatprep.subr.mxu0 0.0
  %4323 = vmatpush1.msra.mxu0 0.0
  %4324 = vmatprep.subr.mxu0 0.0
  %4325 = vmatpush1.msra.mxu0 0.0
  %4326 = vmatprep.subr.mxu0 0.0
  %4327 = vmatpush1.msra.mxu0 0.0
  %4328 = vmatprep.subr.mxu0 0.0
  %4329 = vmatpush1.msra.mxu0 0.0
  %4330 = vmatprep.subr.mxu0 0.0
  %4331 = vmatpush1.msra.mxu0 0.0
  %4332 = vmatprep.mubr.f32.mxu0 0.0
  %4333 = vmatmul.mubr.f32.gmra.mrb[0].mxu0 %v4266
  %v4334 = vpop.f32.mrb[0].mxu0
  %v4335 = vadd.f32 0.0, %v4334
  %v4336 = vpop.f32.mrb[0].mxu0
  %4337 = vdwg.mxu0
  %v4339 = vsel %vm614, %v89, 0
  %4341 = vmatprep.subr.mxu0 0.0
  %4342 = vmatpush1.msra.mxu0 %v510
  %4343 = vmatprep.subr.mxu0 0.0
  %4344 = vmatpush1.msra.mxu0 %v511
  %4345 = vmatprep.subr.mxu0 0.0
  %4346 = vmatpush1.msra.mxu0 %v512
  %4347 = vmatprep.subr.mxu0 0.0
  %4348 = vmatpush1.msra.mxu0 %v513
  %4349 = vmatprep.subr.mxu0 0.0
  %4350 = vmatpush1.msra.mxu0 %v514
  %4351 = vmatprep.subr.mxu0 0.0
  %4352 = vmatpush1.msra.mxu0 %v515
  %4353 = vmatprep.subr.mxu0 0.0
  %4354 = vmatpush1.msra.mxu0 %v516
  %4355 = vmatprep.subr.mxu0 0.0
  %4356 = vmatpush1.msra.mxu0 %v517
  %4357 = vmatprep.subr.mxu0 0.0
  %4358 = vmatpush1.msra.mxu0 0.0
  %4359 = vmatprep.subr.mxu0 0.0
  %4360 = vmatpush1.msra.mxu0 0.0
  %4361 = vmatprep.subr.mxu0 0.0
  %4362 = vmatpush1.msra.mxu0 0.0
  %4363 = vmatprep.subr.mxu0 0.0
  %4364 = vmatpush1.msra.mxu0 0.0
  %4365 = vmatprep.subr.mxu0 0.0
  %4366 = vmatpush1.msra.mxu0 0.0
  %4367 = vmatprep.subr.mxu0 0.0
  %4368 = vmatpush1.msra.mxu0 0.0
  %4369 = vmatprep.subr.mxu0 0.0
  %4370 = vmatpush1.msra.mxu0 0.0
  %4371 = vmatprep.subr.mxu0 0.0
  %4372 = vmatpush1.msra.mxu0 0.0
  %4373 = vmatprep.subr.mxu0 0.0
  %4374 = vmatpush1.msra.mxu0 0.0
  %4375 = vmatprep.subr.mxu0 0.0
  %4376 = vmatpush1.msra.mxu0 0.0
  %4377 = vmatprep.subr.mxu0 0.0
  %4378 = vmatpush1.msra.mxu0 0.0
  %4379 = vmatprep.subr.mxu0 0.0
  %4380 = vmatpush1.msra.mxu0 0.0
  %4381 = vmatprep.subr.mxu0 0.0
  %4382 = vmatpush1.msra.mxu0 0.0
  %4383 = vmatprep.subr.mxu0 0.0
  %4384 = vmatpush1.msra.mxu0 0.0
  %4385 = vmatprep.subr.mxu0 0.0
  %4386 = vmatpush1.msra.mxu0 0.0
  %4387 = vmatprep.subr.mxu0 0.0
  %4388 = vmatpush1.msra.mxu0 0.0
  %4389 = vmatprep.subr.mxu0 0.0
  %4390 = vmatpush1.msra.mxu0 0.0
  %4391 = vmatprep.subr.mxu0 0.0
  %4392 = vmatpush1.msra.mxu0 0.0
  %4393 = vmatprep.subr.mxu0 0.0
  %4394 = vmatpush1.msra.mxu0 0.0
  %4395 = vmatprep.subr.mxu0 0.0
  %4396 = vmatpush1.msra.mxu0 0.0
  %4397 = vmatprep.subr.mxu0 0.0
  %4398 = vmatpush1.msra.mxu0 0.0
  %4399 = vmatprep.subr.mxu0 0.0
  %4400 = vmatpush1.msra.mxu0 0.0
  %4401 = vmatprep.subr.mxu0 0.0
  %4402 = vmatpush1.msra.mxu0 0.0
  %4403 = vmatprep.subr.mxu0 0.0
  %4404 = vmatpush1.msra.mxu0 0.0
  %4405 = vmatprep.mubr.f32.mxu0 0.0
  %4406 = vmatmul.mubr.f32.gmra.mrb[0].mxu0 %v4339
  %v4407 = vpop.f32.mrb[0].mxu0
  %v4408 = vadd.f32 0.0, %v4407
  %v4409 = vpop.f32.mrb[0].mxu0
  %4410 = vdwg.mxu0
  %v4412 = vsel %vm614, %v90, 0
  %4414 = vmatprep.subr.mxu0 0.0
  %4415 = vmatpush1.msra.mxu0 %v518
  %4416 = vmatprep.subr.mxu0 0.0
  %4417 = vmatpush1.msra.mxu0 %v519
  %4418 = vmatprep.subr.mxu0 0.0
  %4419 = vmatpush1.msra.mxu0 %v520
  %4420 = vmatprep.subr.mxu0 0.0
  %4421 = vmatpush1.msra.mxu0 %v521
  %4422 = vmatprep.subr.mxu0 0.0
  %4423 = vmatpush1.msra.mxu0 %v522
  %4424 = vmatprep.subr.mxu0 0.0
  %4425 = vmatpush1.msra.mxu0 %v523
  %4426 = vmatprep.subr.mxu0 0.0
  %4427 = vmatpush1.msra.mxu0 %v524
  %4428 = vmatprep.subr.mxu0 0.0
  %4429 = vmatpush1.msra.mxu0 %v525
  %4430 = vmatprep.subr.mxu0 0.0
  %4431 = vmatpush1.msra.mxu0 0.0
  %4432 = vmatprep.subr.mxu0 0.0
  %4433 = vmatpush1.msra.mxu0 0.0
  %4434 = vmatprep.subr.mxu0 0.0
  %4435 = vmatpush1.msra.mxu0 0.0
  %4436 = vmatprep.subr.mxu0 0.0
  %4437 = vmatpush1.msra.mxu0 0.0
  %4438 = vmatprep.subr.mxu0 0.0
  %4439 = vmatpush1.msra.mxu0 0.0
  %4440 = vmatprep.subr.mxu0 0.0
  %4441 = vmatpush1.msra.mxu0 0.0
  %4442 = vmatprep.subr.mxu0 0.0
  %4443 = vmatpush1.msra.mxu0 0.0
  %4444 = vmatprep.subr.mxu0 0.0
  %4445 = vmatpush1.msra.mxu0 0.0
  %4446 = vmatprep.subr.mxu0 0.0
  %4447 = vmatpush1.msra.mxu0 0.0
  %4448 = vmatprep.subr.mxu0 0.0
  %4449 = vmatpush1.msra.mxu0 0.0
  %4450 = vmatprep.subr.mxu0 0.0
  %4451 = vmatpush1.msra.mxu0 0.0
  %4452 = vmatprep.subr.mxu0 0.0
  %4453 = vmatpush1.msra.mxu0 0.0
  %4454 = vmatprep.subr.mxu0 0.0
  %4455 = vmatpush1.msra.mxu0 0.0
  %4456 = vmatprep.subr.mxu0 0.0
  %4457 = vmatpush1.msra.mxu0 0.0
  %4458 = vmatprep.subr.mxu0 0.0
  %4459 = vmatpush1.msra.mxu0 0.0
  %4460 = vmatprep.subr.mxu0 0.0
  %4461 = vmatpush1.msra.mxu0 0.0
  %4462 = vmatprep.subr.mxu0 0.0
  %4463 = vmatpush1.msra.mxu0 0.0
  %4464 = vmatprep.subr.mxu0 0.0
  %4465 = vmatpush1.msra.mxu0 0.0
  %4466 = vmatprep.subr.mxu0 0.0
  %4467 = vmatpush1.msra.mxu0 0.0
  %4468 = vmatprep.subr.mxu0 0.0
  %4469 = vmatpush1.msra.mxu0 0.0
  %4470 = vmatprep.subr.mxu0 0.0
  %4471 = vmatpush1.msra.mxu0 0.0
  %4472 = vmatprep.subr.mxu0 0.0
  %4473 = vmatpush1.msra.mxu0 0.0
  %4474 = vmatprep.subr.mxu0 0.0
  %4475 = vmatpush1.msra.mxu0 0.0
  %4476 = vmatprep.subr.mxu0 0.0
  %4477 = vmatpush1.msra.mxu0 0.0
  %4478 = vmatprep.mubr.f32.mxu0 0.0
  %4479 = vmatmul.mubr.f32.gmra.mrb[0].mxu0 %v4412
  %v4480 = vpop.f32.mrb[0].mxu0
  %v4481 = vadd.f32 0.0, %v4480
  %v4482 = vpop.f32.mrb[0].mxu0
  %4483 = vdwg.mxu0
  %v4485 = vsel %vm614, %v91, 0
  %4487 = vmatprep.subr.mxu0 0.0
  %4488 = vmatpush1.msra.mxu0 %v526
  %4489 = vmatprep.subr.mxu0 0.0
  %4490 = vmatpush1.msra.mxu0 %v527
  %4491 = vmatprep.subr.mxu0 0.0
  %4492 = vmatpush1.msra.mxu0 %v528
  %4493 = vmatprep.subr.mxu0 0.0
  %4494 = vmatpush1.msra.mxu0 %v529
  %4495 = vmatprep.subr.mxu0 0.0
  %4496 = vmatpush1.msra.mxu0 %v530
  %4497 = vmatprep.subr.mxu0 0.0
  %4498 = vmatpush1.msra.mxu0 %v531
  %4499 = vmatprep.subr.mxu0 0.0
  %4500 = vmatpush1.msra.mxu0 %v532
  %4501 = vmatprep.subr.mxu0 0.0
  %4502 = vmatpush1.msra.mxu0 %v533
  %4503 = vmatprep.subr.mxu0 0.0
  %4504 = vmatpush1.msra.mxu0 0.0
  %4505 = vmatprep.subr.mxu0 0.0
  %4506 = vmatpush1.msra.mxu0 0.0
  %4507 = vmatprep.subr.mxu0 0.0
  %4508 = vmatpush1.msra.mxu0 0.0
  %4509 = vmatprep.subr.mxu0 0.0
  %4510 = vmatpush1.msra.mxu0 0.0
  %4511 = vmatprep.subr.mxu0 0.0
  %4512 = vmatpush1.msra.mxu0 0.0
  %4513 = vmatprep.subr.mxu0 0.0
  %4514 = vmatpush1.msra.mxu0 0.0
  %4515 = vmatprep.subr.mxu0 0.0
  %4516 = vmatpush1.msra.mxu0 0.0
  %4517 = vmatprep.subr.mxu0 0.0
  %4518 = vmatpush1.msra.mxu0 0.0
  %4519 = vmatprep.subr.mxu0 0.0
  %4520 = vmatpush1.msra.mxu0 0.0
  %4521 = vmatprep.subr.mxu0 0.0
  %4522 = vmatpush1.msra.mxu0 0.0
  %4523 = vmatprep.subr.mxu0 0.0
  %4524 = vmatpush1.msra.mxu0 0.0
  %4525 = vmatprep.subr.mxu0 0.0
  %4526 = vmatpush1.msra.mxu0 0.0
  %4527 = vmatprep.subr.mxu0 0.0
  %4528 = vmatpush1.msra.mxu0 0.0
  %4529 = vmatprep.subr.mxu0 0.0
  %4530 = vmatpush1.msra.mxu0 0.0
  %4531 = vmatprep.subr.mxu0 0.0
  %4532 = vmatpush1.msra.mxu0 0.0
  %4533 = vmatprep.subr.mxu0 0.0
  %4534 = vmatpush1.msra.mxu0 0.0
  %4535 = vmatprep.subr.mxu0 0.0
  %4536 = vmatpush1.msra.mxu0 0.0
  %4537 = vmatprep.subr.mxu0 0.0
  %4538 = vmatpush1.msra.mxu0 0.0
  %4539 = vmatprep.subr.mxu0 0.0
  %4540 = vmatpush1.msra.mxu0 0.0
  %4541 = vmatprep.subr.mxu0 0.0
  %4542 = vmatpush1.msra.mxu0 0.0
  %4543 = vmatprep.subr.mxu0 0.0
  %4544 = vmatpush1.msra.mxu0 0.0
  %4545 = vmatprep.subr.mxu0 0.0
  %4546 = vmatpush1.msra.mxu0 0.0
  %4547 = vmatprep.subr.mxu0 0.0
  %4548 = vmatpush1.msra.mxu0 0.0
  %4549 = vmatprep.subr.mxu0 0.0
  %4550 = vmatpush1.msra.mxu0 0.0
  %4551 = vmatprep.mubr.f32.mxu0 0.0
  %4552 = vmatmul.mubr.f32.gmra.mrb[0].mxu0 %v4485
  %v4553 = vpop.f32.mrb[0].mxu0
  %v4554 = vadd.f32 0.0, %v4553
  %v4555 = vpop.f32.mrb[0].mxu0
  %4556 = vdwg.mxu0
  %v4558 = vsel %vm614, %v92, 0
  %4560 = vmatprep.subr.mxu0 0.0
  %4561 = vmatpush1.msra.mxu0 %v534
  %4562 = vmatprep.subr.mxu0 0.0
  %4563 = vmatpush1.msra.mxu0 %v535
  %4564 = vmatprep.subr.mxu0 0.0
  %4565 = vmatpush1.msra.mxu0 %v536
  %4566 = vmatprep.subr.mxu0 0.0
  %4567 = vmatpush1.msra.mxu0 %v537
  %4568 = vmatprep.subr.mxu0 0.0
  %4569 = vmatpush1.msra.mxu0 %v538
  %4570 = vmatprep.subr.mxu0 0.0
  %4571 = vmatpush1.msra.mxu0 %v539
  %4572 = vmatprep.subr.mxu0 0.0
  %4573 = vmatpush1.msra.mxu0 %v540
  %4574 = vmatprep.subr.mxu0 0.0
  %4575 = vmatpush1.msra.mxu0 %v541
  %4576 = vmatprep.subr.mxu0 0.0
  %4577 = vmatpush1.msra.mxu0 0.0
  %4578 = vmatprep.subr.mxu0 0.0
  %4579 = vmatpush1.msra.mxu0 0.0
  %4580 = vmatprep.subr.mxu0 0.0
  %4581 = vmatpush1.msra.mxu0 0.0
  %4582 = vmatprep.subr.mxu0 0.0
  %4583 = vmatpush1.msra.mxu0 0.0
  %4584 = vmatprep.subr.mxu0 0.0
  %4585 = vmatpush1.msra.mxu0 0.0
  %4586 = vmatprep.subr.mxu0 0.0
  %4587 = vmatpush1.msra.mxu0 0.0
  %4588 = vmatprep.subr.mxu0 0.0
  %4589 = vmatpush1.msra.mxu0 0.0
  %4590 = vmatprep.subr.mxu0 0.0
  %4591 = vmatpush1.msra.mxu0 0.0
  %4592 = vmatprep.subr.mxu0 0.0
  %4593 = vmatpush1.msra.mxu0 0.0
  %4594 = vmatprep.subr.mxu0 0.0
  %4595 = vmatpush1.msra.mxu0 0.0
  %4596 = vmatprep.subr.mxu0 0.0
  %4597 = vmatpush1.msra.mxu0 0.0
  %4598 = vmatprep.subr.mxu0 0.0
  %4599 = vmatpush1.msra.mxu0 0.0
  %4600 = vmatprep.subr.mxu0 0.0
  %4601 = vmatpush1.msra.mxu0 0.0
  %4602 = vmatprep.subr.mxu0 0.0
  %4603 = vmatpush1.msra.mxu0 0.0
  %4604 = vmatprep.subr.mxu0 0.0
  %4605 = vmatpush1.msra.mxu0 0.0
  %4606 = vmatprep.subr.mxu0 0.0
  %4607 = vmatpush1.msra.mxu0 0.0
  %4608 = vmatprep.subr.mxu0 0.0
  %4609 = vmatpush1.msra.mxu0 0.0
  %4610 = vmatprep.subr.mxu0 0.0
  %4611 = vmatpush1.msra.mxu0 0.0
  %4612 = vmatprep.subr.mxu0 0.0
  %4613 = vmatpush1.msra.mxu0 0.0
  %4614 = vmatprep.subr.mxu0 0.0
  %4615 = vmatpush1.msra.mxu0 0.0
  %4616 = vmatprep.subr.mxu0 0.0
  %4617 = vmatpush1.msra.mxu0 0.0
  %4618 = vmatprep.subr.mxu0 0.0
  %4619 = vmatpush1.msra.mxu0 0.0
  %4620 = vmatprep.subr.mxu0 0.0
  %4621 = vmatpush1.msra.mxu0 0.0
  %4622 = vmatprep.subr.mxu0 0.0
  %4623 = vmatpush1.msra.mxu0 0.0
  %4624 = vmatprep.mubr.f32.mxu0 0.0
  %4625 = vmatmul.mubr.f32.gmra.mrb[0].mxu0 %v4558
  %v4626 = vpop.f32.mrb[0].mxu0
  %v4627 = vadd.f32 0.0, %v4626
  %v4628 = vpop.f32.mrb[0].mxu0
  %4629 = vdwg.mxu0
  %v4631 = vsel %vm614, %v93, 0
  %4633 = vmatprep.subr.mxu0 0.0
  %4634 = vmatpush1.msra.mxu0 %v542
  %4635 = vmatprep.subr.mxu0 0.0
  %4636 = vmatpush1.msra.mxu0 %v543
  %4637 = vmatprep.subr.mxu0 0.0
  %4638 = vmatpush1.msra.mxu0 %v544
  %4639 = vmatprep.subr.mxu0 0.0
  %4640 = vmatpush1.msra.mxu0 %v545
  %4641 = vmatprep.subr.mxu0 0.0
  %4642 = vmatpush1.msra.mxu0 %v546
  %4643 = vmatprep.subr.mxu0 0.0
  %4644 = vmatpush1.msra.mxu0 %v547
  %4645 = vmatprep.subr.mxu0 0.0
  %4646 = vmatpush1.msra.mxu0 %v548
  %4647 = vmatprep.subr.mxu0 0.0
  %4648 = vmatpush1.msra.mxu0 %v549
  %4649 = vmatprep.subr.mxu0 0.0
  %4650 = vmatpush1.msra.mxu0 0.0
  %4651 = vmatprep.subr.mxu0 0.0
  %4652 = vmatpush1.msra.mxu0 0.0
  %4653 = vmatprep.subr.mxu0 0.0
  %4654 = vmatpush1.msra.mxu0 0.0
  %4655 = vmatprep.subr.mxu0 0.0
  %4656 = vmatpush1.msra.mxu0 0.0
  %4657 = vmatprep.subr.mxu0 0.0
  %4658 = vmatpush1.msra.mxu0 0.0
  %4659 = vmatprep.subr.mxu0 0.0
  %4660 = vmatpush1.msra.mxu0 0.0
  %4661 = vmatprep.subr.mxu0 0.0
  %4662 = vmatpush1.msra.mxu0 0.0
  %4663 = vmatprep.subr.mxu0 0.0
  %4664 = vmatpush1.msra.mxu0 0.0
  %4665 = vmatprep.subr.mxu0 0.0
  %4666 = vmatpush1.msra.mxu0 0.0
  %4667 = vmatprep.subr.mxu0 0.0
  %4668 = vmatpush1.msra.mxu0 0.0
  %4669 = vmatprep.subr.mxu0 0.0
  %4670 = vmatpush1.msra.mxu0 0.0
  %4671 = vmatprep.subr.mxu0 0.0
  %4672 = vmatpush1.msra.mxu0 0.0
  %4673 = vmatprep.subr.mxu0 0.0
  %4674 = vmatpush1.msra.mxu0 0.0
  %4675 = vmatprep.subr.mxu0 0.0
  %4676 = vmatpush1.msra.mxu0 0.0
  %4677 = vmatprep.subr.mxu0 0.0
  %4678 = vmatpush1.msra.mxu0 0.0
  %4679 = vmatprep.subr.mxu0 0.0
  %4680 = vmatpush1.msra.mxu0 0.0
  %4681 = vmatprep.subr.mxu0 0.0
  %4682 = vmatpush1.msra.mxu0 0.0
  %4683 = vmatprep.subr.mxu0 0.0
  %4684 = vmatpush1.msra.mxu0 0.0
  %4685 = vmatprep.subr.mxu0 0.0
  %4686 = vmatpush1.msra.mxu0 0.0
  %4687 = vmatprep.subr.mxu0 0.0
  %4688 = vmatpush1.msra.mxu0 0.0
  %4689 = vmatprep.subr.mxu0 0.0
  %4690 = vmatpush1.msra.mxu0 0.0
  %4691 = vmatprep.subr.mxu0 0.0
  %4692 = vmatpush1.msra.mxu0 0.0
  %4693 = vmatprep.subr.mxu0 0.0
  %4694 = vmatpush1.msra.mxu0 0.0
  %4695 = vmatprep.subr.mxu0 0.0
  %4696 = vmatpush1.msra.mxu0 0.0
  %4697 = vmatprep.mubr.f32.mxu0 0.0
  %4698 = vmatmul.mubr.f32.gmra.mrb[0].mxu0 %v4631
  %v4699 = vpop.f32.mrb[0].mxu0
  %v4700 = vadd.f32 0.0, %v4699
  %v4701 = vpop.f32.mrb[0].mxu0
  %4702 = vdwg.mxu0
  %v4704 = vsel %vm614, %v94, 0
  %4706 = vmatprep.subr.mxu0 0.0
  %4707 = vmatpush1.msra.mxu0 %v550
  %4708 = vmatprep.subr.mxu0 0.0
  %4709 = vmatpush1.msra.mxu0 %v551
  %4710 = vmatprep.subr.mxu0 0.0
  %4711 = vmatpush1.msra.mxu0 %v552
  %4712 = vmatprep.subr.mxu0 0.0
  %4713 = vmatpush1.msra.mxu0 %v553
  %4714 = vmatprep.subr.mxu0 0.0
  %4715 = vmatpush1.msra.mxu0 %v554
  %4716 = vmatprep.subr.mxu0 0.0
  %4717 = vmatpush1.msra.mxu0 %v555
  %4718 = vmatprep.subr.mxu0 0.0
  %4719 = vmatpush1.msra.mxu0 %v556
  %4720 = vmatprep.subr.mxu0 0.0
  %4721 = vmatpush1.msra.mxu0 %v557
  %4722 = vmatprep.subr.mxu0 0.0
  %4723 = vmatpush1.msra.mxu0 0.0
  %4724 = vmatprep.subr.mxu0 0.0
  %4725 = vmatpush1.msra.mxu0 0.0
  %4726 = vmatprep.subr.mxu0 0.0
  %4727 = vmatpush1.msra.mxu0 0.0
  %4728 = vmatprep.subr.mxu0 0.0
  %4729 = vmatpush1.msra.mxu0 0.0
  %4730 = vmatprep.subr.mxu0 0.0
  %4731 = vmatpush1.msra.mxu0 0.0
  %4732 = vmatprep.subr.mxu0 0.0
  %4733 = vmatpush1.msra.mxu0 0.0
  %4734 = vmatprep.subr.mxu0 0.0
  %4735 = vmatpush1.msra.mxu0 0.0
  %4736 = vmatprep.subr.mxu0 0.0
  %4737 = vmatpush1.msra.mxu0 0.0
  %4738 = vmatprep.subr.mxu0 0.0
  %4739 = vmatpush1.msra.mxu0 0.0
  %4740 = vmatprep.subr.mxu0 0.0
  %4741 = vmatpush1.msra.mxu0 0.0
  %4742 = vmatprep.subr.mxu0 0.0
  %4743 = vmatpush1.msra.mxu0 0.0
  %4744 = vmatprep.subr.mxu0 0.0
  %4745 = vmatpush1.msra.mxu0 0.0
  %4746 = vmatprep.subr.mxu0 0.0
  %4747 = vmatpush1.msra.mxu0 0.0
  %4748 = vmatprep.subr.mxu0 0.0
  %4749 = vmatpush1.msra.mxu0 0.0
  %4750 = vmatprep.subr.mxu0 0.0
  %4751 = vmatpush1.msra.mxu0 0.0
  %4752 = vmatprep.subr.mxu0 0.0
  %4753 = vmatpush1.msra.mxu0 0.0
  %4754 = vmatprep.subr.mxu0 0.0
  %4755 = vmatpush1.msra.mxu0 0.0
  %4756 = vmatprep.subr.mxu0 0.0
  %4757 = vmatpush1.msra.mxu0 0.0
  %4758 = vmatprep.subr.mxu0 0.0
  %4759 = vmatpush1.msra.mxu0 0.0
  %4760 = vmatprep.subr.mxu0 0.0
  %4761 = vmatpush1.msra.mxu0 0.0
  %4762 = vmatprep.subr.mxu0 0.0
  %4763 = vmatpush1.msra.mxu0 0.0
  %4764 = vmatprep.subr.mxu0 0.0
  %4765 = vmatpush1.msra.mxu0 0.0
  %4766 = vmatprep.subr.mxu0 0.0
  %4767 = vmatpush1.msra.mxu0 0.0
  %4768 = vmatprep.subr.mxu0 0.0
  %4769 = vmatpush1.msra.mxu0 0.0
  %4770 = vmatprep.mubr.f32.mxu0 0.0
  %4771 = vmatmul.mubr.f32.gmra.mrb[0].mxu0 %v4704
  %v4772 = vpop.f32.mrb[0].mxu0
  %v4773 = vadd.f32 0.0, %v4772
  %v4774 = vpop.f32.mrb[0].mxu0
  %4775 = vdwg.mxu0
  %v4777 = vsel %vm614, %v95, 0
  %4779 = vmatprep.subr.mxu0 0.0
  %4780 = vmatpush1.msra.mxu0 %v558
  %4781 = vmatprep.subr.mxu0 0.0
  %4782 = vmatpush1.msra.mxu0 %v559
  %4783 = vmatprep.subr.mxu0 0.0
  %4784 = vmatpush1.msra.mxu0 %v560
  %4785 = vmatprep.subr.mxu0 0.0
  %4786 = vmatpush1.msra.mxu0 %v561
  %4787 = vmatprep.subr.mxu0 0.0
  %4788 = vmatpush1.msra.mxu0 %v562
  %4789 = vmatprep.subr.mxu0 0.0
  %4790 = vmatpush1.msra.mxu0 %v563
  %4791 = vmatprep.subr.mxu0 0.0
  %4792 = vmatpush1.msra.mxu0 %v564
  %4793 = vmatprep.subr.mxu0 0.0
  %4794 = vmatpush1.msra.mxu0 %v565
  %4795 = vmatprep.subr.mxu0 0.0
  %4796 = vmatpush1.msra.mxu0 0.0
  %4797 = vmatprep.subr.mxu0 0.0
  %4798 = vmatpush1.msra.mxu0 0.0
  %4799 = vmatprep.subr.mxu0 0.0
  %4800 = vmatpush1.msra.mxu0 0.0
  %4801 = vmatprep.subr.mxu0 0.0
  %4802 = vmatpush1.msra.mxu0 0.0
  %4803 = vmatprep.subr.mxu0 0.0
  %4804 = vmatpush1.msra.mxu0 0.0
  %4805 = vmatprep.subr.mxu0 0.0
  %4806 = vmatpush1.msra.mxu0 0.0
  %4807 = vmatprep.subr.mxu0 0.0
  %4808 = vmatpush1.msra.mxu0 0.0
  %4809 = vmatprep.subr.mxu0 0.0
  %4810 = vmatpush1.msra.mxu0 0.0
  %4811 = vmatprep.subr.mxu0 0.0
  %4812 = vmatpush1.msra.mxu0 0.0
  %4813 = vmatprep.subr.mxu0 0.0
  %4814 = vmatpush1.msra.mxu0 0.0
  %4815 = vmatprep.subr.mxu0 0.0
  %4816 = vmatpush1.msra.mxu0 0.0
  %4817 = vmatprep.subr.mxu0 0.0
  %4818 = vmatpush1.msra.mxu0 0.0
  %4819 = vmatprep.subr.mxu0 0.0
  %4820 = vmatpush1.msra.mxu0 0.0
  %4821 = vmatprep.subr.mxu0 0.0
  %4822 = vmatpush1.msra.mxu0 0.0
  %4823 = vmatprep.subr.mxu0 0.0
  %4824 = vmatpush1.msra.mxu0 0.0
  %4825 = vmatprep.subr.mxu0 0.0
  %4826 = vmatpush1.msra.mxu0 0.0
  %4827 = vmatprep.subr.mxu0 0.0
  %4828 = vmatpush1.msra.mxu0 0.0
  %4829 = vmatprep.subr.mxu0 0.0
  %4830 = vmatpush1.msra.mxu0 0.0
  %4831 = vmatprep.subr.mxu0 0.0
  %4832 = vmatpush1.msra.mxu0 0.0
  %4833 = vmatprep.subr.mxu0 0.0
  %4834 = vmatpush1.msra.mxu0 0.0
  %4835 = vmatprep.subr.mxu0 0.0
  %4836 = vmatpush1.msra.mxu0 0.0
  %4837 = vmatprep.subr.mxu0 0.0
  %4838 = vmatpush1.msra.mxu0 0.0
  %4839 = vmatprep.subr.mxu0 0.0
  %4840 = vmatpush1.msra.mxu0 0.0
  %4841 = vmatprep.subr.mxu0 0.0
  %4842 = vmatpush1.msra.mxu0 0.0
  %4843 = vmatprep.mubr.f32.mxu0 0.0
  %4844 = vmatmul.mubr.f32.gmra.mrb[0].mxu0 %v4777
  %v4845 = vpop.f32.mrb[0].mxu0
  %v4846 = vadd.f32 0.0, %v4845
  %v4847 = vpop.f32.mrb[0].mxu0
  %4848 = vdwg.mxu0
  %v4850 = vsel %vm614, %v96, 0
  %4852 = vmatprep.subr.mxu0 0.0
  %4853 = vmatpush1.msra.mxu0 %v566
  %4854 = vmatprep.subr.mxu0 0.0
  %4855 = vmatpush1.msra.mxu0 %v567
  %4856 = vmatprep.subr.mxu0 0.0
  %4857 = vmatpush1.msra.mxu0 %v568
  %4858 = vmatprep.subr.mxu0 0.0
  %4859 = vmatpush1.msra.mxu0 %v569
  %4860 = vmatprep.subr.mxu0 0.0
  %4861 = vmatpush1.msra.mxu0 %v570
  %4862 = vmatprep.subr.mxu0 0.0
  %4863 = vmatpush1.msra.mxu0 %v571
  %4864 = vmatprep.subr.mxu0 0.0
  %4865 = vmatpush1.msra.mxu0 %v572
  %4866 = vmatprep.subr.mxu0 0.0
  %4867 = vmatpush1.msra.mxu0 %v573
  %4868 = vmatprep.subr.mxu0 0.0
  %4869 = vmatpush1.msra.mxu0 0.0
  %4870 = vmatprep.subr.mxu0 0.0
  %4871 = vmatpush1.msra.mxu0 0.0
  %4872 = vmatprep.subr.mxu0 0.0
  %4873 = vmatpush1.msra.mxu0 0.0
  %4874 = vmatprep.subr.mxu0 0.0
  %4875 = vmatpush1.msra.mxu0 0.0
  %4876 = vmatprep.subr.mxu0 0.0
  %4877 = vmatpush1.msra.mxu0 0.0
  %4878 = vmatprep.subr.mxu0 0.0
  %4879 = vmatpush1.msra.mxu0 0.0
  %4880 = vmatprep.subr.mxu0 0.0
  %4881 = vmatpush1.msra.mxu0 0.0
  %4882 = vmatprep.subr.mxu0 0.0
  %4883 = vmatpush1.msra.mxu0 0.0
  %4884 = vmatprep.subr.mxu0 0.0
  %4885 = vmatpush1.msra.mxu0 0.0
  %4886 = vmatprep.subr.mxu0 0.0
  %4887 = vmatpush1.msra.mxu0 0.0
  %4888 = vmatprep.subr.mxu0 0.0
  %4889 = vmatpush1.msra.mxu0 0.0
  %4890 = vmatprep.subr.mxu0 0.0
  %4891 = vmatpush1.msra.mxu0 0.0
  %4892 = vmatprep.subr.mxu0 0.0
  %4893 = vmatpush1.msra.mxu0 0.0
  %4894 = vmatprep.subr.mxu0 0.0
  %4895 = vmatpush1.msra.mxu0 0.0
  %4896 = vmatprep.subr.mxu0 0.0
  %4897 = vmatpush1.msra.mxu0 0.0
  %4898 = vmatprep.subr.mxu0 0.0
  %4899 = vmatpush1.msra.mxu0 0.0
  %4900 = vmatprep.subr.mxu0 0.0
  %4901 = vmatpush1.msra.mxu0 0.0
  %4902 = vmatprep.subr.mxu0 0.0
  %4903 = vmatpush1.msra.mxu0 0.0
  %4904 = vmatprep.subr.mxu0 0.0
  %4905 = vmatpush1.msra.mxu0 0.0
  %4906 = vmatprep.subr.mxu0 0.0
  %4907 = vmatpush1.msra.mxu0 0.0
  %4908 = vmatprep.subr.mxu0 0.0
  %4909 = vmatpush1.msra.mxu0 0.0
  %4910 = vmatprep.subr.mxu0 0.0
  %4911 = vmatpush1.msra.mxu0 0.0
  %4912 = vmatprep.subr.mxu0 0.0
  %4913 = vmatpush1.msra.mxu0 0.0
  %4914 = vmatprep.subr.mxu0 0.0
  %4915 = vmatpush1.msra.mxu0 0.0
  %4916 = vmatprep.mubr.f32.mxu0 0.0
  %4917 = vmatmul.mubr.f32.gmra.mrb[0].mxu0 %v4850
  %v4918 = vpop.f32.mrb[0].mxu0
  %v4919 = vadd.f32 0.0, %v4918
  %v4920 = vpop.f32.mrb[0].mxu0
  %4921 = vdwg.mxu0
  %v4923 = vsel %vm614, %v97, 0
  %4925 = vmatprep.subr.mxu0 0.0
  %4926 = vmatpush1.msra.mxu0 %v574
  %4927 = vmatprep.subr.mxu0 0.0
  %4928 = vmatpush1.msra.mxu0 %v575
  %4929 = vmatprep.subr.mxu0 0.0
  %4930 = vmatpush1.msra.mxu0 %v576
  %4931 = vmatprep.subr.mxu0 0.0
  %4932 = vmatpush1.msra.mxu0 %v577
  %4933 = vmatprep.subr.mxu0 0.0
  %4934 = vmatpush1.msra.mxu0 %v578
  %4935 = vmatprep.subr.mxu0 0.0
  %4936 = vmatpush1.msra.mxu0 %v579
  %4937 = vmatprep.subr.mxu0 0.0
  %4938 = vmatpush1.msra.mxu0 %v580
  %4939 = vmatprep.subr.mxu0 0.0
  %4940 = vmatpush1.msra.mxu0 %v581
  %4941 = vmatprep.subr.mxu0 0.0
  %4942 = vmatpush1.msra.mxu0 0.0
  %4943 = vmatprep.subr.mxu0 0.0
  %4944 = vmatpush1.msra.mxu0 0.0
  %4945 = vmatprep.subr.mxu0 0.0
  %4946 = vmatpush1.msra.mxu0 0.0
  %4947 = vmatprep.subr.mxu0 0.0
  %4948 = vmatpush1.msra.mxu0 0.0
  %4949 = vmatprep.subr.mxu0 0.0
  %4950 = vmatpush1.msra.mxu0 0.0
  %4951 = vmatprep.subr.mxu0 0.0
  %4952 = vmatpush1.msra.mxu0 0.0
  %4953 = vmatprep.subr.mxu0 0.0
  %4954 = vmatpush1.msra.mxu0 0.0
  %4955 = vmatprep.subr.mxu0 0.0
  %4956 = vmatpush1.msra.mxu0 0.0
  %4957 = vmatprep.subr.mxu0 0.0
  %4958 = vmatpush1.msra.mxu0 0.0
  %4959 = vmatprep.subr.mxu0 0.0
  %4960 = vmatpush1.msra.mxu0 0.0
  %4961 = vmatprep.subr.mxu0 0.0
  %4962 = vmatpush1.msra.mxu0 0.0
  %4963 = vmatprep.subr.mxu0 0.0
  %4964 = vmatpush1.msra.mxu0 0.0
  %4965 = vmatprep.subr.mxu0 0.0
  %4966 = vmatpush1.msra.mxu0 0.0
  %4967 = vmatprep.subr.mxu0 0.0
  %4968 = vmatpush1.msra.mxu0 0.0
  %4969 = vmatprep.subr.mxu0 0.0
  %4970 = vmatpush1.msra.mxu0 0.0
  %4971 = vmatprep.subr.mxu0 0.0
  %4972 = vmatpush1.msra.mxu0 0.0
  %4973 = vmatprep.subr.mxu0 0.0
  %4974 = vmatpush1.msra.mxu0 0.0
  %4975 = vmatprep.subr.mxu0 0.0
  %4976 = vmatpush1.msra.mxu0 0.0
  %4977 = vmatprep.subr.mxu0 0.0
  %4978 = vmatpush1.msra.mxu0 0.0
  %4979 = vmatprep.subr.mxu0 0.0
  %4980 = vmatpush1.msra.mxu0 0.0
  %4981 = vmatprep.subr.mxu0 0.0
  %4982 = vmatpush1.msra.mxu0 0.0
  %4983 = vmatprep.subr.mxu0 0.0
  %4984 = vmatpush1.msra.mxu0 0.0
  %4985 = vmatprep.subr.mxu0 0.0
  %4986 = vmatpush1.msra.mxu0 0.0
  %4987 = vmatprep.subr.mxu0 0.0
  %4988 = vmatpush1.msra.mxu0 0.0
  %4989 = vmatprep.mubr.f32.mxu0 0.0
  %4990 = vmatmul.mubr.f32.gmra.mrb[0].mxu0 %v4923
  %v4991 = vpop.f32.mrb[0].mxu0
  %v4992 = vadd.f32 0.0, %v4991
  %v4993 = vpop.f32.mrb[0].mxu0
  %4994 = vdwg.mxu0
  %v4996 = vsel %vm614, %v98, 0
  %4998 = vmatprep.subr.mxu0 0.0
  %4999 = vmatpush1.msra.mxu0 %v582
  %5000 = vmatprep.subr.mxu0 0.0
  %5001 = vmatpush1.msra.mxu0 %v583
  %5002 = vmatprep.subr.mxu0 0.0
  %5003 = vmatpush1.msra.mxu0 %v584
  %5004 = vmatprep.subr.mxu0 0.0
  %5005 = vmatpush1.msra.mxu0 %v585
  %5006 = vmatprep.subr.mxu0 0.0
  %5007 = vmatpush1.msra.mxu0 %v586
  %5008 = vmatprep.subr.mxu0 0.0
  %5009 = vmatpush1.msra.mxu0 %v587
  %5010 = vmatprep.subr.mxu0 0.0
  %5011 = vmatpush1.msra.mxu0 %v588
  %5012 = vmatprep.subr.mxu0 0.0
  %5013 = vmatpush1.msra.mxu0 %v589
  %5014 = vmatprep.subr.mxu0 0.0
  %5015 = vmatpush1.msra.mxu0 0.0
  %5016 = vmatprep.subr.mxu0 0.0
  %5017 = vmatpush1.msra.mxu0 0.0
  %5018 = vmatprep.subr.mxu0 0.0
  %5019 = vmatpush1.msra.mxu0 0.0
  %5020 = vmatprep.subr.mxu0 0.0
  %5021 = vmatpush1.msra.mxu0 0.0
  %5022 = vmatprep.subr.mxu0 0.0
  %5023 = vmatpush1.msra.mxu0 0.0
  %5024 = vmatprep.subr.mxu0 0.0
  %5025 = vmatpush1.msra.mxu0 0.0
  %5026 = vmatprep.subr.mxu0 0.0
  %5027 = vmatpush1.msra.mxu0 0.0
  %5028 = vmatprep.subr.mxu0 0.0
  %5029 = vmatpush1.msra.mxu0 0.0
  %5030 = vmatprep.subr.mxu0 0.0
  %5031 = vmatpush1.msra.mxu0 0.0
  %5032 = vmatprep.subr.mxu0 0.0
  %5033 = vmatpush1.msra.mxu0 0.0
  %5034 = vmatprep.subr.mxu0 0.0
  %5035 = vmatpush1.msra.mxu0 0.0
  %5036 = vmatprep.subr.mxu0 0.0
  %5037 = vmatpush1.msra.mxu0 0.0
  %5038 = vmatprep.subr.mxu0 0.0
  %5039 = vmatpush1.msra.mxu0 0.0
  %5040 = vmatprep.subr.mxu0 0.0
  %5041 = vmatpush1.msra.mxu0 0.0
  %5042 = vmatprep.subr.mxu0 0.0
  %5043 = vmatpush1.msra.mxu0 0.0
  %5044 = vmatprep.subr.mxu0 0.0
  %5045 = vmatpush1.msra.mxu0 0.0
  %5046 = vmatprep.subr.mxu0 0.0
  %5047 = vmatpush1.msra.mxu0 0.0
  %5048 = vmatprep.subr.mxu0 0.0
  %5049 = vmatpush1.msra.mxu0 0.0
  %5050 = vmatprep.subr.mxu0 0.0
  %5051 = vmatpush1.msra.mxu0 0.0
  %5052 = vmatprep.subr.mxu0 0.0
  %5053 = vmatpush1.msra.mxu0 0.0
  %5054 = vmatprep.subr.mxu0 0.0
  %5055 = vmatpush1.msra.mxu0 0.0
  %5056 = vmatprep.subr.mxu0 0.0
  %5057 = vmatpush1.msra.mxu0 0.0
  %5058 = vmatprep.subr.mxu0 0.0
  %5059 = vmatpush1.msra.mxu0 0.0
  %5060 = vmatprep.subr.mxu0 0.0
  %5061 = vmatpush1.msra.mxu0 0.0
  %5062 = vmatprep.mubr.f32.mxu0 0.0
  %5063 = vmatmul.mubr.f32.gmra.mrb[0].mxu0 %v4996
  %v5064 = vpop.f32.mrb[0].mxu0
  %v5065 = vadd.f32 0.0, %v5064
  %v5066 = vpop.f32.mrb[0].mxu0
  %5067 = vdwg.mxu0
  %v5069 = vsel %vm614, %v99, 0
  %5071 = vmatprep.subr.mxu0 0.0
  %5072 = vmatpush1.msra.mxu0 %v590
  %5073 = vmatprep.subr.mxu0 0.0
  %5074 = vmatpush1.msra.mxu0 %v591
  %5075 = vmatprep.subr.mxu0 0.0
  %5076 = vmatpush1.msra.mxu0 %v592
  %5077 = vmatprep.subr.mxu0 0.0
  %5078 = vmatpush1.msra.mxu0 %v593
  %5079 = vmatprep.subr.mxu0 0.0
  %5080 = vmatpush1.msra.mxu0 %v594
  %5081 = vmatprep.subr.mxu0 0.0
  %5082 = vmatpush1.msra.mxu0 %v595
  %5083 = vmatprep.subr.mxu0 0.0
  %5084 = vmatpush1.msra.mxu0 %v596
  %5085 = vmatprep.subr.mxu0 0.0
  %5086 = vmatpush1.msra.mxu0 %v597
  %5087 = vmatprep.subr.mxu0 0.0
  %5088 = vmatpush1.msra.mxu0 0.0
  %5089 = vmatprep.subr.mxu0 0.0
  %5090 = vmatpush1.msra.mxu0 0.0
  %5091 = vmatprep.subr.mxu0 0.0
  %5092 = vmatpush1.msra.mxu0 0.0
  %5093 = vmatprep.subr.mxu0 0.0
  %5094 = vmatpush1.msra.mxu0 0.0
  %5095 = vmatprep.subr.mxu0 0.0
  %5096 = vmatpush1.msra.mxu0 0.0
  %5097 = vmatprep.subr.mxu0 0.0
  %5098 = vmatpush1.msra.mxu0 0.0
  %5099 = vmatprep.subr.mxu0 0.0
  %5100 = vmatpush1.msra.mxu0 0.0
  %5101 = vmatprep.subr.mxu0 0.0
  %5102 = vmatpush1.msra.mxu0 0.0
  %5103 = vmatprep.subr.mxu0 0.0
  %5104 = vmatpush1.msra.mxu0 0.0
  %5105 = vmatprep.subr.mxu0 0.0
  %5106 = vmatpush1.msra.mxu0 0.0
  %5107 = vmatprep.subr.mxu0 0.0
  %5108 = vmatpush1.msra.mxu0 0.0
  %5109 = vmatprep.subr.mxu0 0.0
  %5110 = vmatpush1.msra.mxu0 0.0
  %5111 = vmatprep.subr.mxu0 0.0
  %5112 = vmatpush1.msra.mxu0 0.0
  %5113 = vmatprep.subr.mxu0 0.0
  %5114 = vmatpush1.msra.mxu0 0.0
  %5115 = vmatprep.subr.mxu0 0.0
  %5116 = vmatpush1.msra.mxu0 0.0
  %5117 = vmatprep.subr.mxu0 0.0
  %5118 = vmatpush1.msra.mxu0 0.0
  %5119 = vmatprep.subr.mxu0 0.0
  %5120 = vmatpush1.msra.mxu0 0.0
  %5121 = vmatprep.subr.mxu0 0.0
  %5122 = vmatpush1.msra.mxu0 0.0
  %5123 = vmatprep.subr.mxu0 0.0
  %5124 = vmatpush1.msra.mxu0 0.0
  %5125 = vmatprep.subr.mxu0 0.0
  %5126 = vmatpush1.msra.mxu0 0.0
  %5127 = vmatprep.subr.mxu0 0.0
  %5128 = vmatpush1.msra.mxu0 0.0
  %5129 = vmatprep.subr.mxu0 0.0
  %5130 = vmatpush1.msra.mxu0 0.0
  %5131 = vmatprep.subr.mxu0 0.0
  %5132 = vmatpush1.msra.mxu0 0.0
  %5133 = vmatprep.subr.mxu0 0.0
  %5134 = vmatpush1.msra.mxu0 0.0
  %5135 = vmatprep.mubr.f32.mxu0 0.0
  %5136 = vmatmul.mubr.f32.gmra.mrb[0].mxu0 %v5069
  %v5137 = vpop.f32.mrb[0].mxu0
  %v5138 = vadd.f32 0.0, %v5137
  %v5139 = vpop.f32.mrb[0].mxu0
  %5140 = vdwg.mxu0
  %v5142 = vsel %vm614, %v100, 0
  %5144 = vmatprep.subr.mxu0 0.0
  %5145 = vmatpush1.msra.mxu0 %v598
  %5146 = vmatprep.subr.mxu0 0.0
  %5147 = vmatpush1.msra.mxu0 %v599
  %5148 = vmatprep.subr.mxu0 0.0
  %5149 = vmatpush1.msra.mxu0 %v600
  %5150 = vmatprep.subr.mxu0 0.0
  %5151 = vmatpush1.msra.mxu0 %v601
  %5152 = vmatprep.subr.mxu0 0.0
  %5153 = vmatpush1.msra.mxu0 %v602
  %5154 = vmatprep.subr.mxu0 0.0
  %5155 = vmatpush1.msra.mxu0 %v603
  %5156 = vmatprep.subr.mxu0 0.0
  %5157 = vmatpush1.msra.mxu0 %v604
  %5158 = vmatprep.subr.mxu0 0.0
  %5159 = vmatpush1.msra.mxu0 %v605
  %5160 = vmatprep.subr.mxu0 0.0
  %5161 = vmatpush1.msra.mxu0 0.0
  %5162 = vmatprep.subr.mxu0 0.0
  %5163 = vmatpush1.msra.mxu0 0.0
  %5164 = vmatprep.subr.mxu0 0.0
  %5165 = vmatpush1.msra.mxu0 0.0
  %5166 = vmatprep.subr.mxu0 0.0
  %5167 = vmatpush1.msra.mxu0 0.0
  %5168 = vmatprep.subr.mxu0 0.0
  %5169 = vmatpush1.msra.mxu0 0.0
  %5170 = vmatprep.subr.mxu0 0.0
  %5171 = vmatpush1.msra.mxu0 0.0
  %5172 = vmatprep.subr.mxu0 0.0
  %5173 = vmatpush1.msra.mxu0 0.0
  %5174 = vmatprep.subr.mxu0 0.0
  %5175 = vmatpush1.msra.mxu0 0.0
  %5176 = vmatprep.subr.mxu0 0.0
  %5177 = vmatpush1.msra.mxu0 0.0
  %5178 = vmatprep.subr.mxu0 0.0
  %5179 = vmatpush1.msra.mxu0 0.0
  %5180 = vmatprep.subr.mxu0 0.0
  %5181 = vmatpush1.msra.mxu0 0.0
  %5182 = vmatprep.subr.mxu0 0.0
  %5183 = vmatpush1.msra.mxu0 0.0
  %5184 = vmatprep.subr.mxu0 0.0
  %5185 = vmatpush1.msra.mxu0 0.0
  %5186 = vmatprep.subr.mxu0 0.0
  %5187 = vmatpush1.msra.mxu0 0.0
  %5188 = vmatprep.subr.mxu0 0.0
  %5189 = vmatpush1.msra.mxu0 0.0
  %5190 = vmatprep.subr.mxu0 0.0
  %5191 = vmatpush1.msra.mxu0 0.0
  %5192 = vmatprep.subr.mxu0 0.0
  %5193 = vmatpush1.msra.mxu0 0.0
  %5194 = vmatprep.subr.mxu0 0.0
  %5195 = vmatpush1.msra.mxu0 0.0
  %5196 = vmatprep.subr.mxu0 0.0
  %5197 = vmatpush1.msra.mxu0 0.0
  %5198 = vmatprep.subr.mxu0 0.0
  %5199 = vmatpush1.msra.mxu0 0.0
  %5200 = vmatprep.subr.mxu0 0.0
  %5201 = vmatpush1.msra.mxu0 0.0
  %5202 = vmatprep.subr.mxu0 0.0
  %5203 = vmatpush1.msra.mxu0 0.0
  %5204 = vmatprep.subr.mxu0 0.0
  %5205 = vmatpush1.msra.mxu0 0.0
  %5206 = vmatprep.subr.mxu0 0.0
  %5207 = vmatpush1.msra.mxu0 0.0
  %5208 = vmatprep.mubr.f32.mxu0 0.0
  %5209 = vmatmul.mubr.f32.gmra.mrb[0].mxu0 %v5142
  %v5210 = vpop.f32.mrb[0].mxu0
  %v5211 = vadd.f32 0.0, %v5210
  %v5212 = vpop.f32.mrb[0].mxu0
  %5213 = vdwg.mxu0
  %v5215 = vsel %vm614, %v101, 0
  %5217 = vmatprep.subr.mxu0 0.0
  %5218 = vmatpush1.msra.mxu0 %v606
  %5219 = vmatprep.subr.mxu0 0.0
  %5220 = vmatpush1.msra.mxu0 %v607
  %5221 = vmatprep.subr.mxu0 0.0
  %5222 = vmatpush1.msra.mxu0 %v608
  %5223 = vmatprep.subr.mxu0 0.0
  %5224 = vmatpush1.msra.mxu0 %v609
  %5225 = vmatprep.subr.mxu0 0.0
  %5226 = vmatpush1.msra.mxu0 %v610
  %5227 = vmatprep.subr.mxu0 0.0
  %5228 = vmatpush1.msra.mxu0 %v611
  %5229 = vmatprep.subr.mxu0 0.0
  %5230 = vmatpush1.msra.mxu0 %v612
  %5231 = vmatprep.subr.mxu0 0.0
  %5232 = vmatpush1.msra.mxu0 %v613
  %5233 = vmatprep.subr.mxu0 0.0
  %5234 = vmatpush1.msra.mxu0 0.0
  %5235 = vmatprep.subr.mxu0 0.0
  %5236 = vmatpush1.msra.mxu0 0.0
  %5237 = vmatprep.subr.mxu0 0.0
  %5238 = vmatpush1.msra.mxu0 0.0
  %5239 = vmatprep.subr.mxu0 0.0
  %5240 = vmatpush1.msra.mxu0 0.0
  %5241 = vmatprep.subr.mxu0 0.0
  %5242 = vmatpush1.msra.mxu0 0.0
  %5243 = vmatprep.subr.mxu0 0.0
  %5244 = vmatpush1.msra.mxu0 0.0
  %5245 = vmatprep.subr.mxu0 0.0
  %5246 = vmatpush1.msra.mxu0 0.0
  %5247 = vmatprep.subr.mxu0 0.0
  %5248 = vmatpush1.msra.mxu0 0.0
  %5249 = vmatprep.subr.mxu0 0.0
  %5250 = vmatpush1.msra.mxu0 0.0
  %5251 = vmatprep.subr.mxu0 0.0
  %5252 = vmatpush1.msra.mxu0 0.0
  %5253 = vmatprep.subr.mxu0 0.0
  %5254 = vmatpush1.msra.mxu0 0.0
  %5255 = vmatprep.subr.mxu0 0.0
  %5256 = vmatpush1.msra.mxu0 0.0
  %5257 = vmatprep.subr.mxu0 0.0
  %5258 = vmatpush1.msra.mxu0 0.0
  %5259 = vmatprep.subr.mxu0 0.0
  %5260 = vmatpush1.msra.mxu0 0.0
  %5261 = vmatprep.subr.mxu0 0.0
  %5262 = vmatpush1.msra.mxu0 0.0
  %5263 = vmatprep.subr.mxu0 0.0
  %5264 = vmatpush1.msra.mxu0 0.0
  %5265 = vmatprep.subr.mxu0 0.0
  %5266 = vmatpush1.msra.mxu0 0.0
  %5267 = vmatprep.subr.mxu0 0.0
  %5268 = vmatpush1.msra.mxu0 0.0
  %5269 = vmatprep.subr.mxu0 0.0
  %5270 = vmatpush1.msra.mxu0 0.0
  %5271 = vmatprep.subr.mxu0 0.0
  %5272 = vmatpush1.msra.mxu0 0.0
  %5273 = vmatprep.subr.mxu0 0.0
  %5274 = vmatpush1.msra.mxu0 0.0
  %5275 = vmatprep.subr.mxu0 0.0
  %5276 = vmatpush1.msra.mxu0 0.0
  %5277 = vmatprep.subr.mxu0 0.0
  %5278 = vmatpush1.msra.mxu0 0.0
  %5279 = vmatprep.subr.mxu0 0.0
  %5280 = vmatpush1.msra.mxu0 0.0
  %5281 = vmatprep.mubr.f32.mxu0 0.0
  %5282 = vmatmul.mubr.f32.gmra.mrb[0].mxu0 %v5215
  %v5283 = vpop.f32.mrb[0].mxu0
  %v5284 = vadd.f32 0.0, %v5283
  %v5285 = vpop.f32.mrb[0].mxu0
  %5286 = vdwg.mxu0
  %v5287 = vld [vmem:[%s3] sm:$0xff]
  %v5288 = vld [vmem:[%s3 + $0x8] sm:$0xff]
  %v5289 = vld [vmem:[%s3 + $0x10] sm:$0xff]
  %v5290 = vld [vmem:[%s3 + $0x18] sm:$0xff]
  %v5291 = vld [vmem:[%s3 + $0x20] sm:$0xff]
  %v5292 = vld [vmem:[%s3 + $0x28] sm:$0xff]
  %v5293 = vld [vmem:[%s3 + $0x30] sm:$0xff]
  %v5294 = vld [vmem:[%s3 + $0x38] sm:$0xff]
  %v5295 = vld [vmem:[%s3 + $0x40] sm:$0xff]
  %v5296 = vld [vmem:[%s3 + $0x48] sm:$0xff]
  %v5297 = vld [vmem:[%s3 + $0x50] sm:$0xff]
  %v5298 = vld [vmem:[%s3 + $0x58] sm:$0xff]
  %v5299 = vld [vmem:[%s3 + $0x60] sm:$0xff]
  %v5300 = vld [vmem:[%s3 + $0x68] sm:$0xff]
  %v5301 = vld [vmem:[%s3 + $0x70] sm:$0xff]
  %v5302 = vld [vmem:[%s3 + $0x78] sm:$0xff]
  %v5303 = vld [vmem:[%s3 + $0x80] sm:$0xff]
  %v5304 = vld [vmem:[%s3 + $0x88] sm:$0xff]
  %v5305 = vld [vmem:[%s3 + $0x90] sm:$0xff]
  %v5306 = vld [vmem:[%s3 + $0x98] sm:$0xff]
  %v5307 = vld [vmem:[%s3 + $0xa0] sm:$0xff]
  %v5308 = vld [vmem:[%s3 + $0xa8] sm:$0xff]
  %v5309 = vld [vmem:[%s3 + $0xb0] sm:$0xff]
  %v5310 = vld [vmem:[%s3 + $0xb8] sm:$0xff]
  %v5311 = vld [vmem:[%s3 + $0xc0] sm:$0xff]
  %v5312 = vld [vmem:[%s3 + $0xc8] sm:$0xff]
  %v5313 = vld [vmem:[%s3 + $0xd0] sm:$0xff]
  %v5314 = vld [vmem:[%s3 + $0xd8] sm:$0xff]
  %v5315 = vld [vmem:[%s3 + $0xe0] sm:$0xff]
  %v5316 = vld [vmem:[%s3 + $0xe8] sm:$0xff]
  %v5317 = vld [vmem:[%s3 + $0xf0] sm:$0xff]
  %v5318 = vld [vmem:[%s3 + $0xf8] sm:$0xff]
  %v5319 = vld [vmem:[%s4] sm:$0xff]
  %v5320 = vld [vmem:[%s4 + $0x8] sm:$0xff]
  %v5321 = vld [vmem:[%s4 + $0x10] sm:$0xff]
  %v5322 = vld [vmem:[%s4 + $0x18] sm:$0xff]
  %v5323 = vld [vmem:[%s4 + $0x20] sm:$0xff]
  %v5324 = vld [vmem:[%s4 + $0x28] sm:$0xff]
  %v5325 = vld [vmem:[%s4 + $0x30] sm:$0xff]
  %v5326 = vld [vmem:[%s4 + $0x38] sm:$0xff]
  %v5327 = vld [vmem:[%s4 + $0x40] sm:$0xff]
  %v5328 = vld [vmem:[%s4 + $0x48] sm:$0xff]
  %v5329 = vld [vmem:[%s4 + $0x50] sm:$0xff]
  %v5330 = vld [vmem:[%s4 + $0x58] sm:$0xff]
  %v5331 = vld [vmem:[%s4 + $0x60] sm:$0xff]
  %v5332 = vld [vmem:[%s4 + $0x68] sm:$0xff]
  %v5333 = vld [vmem:[%s4 + $0x70] sm:$0xff]
  %v5334 = vld [vmem:[%s4 + $0x78] sm:$0xff]
  %v5335 = vld [vmem:[%s4 + $0x80] sm:$0xff]
  %v5336 = vld [vmem:[%s4 + $0x88] sm:$0xff]
  %v5337 = vld [vmem:[%s4 + $0x90] sm:$0xff]
  %v5338 = vld [vmem:[%s4 + $0x98] sm:$0xff]
  %v5339 = vld [vmem:[%s4 + $0xa0] sm:$0xff]
  %v5340 = vld [vmem:[%s4 + $0xa8] sm:$0xff]
  %v5341 = vld [vmem:[%s4 + $0xb0] sm:$0xff]
  %v5342 = vld [vmem:[%s4 + $0xb8] sm:$0xff]
  %v5343 = vld [vmem:[%s4 + $0xc0] sm:$0xff]
  %v5344 = vld [vmem:[%s4 + $0xc8] sm:$0xff]
  %v5345 = vld [vmem:[%s4 + $0xd0] sm:$0xff]
  %v5346 = vld [vmem:[%s4 + $0xd8] sm:$0xff]
  %v5347 = vld [vmem:[%s4 + $0xe0] sm:$0xff]
  %v5348 = vld [vmem:[%s4 + $0xe8] sm:$0xff]
  %v5349 = vld [vmem:[%s4 + $0xf0] sm:$0xff]
  %v5350 = vld [vmem:[%s4 + $0xf8] sm:$0xff]
  %v5351 = vld [vmem:[%s5] sm:$0xff]
  %v5352 = vld [vmem:[%s5 + $0x8] sm:$0xff]
  %v5353 = vld [vmem:[%s5 + $0x10] sm:$0xff]
  %v5354 = vld [vmem:[%s5 + $0x18] sm:$0xff]
  %v5355 = vld [vmem:[%s5 + $0x20] sm:$0xff]
  %v5356 = vld [vmem:[%s5 + $0x28] sm:$0xff]
  %v5357 = vld [vmem:[%s5 + $0x30] sm:$0xff]
  %v5358 = vld [vmem:[%s5 + $0x38] sm:$0xff]
  %v5359 = vld [vmem:[%s5 + $0x40] sm:$0xff]
  %v5360 = vld [vmem:[%s5 + $0x48] sm:$0xff]
  %v5361 = vld [vmem:[%s5 + $0x50] sm:$0xff]
  %v5362 = vld [vmem:[%s5 + $0x58] sm:$0xff]
  %v5363 = vld [vmem:[%s5 + $0x60] sm:$0xff]
  %v5364 = vld [vmem:[%s5 + $0x68] sm:$0xff]
  %v5365 = vld [vmem:[%s5 + $0x70] sm:$0xff]
  %v5366 = vld [vmem:[%s5 + $0x78] sm:$0xff]
  %v5367 = vld [vmem:[%s6] sm:$0xff]
  %v5368 = vld [vmem:[%s6 + $0x8] sm:$0xff]
  %v5369 = vld [vmem:[%s6 + $0x10] sm:$0xff]
  %v5370 = vld [vmem:[%s6 + $0x18] sm:$0xff]
  %v5371 = vld [vmem:[%s6 + $0x20] sm:$0xff]
  %v5372 = vld [vmem:[%s6 + $0x28] sm:$0xff]
  %v5373 = vld [vmem:[%s6 + $0x30] sm:$0xff]
  %v5374 = vld [vmem:[%s6 + $0x38] sm:$0xff]
  %v5375 = vld [vmem:[%s6 + $0x40] sm:$0xff]
  %v5376 = vld [vmem:[%s6 + $0x48] sm:$0xff]
  %v5377 = vld [vmem:[%s6 + $0x50] sm:$0xff]
  %v5378 = vld [vmem:[%s6 + $0x58] sm:$0xff]
  %v5379 = vld [vmem:[%s6 + $0x60] sm:$0xff]
  %v5380 = vld [vmem:[%s6 + $0x68] sm:$0xff]
  %v5381 = vld [vmem:[%s6 + $0x70] sm:$0xff]
  %v5382 = vld [vmem:[%s6 + $0x78] sm:$0xff]
  %v5383 = vld [vmem:[%s7] sm:$0xff]
  %v5384 = vld [vmem:[%s7 + $0x8] sm:$0xff]
  %v5385 = vld [vmem:[%s7 + $0x10] sm:$0xff]
  %v5386 = vld [vmem:[%s7 + $0x18] sm:$0xff]
  %v5387 = vld [vmem:[%s8] sm:$0x1]
  %v5388 = vld [vmem:[%s9] sm:$0xff]
  %v5389 = vld [vmem:[%s9 + $0x8] sm:$0xff]
  %v5390 = vld [vmem:[%s9 + $0x10] sm:$0xff]
  %v5391 = vld [vmem:[%s9 + $0x18] sm:$0xff]
  %v5392 = vld [vmem:[%s10] sm:$0x1]
  %v5393 = vld [vmem:[%s0] sm:$0xff]
  %v5394 = vld [vmem:[%s0 + $0x8] sm:$0xff]
  %v5395 = vld [vmem:[%s0 + $0x10] sm:$0xff]
  %v5396 = vld [vmem:[%s0 + $0x18] sm:$0xff]
  %v5397 = vld [vmem:[%s0 + $0x20] sm:$0xff]
  %v5398 = vld [vmem:[%s0 + $0x28] sm:$0xff]
  %v5399 = vld [vmem:[%s0 + $0x30] sm:$0xff]
  %v5400 = vld [vmem:[%s0 + $0x38] sm:$0xff]
  %v5402 = vsel %vm614, %v5287, 0
  %v5405 = vsel %vm614, %v5288, 0
  %v5408 = vsel %vm614, %v5289, 0
  %v5411 = vsel %vm614, %v5290, 0
  %v5414 = vsel %vm614, %v5291, 0
  %v5417 = vsel %vm614, %v5292, 0
  %v5420 = vsel %vm614, %v5293, 0
  %v5423 = vsel %vm614, %v5294, 0
  %v5426 = vsel %vm614, %v5295, 0
  %v5429 = vsel %vm614, %v5296, 0
  %v5432 = vsel %vm614, %v5297, 0
  %v5435 = vsel %vm614, %v5298, 0
  %v5438 = vsel %vm614, %v5299, 0
  %v5441 = vsel %vm614, %v5300, 0
  %v5444 = vsel %vm614, %v5301, 0
  %v5447 = vsel %vm614, %v5302, 0
  %v5450 = vsel %vm614, %v5303, 0
  %v5453 = vsel %vm614, %v5304, 0
  %v5456 = vsel %vm614, %v5305, 0
  %v5459 = vsel %vm614, %v5306, 0
  %v5462 = vsel %vm614, %v5307, 0
  %v5465 = vsel %vm614, %v5308, 0
  %v5468 = vsel %vm614, %v5309, 0
  %v5471 = vsel %vm614, %v5310, 0
  %v5474 = vsel %vm614, %v5311, 0
  %v5477 = vsel %vm614, %v5312, 0
  %v5480 = vsel %vm614, %v5313, 0
  %v5483 = vsel %vm614, %v5314, 0
  %v5486 = vsel %vm614, %v5315, 0
  %v5489 = vsel %vm614, %v5316, 0
  %v5492 = vsel %vm614, %v5317, 0
  %v5495 = vsel %vm614, %v5318, 0
  %5497 = vmatprep.subr.mxu0 0.0
  %5498 = vmatpush1.msra.mxu0 %v5393
  %5499 = vmatprep.subr.mxu0 0.0
  %5500 = vmatpush1.msra.mxu0 %v5394
  %5501 = vmatprep.subr.mxu0 0.0
  %5502 = vmatpush1.msra.mxu0 %v5395
  %5503 = vmatprep.subr.mxu0 0.0
  %5504 = vmatpush1.msra.mxu0 %v5396
  %5505 = vmatprep.subr.mxu0 0.0
  %5506 = vmatpush1.msra.mxu0 %v5397
  %5507 = vmatprep.subr.mxu0 0.0
  %5508 = vmatpush1.msra.mxu0 %v5398
  %5509 = vmatprep.subr.mxu0 0.0
  %5510 = vmatpush1.msra.mxu0 %v5399
  %5511 = vmatprep.subr.mxu0 0.0
  %5512 = vmatpush1.msra.mxu0 %v5400
  %5513 = vmatprep.subr.mxu0 0.0
  %5514 = vmatpush1.msra.mxu0 0.0
  %5515 = vmatprep.subr.mxu0 0.0
  %5516 = vmatpush1.msra.mxu0 0.0
  %5517 = vmatprep.subr.mxu0 0.0
  %5518 = vmatpush1.msra.mxu0 0.0
  %5519 = vmatprep.subr.mxu0 0.0
  %5520 = vmatpush1.msra.mxu0 0.0
  %5521 = vmatprep.subr.mxu0 0.0
  %5522 = vmatpush1.msra.mxu0 0.0
  %5523 = vmatprep.subr.mxu0 0.0
  %5524 = vmatpush1.msra.mxu0 0.0
  %5525 = vmatprep.subr.mxu0 0.0
  %5526 = vmatpush1.msra.mxu0 0.0
  %5527 = vmatprep.subr.mxu0 0.0
  %5528 = vmatpush1.msra.mxu0 0.0
  %5529 = vmatprep.subr.mxu0 0.0
  %5530 = vmatpush1.msra.mxu0 0.0
  %5531 = vmatprep.subr.mxu0 0.0
  %5532 = vmatpush1.msra.mxu0 0.0
  %5533 = vmatprep.subr.mxu0 0.0
  %5534 = vmatpush1.msra.mxu0 0.0
  %5535 = vmatprep.subr.mxu0 0.0
  %5536 = vmatpush1.msra.mxu0 0.0
  %5537 = vmatprep.subr.mxu0 0.0
  %5538 = vmatpush1.msra.mxu0 0.0
  %5539 = vmatprep.subr.mxu0 0.0
  %5540 = vmatpush1.msra.mxu0 0.0
  %5541 = vmatprep.subr.mxu0 0.0
  %5542 = vmatpush1.msra.mxu0 0.0
  %5543 = vmatprep.subr.mxu0 0.0
  %5544 = vmatpush1.msra.mxu0 0.0
  %5545 = vmatprep.subr.mxu0 0.0
  %5546 = vmatpush1.msra.mxu0 0.0
  %5547 = vmatprep.subr.mxu0 0.0
  %5548 = vmatpush1.msra.mxu0 0.0
  %5549 = vmatprep.subr.mxu0 0.0
  %5550 = vmatpush1.msra.mxu0 0.0
  %5551 = vmatprep.subr.mxu0 0.0
  %5552 = vmatpush1.msra.mxu0 0.0
  %5553 = vmatprep.subr.mxu0 0.0
  %5554 = vmatpush1.msra.mxu0 0.0
  %5555 = vmatprep.subr.mxu0 0.0
  %5556 = vmatpush1.msra.mxu0 0.0
  %5557 = vmatprep.subr.mxu0 0.0
  %5558 = vmatpush1.msra.mxu0 0.0
  %5559 = vmatprep.subr.mxu0 0.0
  %5560 = vmatpush1.msra.mxu0 0.0
  %5561 = vmatprep.mubr.f32.mxu0 0.0
  %5562 = vmatmul.mubr.f32.gmra.mrb[0].mxu0 %v5402
  %v5563 = vpop.f32.mrb[0].mxu0
  %v5564 = vadd.f32 0.0, %v5563
  %v5565 = vpop.f32.mrb[0].mxu0
  %5566 = vmatprep.mubr.f32.mxu0 0.0
  %5567 = vmatmul.mubr.f32.gmra.mrb[0].mxu0 %v5405
  %v5568 = vpop.f32.mrb[0].mxu0
  %v5569 = vadd.f32 0.0, %v5568
  %v5570 = vpop.f32.mrb[0].mxu0
  %5571 = vmatprep.mubr.f32.mxu0 0.0
  %5572 = vmatmul.mubr.f32.gmra.mrb[0].mxu0 %v5408
  %v5573 = vpop.f32.mrb[0].mxu0
  %v5574 = vadd.f32 0.0, %v5573
  %v5575 = vpop.f32.mrb[0].mxu0
  %5576 = vmatprep.mubr.f32.mxu0 0.0
  %5577 = vmatmul.mubr.f32.gmra.mrb[0].mxu0 %v5411
  %v5578 = vpop.f32.mrb[0].mxu0
  %v5579 = vadd.f32 0.0, %v5578
  %v5580 = vpop.f32.mrb[0].mxu0
  %5581 = vmatprep.mubr.f32.mxu0 0.0
  %5582 = vmatmul.mubr.f32.gmra.mrb[0].mxu0 %v5414
  %v5583 = vpop.f32.mrb[0].mxu0
  %v5584 = vadd.f32 0.0, %v5583
  %v5585 = vpop.f32.mrb[0].mxu0
  %5586 = vmatprep.mubr.f32.mxu0 0.0
  %5587 = vmatmul.mubr.f32.gmra.mrb[0].mxu0 %v5417
  %v5588 = vpop.f32.mrb[0].mxu0
  %v5589 = vadd.f32 0.0, %v5588
  %v5590 = vpop.f32.mrb[0].mxu0
  %5591 = vmatprep.mubr.f32.mxu0 0.0
  %5592 = vmatmul.mubr.f32.gmra.mrb[0].mxu0 %v5420
  %v5593 = vpop.f32.mrb[0].mxu0
  %v5594 = vadd.f32 0.0, %v5593
  %v5595 = vpop.f32.mrb[0].mxu0
  %5596 = vmatprep.mubr.f32.mxu0 0.0
  %5597 = vmatmul.mubr.f32.gmra.mrb[0].mxu0 %v5423
  %v5598 = vpop.f32.mrb[0].mxu0
  %v5599 = vadd.f32 0.0, %v5598
  %v5600 = vpop.f32.mrb[0].mxu0
  %5601 = vmatprep.mubr.f32.mxu0 0.0
  %5602 = vmatmul.mubr.f32.gmra.mrb[0].mxu0 %v5426
  %v5603 = vpop.f32.mrb[0].mxu0
  %v5604 = vadd.f32 0.0, %v5603
  %v5605 = vpop.f32.mrb[0].mxu0
  %5606 = vmatprep.mubr.f32.mxu0 0.0
  %5607 = vmatmul.mubr.f32.gmra.mrb[0].mxu0 %v5429
  %v5608 = vpop.f32.mrb[0].mxu0
  %v5609 = vadd.f32 0.0, %v5608
  %v5610 = vpop.f32.mrb[0].mxu0
  %5611 = vmatprep.mubr.f32.mxu0 0.0
  %5612 = vmatmul.mubr.f32.gmra.mrb[0].mxu0 %v5432
  %v5613 = vpop.f32.mrb[0].mxu0
  %v5614 = vadd.f32 0.0, %v5613
  %v5615 = vpop.f32.mrb[0].mxu0
  %5616 = vmatprep.mubr.f32.mxu0 0.0
  %5617 = vmatmul.mubr.f32.gmra.mrb[0].mxu0 %v5435
  %v5618 = vpop.f32.mrb[0].mxu0
  %v5619 = vadd.f32 0.0, %v5618
  %v5620 = vpop.f32.mrb[0].mxu0
  %5621 = vmatprep.mubr.f32.mxu0 0.0
  %5622 = vmatmul.mubr.f32.gmra.mrb[0].mxu0 %v5438
  %v5623 = vpop.f32.mrb[0].mxu0
  %v5624 = vadd.f32 0.0, %v5623
  %v5625 = vpop.f32.mrb[0].mxu0
  %5626 = vmatprep.mubr.f32.mxu0 0.0
  %5627 = vmatmul.mubr.f32.gmra.mrb[0].mxu0 %v5441
  %v5628 = vpop.f32.mrb[0].mxu0
  %v5629 = vadd.f32 0.0, %v5628
  %v5630 = vpop.f32.mrb[0].mxu0
  %5631 = vmatprep.mubr.f32.mxu0 0.0
  %5632 = vmatmul.mubr.f32.gmra.mrb[0].mxu0 %v5444
  %v5633 = vpop.f32.mrb[0].mxu0
  %v5634 = vadd.f32 0.0, %v5633
  %v5635 = vpop.f32.mrb[0].mxu0
  %5636 = vmatprep.mubr.f32.mxu0 0.0
  %5637 = vmatmul.mubr.f32.gmra.mrb[0].mxu0 %v5447
  %v5638 = vpop.f32.mrb[0].mxu0
  %v5639 = vadd.f32 0.0, %v5638
  %v5640 = vpop.f32.mrb[0].mxu0
  %5641 = vmatprep.mubr.f32.mxu0 0.0
  %5642 = vmatmul.mubr.f32.gmra.mrb[0].mxu0 %v5450
  %v5643 = vpop.f32.mrb[0].mxu0
  %v5644 = vadd.f32 0.0, %v5643
  %v5645 = vpop.f32.mrb[0].mxu0
  %5646 = vmatprep.mubr.f32.mxu0 0.0
  %5647 = vmatmul.mubr.f32.gmra.mrb[0].mxu0 %v5453
  %v5648 = vpop.f32.mrb[0].mxu0
  %v5649 = vadd.f32 0.0, %v5648
  %v5650 = vpop.f32.mrb[0].mxu0
  %5651 = vmatprep.mubr.f32.mxu0 0.0
  %5652 = vmatmul.mubr.f32.gmra.mrb[0].mxu0 %v5456
  %v5653 = vpop.f32.mrb[0].mxu0
  %v5654 = vadd.f32 0.0, %v5653
  %v5655 = vpop.f32.mrb[0].mxu0
  %5656 = vmatprep.mubr.f32.mxu0 0.0
  %5657 = vmatmul.mubr.f32.gmra.mrb[0].mxu0 %v5459
  %v5658 = vpop.f32.mrb[0].mxu0
  %v5659 = vadd.f32 0.0, %v5658
  %v5660 = vpop.f32.mrb[0].mxu0
  %5661 = vmatprep.mubr.f32.mxu0 0.0
  %5662 = vmatmul.mubr.f32.gmra.mrb[0].mxu0 %v5462
  %v5663 = vpop.f32.mrb[0].mxu0
  %v5664 = vadd.f32 0.0, %v5663
  %v5665 = vpop.f32.mrb[0].mxu0
  %5666 = vmatprep.mubr.f32.mxu0 0.0
  %5667 = vmatmul.mubr.f32.gmra.mrb[0].mxu0 %v5465
  %v5668 = vpop.f32.mrb[0].mxu0
  %v5669 = vadd.f32 0.0, %v5668
  %v5670 = vpop.f32.mrb[0].mxu0
  %5671 = vmatprep.mubr.f32.mxu0 0.0
  %5672 = vmatmul.mubr.f32.gmra.mrb[0].mxu0 %v5468
  %v5673 = vpop.f32.mrb[0].mxu0
  %v5674 = vadd.f32 0.0, %v5673
  %v5675 = vpop.f32.mrb[0].mxu0
  %5676 = vmatprep.mubr.f32.mxu0 0.0
  %5677 = vmatmul.mubr.f32.gmra.mrb[0].mxu0 %v5471
  %v5678 = vpop.f32.mrb[0].mxu0
  %v5679 = vadd.f32 0.0, %v5678
  %v5680 = vpop.f32.mrb[0].mxu0
  %5681 = vmatprep.mubr.f32.mxu0 0.0
  %5682 = vmatmul.mubr.f32.gmra.mrb[0].mxu0 %v5474
  %v5683 = vpop.f32.mrb[0].mxu0
  %v5684 = vadd.f32 0.0, %v5683
  %v5685 = vpop.f32.mrb[0].mxu0
  %5686 = vmatprep.mubr.f32.mxu0 0.0
  %5687 = vmatmul.mubr.f32.gmra.mrb[0].mxu0 %v5477
  %v5688 = vpop.f32.mrb[0].mxu0
  %v5689 = vadd.f32 0.0, %v5688
  %v5690 = vpop.f32.mrb[0].mxu0
  %5691 = vmatprep.mubr.f32.mxu0 0.0
  %5692 = vmatmul.mubr.f32.gmra.mrb[0].mxu0 %v5480
  %v5693 = vpop.f32.mrb[0].mxu0
  %v5694 = vadd.f32 0.0, %v5693
  %v5695 = vpop.f32.mrb[0].mxu0
  %5696 = vmatprep.mubr.f32.mxu0 0.0
  %5697 = vmatmul.mubr.f32.gmra.mrb[0].mxu0 %v5483
  %v5698 = vpop.f32.mrb[0].mxu0
  %v5699 = vadd.f32 0.0, %v5698
  %v5700 = vpop.f32.mrb[0].mxu0
  %5701 = vmatprep.mubr.f32.mxu0 0.0
  %5702 = vmatmul.mubr.f32.gmra.mrb[0].mxu0 %v5486
  %v5703 = vpop.f32.mrb[0].mxu0
  %v5704 = vadd.f32 0.0, %v5703
  %v5705 = vpop.f32.mrb[0].mxu0
  %5706 = vmatprep.mubr.f32.mxu0 0.0
  %5707 = vmatmul.mubr.f32.gmra.mrb[0].mxu0 %v5489
  %v5708 = vpop.f32.mrb[0].mxu0
  %v5709 = vadd.f32 0.0, %v5708
  %v5710 = vpop.f32.mrb[0].mxu0
  %5711 = vmatprep.mubr.f32.mxu0 0.0
  %5712 = vmatmul.mubr.f32.gmra.mrb[0].mxu0 %v5492
  %v5713 = vpop.f32.mrb[0].mxu0
  %v5714 = vadd.f32 0.0, %v5713
  %v5715 = vpop.f32.mrb[0].mxu0
  %5716 = vmatprep.mubr.f32.mxu0 0.0
  %5717 = vmatmul.mubr.f32.gmra.mrb[0].mxu0 %v5495
  %v5718 = vpop.f32.mrb[0].mxu0
  %v5719 = vadd.f32 0.0, %v5718
  %v5720 = vpop.f32.mrb[0].mxu0
  %5721 = vdwg.mxu0
  %5730 = vrot.lane.b32.xlu0 %v5393, 96
  %v5731 = vpop.permute.xlu0 %5730
  %5732 = vrot.lane.b32.xlu0 %v5394, 96
  %v5733 = vpop.permute.xlu0 %5732
  %5734 = vrot.lane.b32.xlu0 %v5395, 96
  %v5735 = vpop.permute.xlu0 %5734
  %5736 = vrot.lane.b32.xlu0 %v5396, 96
  %v5737 = vpop.permute.xlu0 %5736
  %5738 = vrot.lane.b32.xlu0 %v5397, 96
  %v5739 = vpop.permute.xlu0 %5738
  %5740 = vrot.lane.b32.xlu0 %v5398, 96
  %v5741 = vpop.permute.xlu0 %5740
  %5742 = vrot.lane.b32.xlu0 %v5399, 96
  %v5743 = vpop.permute.xlu0 %5742
  %5744 = vrot.lane.b32.xlu0 %v5400, 96
  %v5745 = vpop.permute.xlu0 %5744
  %v5755 = vsel %vm614, %v5319, 0
  %v5758 = vsel %vm614, %v5320, 0
  %v5761 = vsel %vm614, %v5321, 0
  %v5764 = vsel %vm614, %v5322, 0
  %v5767 = vsel %vm614, %v5323, 0
  %v5770 = vsel %vm614, %v5324, 0
  %v5773 = vsel %vm614, %v5325, 0
  %v5776 = vsel %vm614, %v5326, 0
  %v5779 = vsel %vm614, %v5327, 0
  %v5782 = vsel %vm614, %v5328, 0
  %v5785 = vsel %vm614, %v5329, 0
  %v5788 = vsel %vm614, %v5330, 0
  %v5791 = vsel %vm614, %v5331, 0
  %v5794 = vsel %vm614, %v5332, 0
  %v5797 = vsel %vm614, %v5333, 0
  %v5800 = vsel %vm614, %v5334, 0
  %v5803 = vsel %vm614, %v5335, 0
  %v5806 = vsel %vm614, %v5336, 0
  %v5809 = vsel %vm614, %v5337, 0
  %v5812 = vsel %vm614, %v5338, 0
  %v5815 = vsel %vm614, %v5339, 0
  %v5818 = vsel %vm614, %v5340, 0
  %v5821 = vsel %vm614, %v5341, 0
  %v5824 = vsel %vm614, %v5342, 0
  %v5827 = vsel %vm614, %v5343, 0
  %v5830 = vsel %vm614, %v5344, 0
  %v5833 = vsel %vm614, %v5345, 0
  %v5836 = vsel %vm614, %v5346, 0
  %v5839 = vsel %vm614, %v5347, 0
  %v5842 = vsel %vm614, %v5348, 0
  %v5845 = vsel %vm614, %v5349, 0
  %v5848 = vsel %vm614, %v5350, 0
  %5850 = vmatprep.subr.mxu0 0.0
  %5851 = vmatpush1.msra.mxu0 %v5731
  %5852 = vmatprep.subr.mxu0 0.0
  %5853 = vmatpush1.msra.mxu0 %v5733
  %5854 = vmatprep.subr.mxu0 0.0
  %5855 = vmatpush1.msra.mxu0 %v5735
  %5856 = vmatprep.subr.mxu0 0.0
  %5857 = vmatpush1.msra.mxu0 %v5737
  %5858 = vmatprep.subr.mxu0 0.0
  %5859 = vmatpush1.msra.mxu0 %v5739
  %5860 = vmatprep.subr.mxu0 0.0
  %5861 = vmatpush1.msra.mxu0 %v5741
  %5862 = vmatprep.subr.mxu0 0.0
  %5863 = vmatpush1.msra.mxu0 %v5743
  %5864 = vmatprep.subr.mxu0 0.0
  %5865 = vmatpush1.msra.mxu0 %v5745
  %5866 = vmatprep.subr.mxu0 0.0
  %5867 = vmatpush1.msra.mxu0 0.0
  %5868 = vmatprep.subr.mxu0 0.0
  %5869 = vmatpush1.msra.mxu0 0.0
  %5870 = vmatprep.subr.mxu0 0.0
  %5871 = vmatpush1.msra.mxu0 0.0
  %5872 = vmatprep.subr.mxu0 0.0
  %5873 = vmatpush1.msra.mxu0 0.0
  %5874 = vmatprep.subr.mxu0 0.0
  %5875 = vmatpush1.msra.mxu0 0.0
  %5876 = vmatprep.subr.mxu0 0.0
  %5877 = vmatpush1.msra.mxu0 0.0
  %5878 = vmatprep.subr.mxu0 0.0
  %5879 = vmatpush1.msra.mxu0 0.0
  %5880 = vmatprep.subr.mxu0 0.0
  %5881 = vmatpush1.msra.mxu0 0.0
  %5882 = vmatprep.subr.mxu0 0.0
  %5883 = vmatpush1.msra.mxu0 0.0
  %5884 = vmatprep.subr.mxu0 0.0
  %5885 = vmatpush1.msra.mxu0 0.0
  %5886 = vmatprep.subr.mxu0 0.0
  %5887 = vmatpush1.msra.mxu0 0.0
  %5888 = vmatprep.subr.mxu0 0.0
  %5889 = vmatpush1.msra.mxu0 0.0
  %5890 = vmatprep.subr.mxu0 0.0
  %5891 = vmatpush1.msra.mxu0 0.0
  %5892 = vmatprep.subr.mxu0 0.0
  %5893 = vmatpush1.msra.mxu0 0.0
  %5894 = vmatprep.subr.mxu0 0.0
  %5895 = vmatpush1.msra.mxu0 0.0
  %5896 = vmatprep.subr.mxu0 0.0
  %5897 = vmatpush1.msra.mxu0 0.0
  %5898 = vmatprep.subr.mxu0 0.0
  %5899 = vmatpush1.msra.mxu0 0.0
  %5900 = vmatprep.subr.mxu0 0.0
  %5901 = vmatpush1.msra.mxu0 0.0
  %5902 = vmatprep.subr.mxu0 0.0
  %5903 = vmatpush1.msra.mxu0 0.0
  %5904 = vmatprep.subr.mxu0 0.0
  %5905 = vmatpush1.msra.mxu0 0.0
  %5906 = vmatprep.subr.mxu0 0.0
  %5907 = vmatpush1.msra.mxu0 0.0
  %5908 = vmatprep.subr.mxu0 0.0
  %5909 = vmatpush1.msra.mxu0 0.0
  %5910 = vmatprep.subr.mxu0 0.0
  %5911 = vmatpush1.msra.mxu0 0.0
  %5912 = vmatprep.subr.mxu0 0.0
  %5913 = vmatpush1.msra.mxu0 0.0
  %5914 = vmatprep.mubr.f32.mxu0 0.0
  %5915 = vmatmul.mubr.f32.gmra.mrb[0].mxu0 %v5755
  %v5916 = vpop.f32.mrb[0].mxu0
  %v5917 = vadd.f32 0.0, %v5916
  %v5918 = vpop.f32.mrb[0].mxu0
  %5919 = vmatprep.mubr.f32.mxu0 0.0
  %5920 = vmatmul.mubr.f32.gmra.mrb[0].mxu0 %v5758
  %v5921 = vpop.f32.mrb[0].mxu0
  %v5922 = vadd.f32 0.0, %v5921
  %v5923 = vpop.f32.mrb[0].mxu0
  %5924 = vmatprep.mubr.f32.mxu0 0.0
  %5925 = vmatmul.mubr.f32.gmra.mrb[0].mxu0 %v5761
  %v5926 = vpop.f32.mrb[0].mxu0
  %v5927 = vadd.f32 0.0, %v5926
  %v5928 = vpop.f32.mrb[0].mxu0
  %5929 = vmatprep.mubr.f32.mxu0 0.0
  %5930 = vmatmul.mubr.f32.gmra.mrb[0].mxu0 %v5764
  %v5931 = vpop.f32.mrb[0].mxu0
  %v5932 = vadd.f32 0.0, %v5931
  %v5933 = vpop.f32.mrb[0].mxu0
  %5934 = vmatprep.mubr.f32.mxu0 0.0
  %5935 = vmatmul.mubr.f32.gmra.mrb[0].mxu0 %v5767
  %v5936 = vpop.f32.mrb[0].mxu0
  %v5937 = vadd.f32 0.0, %v5936
  %v5938 = vpop.f32.mrb[0].mxu0
  %5939 = vmatprep.mubr.f32.mxu0 0.0
  %5940 = vmatmul.mubr.f32.gmra.mrb[0].mxu0 %v5770
  %v5941 = vpop.f32.mrb[0].mxu0
  %v5942 = vadd.f32 0.0, %v5941
  %v5943 = vpop.f32.mrb[0].mxu0
  %5944 = vmatprep.mubr.f32.mxu0 0.0
  %5945 = vmatmul.mubr.f32.gmra.mrb[0].mxu0 %v5773
  %v5946 = vpop.f32.mrb[0].mxu0
  %v5947 = vadd.f32 0.0, %v5946
  %v5948 = vpop.f32.mrb[0].mxu0
  %5949 = vmatprep.mubr.f32.mxu0 0.0
  %5950 = vmatmul.mubr.f32.gmra.mrb[0].mxu0 %v5776
  %v5951 = vpop.f32.mrb[0].mxu0
  %v5952 = vadd.f32 0.0, %v5951
  %v5953 = vpop.f32.mrb[0].mxu0
  %5954 = vmatprep.mubr.f32.mxu0 0.0
  %5955 = vmatmul.mubr.f32.gmra.mrb[0].mxu0 %v5779
  %v5956 = vpop.f32.mrb[0].mxu0
  %v5957 = vadd.f32 0.0, %v5956
  %v5958 = vpop.f32.mrb[0].mxu0
  %5959 = vmatprep.mubr.f32.mxu0 0.0
  %5960 = vmatmul.mubr.f32.gmra.mrb[0].mxu0 %v5782
  %v5961 = vpop.f32.mrb[0].mxu0
  %v5962 = vadd.f32 0.0, %v5961
  %v5963 = vpop.f32.mrb[0].mxu0
  %5964 = vmatprep.mubr.f32.mxu0 0.0
  %5965 = vmatmul.mubr.f32.gmra.mrb[0].mxu0 %v5785
  %v5966 = vpop.f32.mrb[0].mxu0
  %v5967 = vadd.f32 0.0, %v5966
  %v5968 = vpop.f32.mrb[0].mxu0
  %5969 = vmatprep.mubr.f32.mxu0 0.0
  %5970 = vmatmul.mubr.f32.gmra.mrb[0].mxu0 %v5788
  %v5971 = vpop.f32.mrb[0].mxu0
  %v5972 = vadd.f32 0.0, %v5971
  %v5973 = vpop.f32.mrb[0].mxu0
  %5974 = vmatprep.mubr.f32.mxu0 0.0
  %5975 = vmatmul.mubr.f32.gmra.mrb[0].mxu0 %v5791
  %v5976 = vpop.f32.mrb[0].mxu0
  %v5977 = vadd.f32 0.0, %v5976
  %v5978 = vpop.f32.mrb[0].mxu0
  %5979 = vmatprep.mubr.f32.mxu0 0.0
  %5980 = vmatmul.mubr.f32.gmra.mrb[0].mxu0 %v5794
  %v5981 = vpop.f32.mrb[0].mxu0
  %v5982 = vadd.f32 0.0, %v5981
  %v5983 = vpop.f32.mrb[0].mxu0
  %5984 = vmatprep.mubr.f32.mxu0 0.0
  %5985 = vmatmul.mubr.f32.gmra.mrb[0].mxu0 %v5797
  %v5986 = vpop.f32.mrb[0].mxu0
  %v5987 = vadd.f32 0.0, %v5986
  %v5988 = vpop.f32.mrb[0].mxu0
  %5989 = vmatprep.mubr.f32.mxu0 0.0
  %5990 = vmatmul.mubr.f32.gmra.mrb[0].mxu0 %v5800
  %v5991 = vpop.f32.mrb[0].mxu0
  %v5992 = vadd.f32 0.0, %v5991
  %v5993 = vpop.f32.mrb[0].mxu0
  %5994 = vmatprep.mubr.f32.mxu0 0.0
  %5995 = vmatmul.mubr.f32.gmra.mrb[0].mxu0 %v5803
  %v5996 = vpop.f32.mrb[0].mxu0
  %v5997 = vadd.f32 0.0, %v5996
  %v5998 = vpop.f32.mrb[0].mxu0
  %5999 = vmatprep.mubr.f32.mxu0 0.0
  %6000 = vmatmul.mubr.f32.gmra.mrb[0].mxu0 %v5806
  %v6001 = vpop.f32.mrb[0].mxu0
  %v6002 = vadd.f32 0.0, %v6001
  %v6003 = vpop.f32.mrb[0].mxu0
  %6004 = vmatprep.mubr.f32.mxu0 0.0
  %6005 = vmatmul.mubr.f32.gmra.mrb[0].mxu0 %v5809
  %v6006 = vpop.f32.mrb[0].mxu0
  %v6007 = vadd.f32 0.0, %v6006
  %v6008 = vpop.f32.mrb[0].mxu0
  %6009 = vmatprep.mubr.f32.mxu0 0.0
  %6010 = vmatmul.mubr.f32.gmra.mrb[0].mxu0 %v5812
  %v6011 = vpop.f32.mrb[0].mxu0
  %v6012 = vadd.f32 0.0, %v6011
  %v6013 = vpop.f32.mrb[0].mxu0
  %6014 = vmatprep.mubr.f32.mxu0 0.0
  %6015 = vmatmul.mubr.f32.gmra.mrb[0].mxu0 %v5815
  %v6016 = vpop.f32.mrb[0].mxu0
  %v6017 = vadd.f32 0.0, %v6016
  %v6018 = vpop.f32.mrb[0].mxu0
  %6019 = vmatprep.mubr.f32.mxu0 0.0
  %6020 = vmatmul.mubr.f32.gmra.mrb[0].mxu0 %v5818
  %v6021 = vpop.f32.mrb[0].mxu0
  %v6022 = vadd.f32 0.0, %v6021
  %v6023 = vpop.f32.mrb[0].mxu0
  %6024 = vmatprep.mubr.f32.mxu0 0.0
  %6025 = vmatmul.mubr.f32.gmra.mrb[0].mxu0 %v5821
  %v6026 = vpop.f32.mrb[0].mxu0
  %v6027 = vadd.f32 0.0, %v6026
  %v6028 = vpop.f32.mrb[0].mxu0
  %6029 = vmatprep.mubr.f32.mxu0 0.0
  %6030 = vmatmul.mubr.f32.gmra.mrb[0].mxu0 %v5824
  %v6031 = vpop.f32.mrb[0].mxu0
  %v6032 = vadd.f32 0.0, %v6031
  %v6033 = vpop.f32.mrb[0].mxu0
  %6034 = vmatprep.mubr.f32.mxu0 0.0
  %6035 = vmatmul.mubr.f32.gmra.mrb[0].mxu0 %v5827
  %v6036 = vpop.f32.mrb[0].mxu0
  %v6037 = vadd.f32 0.0, %v6036
  %v6038 = vpop.f32.mrb[0].mxu0
  %6039 = vmatprep.mubr.f32.mxu0 0.0
  %6040 = vmatmul.mubr.f32.gmra.mrb[0].mxu0 %v5830
  %v6041 = vpop.f32.mrb[0].mxu0
  %v6042 = vadd.f32 0.0, %v6041
  %v6043 = vpop.f32.mrb[0].mxu0
  %6044 = vmatprep.mubr.f32.mxu0 0.0
  %6045 = vmatmul.mubr.f32.gmra.mrb[0].mxu0 %v5833
  %v6046 = vpop.f32.mrb[0].mxu0
  %v6047 = vadd.f32 0.0, %v6046
  %v6048 = vpop.f32.mrb[0].mxu0
  %6049 = vmatprep.mubr.f32.mxu0 0.0
  %6050 = vmatmul.mubr.f32.gmra.mrb[0].mxu0 %v5836
  %v6051 = vpop.f32.mrb[0].mxu0
  %v6052 = vadd.f32 0.0, %v6051
  %v6053 = vpop.f32.mrb[0].mxu0
  %6054 = vmatprep.mubr.f32.mxu0 0.0
  %6055 = vmatmul.mubr.f32.gmra.mrb[0].mxu0 %v5839
  %v6056 = vpop.f32.mrb[0].mxu0
  %v6057 = vadd.f32 0.0, %v6056
  %v6058 = vpop.f32.mrb[0].mxu0
  %6059 = vmatprep.mubr.f32.mxu0 0.0
  %6060 = vmatmul.mubr.f32.gmra.mrb[0].mxu0 %v5842
  %v6061 = vpop.f32.mrb[0].mxu0
  %v6062 = vadd.f32 0.0, %v6061
  %v6063 = vpop.f32.mrb[0].mxu0
  %6064 = vmatprep.mubr.f32.mxu0 0.0
  %6065 = vmatmul.mubr.f32.gmra.mrb[0].mxu0 %v5845
  %v6066 = vpop.f32.mrb[0].mxu0
  %v6067 = vadd.f32 0.0, %v6066
  %v6068 = vpop.f32.mrb[0].mxu0
  %6069 = vmatprep.mubr.f32.mxu0 0.0
  %6070 = vmatmul.mubr.f32.gmra.mrb[0].mxu0 %v5848
  %v6071 = vpop.f32.mrb[0].mxu0
  %v6072 = vadd.f32 0.0, %v6071
  %v6073 = vpop.f32.mrb[0].mxu0
  %6074 = vdwg.mxu0
  %v6075 = vsub.f32 %v5564, %v5917
  %v6076 = vsub.f32 %v5569, %v5922
  %v6077 = vsub.f32 %v5574, %v5927
  %v6078 = vsub.f32 %v5579, %v5932
  %v6079 = vsub.f32 %v5584, %v5937
  %v6080 = vsub.f32 %v5589, %v5942
  %v6081 = vsub.f32 %v5594, %v5947
  %v6082 = vsub.f32 %v5599, %v5952
  %v6083 = vsub.f32 %v5604, %v5957
  %v6084 = vsub.f32 %v5609, %v5962
  %v6085 = vsub.f32 %v5614, %v5967
  %v6086 = vsub.f32 %v5619, %v5972
  %v6087 = vsub.f32 %v5624, %v5977
  %v6088 = vsub.f32 %v5629, %v5982
  %v6089 = vsub.f32 %v5634, %v5987
  %v6090 = vsub.f32 %v5639, %v5992
  %v6091 = vsub.f32 %v5644, %v5997
  %v6092 = vsub.f32 %v5649, %v6002
  %v6093 = vsub.f32 %v5654, %v6007
  %v6094 = vsub.f32 %v5659, %v6012
  %v6095 = vsub.f32 %v5664, %v6017
  %v6096 = vsub.f32 %v5669, %v6022
  %v6097 = vsub.f32 %v5674, %v6027
  %v6098 = vsub.f32 %v5679, %v6032
  %v6099 = vsub.f32 %v5684, %v6037
  %v6100 = vsub.f32 %v5689, %v6042
  %v6101 = vsub.f32 %v5694, %v6047
  %v6102 = vsub.f32 %v5699, %v6052
  %v6103 = vsub.f32 %v5704, %v6057
  %v6104 = vsub.f32 %v5709, %v6062
  %v6105 = vsub.f32 %v5714, %v6067
  %v6106 = vsub.f32 %v5719, %v6072
  %v6108 = vlaneseq
  %v6109 = vshrl.u32 %v6108, 7
  %v6110 = vsub.s32 0, %v6109
  %v6111 = vrot.slane %v5387, %v6110
  %vm6113 = vcmask 261120
  %v6115 = vsel %vm6113, %v6075, 0
  %v6118 = vsel %vm6113, %v6076, 0
  %v6121 = vsel %vm6113, %v6077, 0
  %v6124 = vsel %vm6113, %v6078, 0
  %v6127 = vsel %vm6113, %v6079, 0
  %v6130 = vsel %vm6113, %v6080, 0
  %v6133 = vsel %vm6113, %v6081, 0
  %v6136 = vsel %vm6113, %v6082, 0
  %v6139 = vsel %vm6113, %v6083, 0
  %v6142 = vsel %vm6113, %v6084, 0
  %v6145 = vsel %vm6113, %v6085, 0
  %v6148 = vsel %vm6113, %v6086, 0
  %v6151 = vsel %vm6113, %v6087, 0
  %v6154 = vsel %vm6113, %v6088, 0
  %v6157 = vsel %vm6113, %v6089, 0
  %v6160 = vsel %vm6113, %v6090, 0
  %v6163 = vsel %vm6113, %v6091, 0
  %v6166 = vsel %vm6113, %v6092, 0
  %v6169 = vsel %vm6113, %v6093, 0
  %v6172 = vsel %vm6113, %v6094, 0
  %v6175 = vsel %vm6113, %v6095, 0
  %v6178 = vsel %vm6113, %v6096, 0
  %v6181 = vsel %vm6113, %v6097, 0
  %v6184 = vsel %vm6113, %v6098, 0
  %v6187 = vsel %vm6113, %v6099, 0
  %v6190 = vsel %vm6113, %v6100, 0
  %v6193 = vsel %vm6113, %v6101, 0
  %v6196 = vsel %vm6113, %v6102, 0
  %v6199 = vsel %vm6113, %v6103, 0
  %v6202 = vsel %vm6113, %v6104, 0
  %v6205 = vsel %vm6113, %v6105, 0
  %v6208 = vsel %vm6113, %v6106, 0
  %6210 = vmatprep.subr.mxu0 0.0
  %6211 = vmatpush1.msra.mxu0 %v5383
  %6212 = vmatprep.subr.mxu0 0.0
  %6213 = vmatpush1.msra.mxu0 %v5384
  %6214 = vmatprep.subr.mxu0 0.0
  %6215 = vmatpush1.msra.mxu0 %v5385
  %6216 = vmatprep.subr.mxu0 0.0
  %6217 = vmatpush1.msra.mxu0 %v5386
  %6218 = vmatprep.subr.mxu0 0.0
  %6219 = vmatpush1.msra.mxu0 0.0
  %6220 = vmatprep.subr.mxu0 0.0
  %6221 = vmatpush1.msra.mxu0 0.0
  %6222 = vmatprep.subr.mxu0 0.0
  %6223 = vmatpush1.msra.mxu0 0.0
  %6224 = vmatprep.subr.mxu0 0.0
  %6225 = vmatpush1.msra.mxu0 0.0
  %6226 = vmatprep.subr.mxu0 0.0
  %6227 = vmatpush1.msra.mxu0 0.0
  %6228 = vmatprep.subr.mxu0 0.0
  %6229 = vmatpush1.msra.mxu0 0.0
  %6230 = vmatprep.subr.mxu0 0.0
  %6231 = vmatpush1.msra.mxu0 0.0
  %6232 = vmatprep.subr.mxu0 0.0
  %6233 = vmatpush1.msra.mxu0 0.0
  %6234 = vmatprep.subr.mxu0 0.0
  %6235 = vmatpush1.msra.mxu0 0.0
  %6236 = vmatprep.subr.mxu0 0.0
  %6237 = vmatpush1.msra.mxu0 0.0
  %6238 = vmatprep.subr.mxu0 0.0
  %6239 = vmatpush1.msra.mxu0 0.0
  %6240 = vmatprep.subr.mxu0 0.0
  %6241 = vmatpush1.msra.mxu0 0.0
  %6242 = vmatprep.subr.mxu0 0.0
  %6243 = vmatpush1.msra.mxu0 0.0
  %6244 = vmatprep.subr.mxu0 0.0
  %6245 = vmatpush1.msra.mxu0 0.0
  %6246 = vmatprep.subr.mxu0 0.0
  %6247 = vmatpush1.msra.mxu0 0.0
  %6248 = vmatprep.subr.mxu0 0.0
  %6249 = vmatpush1.msra.mxu0 0.0
  %6250 = vmatprep.subr.mxu0 0.0
  %6251 = vmatpush1.msra.mxu0 0.0
  %6252 = vmatprep.subr.mxu0 0.0
  %6253 = vmatpush1.msra.mxu0 0.0
  %6254 = vmatprep.subr.mxu0 0.0
  %6255 = vmatpush1.msra.mxu0 0.0
  %6256 = vmatprep.subr.mxu0 0.0
  %6257 = vmatpush1.msra.mxu0 0.0
  %6258 = vmatprep.subr.mxu0 0.0
  %6259 = vmatpush1.msra.mxu0 0.0
  %6260 = vmatprep.subr.mxu0 0.0
  %6261 = vmatpush1.msra.mxu0 0.0
  %6262 = vmatprep.subr.mxu0 0.0
  %6263 = vmatpush1.msra.mxu0 0.0
  %6264 = vmatprep.subr.mxu0 0.0
  %6265 = vmatpush1.msra.mxu0 0.0
  %6266 = vmatprep.subr.mxu0 0.0
  %6267 = vmatpush1.msra.mxu0 0.0
  %6268 = vmatprep.subr.mxu0 0.0
  %6269 = vmatpush1.msra.mxu0 0.0
  %6270 = vmatprep.subr.mxu0 0.0
  %6271 = vmatpush1.msra.mxu0 0.0
  %6272 = vmatprep.subr.mxu0 0.0
  %6273 = vmatpush1.msra.mxu0 0.0
  %6274 = vmatprep.mubr.f32.mxu0 0.0
  %6275 = vmatmul.mubr.f32.gmra.mrb[0].mxu0 %v6115
  %v6276 = vpop.f32.mrb[0].mxu0
  %v6277 = vadd.f32 %v6111, %v6276
  %v6278 = vpop.f32.mrb[0].mxu0
  %6279 = vmatprep.mubr.f32.mxu0 0.0
  %6280 = vmatmul.mubr.f32.gmra.mrb[0].mxu0 %v6118
  %v6281 = vpop.f32.mrb[0].mxu0
  %v6282 = vadd.f32 %v6111, %v6281
  %v6283 = vpop.f32.mrb[0].mxu0
  %6284 = vmatprep.mubr.f32.mxu0 0.0
  %6285 = vmatmul.mubr.f32.gmra.mrb[0].mxu0 %v6121
  %v6286 = vpop.f32.mrb[0].mxu0
  %v6287 = vadd.f32 %v6111, %v6286
  %v6288 = vpop.f32.mrb[0].mxu0
  %6289 = vmatprep.mubr.f32.mxu0 0.0
  %6290 = vmatmul.mubr.f32.gmra.mrb[0].mxu0 %v6124
  %v6291 = vpop.f32.mrb[0].mxu0
  %v6292 = vadd.f32 %v6111, %v6291
  %v6293 = vpop.f32.mrb[0].mxu0
  %6294 = vmatprep.mubr.f32.mxu0 0.0
  %6295 = vmatmul.mubr.f32.gmra.mrb[0].mxu0 %v6127
  %v6296 = vpop.f32.mrb[0].mxu0
  %v6297 = vadd.f32 %v6111, %v6296
  %v6298 = vpop.f32.mrb[0].mxu0
  %6299 = vmatprep.mubr.f32.mxu0 0.0
  %6300 = vmatmul.mubr.f32.gmra.mrb[0].mxu0 %v6130
  %v6301 = vpop.f32.mrb[0].mxu0
  %v6302 = vadd.f32 %v6111, %v6301
  %v6303 = vpop.f32.mrb[0].mxu0
  %6304 = vmatprep.mubr.f32.mxu0 0.0
  %6305 = vmatmul.mubr.f32.gmra.mrb[0].mxu0 %v6133
  %v6306 = vpop.f32.mrb[0].mxu0
  %v6307 = vadd.f32 %v6111, %v6306
  %v6308 = vpop.f32.mrb[0].mxu0
  %6309 = vmatprep.mubr.f32.mxu0 0.0
  %6310 = vmatmul.mubr.f32.gmra.mrb[0].mxu0 %v6136
  %v6311 = vpop.f32.mrb[0].mxu0
  %v6312 = vadd.f32 %v6111, %v6311
  %v6313 = vpop.f32.mrb[0].mxu0
  %6314 = vmatprep.mubr.f32.mxu0 0.0
  %6315 = vmatmul.mubr.f32.gmra.mrb[0].mxu0 %v6139
  %v6316 = vpop.f32.mrb[0].mxu0
  %v6317 = vadd.f32 %v6111, %v6316
  %v6318 = vpop.f32.mrb[0].mxu0
  %6319 = vmatprep.mubr.f32.mxu0 0.0
  %6320 = vmatmul.mubr.f32.gmra.mrb[0].mxu0 %v6142
  %v6321 = vpop.f32.mrb[0].mxu0
  %v6322 = vadd.f32 %v6111, %v6321
  %v6323 = vpop.f32.mrb[0].mxu0
  %6324 = vmatprep.mubr.f32.mxu0 0.0
  %6325 = vmatmul.mubr.f32.gmra.mrb[0].mxu0 %v6145
  %v6326 = vpop.f32.mrb[0].mxu0
  %v6327 = vadd.f32 %v6111, %v6326
  %v6328 = vpop.f32.mrb[0].mxu0
  %6329 = vmatprep.mubr.f32.mxu0 0.0
  %6330 = vmatmul.mubr.f32.gmra.mrb[0].mxu0 %v6148
  %v6331 = vpop.f32.mrb[0].mxu0
  %v6332 = vadd.f32 %v6111, %v6331
  %v6333 = vpop.f32.mrb[0].mxu0
  %6334 = vmatprep.mubr.f32.mxu0 0.0
  %6335 = vmatmul.mubr.f32.gmra.mrb[0].mxu0 %v6151
  %v6336 = vpop.f32.mrb[0].mxu0
  %v6337 = vadd.f32 %v6111, %v6336
  %v6338 = vpop.f32.mrb[0].mxu0
  %6339 = vmatprep.mubr.f32.mxu0 0.0
  %6340 = vmatmul.mubr.f32.gmra.mrb[0].mxu0 %v6154
  %v6341 = vpop.f32.mrb[0].mxu0
  %v6342 = vadd.f32 %v6111, %v6341
  %v6343 = vpop.f32.mrb[0].mxu0
  %6344 = vmatprep.mubr.f32.mxu0 0.0
  %6345 = vmatmul.mubr.f32.gmra.mrb[0].mxu0 %v6157
  %v6346 = vpop.f32.mrb[0].mxu0
  %v6347 = vadd.f32 %v6111, %v6346
  %v6348 = vpop.f32.mrb[0].mxu0
  %6349 = vmatprep.mubr.f32.mxu0 0.0
  %6350 = vmatmul.mubr.f32.gmra.mrb[0].mxu0 %v6160
  %v6351 = vpop.f32.mrb[0].mxu0
  %v6352 = vadd.f32 %v6111, %v6351
  %v6353 = vpop.f32.mrb[0].mxu0
  %6354 = vmatprep.mubr.f32.mxu0 0.0
  %6355 = vmatmul.mubr.f32.gmra.mrb[0].mxu0 %v6163
  %v6356 = vpop.f32.mrb[0].mxu0
  %v6357 = vadd.f32 %v6111, %v6356
  %v6358 = vpop.f32.mrb[0].mxu0
  %6359 = vmatprep.mubr.f32.mxu0 0.0
  %6360 = vmatmul.mubr.f32.gmra.mrb[0].mxu0 %v6166
  %v6361 = vpop.f32.mrb[0].mxu0
  %v6362 = vadd.f32 %v6111, %v6361
  %v6363 = vpop.f32.mrb[0].mxu0
  %6364 = vmatprep.mubr.f32.mxu0 0.0
  %6365 = vmatmul.mubr.f32.gmra.mrb[0].mxu0 %v6169
  %v6366 = vpop.f32.mrb[0].mxu0
  %v6367 = vadd.f32 %v6111, %v6366
  %v6368 = vpop.f32.mrb[0].mxu0
  %6369 = vmatprep.mubr.f32.mxu0 0.0
  %6370 = vmatmul.mubr.f32.gmra.mrb[0].mxu0 %v6172
  %v6371 = vpop.f32.mrb[0].mxu0
  %v6372 = vadd.f32 %v6111, %v6371
  %v6373 = vpop.f32.mrb[0].mxu0
  %6374 = vmatprep.mubr.f32.mxu0 0.0
  %6375 = vmatmul.mubr.f32.gmra.mrb[0].mxu0 %v6175
  %v6376 = vpop.f32.mrb[0].mxu0
  %v6377 = vadd.f32 %v6111, %v6376
  %v6378 = vpop.f32.mrb[0].mxu0
  %6379 = vmatprep.mubr.f32.mxu0 0.0
  %6380 = vmatmul.mubr.f32.gmra.mrb[0].mxu0 %v6178
  %v6381 = vpop.f32.mrb[0].mxu0
  %v6382 = vadd.f32 %v6111, %v6381
  %v6383 = vpop.f32.mrb[0].mxu0
  %6384 = vmatprep.mubr.f32.mxu0 0.0
  %6385 = vmatmul.mubr.f32.gmra.mrb[0].mxu0 %v6181
  %v6386 = vpop.f32.mrb[0].mxu0
  %v6387 = vadd.f32 %v6111, %v6386
  %v6388 = vpop.f32.mrb[0].mxu0
  %6389 = vmatprep.mubr.f32.mxu0 0.0
  %6390 = vmatmul.mubr.f32.gmra.mrb[0].mxu0 %v6184
  %v6391 = vpop.f32.mrb[0].mxu0
  %v6392 = vadd.f32 %v6111, %v6391
  %v6393 = vpop.f32.mrb[0].mxu0
  %6394 = vmatprep.mubr.f32.mxu0 0.0
  %6395 = vmatmul.mubr.f32.gmra.mrb[0].mxu0 %v6187
  %v6396 = vpop.f32.mrb[0].mxu0
  %v6397 = vadd.f32 %v6111, %v6396
  %v6398 = vpop.f32.mrb[0].mxu0
  %6399 = vmatprep.mubr.f32.mxu0 0.0
  %6400 = vmatmul.mubr.f32.gmra.mrb[0].mxu0 %v6190
  %v6401 = vpop.f32.mrb[0].mxu0
  %v6402 = vadd.f32 %v6111, %v6401
  %v6403 = vpop.f32.mrb[0].mxu0
  %6404 = vmatprep.mubr.f32.mxu0 0.0
  %6405 = vmatmul.mubr.f32.gmra.mrb[0].mxu0 %v6193
  %v6406 = vpop.f32.mrb[0].mxu0
  %v6407 = vadd.f32 %v6111, %v6406
  %v6408 = vpop.f32.mrb[0].mxu0
  %6409 = vmatprep.mubr.f32.mxu0 0.0
  %6410 = vmatmul.mubr.f32.gmra.mrb[0].mxu0 %v6196
  %v6411 = vpop.f32.mrb[0].mxu0
  %v6412 = vadd.f32 %v6111, %v6411
  %v6413 = vpop.f32.mrb[0].mxu0
  %6414 = vmatprep.mubr.f32.mxu0 0.0
  %6415 = vmatmul.mubr.f32.gmra.mrb[0].mxu0 %v6199
  %v6416 = vpop.f32.mrb[0].mxu0
  %v6417 = vadd.f32 %v6111, %v6416
  %v6418 = vpop.f32.mrb[0].mxu0
  %6419 = vmatprep.mubr.f32.mxu0 0.0
  %6420 = vmatmul.mubr.f32.gmra.mrb[0].mxu0 %v6202
  %v6421 = vpop.f32.mrb[0].mxu0
  %v6422 = vadd.f32 %v6111, %v6421
  %v6423 = vpop.f32.mrb[0].mxu0
  %6424 = vmatprep.mubr.f32.mxu0 0.0
  %6425 = vmatmul.mubr.f32.gmra.mrb[0].mxu0 %v6205
  %v6426 = vpop.f32.mrb[0].mxu0
  %v6427 = vadd.f32 %v6111, %v6426
  %v6428 = vpop.f32.mrb[0].mxu0
  %6429 = vmatprep.mubr.f32.mxu0 0.0
  %6430 = vmatmul.mubr.f32.gmra.mrb[0].mxu0 %v6208
  %v6431 = vpop.f32.mrb[0].mxu0
  %v6432 = vadd.f32 %v6111, %v6431
  %v6433 = vpop.f32.mrb[0].mxu0
  %6434 = vdwg.mxu0
  %v6435 = vtanh.pop %v6277
  %v6436 = vtanh.pop %v6282
  %v6437 = vtanh.pop %v6287
  %v6438 = vtanh.pop %v6292
  %v6439 = vtanh.pop %v6297
  %v6440 = vtanh.pop %v6302
  %v6441 = vtanh.pop %v6307
  %v6442 = vtanh.pop %v6312
  %v6443 = vtanh.pop %v6317
  %v6444 = vtanh.pop %v6322
  %v6445 = vtanh.pop %v6327
  %v6446 = vtanh.pop %v6332
  %v6447 = vtanh.pop %v6337
  %v6448 = vtanh.pop %v6342
  %v6449 = vtanh.pop %v6347
  %v6450 = vtanh.pop %v6352
  %v6451 = vtanh.pop %v6357
  %v6452 = vtanh.pop %v6362
  %v6453 = vtanh.pop %v6367
  %v6454 = vtanh.pop %v6372
  %v6455 = vtanh.pop %v6377
  %v6456 = vtanh.pop %v6382
  %v6457 = vtanh.pop %v6387
  %v6458 = vtanh.pop %v6392
  %v6459 = vtanh.pop %v6397
  %v6460 = vtanh.pop %v6402
  %v6461 = vtanh.pop %v6407
  %v6462 = vtanh.pop %v6412
  %v6463 = vtanh.pop %v6417
  %v6464 = vtanh.pop %v6422
  %v6465 = vtanh.pop %v6427
  %v6466 = vtanh.pop %v6432
  %v6468 = vlaneseq
  %v6469 = vshrl.u32 %v6468, 7
  %v6470 = vsub.s32 0, %v6469
  %v6471 = vrot.slane %v5392, %v6470
  %v6474 = vsel %vm6113, %v6435, 0
  %v6477 = vsel %vm6113, %v6436, 0
  %v6480 = vsel %vm6113, %v6437, 0
  %v6483 = vsel %vm6113, %v6438, 0
  %v6486 = vsel %vm6113, %v6439, 0
  %v6489 = vsel %vm6113, %v6440, 0
  %v6492 = vsel %vm6113, %v6441, 0
  %v6495 = vsel %vm6113, %v6442, 0
  %v6498 = vsel %vm6113, %v6443, 0
  %v6501 = vsel %vm6113, %v6444, 0
  %v6504 = vsel %vm6113, %v6445, 0
  %v6507 = vsel %vm6113, %v6446, 0
  %v6510 = vsel %vm6113, %v6447, 0
  %v6513 = vsel %vm6113, %v6448, 0
  %v6516 = vsel %vm6113, %v6449, 0
  %v6519 = vsel %vm6113, %v6450, 0
  %v6522 = vsel %vm6113, %v6451, 0
  %v6525 = vsel %vm6113, %v6452, 0
  %v6528 = vsel %vm6113, %v6453, 0
  %v6531 = vsel %vm6113, %v6454, 0
  %v6534 = vsel %vm6113, %v6455, 0
  %v6537 = vsel %vm6113, %v6456, 0
  %v6540 = vsel %vm6113, %v6457, 0
  %v6543 = vsel %vm6113, %v6458, 0
  %v6546 = vsel %vm6113, %v6459, 0
  %v6549 = vsel %vm6113, %v6460, 0
  %v6552 = vsel %vm6113, %v6461, 0
  %v6555 = vsel %vm6113, %v6462, 0
  %v6558 = vsel %vm6113, %v6463, 0
  %v6561 = vsel %vm6113, %v6464, 0
  %v6564 = vsel %vm6113, %v6465, 0
  %v6567 = vsel %vm6113, %v6466, 0
  %6569 = vmatprep.subr.mxu0 0.0
  %6570 = vmatpush1.msra.mxu0 %v5388
  %6571 = vmatprep.subr.mxu0 0.0
  %6572 = vmatpush1.msra.mxu0 %v5389
  %6573 = vmatprep.subr.mxu0 0.0
  %6574 = vmatpush1.msra.mxu0 %v5390
  %6575 = vmatprep.subr.mxu0 0.0
  %6576 = vmatpush1.msra.mxu0 %v5391
  %6577 = vmatprep.subr.mxu0 0.0
  %6578 = vmatpush1.msra.mxu0 0.0
  %6579 = vmatprep.subr.mxu0 0.0
  %6580 = vmatpush1.msra.mxu0 0.0
  %6581 = vmatprep.subr.mxu0 0.0
  %6582 = vmatpush1.msra.mxu0 0.0
  %6583 = vmatprep.subr.mxu0 0.0
  %6584 = vmatpush1.msra.mxu0 0.0
  %6585 = vmatprep.subr.mxu0 0.0
  %6586 = vmatpush1.msra.mxu0 0.0
  %6587 = vmatprep.subr.mxu0 0.0
  %6588 = vmatpush1.msra.mxu0 0.0
  %6589 = vmatprep.subr.mxu0 0.0
  %6590 = vmatpush1.msra.mxu0 0.0
  %6591 = vmatprep.subr.mxu0 0.0
  %6592 = vmatpush1.msra.mxu0 0.0
  %6593 = vmatprep.subr.mxu0 0.0
  %6594 = vmatpush1.msra.mxu0 0.0
  %6595 = vmatprep.subr.mxu0 0.0
  %6596 = vmatpush1.msra.mxu0 0.0
  %6597 = vmatprep.subr.mxu0 0.0
  %6598 = vmatpush1.msra.mxu0 0.0
  %6599 = vmatprep.subr.mxu0 0.0
  %6600 = vmatpush1.msra.mxu0 0.0
  %6601 = vmatprep.subr.mxu0 0.0
  %6602 = vmatpush1.msra.mxu0 0.0
  %6603 = vmatprep.subr.mxu0 0.0
  %6604 = vmatpush1.msra.mxu0 0.0
  %6605 = vmatprep.subr.mxu0 0.0
  %6606 = vmatpush1.msra.mxu0 0.0
  %6607 = vmatprep.subr.mxu0 0.0
  %6608 = vmatpush1.msra.mxu0 0.0
  %6609 = vmatprep.subr.mxu0 0.0
  %6610 = vmatpush1.msra.mxu0 0.0
  %6611 = vmatprep.subr.mxu0 0.0
  %6612 = vmatpush1.msra.mxu0 0.0
  %6613 = vmatprep.subr.mxu0 0.0
  %6614 = vmatpush1.msra.mxu0 0.0
  %6615 = vmatprep.subr.mxu0 0.0
  %6616 = vmatpush1.msra.mxu0 0.0
  %6617 = vmatprep.subr.mxu0 0.0
  %6618 = vmatpush1.msra.mxu0 0.0
  %6619 = vmatprep.subr.mxu0 0.0
  %6620 = vmatpush1.msra.mxu0 0.0
  %6621 = vmatprep.subr.mxu0 0.0
  %6622 = vmatpush1.msra.mxu0 0.0
  %6623 = vmatprep.subr.mxu0 0.0
  %6624 = vmatpush1.msra.mxu0 0.0
  %6625 = vmatprep.subr.mxu0 0.0
  %6626 = vmatpush1.msra.mxu0 0.0
  %6627 = vmatprep.subr.mxu0 0.0
  %6628 = vmatpush1.msra.mxu0 0.0
  %6629 = vmatprep.subr.mxu0 0.0
  %6630 = vmatpush1.msra.mxu0 0.0
  %6631 = vmatprep.subr.mxu0 0.0
  %6632 = vmatpush1.msra.mxu0 0.0
  %6633 = vmatprep.mubr.f32.mxu0 0.0
  %6634 = vmatmul.mubr.f32.gmra.mrb[0].mxu0 %v6474
  %v6635 = vpop.f32.mrb[0].mxu0
  %v6636 = vadd.f32 %v6471, %v6635
  %v6637 = vpop.f32.mrb[0].mxu0
  %6638 = vmatprep.mubr.f32.mxu0 0.0
  %6639 = vmatmul.mubr.f32.gmra.mrb[0].mxu0 %v6477
  %v6640 = vpop.f32.mrb[0].mxu0
  %v6641 = vadd.f32 %v6471, %v6640
  %v6642 = vpop.f32.mrb[0].mxu0
  %6643 = vmatprep.mubr.f32.mxu0 0.0
  %6644 = vmatmul.mubr.f32.gmra.mrb[0].mxu0 %v6480
  %v6645 = vpop.f32.mrb[0].mxu0
  %v6646 = vadd.f32 %v6471, %v6645
  %v6647 = vpop.f32.mrb[0].mxu0
  %6648 = vmatprep.mubr.f32.mxu0 0.0
  %6649 = vmatmul.mubr.f32.gmra.mrb[0].mxu0 %v6483
  %v6650 = vpop.f32.mrb[0].mxu0
  %v6651 = vadd.f32 %v6471, %v6650
  %v6652 = vpop.f32.mrb[0].mxu0
  %6653 = vmatprep.mubr.f32.mxu0 0.0
  %6654 = vmatmul.mubr.f32.gmra.mrb[0].mxu0 %v6486
  %v6655 = vpop.f32.mrb[0].mxu0
  %v6656 = vadd.f32 %v6471, %v6655
  %v6657 = vpop.f32.mrb[0].mxu0
  %6658 = vmatprep.mubr.f32.mxu0 0.0
  %6659 = vmatmul.mubr.f32.gmra.mrb[0].mxu0 %v6489
  %v6660 = vpop.f32.mrb[0].mxu0
  %v6661 = vadd.f32 %v6471, %v6660
  %v6662 = vpop.f32.mrb[0].mxu0
  %6663 = vmatprep.mubr.f32.mxu0 0.0
  %6664 = vmatmul.mubr.f32.gmra.mrb[0].mxu0 %v6492
  %v6665 = vpop.f32.mrb[0].mxu0
  %v6666 = vadd.f32 %v6471, %v6665
  %v6667 = vpop.f32.mrb[0].mxu0
  %6668 = vmatprep.mubr.f32.mxu0 0.0
  %6669 = vmatmul.mubr.f32.gmra.mrb[0].mxu0 %v6495
  %v6670 = vpop.f32.mrb[0].mxu0
  %v6671 = vadd.f32 %v6471, %v6670
  %v6672 = vpop.f32.mrb[0].mxu0
  %6673 = vmatprep.mubr.f32.mxu0 0.0
  %6674 = vmatmul.mubr.f32.gmra.mrb[0].mxu0 %v6498
  %v6675 = vpop.f32.mrb[0].mxu0
  %v6676 = vadd.f32 %v6471, %v6675
  %v6677 = vpop.f32.mrb[0].mxu0
  %6678 = vmatprep.mubr.f32.mxu0 0.0
  %6679 = vmatmul.mubr.f32.gmra.mrb[0].mxu0 %v6501
  %v6680 = vpop.f32.mrb[0].mxu0
  %v6681 = vadd.f32 %v6471, %v6680
  %v6682 = vpop.f32.mrb[0].mxu0
  %6683 = vmatprep.mubr.f32.mxu0 0.0
  %6684 = vmatmul.mubr.f32.gmra.mrb[0].mxu0 %v6504
  %v6685 = vpop.f32.mrb[0].mxu0
  %v6686 = vadd.f32 %v6471, %v6685
  %v6687 = vpop.f32.mrb[0].mxu0
  %6688 = vmatprep.mubr.f32.mxu0 0.0
  %6689 = vmatmul.mubr.f32.gmra.mrb[0].mxu0 %v6507
  %v6690 = vpop.f32.mrb[0].mxu0
  %v6691 = vadd.f32 %v6471, %v6690
  %v6692 = vpop.f32.mrb[0].mxu0
  %6693 = vmatprep.mubr.f32.mxu0 0.0
  %6694 = vmatmul.mubr.f32.gmra.mrb[0].mxu0 %v6510
  %v6695 = vpop.f32.mrb[0].mxu0
  %v6696 = vadd.f32 %v6471, %v6695
  %v6697 = vpop.f32.mrb[0].mxu0
  %6698 = vmatprep.mubr.f32.mxu0 0.0
  %6699 = vmatmul.mubr.f32.gmra.mrb[0].mxu0 %v6513
  %v6700 = vpop.f32.mrb[0].mxu0
  %v6701 = vadd.f32 %v6471, %v6700
  %v6702 = vpop.f32.mrb[0].mxu0
  %6703 = vmatprep.mubr.f32.mxu0 0.0
  %6704 = vmatmul.mubr.f32.gmra.mrb[0].mxu0 %v6516
  %v6705 = vpop.f32.mrb[0].mxu0
  %v6706 = vadd.f32 %v6471, %v6705
  %v6707 = vpop.f32.mrb[0].mxu0
  %6708 = vmatprep.mubr.f32.mxu0 0.0
  %6709 = vmatmul.mubr.f32.gmra.mrb[0].mxu0 %v6519
  %v6710 = vpop.f32.mrb[0].mxu0
  %v6711 = vadd.f32 %v6471, %v6710
  %v6712 = vpop.f32.mrb[0].mxu0
  %6713 = vmatprep.mubr.f32.mxu0 0.0
  %6714 = vmatmul.mubr.f32.gmra.mrb[0].mxu0 %v6522
  %v6715 = vpop.f32.mrb[0].mxu0
  %v6716 = vadd.f32 %v6471, %v6715
  %v6717 = vpop.f32.mrb[0].mxu0
  %6718 = vmatprep.mubr.f32.mxu0 0.0
  %6719 = vmatmul.mubr.f32.gmra.mrb[0].mxu0 %v6525
  %v6720 = vpop.f32.mrb[0].mxu0
  %v6721 = vadd.f32 %v6471, %v6720
  %v6722 = vpop.f32.mrb[0].mxu0
  %6723 = vmatprep.mubr.f32.mxu0 0.0
  %6724 = vmatmul.mubr.f32.gmra.mrb[0].mxu0 %v6528
  %v6725 = vpop.f32.mrb[0].mxu0
  %v6726 = vadd.f32 %v6471, %v6725
  %v6727 = vpop.f32.mrb[0].mxu0
  %6728 = vmatprep.mubr.f32.mxu0 0.0
  %6729 = vmatmul.mubr.f32.gmra.mrb[0].mxu0 %v6531
  %v6730 = vpop.f32.mrb[0].mxu0
  %v6731 = vadd.f32 %v6471, %v6730
  %v6732 = vpop.f32.mrb[0].mxu0
  %6733 = vmatprep.mubr.f32.mxu0 0.0
  %6734 = vmatmul.mubr.f32.gmra.mrb[0].mxu0 %v6534
  %v6735 = vpop.f32.mrb[0].mxu0
  %v6736 = vadd.f32 %v6471, %v6735
  %v6737 = vpop.f32.mrb[0].mxu0
  %6738 = vmatprep.mubr.f32.mxu0 0.0
  %6739 = vmatmul.mubr.f32.gmra.mrb[0].mxu0 %v6537
  %v6740 = vpop.f32.mrb[0].mxu0
  %v6741 = vadd.f32 %v6471, %v6740
  %v6742 = vpop.f32.mrb[0].mxu0
  %6743 = vmatprep.mubr.f32.mxu0 0.0
  %6744 = vmatmul.mubr.f32.gmra.mrb[0].mxu0 %v6540
  %v6745 = vpop.f32.mrb[0].mxu0
  %v6746 = vadd.f32 %v6471, %v6745
  %v6747 = vpop.f32.mrb[0].mxu0
  %6748 = vmatprep.mubr.f32.mxu0 0.0
  %6749 = vmatmul.mubr.f32.gmra.mrb[0].mxu0 %v6543
  %v6750 = vpop.f32.mrb[0].mxu0
  %v6751 = vadd.f32 %v6471, %v6750
  %v6752 = vpop.f32.mrb[0].mxu0
  %6753 = vmatprep.mubr.f32.mxu0 0.0
  %6754 = vmatmul.mubr.f32.gmra.mrb[0].mxu0 %v6546
  %v6755 = vpop.f32.mrb[0].mxu0
  %v6756 = vadd.f32 %v6471, %v6755
  %v6757 = vpop.f32.mrb[0].mxu0
  %6758 = vmatprep.mubr.f32.mxu0 0.0
  %6759 = vmatmul.mubr.f32.gmra.mrb[0].mxu0 %v6549
  %v6760 = vpop.f32.mrb[0].mxu0
  %v6761 = vadd.f32 %v6471, %v6760
  %v6762 = vpop.f32.mrb[0].mxu0
  %6763 = vmatprep.mubr.f32.mxu0 0.0
  %6764 = vmatmul.mubr.f32.gmra.mrb[0].mxu0 %v6552
  %v6765 = vpop.f32.mrb[0].mxu0
  %v6766 = vadd.f32 %v6471, %v6765
  %v6767 = vpop.f32.mrb[0].mxu0
  %6768 = vmatprep.mubr.f32.mxu0 0.0
  %6769 = vmatmul.mubr.f32.gmra.mrb[0].mxu0 %v6555
  %v6770 = vpop.f32.mrb[0].mxu0
  %v6771 = vadd.f32 %v6471, %v6770
  %v6772 = vpop.f32.mrb[0].mxu0
  %6773 = vmatprep.mubr.f32.mxu0 0.0
  %6774 = vmatmul.mubr.f32.gmra.mrb[0].mxu0 %v6558
  %v6775 = vpop.f32.mrb[0].mxu0
  %v6776 = vadd.f32 %v6471, %v6775
  %v6777 = vpop.f32.mrb[0].mxu0
  %6778 = vmatprep.mubr.f32.mxu0 0.0
  %6779 = vmatmul.mubr.f32.gmra.mrb[0].mxu0 %v6561
  %v6780 = vpop.f32.mrb[0].mxu0
  %v6781 = vadd.f32 %v6471, %v6780
  %v6782 = vpop.f32.mrb[0].mxu0
  %6783 = vmatprep.mubr.f32.mxu0 0.0
  %6784 = vmatmul.mubr.f32.gmra.mrb[0].mxu0 %v6564
  %v6785 = vpop.f32.mrb[0].mxu0
  %v6786 = vadd.f32 %v6471, %v6785
  %v6787 = vpop.f32.mrb[0].mxu0
  %6788 = vmatprep.mubr.f32.mxu0 0.0
  %6789 = vmatmul.mubr.f32.gmra.mrb[0].mxu0 %v6567
  %v6790 = vpop.f32.mrb[0].mxu0
  %v6791 = vadd.f32 %v6471, %v6790
  %v6792 = vpop.f32.mrb[0].mxu0
  %6793 = vdwg.mxu0
  %6794 = vmatprep.subr.mxu0 0.0
  %6795 = vmatpush1.msra.mxu0 %v6636
  %6796 = vmatprep.subr.mxu0 0.0
  %6797 = vmatpush1.msra.mxu0 %v6641
  %6798 = vmatprep.subr.mxu0 0.0
  %6799 = vmatpush1.msra.mxu0 %v6646
  %6800 = vmatprep.subr.mxu0 0.0
  %6801 = vmatpush1.msra.mxu0 %v6651
  %6802 = vmatprep.subr.mxu0 0.0
  %6803 = vmatpush1.msra.mxu0 %v6656
  %6804 = vmatprep.subr.mxu0 0.0
  %6805 = vmatpush1.msra.mxu0 %v6661
  %6806 = vmatprep.subr.mxu0 0.0
  %6807 = vmatpush1.msra.mxu0 %v6666
  %6808 = vmatprep.subr.mxu0 0.0
  %6809 = vmatpush1.msra.mxu0 %v6671
  %6810 = vmatprep.subr.mxu0 0.0
  %6811 = vmatpush1.msra.mxu0 %v6676
  %6812 = vmatprep.subr.mxu0 0.0
  %6813 = vmatpush1.msra.mxu0 %v6681
  %6814 = vmatprep.subr.mxu0 0.0
  %6815 = vmatpush1.msra.mxu0 %v6686
  %6816 = vmatprep.subr.mxu0 0.0
  %6817 = vmatpush1.msra.mxu0 %v6691
  %6818 = vmatprep.subr.mxu0 0.0
  %6819 = vmatpush1.msra.mxu0 %v6696
  %6820 = vmatprep.subr.mxu0 0.0
  %6821 = vmatpush1.msra.mxu0 %v6701
  %6822 = vmatprep.subr.mxu0 0.0
  %6823 = vmatpush1.msra.mxu0 %v6706
  %6824 = vmatprep.subr.mxu0 0.0
  %6825 = vmatpush1.msra.mxu0 %v6711
  %6826 = vmatprep.subr.mxu0 0.0
  %6827 = vmatpush1.msra.mxu0 %v6716
  %6828 = vmatprep.subr.mxu0 0.0
  %6829 = vmatpush1.msra.mxu0 %v6721
  %6830 = vmatprep.subr.mxu0 0.0
  %6831 = vmatpush1.msra.mxu0 %v6726
  %6832 = vmatprep.subr.mxu0 0.0
  %6833 = vmatpush1.msra.mxu0 %v6731
  %6834 = vmatprep.subr.mxu0 0.0
  %6835 = vmatpush1.msra.mxu0 %v6736
  %6836 = vmatprep.subr.mxu0 0.0
  %6837 = vmatpush1.msra.mxu0 %v6741
  %6838 = vmatprep.subr.mxu0 0.0
  %6839 = vmatpush1.msra.mxu0 %v6746
  %6840 = vmatprep.subr.mxu0 0.0
  %6841 = vmatpush1.msra.mxu0 %v6751
  %6842 = vmatprep.subr.mxu0 0.0
  %6843 = vmatpush1.msra.mxu0 %v6756
  %6844 = vmatprep.subr.mxu0 0.0
  %6845 = vmatpush1.msra.mxu0 %v6761
  %6846 = vmatprep.subr.mxu0 0.0
  %6847 = vmatpush1.msra.mxu0 %v6766
  %6848 = vmatprep.subr.mxu0 0.0
  %6849 = vmatpush1.msra.mxu0 %v6771
  %6850 = vmatprep.subr.mxu0 0.0
  %6851 = vmatpush1.msra.mxu0 %v6776
  %6852 = vmatprep.subr.mxu0 0.0
  %6853 = vmatpush1.msra.mxu0 %v6781
  %6854 = vmatprep.subr.mxu0 0.0
  %6855 = vmatpush1.msra.mxu0 %v6786
  %6856 = vmatprep.subr.mxu0 0.0
  %6857 = vmatpush1.msra.mxu0 %v6791
  %6858 = vmatprep.mubr.f32.mxu0 %v5352
  %6859 = vmatmul.mubr.f32.gmra.mrb[0].mxu0 %v5351
  %v6860 = vpop.f32.mrb[0].mxu0
  %v6861 = vadd.f32 0.0, %v6860
  %v6862 = vpop.f32.mrb[0].mxu0
  %6863 = vmatprep.mubr.f32.mxu0 %v5354
  %6864 = vmatmul.mubr.f32.gmra.mrb[0].mxu0 %v5353
  %v6865 = vpop.f32.mrb[0].mxu0
  %v6866 = vadd.f32 0.0, %v6865
  %v6867 = vpop.f32.mrb[0].mxu0
  %6868 = vmatprep.mubr.f32.mxu0 %v5356
  %6869 = vmatmul.mubr.f32.gmra.mrb[0].mxu0 %v5355
  %v6870 = vpop.f32.mrb[0].mxu0
  %v6871 = vadd.f32 0.0, %v6870
  %v6872 = vpop.f32.mrb[0].mxu0
  %6873 = vmatprep.mubr.f32.mxu0 %v5358
  %6874 = vmatmul.mubr.f32.gmra.mrb[0].mxu0 %v5357
  %v6875 = vpop.f32.mrb[0].mxu0
  %v6876 = vadd.f32 0.0, %v6875
  %v6877 = vpop.f32.mrb[0].mxu0
  %6878 = vmatprep.mubr.f32.mxu0 %v5360
  %6879 = vmatmul.mubr.f32.gmra.mrb[0].mxu0 %v5359
  %v6880 = vpop.f32.mrb[0].mxu0
  %v6881 = vadd.f32 0.0, %v6880
  %v6882 = vpop.f32.mrb[0].mxu0
  %6883 = vmatprep.mubr.f32.mxu0 %v5362
  %6884 = vmatmul.mubr.f32.gmra.mrb[0].mxu0 %v5361
  %v6885 = vpop.f32.mrb[0].mxu0
  %v6886 = vadd.f32 0.0, %v6885
  %v6887 = vpop.f32.mrb[0].mxu0
  %6888 = vmatprep.mubr.f32.mxu0 %v5364
  %6889 = vmatmul.mubr.f32.gmra.mrb[0].mxu0 %v5363
  %v6890 = vpop.f32.mrb[0].mxu0
  %v6891 = vadd.f32 0.0, %v6890
  %v6892 = vpop.f32.mrb[0].mxu0
  %6893 = vmatprep.mubr.f32.mxu0 %v5366
  %6894 = vmatmul.mubr.f32.gmra.mrb[0].mxu0 %v5365
  %v6895 = vpop.f32.mrb[0].mxu0
  %v6896 = vadd.f32 0.0, %v6895
  %v6897 = vpop.f32.mrb[0].mxu0
  %6898 = vdwg.mxu0
  %6899 = vmatprep.subr.mxu0 0.0
  %6900 = vmatpush1.msra.mxu0 %v6636
  %6901 = vmatprep.subr.mxu0 0.0
  %6902 = vmatpush1.msra.mxu0 %v6641
  %6903 = vmatprep.subr.mxu0 0.0
  %6904 = vmatpush1.msra.mxu0 %v6646
  %6905 = vmatprep.subr.mxu0 0.0
  %6906 = vmatpush1.msra.mxu0 %v6651
  %6907 = vmatprep.subr.mxu0 0.0
  %6908 = vmatpush1.msra.mxu0 %v6656
  %6909 = vmatprep.subr.mxu0 0.0
  %6910 = vmatpush1.msra.mxu0 %v6661
  %6911 = vmatprep.subr.mxu0 0.0
  %6912 = vmatpush1.msra.mxu0 %v6666
  %6913 = vmatprep.subr.mxu0 0.0
  %6914 = vmatpush1.msra.mxu0 %v6671
  %6915 = vmatprep.subr.mxu0 0.0
  %6916 = vmatpush1.msra.mxu0 %v6676
  %6917 = vmatprep.subr.mxu0 0.0
  %6918 = vmatpush1.msra.mxu0 %v6681
  %6919 = vmatprep.subr.mxu0 0.0
  %6920 = vmatpush1.msra.mxu0 %v6686
  %6921 = vmatprep.subr.mxu0 0.0
  %6922 = vmatpush1.msra.mxu0 %v6691
  %6923 = vmatprep.subr.mxu0 0.0
  %6924 = vmatpush1.msra.mxu0 %v6696
  %6925 = vmatprep.subr.mxu0 0.0
  %6926 = vmatpush1.msra.mxu0 %v6701
  %6927 = vmatprep.subr.mxu0 0.0
  %6928 = vmatpush1.msra.mxu0 %v6706
  %6929 = vmatprep.subr.mxu0 0.0
  %6930 = vmatpush1.msra.mxu0 %v6711
  %6931 = vmatprep.subr.mxu0 0.0
  %6932 = vmatpush1.msra.mxu0 %v6716
  %6933 = vmatprep.subr.mxu0 0.0
  %6934 = vmatpush1.msra.mxu0 %v6721
  %6935 = vmatprep.subr.mxu0 0.0
  %6936 = vmatpush1.msra.mxu0 %v6726
  %6937 = vmatprep.subr.mxu0 0.0
  %6938 = vmatpush1.msra.mxu0 %v6731
  %6939 = vmatprep.subr.mxu0 0.0
  %6940 = vmatpush1.msra.mxu0 %v6736
  %6941 = vmatprep.subr.mxu0 0.0
  %6942 = vmatpush1.msra.mxu0 %v6741
  %6943 = vmatprep.subr.mxu0 0.0
  %6944 = vmatpush1.msra.mxu0 %v6746
  %6945 = vmatprep.subr.mxu0 0.0
  %6946 = vmatpush1.msra.mxu0 %v6751
  %6947 = vmatprep.subr.mxu0 0.0
  %6948 = vmatpush1.msra.mxu0 %v6756
  %6949 = vmatprep.subr.mxu0 0.0
  %6950 = vmatpush1.msra.mxu0 %v6761
  %6951 = vmatprep.subr.mxu0 0.0
  %6952 = vmatpush1.msra.mxu0 %v6766
  %6953 = vmatprep.subr.mxu0 0.0
  %6954 = vmatpush1.msra.mxu0 %v6771
  %6955 = vmatprep.subr.mxu0 0.0
  %6956 = vmatpush1.msra.mxu0 %v6776
  %6957 = vmatprep.subr.mxu0 0.0
  %6958 = vmatpush1.msra.mxu0 %v6781
  %6959 = vmatprep.subr.mxu0 0.0
  %6960 = vmatpush1.msra.mxu0 %v6786
  %6961 = vmatprep.subr.mxu0 0.0
  %6962 = vmatpush1.msra.mxu0 %v6791
  %6963 = vmatprep.mubr.f32.mxu0 %v5368
  %6964 = vmatmul.mubr.f32.gmra.mrb[0].mxu0 %v5367
  %v6965 = vpop.f32.mrb[0].mxu0
  %v6966 = vadd.f32 0.0, %v6965
  %v6967 = vpop.f32.mrb[0].mxu0
  %6968 = vmatprep.mubr.f32.mxu0 %v5370
  %6969 = vmatmul.mubr.f32.gmra.mrb[0].mxu0 %v5369
  %v6970 = vpop.f32.mrb[0].mxu0
  %v6971 = vadd.f32 0.0, %v6970
  %v6972 = vpop.f32.mrb[0].mxu0
  %6973 = vmatprep.mubr.f32.mxu0 %v5372
  %6974 = vmatmul.mubr.f32.gmra.mrb[0].mxu0 %v5371
  %v6975 = vpop.f32.mrb[0].mxu0
  %v6976 = vadd.f32 0.0, %v6975
  %v6977 = vpop.f32.mrb[0].mxu0
  %6978 = vmatprep.mubr.f32.mxu0 %v5374
  %6979 = vmatmul.mubr.f32.gmra.mrb[0].mxu0 %v5373
  %v6980 = vpop.f32.mrb[0].mxu0
  %v6981 = vadd.f32 0.0, %v6980
  %v6982 = vpop.f32.mrb[0].mxu0
  %6983 = vmatprep.mubr.f32.mxu0 %v5376
  %6984 = vmatmul.mubr.f32.gmra.mrb[0].mxu0 %v5375
  %v6985 = vpop.f32.mrb[0].mxu0
  %v6986 = vadd.f32 0.0, %v6985
  %v6987 = vpop.f32.mrb[0].mxu0
  %6988 = vmatprep.mubr.f32.mxu0 %v5378
  %6989 = vmatmul.mubr.f32.gmra.mrb[0].mxu0 %v5377
  %v6990 = vpop.f32.mrb[0].mxu0
  %v6991 = vadd.f32 0.0, %v6990
  %v6992 = vpop.f32.mrb[0].mxu0
  %6993 = vmatprep.mubr.f32.mxu0 %v5380
  %6994 = vmatmul.mubr.f32.gmra.mrb[0].mxu0 %v5379
  %v6995 = vpop.f32.mrb[0].mxu0
  %v6996 = vadd.f32 0.0, %v6995
  %v6997 = vpop.f32.mrb[0].mxu0
  %6998 = vmatprep.mubr.f32.mxu0 %v5382
  %6999 = vmatmul.mubr.f32.gmra.mrb[0].mxu0 %v5381
  %v7000 = vpop.f32.mrb[0].mxu0
  %v7001 = vadd.f32 0.0, %v7000
  %v7002 = vpop.f32.mrb[0].mxu0
  %7003 = vdwg.mxu0
  %7012 = vrot.lane.b32.xlu0 %v6966, 32
  %v7013 = vpop.permute.xlu0 %7012
  %7014 = vrot.lane.b32.xlu0 %v6971, 32
  %v7015 = vpop.permute.xlu0 %7014
  %7016 = vrot.lane.b32.xlu0 %v6976, 32
  %v7017 = vpop.permute.xlu0 %7016
  %7018 = vrot.lane.b32.xlu0 %v6981, 32
  %v7019 = vpop.permute.xlu0 %7018
  %7020 = vrot.lane.b32.xlu0 %v6986, 32
  %v7021 = vpop.permute.xlu0 %7020
  %7022 = vrot.lane.b32.xlu0 %v6991, 32
  %v7023 = vpop.permute.xlu0 %7022
  %7024 = vrot.lane.b32.xlu0 %v6996, 32
  %v7025 = vpop.permute.xlu0 %7024
  %7026 = vrot.lane.b32.xlu0 %v7001, 32
  %v7027 = vpop.permute.xlu0 %7026
  %v7036 = vsel %vm6113, %v6861, %v7013
  %v7037 = vsel %vm6113, %v6866, %v7015
  %v7038 = vsel %vm6113, %v6871, %v7017
  %v7039 = vsel %vm6113, %v6876, %v7019
  %v7040 = vsel %vm6113, %v6881, %v7021
  %v7041 = vsel %vm6113, %v6886, %v7023
  %v7042 = vsel %vm6113, %v6891, %v7025
  %v7043 = vsel %vm6113, %v6896, %v7027
  %v7052 = vrot.slane %v7036, 1
  %v7053 = vrot.slane %v7036, 2
  %v7054 = vrot.slane %v7036, 3
  %v7055 = vrot.slane %v7036, 4
  %v7056 = vrot.slane %v7036, 5
  %v7057 = vrot.slane %v7036, 6
  %v7058 = vrot.slane %v7036, 7
  %v7059 = vrot.slane %v7037, 1
  %v7060 = vrot.slane %v7037, 2
  %v7061 = vrot.slane %v7037, 3
  %v7062 = vrot.slane %v7037, 4
  %v7063 = vrot.slane %v7037, 5
  %v7064 = vrot.slane %v7037, 6
  %v7065 = vrot.slane %v7037, 7
  %v7066 = vrot.slane %v7038, 1
  %v7067 = vrot.slane %v7038, 2
  %v7068 = vrot.slane %v7038, 3
  %v7069 = vrot.slane %v7038, 4
  %v7070 = vrot.slane %v7038, 5
  %v7071 = vrot.slane %v7038, 6
  %v7072 = vrot.slane %v7038, 7
  %v7073 = vrot.slane %v7039, 1
  %v7074 = vrot.slane %v7039, 2
  %v7075 = vrot.slane %v7039, 3
  %v7076 = vrot.slane %v7039, 4
  %v7077 = vrot.slane %v7039, 5
  %v7078 = vrot.slane %v7039, 6
  %v7079 = vrot.slane %v7039, 7
  %v7080 = vrot.slane %v7040, 1
  %v7081 = vrot.slane %v7040, 2
  %v7082 = vrot.slane %v7040, 3
  %v7083 = vrot.slane %v7040, 4
  %v7084 = vrot.slane %v7040, 5
  %v7085 = vrot.slane %v7040, 6
  %v7086 = vrot.slane %v7040, 7
  %v7087 = vrot.slane %v7041, 1
  %v7088 = vrot.slane %v7041, 2
  %v7089 = vrot.slane %v7041, 3
  %v7090 = vrot.slane %v7041, 4
  %v7091 = vrot.slane %v7041, 5
  %v7092 = vrot.slane %v7041, 6
  %v7093 = vrot.slane %v7041, 7
  %v7094 = vrot.slane %v7042, 1
  %v7095 = vrot.slane %v7042, 2
  %v7096 = vrot.slane %v7042, 3
  %v7097 = vrot.slane %v7042, 4
  %v7098 = vrot.slane %v7042, 5
  %v7099 = vrot.slane %v7042, 6
  %v7100 = vrot.slane %v7042, 7
  %v7101 = vrot.slane %v7043, 1
  %v7102 = vrot.slane %v7043, 2
  %v7103 = vrot.slane %v7043, 3
  %v7104 = vrot.slane %v7043, 4
  %v7105 = vrot.slane %v7043, 5
  %v7106 = vrot.slane %v7043, 6
  %v7107 = vrot.slane %v7043, 7
  %v7172 = vadd.f32 %v685, %v7036
  %v7173 = vadd.f32 %v758, %v7052
  %v7174 = vadd.f32 %v831, %v7053
  %v7175 = vadd.f32 %v904, %v7054
  %v7176 = vadd.f32 %v977, %v7055
  %v7177 = vadd.f32 %v1050, %v7056
  %v7178 = vadd.f32 %v1123, %v7057
  %v7179 = vadd.f32 %v1196, %v7058
  %v7180 = vadd.f32 %v1269, %v7037
  %v7181 = vadd.f32 %v1342, %v7059
  %v7182 = vadd.f32 %v1415, %v7060
  %v7183 = vadd.f32 %v1488, %v7061
  %v7184 = vadd.f32 %v1561, %v7062
  %v7185 = vadd.f32 %v1634, %v7063
  %v7186 = vadd.f32 %v1707, %v7064
  %v7187 = vadd.f32 %v1780, %v7065
  %v7188 = vadd.f32 %v1853, %v7038
  %v7189 = vadd.f32 %v1926, %v7066
  %v7190 = vadd.f32 %v1999, %v7067
  %v7191 = vadd.f32 %v2072, %v7068
  %v7192 = vadd.f32 %v2145, %v7069
  %v7193 = vadd.f32 %v2218, %v7070
  %v7194 = vadd.f32 %v2291, %v7071
  %v7195 = vadd.f32 %v2364, %v7072
  %v7196 = vadd.f32 %v2437, %v7039
  %v7197 = vadd.f32 %v2510, %v7073
  %v7198 = vadd.f32 %v2583, %v7074
  %v7199 = vadd.f32 %v2656, %v7075
  %v7200 = vadd.f32 %v2729, %v7076
  %v7201 = vadd.f32 %v2802, %v7077
  %v7202 = vadd.f32 %v2875, %v7078
  %v7203 = vadd.f32 %v2948, %v7079
  %v7204 = vadd.f32 %v3021, %v7040
  %v7205 = vadd.f32 %v3094, %v7080
  %v7206 = vadd.f32 %v3167, %v7081
  %v7207 = vadd.f32 %v3240, %v7082
  %v7208 = vadd.f32 %v3313, %v7083
  %v7209 = vadd.f32 %v3386, %v7084
  %v7210 = vadd.f32 %v3459, %v7085
  %v7211 = vadd.f32 %v3532, %v7086
  %v7212 = vadd.f32 %v3605, %v7041
  %v7213 = vadd.f32 %v3678, %v7087
  %v7214 = vadd.f32 %v3751, %v7088
  %v7215 = vadd.f32 %v3824, %v7089
  %v7216 = vadd.f32 %v3897, %v7090
  %v7217 = vadd.f32 %v3970, %v7091
  %v7218 = vadd.f32 %v4043, %v7092
  %v7219 = vadd.f32 %v4116, %v7093
  %v7220 = vadd.f32 %v4189, %v7042
  %v7221 = vadd.f32 %v4262, %v7094
  %v7222 = vadd.f32 %v4335, %v7095
  %v7223 = vadd.f32 %v4408, %v7096
  %v7224 = vadd.f32 %v4481, %v7097
  %v7225 = vadd.f32 %v4554, %v7098
  %v7226 = vadd.f32 %v4627, %v7099
  %v7227 = vadd.f32 %v4700, %v7100
  %v7228 = vadd.f32 %v4773, %v7043
  %v7229 = vadd.f32 %v4846, %v7101
  %v7230 = vadd.f32 %v4919, %v7102
  %v7231 = vadd.f32 %v4992, %v7103
  %v7232 = vadd.f32 %v5065, %v7104
  %v7233 = vadd.f32 %v5138, %v7105
  %v7234 = vadd.f32 %v5211, %v7106
  %v7235 = vadd.f32 %v5284, %v7107
  %7236 = vrot.lane.b32.xlu0 %v5393, 64
  %v7237 = vpop.permute.xlu0 %7236
  %7238 = vrot.lane.b32.xlu0 %v5394, 64
  %v7239 = vpop.permute.xlu0 %7238
  %7240 = vrot.lane.b32.xlu0 %v5395, 64
  %v7241 = vpop.permute.xlu0 %7240
  %7242 = vrot.lane.b32.xlu0 %v5396, 64
  %v7243 = vpop.permute.xlu0 %7242
  %7244 = vrot.lane.b32.xlu0 %v5397, 64
  %v7245 = vpop.permute.xlu0 %7244
  %7246 = vrot.lane.b32.xlu0 %v5398, 64
  %v7247 = vpop.permute.xlu0 %7246
  %7248 = vrot.lane.b32.xlu0 %v5399, 64
  %v7249 = vpop.permute.xlu0 %7248
  %7250 = vrot.lane.b32.xlu0 %v5400, 64
  %v7251 = vpop.permute.xlu0 %7250
  %7260 = vmatprep.subr.mxu0 0.0
  %7261 = vmatpush1.msra.mxu0 %v7237
  %7262 = vmatprep.subr.mxu0 0.0
  %7263 = vmatpush1.msra.mxu0 %v7239
  %7264 = vmatprep.subr.mxu0 0.0
  %7265 = vmatpush1.msra.mxu0 %v7241
  %7266 = vmatprep.subr.mxu0 0.0
  %7267 = vmatpush1.msra.mxu0 %v7243
  %7268 = vmatprep.subr.mxu0 0.0
  %7269 = vmatpush1.msra.mxu0 %v7245
  %7270 = vmatprep.subr.mxu0 0.0
  %7271 = vmatpush1.msra.mxu0 %v7247
  %7272 = vmatprep.subr.mxu0 0.0
  %7273 = vmatpush1.msra.mxu0 %v7249
  %7274 = vmatprep.subr.mxu0 0.0
  %7275 = vmatpush1.msra.mxu0 %v7251
  %7276 = vmatprep.subr.mxu0 0.0
  %7277 = vmatpush1.msra.mxu0 0.0
  %7278 = vmatprep.subr.mxu0 0.0
  %7279 = vmatpush1.msra.mxu0 0.0
  %7280 = vmatprep.subr.mxu0 0.0
  %7281 = vmatpush1.msra.mxu0 0.0
  %7282 = vmatprep.subr.mxu0 0.0
  %7283 = vmatpush1.msra.mxu0 0.0
  %7284 = vmatprep.subr.mxu0 0.0
  %7285 = vmatpush1.msra.mxu0 0.0
  %7286 = vmatprep.subr.mxu0 0.0
  %7287 = vmatpush1.msra.mxu0 0.0
  %7288 = vmatprep.subr.mxu0 0.0
  %7289 = vmatpush1.msra.mxu0 0.0
  %7290 = vmatprep.subr.mxu0 0.0
  %7291 = vmatpush1.msra.mxu0 0.0
  %7292 = vmatprep.subr.mxu0 0.0
  %7293 = vmatpush1.msra.mxu0 0.0
  %7294 = vmatprep.subr.mxu0 0.0
  %7295 = vmatpush1.msra.mxu0 0.0
  %7296 = vmatprep.subr.mxu0 0.0
  %7297 = vmatpush1.msra.mxu0 0.0
  %7298 = vmatprep.subr.mxu0 0.0
  %7299 = vmatpush1.msra.mxu0 0.0
  %7300 = vmatprep.subr.mxu0 0.0
  %7301 = vmatpush1.msra.mxu0 0.0
  %7302 = vmatprep.subr.mxu0 0.0
  %7303 = vmatpush1.msra.mxu0 0.0
  %7304 = vmatprep.subr.mxu0 0.0
  %7305 = vmatpush1.msra.mxu0 0.0
  %7306 = vmatprep.subr.mxu0 0.0
  %7307 = vmatpush1.msra.mxu0 0.0
  %7308 = vmatprep.subr.mxu0 0.0
  %7309 = vmatpush1.msra.mxu0 0.0
  %7310 = vmatprep.subr.mxu0 0.0
  %7311 = vmatpush1.msra.mxu0 0.0
  %7312 = vmatprep.subr.mxu0 0.0
  %7313 = vmatpush1.msra.mxu0 0.0
  %7314 = vmatprep.subr.mxu0 0.0
  %7315 = vmatpush1.msra.mxu0 0.0
  %7316 = vmatprep.subr.mxu0 0.0
  %7317 = vmatpush1.msra.mxu0 0.0
  %7318 = vmatprep.subr.mxu0 0.0
  %7319 = vmatpush1.msra.mxu0 0.0
  %7320 = vmatprep.subr.mxu0 0.0
  %7321 = vmatpush1.msra.mxu0 0.0
  %7322 = vmatprep.subr.mxu0 0.0
  %7323 = vmatpush1.msra.mxu0 0.0
  %7324 = vmatprep.mubr.f32.mxu0 0.0
  %7325 = vmatmul.mubr.f32.gmra.mrb[0].mxu0 %v5402
  %v7326 = vpop.f32.mrb[0].mxu0
  %v7327 = vadd.f32 0.0, %v7326
  %v7328 = vpop.f32.mrb[0].mxu0
  %7329 = vmatprep.mubr.f32.mxu0 0.0
  %7330 = vmatmul.mubr.f32.gmra.mrb[0].mxu0 %v5405
  %v7331 = vpop.f32.mrb[0].mxu0
  %v7332 = vadd.f32 0.0, %v7331
  %v7333 = vpop.f32.mrb[0].mxu0
  %7334 = vmatprep.mubr.f32.mxu0 0.0
  %7335 = vmatmul.mubr.f32.gmra.mrb[0].mxu0 %v5408
  %v7336 = vpop.f32.mrb[0].mxu0
  %v7337 = vadd.f32 0.0, %v7336
  %v7338 = vpop.f32.mrb[0].mxu0
  %7339 = vmatprep.mubr.f32.mxu0 0.0
  %7340 = vmatmul.mubr.f32.gmra.mrb[0].mxu0 %v5411
  %v7341 = vpop.f32.mrb[0].mxu0
  %v7342 = vadd.f32 0.0, %v7341
  %v7343 = vpop.f32.mrb[0].mxu0
  %7344 = vmatprep.mubr.f32.mxu0 0.0
  %7345 = vmatmul.mubr.f32.gmra.mrb[0].mxu0 %v5414
  %v7346 = vpop.f32.mrb[0].mxu0
  %v7347 = vadd.f32 0.0, %v7346
  %v7348 = vpop.f32.mrb[0].mxu0
  %7349 = vmatprep.mubr.f32.mxu0 0.0
  %7350 = vmatmul.mubr.f32.gmra.mrb[0].mxu0 %v5417
  %v7351 = vpop.f32.mrb[0].mxu0
  %v7352 = vadd.f32 0.0, %v7351
  %v7353 = vpop.f32.mrb[0].mxu0
  %7354 = vmatprep.mubr.f32.mxu0 0.0
  %7355 = vmatmul.mubr.f32.gmra.mrb[0].mxu0 %v5420
  %v7356 = vpop.f32.mrb[0].mxu0
  %v7357 = vadd.f32 0.0, %v7356
  %v7358 = vpop.f32.mrb[0].mxu0
  %7359 = vmatprep.mubr.f32.mxu0 0.0
  %7360 = vmatmul.mubr.f32.gmra.mrb[0].mxu0 %v5423
  %v7361 = vpop.f32.mrb[0].mxu0
  %v7362 = vadd.f32 0.0, %v7361
  %v7363 = vpop.f32.mrb[0].mxu0
  %7364 = vmatprep.mubr.f32.mxu0 0.0
  %7365 = vmatmul.mubr.f32.gmra.mrb[0].mxu0 %v5426
  %v7366 = vpop.f32.mrb[0].mxu0
  %v7367 = vadd.f32 0.0, %v7366
  %v7368 = vpop.f32.mrb[0].mxu0
  %7369 = vmatprep.mubr.f32.mxu0 0.0
  %7370 = vmatmul.mubr.f32.gmra.mrb[0].mxu0 %v5429
  %v7371 = vpop.f32.mrb[0].mxu0
  %v7372 = vadd.f32 0.0, %v7371
  %v7373 = vpop.f32.mrb[0].mxu0
  %7374 = vmatprep.mubr.f32.mxu0 0.0
  %7375 = vmatmul.mubr.f32.gmra.mrb[0].mxu0 %v5432
  %v7376 = vpop.f32.mrb[0].mxu0
  %v7377 = vadd.f32 0.0, %v7376
  %v7378 = vpop.f32.mrb[0].mxu0
  %7379 = vmatprep.mubr.f32.mxu0 0.0
  %7380 = vmatmul.mubr.f32.gmra.mrb[0].mxu0 %v5435
  %v7381 = vpop.f32.mrb[0].mxu0
  %v7382 = vadd.f32 0.0, %v7381
  %v7383 = vpop.f32.mrb[0].mxu0
  %7384 = vmatprep.mubr.f32.mxu0 0.0
  %7385 = vmatmul.mubr.f32.gmra.mrb[0].mxu0 %v5438
  %v7386 = vpop.f32.mrb[0].mxu0
  %v7387 = vadd.f32 0.0, %v7386
  %v7388 = vpop.f32.mrb[0].mxu0
  %7389 = vmatprep.mubr.f32.mxu0 0.0
  %7390 = vmatmul.mubr.f32.gmra.mrb[0].mxu0 %v5441
  %v7391 = vpop.f32.mrb[0].mxu0
  %v7392 = vadd.f32 0.0, %v7391
  %v7393 = vpop.f32.mrb[0].mxu0
  %7394 = vmatprep.mubr.f32.mxu0 0.0
  %7395 = vmatmul.mubr.f32.gmra.mrb[0].mxu0 %v5444
  %v7396 = vpop.f32.mrb[0].mxu0
  %v7397 = vadd.f32 0.0, %v7396
  %v7398 = vpop.f32.mrb[0].mxu0
  %7399 = vmatprep.mubr.f32.mxu0 0.0
  %7400 = vmatmul.mubr.f32.gmra.mrb[0].mxu0 %v5447
  %v7401 = vpop.f32.mrb[0].mxu0
  %v7402 = vadd.f32 0.0, %v7401
  %v7403 = vpop.f32.mrb[0].mxu0
  %7404 = vmatprep.mubr.f32.mxu0 0.0
  %7405 = vmatmul.mubr.f32.gmra.mrb[0].mxu0 %v5450
  %v7406 = vpop.f32.mrb[0].mxu0
  %v7407 = vadd.f32 0.0, %v7406
  %v7408 = vpop.f32.mrb[0].mxu0
  %7409 = vmatprep.mubr.f32.mxu0 0.0
  %7410 = vmatmul.mubr.f32.gmra.mrb[0].mxu0 %v5453
  %v7411 = vpop.f32.mrb[0].mxu0
  %v7412 = vadd.f32 0.0, %v7411
  %v7413 = vpop.f32.mrb[0].mxu0
  %7414 = vmatprep.mubr.f32.mxu0 0.0
  %7415 = vmatmul.mubr.f32.gmra.mrb[0].mxu0 %v5456
  %v7416 = vpop.f32.mrb[0].mxu0
  %v7417 = vadd.f32 0.0, %v7416
  %v7418 = vpop.f32.mrb[0].mxu0
  %7419 = vmatprep.mubr.f32.mxu0 0.0
  %7420 = vmatmul.mubr.f32.gmra.mrb[0].mxu0 %v5459
  %v7421 = vpop.f32.mrb[0].mxu0
  %v7422 = vadd.f32 0.0, %v7421
  %v7423 = vpop.f32.mrb[0].mxu0
  %7424 = vmatprep.mubr.f32.mxu0 0.0
  %7425 = vmatmul.mubr.f32.gmra.mrb[0].mxu0 %v5462
  %v7426 = vpop.f32.mrb[0].mxu0
  %v7427 = vadd.f32 0.0, %v7426
  %v7428 = vpop.f32.mrb[0].mxu0
  %7429 = vmatprep.mubr.f32.mxu0 0.0
  %7430 = vmatmul.mubr.f32.gmra.mrb[0].mxu0 %v5465
  %v7431 = vpop.f32.mrb[0].mxu0
  %v7432 = vadd.f32 0.0, %v7431
  %v7433 = vpop.f32.mrb[0].mxu0
  %7434 = vmatprep.mubr.f32.mxu0 0.0
  %7435 = vmatmul.mubr.f32.gmra.mrb[0].mxu0 %v5468
  %v7436 = vpop.f32.mrb[0].mxu0
  %v7437 = vadd.f32 0.0, %v7436
  %v7438 = vpop.f32.mrb[0].mxu0
  %7439 = vmatprep.mubr.f32.mxu0 0.0
  %7440 = vmatmul.mubr.f32.gmra.mrb[0].mxu0 %v5471
  %v7441 = vpop.f32.mrb[0].mxu0
  %v7442 = vadd.f32 0.0, %v7441
  %v7443 = vpop.f32.mrb[0].mxu0
  %7444 = vmatprep.mubr.f32.mxu0 0.0
  %7445 = vmatmul.mubr.f32.gmra.mrb[0].mxu0 %v5474
  %v7446 = vpop.f32.mrb[0].mxu0
  %v7447 = vadd.f32 0.0, %v7446
  %v7448 = vpop.f32.mrb[0].mxu0
  %7449 = vmatprep.mubr.f32.mxu0 0.0
  %7450 = vmatmul.mubr.f32.gmra.mrb[0].mxu0 %v5477
  %v7451 = vpop.f32.mrb[0].mxu0
  %v7452 = vadd.f32 0.0, %v7451
  %v7453 = vpop.f32.mrb[0].mxu0
  %7454 = vmatprep.mubr.f32.mxu0 0.0
  %7455 = vmatmul.mubr.f32.gmra.mrb[0].mxu0 %v5480
  %v7456 = vpop.f32.mrb[0].mxu0
  %v7457 = vadd.f32 0.0, %v7456
  %v7458 = vpop.f32.mrb[0].mxu0
  %7459 = vmatprep.mubr.f32.mxu0 0.0
  %7460 = vmatmul.mubr.f32.gmra.mrb[0].mxu0 %v5483
  %v7461 = vpop.f32.mrb[0].mxu0
  %v7462 = vadd.f32 0.0, %v7461
  %v7463 = vpop.f32.mrb[0].mxu0
  %7464 = vmatprep.mubr.f32.mxu0 0.0
  %7465 = vmatmul.mubr.f32.gmra.mrb[0].mxu0 %v5486
  %v7466 = vpop.f32.mrb[0].mxu0
  %v7467 = vadd.f32 0.0, %v7466
  %v7468 = vpop.f32.mrb[0].mxu0
  %7469 = vmatprep.mubr.f32.mxu0 0.0
  %7470 = vmatmul.mubr.f32.gmra.mrb[0].mxu0 %v5489
  %v7471 = vpop.f32.mrb[0].mxu0
  %v7472 = vadd.f32 0.0, %v7471
  %v7473 = vpop.f32.mrb[0].mxu0
  %7474 = vmatprep.mubr.f32.mxu0 0.0
  %7475 = vmatmul.mubr.f32.gmra.mrb[0].mxu0 %v5492
  %v7476 = vpop.f32.mrb[0].mxu0
  %v7477 = vadd.f32 0.0, %v7476
  %v7478 = vpop.f32.mrb[0].mxu0
  %7479 = vmatprep.mubr.f32.mxu0 0.0
  %7480 = vmatmul.mubr.f32.gmra.mrb[0].mxu0 %v5495
  %v7481 = vpop.f32.mrb[0].mxu0
  %v7482 = vadd.f32 0.0, %v7481
  %v7483 = vpop.f32.mrb[0].mxu0
  %7484 = vdwg.mxu0
  %7485 = vrot.lane.b32.xlu0 %v5393, 32
  %v7486 = vpop.permute.xlu0 %7485
  %7487 = vrot.lane.b32.xlu0 %v5394, 32
  %v7488 = vpop.permute.xlu0 %7487
  %7489 = vrot.lane.b32.xlu0 %v5395, 32
  %v7490 = vpop.permute.xlu0 %7489
  %7491 = vrot.lane.b32.xlu0 %v5396, 32
  %v7492 = vpop.permute.xlu0 %7491
  %7493 = vrot.lane.b32.xlu0 %v5397, 32
  %v7494 = vpop.permute.xlu0 %7493
  %7495 = vrot.lane.b32.xlu0 %v5398, 32
  %v7496 = vpop.permute.xlu0 %7495
  %7497 = vrot.lane.b32.xlu0 %v5399, 32
  %v7498 = vpop.permute.xlu0 %7497
  %7499 = vrot.lane.b32.xlu0 %v5400, 32
  %v7500 = vpop.permute.xlu0 %7499
  %7509 = vmatprep.subr.mxu0 0.0
  %7510 = vmatpush1.msra.mxu0 %v7486
  %7511 = vmatprep.subr.mxu0 0.0
  %7512 = vmatpush1.msra.mxu0 %v7488
  %7513 = vmatprep.subr.mxu0 0.0
  %7514 = vmatpush1.msra.mxu0 %v7490
  %7515 = vmatprep.subr.mxu0 0.0
  %7516 = vmatpush1.msra.mxu0 %v7492
  %7517 = vmatprep.subr.mxu0 0.0
  %7518 = vmatpush1.msra.mxu0 %v7494
  %7519 = vmatprep.subr.mxu0 0.0
  %7520 = vmatpush1.msra.mxu0 %v7496
  %7521 = vmatprep.subr.mxu0 0.0
  %7522 = vmatpush1.msra.mxu0 %v7498
  %7523 = vmatprep.subr.mxu0 0.0
  %7524 = vmatpush1.msra.mxu0 %v7500
  %7525 = vmatprep.subr.mxu0 0.0
  %7526 = vmatpush1.msra.mxu0 0.0
  %7527 = vmatprep.subr.mxu0 0.0
  %7528 = vmatpush1.msra.mxu0 0.0
  %7529 = vmatprep.subr.mxu0 0.0
  %7530 = vmatpush1.msra.mxu0 0.0
  %7531 = vmatprep.subr.mxu0 0.0
  %7532 = vmatpush1.msra.mxu0 0.0
  %7533 = vmatprep.subr.mxu0 0.0
  %7534 = vmatpush1.msra.mxu0 0.0
  %7535 = vmatprep.subr.mxu0 0.0
  %7536 = vmatpush1.msra.mxu0 0.0
  %7537 = vmatprep.subr.mxu0 0.0
  %7538 = vmatpush1.msra.mxu0 0.0
  %7539 = vmatprep.subr.mxu0 0.0
  %7540 = vmatpush1.msra.mxu0 0.0
  %7541 = vmatprep.subr.mxu0 0.0
  %7542 = vmatpush1.msra.mxu0 0.0
  %7543 = vmatprep.subr.mxu0 0.0
  %7544 = vmatpush1.msra.mxu0 0.0
  %7545 = vmatprep.subr.mxu0 0.0
  %7546 = vmatpush1.msra.mxu0 0.0
  %7547 = vmatprep.subr.mxu0 0.0
  %7548 = vmatpush1.msra.mxu0 0.0
  %7549 = vmatprep.subr.mxu0 0.0
  %7550 = vmatpush1.msra.mxu0 0.0
  %7551 = vmatprep.subr.mxu0 0.0
  %7552 = vmatpush1.msra.mxu0 0.0
  %7553 = vmatprep.subr.mxu0 0.0
  %7554 = vmatpush1.msra.mxu0 0.0
  %7555 = vmatprep.subr.mxu0 0.0
  %7556 = vmatpush1.msra.mxu0 0.0
  %7557 = vmatprep.subr.mxu0 0.0
  %7558 = vmatpush1.msra.mxu0 0.0
  %7559 = vmatprep.subr.mxu0 0.0
  %7560 = vmatpush1.msra.mxu0 0.0
  %7561 = vmatprep.subr.mxu0 0.0
  %7562 = vmatpush1.msra.mxu0 0.0
  %7563 = vmatprep.subr.mxu0 0.0
  %7564 = vmatpush1.msra.mxu0 0.0
  %7565 = vmatprep.subr.mxu0 0.0
  %7566 = vmatpush1.msra.mxu0 0.0
  %7567 = vmatprep.subr.mxu0 0.0
  %7568 = vmatpush1.msra.mxu0 0.0
  %7569 = vmatprep.subr.mxu0 0.0
  %7570 = vmatpush1.msra.mxu0 0.0
  %7571 = vmatprep.subr.mxu0 0.0
  %7572 = vmatpush1.msra.mxu0 0.0
  %7573 = vmatprep.mubr.f32.mxu0 0.0
  %7574 = vmatmul.mubr.f32.gmra.mrb[0].mxu0 %v5755
  %v7575 = vpop.f32.mrb[0].mxu0
  %v7576 = vadd.f32 0.0, %v7575
  %v7577 = vpop.f32.mrb[0].mxu0
  %7578 = vmatprep.mubr.f32.mxu0 0.0
  %7579 = vmatmul.mubr.f32.gmra.mrb[0].mxu0 %v5758
  %v7580 = vpop.f32.mrb[0].mxu0
  %v7581 = vadd.f32 0.0, %v7580
  %v7582 = vpop.f32.mrb[0].mxu0
  %7583 = vmatprep.mubr.f32.mxu0 0.0
  %7584 = vmatmul.mubr.f32.gmra.mrb[0].mxu0 %v5761
  %v7585 = vpop.f32.mrb[0].mxu0
  %v7586 = vadd.f32 0.0, %v7585
  %v7587 = vpop.f32.mrb[0].mxu0
  %7588 = vmatprep.mubr.f32.mxu0 0.0
  %7589 = vmatmul.mubr.f32.gmra.mrb[0].mxu0 %v5764
  %v7590 = vpop.f32.mrb[0].mxu0
  %v7591 = vadd.f32 0.0, %v7590
  %v7592 = vpop.f32.mrb[0].mxu0
  %7593 = vmatprep.mubr.f32.mxu0 0.0
  %7594 = vmatmul.mubr.f32.gmra.mrb[0].mxu0 %v5767
  %v7595 = vpop.f32.mrb[0].mxu0
  %v7596 = vadd.f32 0.0, %v7595
  %v7597 = vpop.f32.mrb[0].mxu0
  %7598 = vmatprep.mubr.f32.mxu0 0.0
  %7599 = vmatmul.mubr.f32.gmra.mrb[0].mxu0 %v5770
  %v7600 = vpop.f32.mrb[0].mxu0
  %v7601 = vadd.f32 0.0, %v7600
  %v7602 = vpop.f32.mrb[0].mxu0
  %7603 = vmatprep.mubr.f32.mxu0 0.0
  %7604 = vmatmul.mubr.f32.gmra.mrb[0].mxu0 %v5773
  %v7605 = vpop.f32.mrb[0].mxu0
  %v7606 = vadd.f32 0.0, %v7605
  %v7607 = vpop.f32.mrb[0].mxu0
  %7608 = vmatprep.mubr.f32.mxu0 0.0
  %7609 = vmatmul.mubr.f32.gmra.mrb[0].mxu0 %v5776
  %v7610 = vpop.f32.mrb[0].mxu0
  %v7611 = vadd.f32 0.0, %v7610
  %v7612 = vpop.f32.mrb[0].mxu0
  %7613 = vmatprep.mubr.f32.mxu0 0.0
  %7614 = vmatmul.mubr.f32.gmra.mrb[0].mxu0 %v5779
  %v7615 = vpop.f32.mrb[0].mxu0
  %v7616 = vadd.f32 0.0, %v7615
  %v7617 = vpop.f32.mrb[0].mxu0
  %7618 = vmatprep.mubr.f32.mxu0 0.0
  %7619 = vmatmul.mubr.f32.gmra.mrb[0].mxu0 %v5782
  %v7620 = vpop.f32.mrb[0].mxu0
  %v7621 = vadd.f32 0.0, %v7620
  %v7622 = vpop.f32.mrb[0].mxu0
  %7623 = vmatprep.mubr.f32.mxu0 0.0
  %7624 = vmatmul.mubr.f32.gmra.mrb[0].mxu0 %v5785
  %v7625 = vpop.f32.mrb[0].mxu0
  %v7626 = vadd.f32 0.0, %v7625
  %v7627 = vpop.f32.mrb[0].mxu0
  %7628 = vmatprep.mubr.f32.mxu0 0.0
  %7629 = vmatmul.mubr.f32.gmra.mrb[0].mxu0 %v5788
  %v7630 = vpop.f32.mrb[0].mxu0
  %v7631 = vadd.f32 0.0, %v7630
  %v7632 = vpop.f32.mrb[0].mxu0
  %7633 = vmatprep.mubr.f32.mxu0 0.0
  %7634 = vmatmul.mubr.f32.gmra.mrb[0].mxu0 %v5791
  %v7635 = vpop.f32.mrb[0].mxu0
  %v7636 = vadd.f32 0.0, %v7635
  %v7637 = vpop.f32.mrb[0].mxu0
  %7638 = vmatprep.mubr.f32.mxu0 0.0
  %7639 = vmatmul.mubr.f32.gmra.mrb[0].mxu0 %v5794
  %v7640 = vpop.f32.mrb[0].mxu0
  %v7641 = vadd.f32 0.0, %v7640
  %v7642 = vpop.f32.mrb[0].mxu0
  %7643 = vmatprep.mubr.f32.mxu0 0.0
  %7644 = vmatmul.mubr.f32.gmra.mrb[0].mxu0 %v5797
  %v7645 = vpop.f32.mrb[0].mxu0
  %v7646 = vadd.f32 0.0, %v7645
  %v7647 = vpop.f32.mrb[0].mxu0
  %7648 = vmatprep.mubr.f32.mxu0 0.0
  %7649 = vmatmul.mubr.f32.gmra.mrb[0].mxu0 %v5800
  %v7650 = vpop.f32.mrb[0].mxu0
  %v7651 = vadd.f32 0.0, %v7650
  %v7652 = vpop.f32.mrb[0].mxu0
  %7653 = vmatprep.mubr.f32.mxu0 0.0
  %7654 = vmatmul.mubr.f32.gmra.mrb[0].mxu0 %v5803
  %v7655 = vpop.f32.mrb[0].mxu0
  %v7656 = vadd.f32 0.0, %v7655
  %v7657 = vpop.f32.mrb[0].mxu0
  %7658 = vmatprep.mubr.f32.mxu0 0.0
  %7659 = vmatmul.mubr.f32.gmra.mrb[0].mxu0 %v5806
  %v7660 = vpop.f32.mrb[0].mxu0
  %v7661 = vadd.f32 0.0, %v7660
  %v7662 = vpop.f32.mrb[0].mxu0
  %7663 = vmatprep.mubr.f32.mxu0 0.0
  %7664 = vmatmul.mubr.f32.gmra.mrb[0].mxu0 %v5809
  %v7665 = vpop.f32.mrb[0].mxu0
  %v7666 = vadd.f32 0.0, %v7665
  %v7667 = vpop.f32.mrb[0].mxu0
  %7668 = vmatprep.mubr.f32.mxu0 0.0
  %7669 = vmatmul.mubr.f32.gmra.mrb[0].mxu0 %v5812
  %v7670 = vpop.f32.mrb[0].mxu0
  %v7671 = vadd.f32 0.0, %v7670
  %v7672 = vpop.f32.mrb[0].mxu0
  %7673 = vmatprep.mubr.f32.mxu0 0.0
  %7674 = vmatmul.mubr.f32.gmra.mrb[0].mxu0 %v5815
  %v7675 = vpop.f32.mrb[0].mxu0
  %v7676 = vadd.f32 0.0, %v7675
  %v7677 = vpop.f32.mrb[0].mxu0
  %7678 = vmatprep.mubr.f32.mxu0 0.0
  %7679 = vmatmul.mubr.f32.gmra.mrb[0].mxu0 %v5818
  %v7680 = vpop.f32.mrb[0].mxu0
  %v7681 = vadd.f32 0.0, %v7680
  %v7682 = vpop.f32.mrb[0].mxu0
  %7683 = vmatprep.mubr.f32.mxu0 0.0
  %7684 = vmatmul.mubr.f32.gmra.mrb[0].mxu0 %v5821
  %v7685 = vpop.f32.mrb[0].mxu0
  %v7686 = vadd.f32 0.0, %v7685
  %v7687 = vpop.f32.mrb[0].mxu0
  %7688 = vmatprep.mubr.f32.mxu0 0.0
  %7689 = vmatmul.mubr.f32.gmra.mrb[0].mxu0 %v5824
  %v7690 = vpop.f32.mrb[0].mxu0
  %v7691 = vadd.f32 0.0, %v7690
  %v7692 = vpop.f32.mrb[0].mxu0
  %7693 = vmatprep.mubr.f32.mxu0 0.0
  %7694 = vmatmul.mubr.f32.gmra.mrb[0].mxu0 %v5827
  %v7695 = vpop.f32.mrb[0].mxu0
  %v7696 = vadd.f32 0.0, %v7695
  %v7697 = vpop.f32.mrb[0].mxu0
  %7698 = vmatprep.mubr.f32.mxu0 0.0
  %7699 = vmatmul.mubr.f32.gmra.mrb[0].mxu0 %v5830
  %v7700 = vpop.f32.mrb[0].mxu0
  %v7701 = vadd.f32 0.0, %v7700
  %v7702 = vpop.f32.mrb[0].mxu0
  %7703 = vmatprep.mubr.f32.mxu0 0.0
  %7704 = vmatmul.mubr.f32.gmra.mrb[0].mxu0 %v5833
  %v7705 = vpop.f32.mrb[0].mxu0
  %v7706 = vadd.f32 0.0, %v7705
  %v7707 = vpop.f32.mrb[0].mxu0
  %7708 = vmatprep.mubr.f32.mxu0 0.0
  %7709 = vmatmul.mubr.f32.gmra.mrb[0].mxu0 %v5836
  %v7710 = vpop.f32.mrb[0].mxu0
  %v7711 = vadd.f32 0.0, %v7710
  %v7712 = vpop.f32.mrb[0].mxu0
  %7713 = vmatprep.mubr.f32.mxu0 0.0
  %7714 = vmatmul.mubr.f32.gmra.mrb[0].mxu0 %v5839
  %v7715 = vpop.f32.mrb[0].mxu0
  %v7716 = vadd.f32 0.0, %v7715
  %v7717 = vpop.f32.mrb[0].mxu0
  %7718 = vmatprep.mubr.f32.mxu0 0.0
  %7719 = vmatmul.mubr.f32.gmra.mrb[0].mxu0 %v5842
  %v7720 = vpop.f32.mrb[0].mxu0
  %v7721 = vadd.f32 0.0, %v7720
  %v7722 = vpop.f32.mrb[0].mxu0
  %7723 = vmatprep.mubr.f32.mxu0 0.0
  %7724 = vmatmul.mubr.f32.gmra.mrb[0].mxu0 %v5845
  %v7725 = vpop.f32.mrb[0].mxu0
  %v7726 = vadd.f32 0.0, %v7725
  %v7727 = vpop.f32.mrb[0].mxu0
  %7728 = vmatprep.mubr.f32.mxu0 0.0
  %7729 = vmatmul.mubr.f32.gmra.mrb[0].mxu0 %v5848
  %v7730 = vpop.f32.mrb[0].mxu0
  %v7731 = vadd.f32 0.0, %v7730
  %v7732 = vpop.f32.mrb[0].mxu0
  %7733 = vdwg.mxu0
  %v7734 = vsub.f32 %v7327, %v7576
  %v7735 = vsub.f32 %v7332, %v7581
  %v7736 = vsub.f32 %v7337, %v7586
  %v7737 = vsub.f32 %v7342, %v7591
  %v7738 = vsub.f32 %v7347, %v7596
  %v7739 = vsub.f32 %v7352, %v7601
  %v7740 = vsub.f32 %v7357, %v7606
  %v7741 = vsub.f32 %v7362, %v7611
  %v7742 = vsub.f32 %v7367, %v7616
  %v7743 = vsub.f32 %v7372, %v7621
  %v7744 = vsub.f32 %v7377, %v7626
  %v7745 = vsub.f32 %v7382, %v7631
  %v7746 = vsub.f32 %v7387, %v7636
  %v7747 = vsub.f32 %v7392, %v7641
  %v7748 = vsub.f32 %v7397, %v7646
  %v7749 = vsub.f32 %v7402, %v7651
  %v7750 = vsub.f32 %v7407, %v7656
  %v7751 = vsub.f32 %v7412, %v7661
  %v7752 = vsub.f32 %v7417, %v7666
  %v7753 = vsub.f32 %v7422, %v7671
  %v7754 = vsub.f32 %v7427, %v7676
  %v7755 = vsub.f32 %v7432, %v7681
  %v7756 = vsub.f32 %v7437, %v7686
  %v7757 = vsub.f32 %v7442, %v7691
  %v7758 = vsub.f32 %v7447, %v7696
  %v7759 = vsub.f32 %v7452, %v7701
  %v7760 = vsub.f32 %v7457, %v7706
  %v7761 = vsub.f32 %v7462, %v7711
  %v7762 = vsub.f32 %v7467, %v7716
  %v7763 = vsub.f32 %v7472, %v7721
  %v7764 = vsub.f32 %v7477, %v7726
  %v7765 = vsub.f32 %v7482, %v7731
  %v7767 = vsel %vm6113, %v7734, 0
  %v7770 = vsel %vm6113, %v7735, 0
  %v7773 = vsel %vm6113, %v7736, 0
  %v7776 = vsel %vm6113, %v7737, 0
  %v7779 = vsel %vm6113, %v7738, 0
  %v7782 = vsel %vm6113, %v7739, 0
  %v7785 = vsel %vm6113, %v7740, 0
  %v7788 = vsel %vm6113, %v7741, 0
  %v7791 = vsel %vm6113, %v7742, 0
  %v7794 = vsel %vm6113, %v7743, 0
  %v7797 = vsel %vm6113, %v7744, 0
  %v7800 = vsel %vm6113, %v7745, 0
  %v7803 = vsel %vm6113, %v7746, 0
  %v7806 = vsel %vm6113, %v7747, 0
  %v7809 = vsel %vm6113, %v7748, 0
  %v7812 = vsel %vm6113, %v7749, 0
  %v7815 = vsel %vm6113, %v7750, 0
  %v7818 = vsel %vm6113, %v7751, 0
  %v7821 = vsel %vm6113, %v7752, 0
  %v7824 = vsel %vm6113, %v7753, 0
  %v7827 = vsel %vm6113, %v7754, 0
  %v7830 = vsel %vm6113, %v7755, 0
  %v7833 = vsel %vm6113, %v7756, 0
  %v7836 = vsel %vm6113, %v7757, 0
  %v7839 = vsel %vm6113, %v7758, 0
  %v7842 = vsel %vm6113, %v7759, 0
  %v7845 = vsel %vm6113, %v7760, 0
  %v7848 = vsel %vm6113, %v7761, 0
  %v7851 = vsel %vm6113, %v7762, 0
  %v7854 = vsel %vm6113, %v7763, 0
  %v7857 = vsel %vm6113, %v7764, 0
  %v7860 = vsel %vm6113, %v7765, 0
  %7862 = vmatprep.subr.mxu0 0.0
  %7863 = vmatpush1.msra.mxu0 %v5383
  %7864 = vmatprep.subr.mxu0 0.0
  %7865 = vmatpush1.msra.mxu0 %v5384
  %7866 = vmatprep.subr.mxu0 0.0
  %7867 = vmatpush1.msra.mxu0 %v5385
  %7868 = vmatprep.subr.mxu0 0.0
  %7869 = vmatpush1.msra.mxu0 %v5386
  %7870 = vmatprep.subr.mxu0 0.0
  %7871 = vmatpush1.msra.mxu0 0.0
  %7872 = vmatprep.subr.mxu0 0.0
  %7873 = vmatpush1.msra.mxu0 0.0
  %7874 = vmatprep.subr.mxu0 0.0
  %7875 = vmatpush1.msra.mxu0 0.0
  %7876 = vmatprep.subr.mxu0 0.0
  %7877 = vmatpush1.msra.mxu0 0.0
  %7878 = vmatprep.subr.mxu0 0.0
  %7879 = vmatpush1.msra.mxu0 0.0
  %7880 = vmatprep.subr.mxu0 0.0
  %7881 = vmatpush1.msra.mxu0 0.0
  %7882 = vmatprep.subr.mxu0 0.0
  %7883 = vmatpush1.msra.mxu0 0.0
  %7884 = vmatprep.subr.mxu0 0.0
  %7885 = vmatpush1.msra.mxu0 0.0
  %7886 = vmatprep.subr.mxu0 0.0
  %7887 = vmatpush1.msra.mxu0 0.0
  %7888 = vmatprep.subr.mxu0 0.0
  %7889 = vmatpush1.msra.mxu0 0.0
  %7890 = vmatprep.subr.mxu0 0.0
  %7891 = vmatpush1.msra.mxu0 0.0
  %7892 = vmatprep.subr.mxu0 0.0
  %7893 = vmatpush1.msra.mxu0 0.0
  %7894 = vmatprep.subr.mxu0 0.0
  %7895 = vmatpush1.msra.mxu0 0.0
  %7896 = vmatprep.subr.mxu0 0.0
  %7897 = vmatpush1.msra.mxu0 0.0
  %7898 = vmatprep.subr.mxu0 0.0
  %7899 = vmatpush1.msra.mxu0 0.0
  %7900 = vmatprep.subr.mxu0 0.0
  %7901 = vmatpush1.msra.mxu0 0.0
  %7902 = vmatprep.subr.mxu0 0.0
  %7903 = vmatpush1.msra.mxu0 0.0
  %7904 = vmatprep.subr.mxu0 0.0
  %7905 = vmatpush1.msra.mxu0 0.0
  %7906 = vmatprep.subr.mxu0 0.0
  %7907 = vmatpush1.msra.mxu0 0.0
  %7908 = vmatprep.subr.mxu0 0.0
  %7909 = vmatpush1.msra.mxu0 0.0
  %7910 = vmatprep.subr.mxu0 0.0
  %7911 = vmatpush1.msra.mxu0 0.0
  %7912 = vmatprep.subr.mxu0 0.0
  %7913 = vmatpush1.msra.mxu0 0.0
  %7914 = vmatprep.subr.mxu0 0.0
  %7915 = vmatpush1.msra.mxu0 0.0
  %7916 = vmatprep.subr.mxu0 0.0
  %7917 = vmatpush1.msra.mxu0 0.0
  %7918 = vmatprep.subr.mxu0 0.0
  %7919 = vmatpush1.msra.mxu0 0.0
  %7920 = vmatprep.subr.mxu0 0.0
  %7921 = vmatpush1.msra.mxu0 0.0
  %7922 = vmatprep.subr.mxu0 0.0
  %7923 = vmatpush1.msra.mxu0 0.0
  %7924 = vmatprep.subr.mxu0 0.0
  %7925 = vmatpush1.msra.mxu0 0.0
  %7926 = vmatprep.mubr.f32.mxu0 0.0
  %7927 = vmatmul.mubr.f32.gmra.mrb[0].mxu0 %v7767
  %v7928 = vpop.f32.mrb[0].mxu0
  %v7929 = vadd.f32 %v6111, %v7928
  %v7930 = vpop.f32.mrb[0].mxu0
  %7931 = vmatprep.mubr.f32.mxu0 0.0
  %7932 = vmatmul.mubr.f32.gmra.mrb[0].mxu0 %v7770
  %v7933 = vpop.f32.mrb[0].mxu0
  %v7934 = vadd.f32 %v6111, %v7933
  %v7935 = vpop.f32.mrb[0].mxu0
  %7936 = vmatprep.mubr.f32.mxu0 0.0
  %7937 = vmatmul.mubr.f32.gmra.mrb[0].mxu0 %v7773
  %v7938 = vpop.f32.mrb[0].mxu0
  %v7939 = vadd.f32 %v6111, %v7938
  %v7940 = vpop.f32.mrb[0].mxu0
  %7941 = vmatprep.mubr.f32.mxu0 0.0
  %7942 = vmatmul.mubr.f32.gmra.mrb[0].mxu0 %v7776
  %v7943 = vpop.f32.mrb[0].mxu0
  %v7944 = vadd.f32 %v6111, %v7943
  %v7945 = vpop.f32.mrb[0].mxu0
  %7946 = vmatprep.mubr.f32.mxu0 0.0
  %7947 = vmatmul.mubr.f32.gmra.mrb[0].mxu0 %v7779
  %v7948 = vpop.f32.mrb[0].mxu0
  %v7949 = vadd.f32 %v6111, %v7948
  %v7950 = vpop.f32.mrb[0].mxu0
  %7951 = vmatprep.mubr.f32.mxu0 0.0
  %7952 = vmatmul.mubr.f32.gmra.mrb[0].mxu0 %v7782
  %v7953 = vpop.f32.mrb[0].mxu0
  %v7954 = vadd.f32 %v6111, %v7953
  %v7955 = vpop.f32.mrb[0].mxu0
  %7956 = vmatprep.mubr.f32.mxu0 0.0
  %7957 = vmatmul.mubr.f32.gmra.mrb[0].mxu0 %v7785
  %v7958 = vpop.f32.mrb[0].mxu0
  %v7959 = vadd.f32 %v6111, %v7958
  %v7960 = vpop.f32.mrb[0].mxu0
  %7961 = vmatprep.mubr.f32.mxu0 0.0
  %7962 = vmatmul.mubr.f32.gmra.mrb[0].mxu0 %v7788
  %v7963 = vpop.f32.mrb[0].mxu0
  %v7964 = vadd.f32 %v6111, %v7963
  %v7965 = vpop.f32.mrb[0].mxu0
  %7966 = vmatprep.mubr.f32.mxu0 0.0
  %7967 = vmatmul.mubr.f32.gmra.mrb[0].mxu0 %v7791
  %v7968 = vpop.f32.mrb[0].mxu0
  %v7969 = vadd.f32 %v6111, %v7968
  %v7970 = vpop.f32.mrb[0].mxu0
  %7971 = vmatprep.mubr.f32.mxu0 0.0
  %7972 = vmatmul.mubr.f32.gmra.mrb[0].mxu0 %v7794
  %v7973 = vpop.f32.mrb[0].mxu0
  %v7974 = vadd.f32 %v6111, %v7973
  %v7975 = vpop.f32.mrb[0].mxu0
  %7976 = vmatprep.mubr.f32.mxu0 0.0
  %7977 = vmatmul.mubr.f32.gmra.mrb[0].mxu0 %v7797
  %v7978 = vpop.f32.mrb[0].mxu0
  %v7979 = vadd.f32 %v6111, %v7978
  %v7980 = vpop.f32.mrb[0].mxu0
  %7981 = vmatprep.mubr.f32.mxu0 0.0
  %7982 = vmatmul.mubr.f32.gmra.mrb[0].mxu0 %v7800
  %v7983 = vpop.f32.mrb[0].mxu0
  %v7984 = vadd.f32 %v6111, %v7983
  %v7985 = vpop.f32.mrb[0].mxu0
  %7986 = vmatprep.mubr.f32.mxu0 0.0
  %7987 = vmatmul.mubr.f32.gmra.mrb[0].mxu0 %v7803
  %v7988 = vpop.f32.mrb[0].mxu0
  %v7989 = vadd.f32 %v6111, %v7988
  %v7990 = vpop.f32.mrb[0].mxu0
  %7991 = vmatprep.mubr.f32.mxu0 0.0
  %7992 = vmatmul.mubr.f32.gmra.mrb[0].mxu0 %v7806
  %v7993 = vpop.f32.mrb[0].mxu0
  %v7994 = vadd.f32 %v6111, %v7993
  %v7995 = vpop.f32.mrb[0].mxu0
  %7996 = vmatprep.mubr.f32.mxu0 0.0
  %7997 = vmatmul.mubr.f32.gmra.mrb[0].mxu0 %v7809
  %v7998 = vpop.f32.mrb[0].mxu0
  %v7999 = vadd.f32 %v6111, %v7998
  %v8000 = vpop.f32.mrb[0].mxu0
  %8001 = vmatprep.mubr.f32.mxu0 0.0
  %8002 = vmatmul.mubr.f32.gmra.mrb[0].mxu0 %v7812
  %v8003 = vpop.f32.mrb[0].mxu0
  %v8004 = vadd.f32 %v6111, %v8003
  %v8005 = vpop.f32.mrb[0].mxu0
  %8006 = vmatprep.mubr.f32.mxu0 0.0
  %8007 = vmatmul.mubr.f32.gmra.mrb[0].mxu0 %v7815
  %v8008 = vpop.f32.mrb[0].mxu0
  %v8009 = vadd.f32 %v6111, %v8008
  %v8010 = vpop.f32.mrb[0].mxu0
  %8011 = vmatprep.mubr.f32.mxu0 0.0
  %8012 = vmatmul.mubr.f32.gmra.mrb[0].mxu0 %v7818
  %v8013 = vpop.f32.mrb[0].mxu0
  %v8014 = vadd.f32 %v6111, %v8013
  %v8015 = vpop.f32.mrb[0].mxu0
  %8016 = vmatprep.mubr.f32.mxu0 0.0
  %8017 = vmatmul.mubr.f32.gmra.mrb[0].mxu0 %v7821
  %v8018 = vpop.f32.mrb[0].mxu0
  %v8019 = vadd.f32 %v6111, %v8018
  %v8020 = vpop.f32.mrb[0].mxu0
  %8021 = vmatprep.mubr.f32.mxu0 0.0
  %8022 = vmatmul.mubr.f32.gmra.mrb[0].mxu0 %v7824
  %v8023 = vpop.f32.mrb[0].mxu0
  %v8024 = vadd.f32 %v6111, %v8023
  %v8025 = vpop.f32.mrb[0].mxu0
  %8026 = vmatprep.mubr.f32.mxu0 0.0
  %8027 = vmatmul.mubr.f32.gmra.mrb[0].mxu0 %v7827
  %v8028 = vpop.f32.mrb[0].mxu0
  %v8029 = vadd.f32 %v6111, %v8028
  %v8030 = vpop.f32.mrb[0].mxu0
  %8031 = vmatprep.mubr.f32.mxu0 0.0
  %8032 = vmatmul.mubr.f32.gmra.mrb[0].mxu0 %v7830
  %v8033 = vpop.f32.mrb[0].mxu0
  %v8034 = vadd.f32 %v6111, %v8033
  %v8035 = vpop.f32.mrb[0].mxu0
  %8036 = vmatprep.mubr.f32.mxu0 0.0
  %8037 = vmatmul.mubr.f32.gmra.mrb[0].mxu0 %v7833
  %v8038 = vpop.f32.mrb[0].mxu0
  %v8039 = vadd.f32 %v6111, %v8038
  %v8040 = vpop.f32.mrb[0].mxu0
  %8041 = vmatprep.mubr.f32.mxu0 0.0
  %8042 = vmatmul.mubr.f32.gmra.mrb[0].mxu0 %v7836
  %v8043 = vpop.f32.mrb[0].mxu0
  %v8044 = vadd.f32 %v6111, %v8043
  %v8045 = vpop.f32.mrb[0].mxu0
  %8046 = vmatprep.mubr.f32.mxu0 0.0
  %8047 = vmatmul.mubr.f32.gmra.mrb[0].mxu0 %v7839
  %v8048 = vpop.f32.mrb[0].mxu0
  %v8049 = vadd.f32 %v6111, %v8048
  %v8050 = vpop.f32.mrb[0].mxu0
  %8051 = vmatprep.mubr.f32.mxu0 0.0
  %8052 = vmatmul.mubr.f32.gmra.mrb[0].mxu0 %v7842
  %v8053 = vpop.f32.mrb[0].mxu0
  %v8054 = vadd.f32 %v6111, %v8053
  %v8055 = vpop.f32.mrb[0].mxu0
  %8056 = vmatprep.mubr.f32.mxu0 0.0
  %8057 = vmatmul.mubr.f32.gmra.mrb[0].mxu0 %v7845
  %v8058 = vpop.f32.mrb[0].mxu0
  %v8059 = vadd.f32 %v6111, %v8058
  %v8060 = vpop.f32.mrb[0].mxu0
  %8061 = vmatprep.mubr.f32.mxu0 0.0
  %8062 = vmatmul.mubr.f32.gmra.mrb[0].mxu0 %v7848
  %v8063 = vpop.f32.mrb[0].mxu0
  %v8064 = vadd.f32 %v6111, %v8063
  %v8065 = vpop.f32.mrb[0].mxu0
  %8066 = vmatprep.mubr.f32.mxu0 0.0
  %8067 = vmatmul.mubr.f32.gmra.mrb[0].mxu0 %v7851
  %v8068 = vpop.f32.mrb[0].mxu0
  %v8069 = vadd.f32 %v6111, %v8068
  %v8070 = vpop.f32.mrb[0].mxu0
  %8071 = vmatprep.mubr.f32.mxu0 0.0
  %8072 = vmatmul.mubr.f32.gmra.mrb[0].mxu0 %v7854
  %v8073 = vpop.f32.mrb[0].mxu0
  %v8074 = vadd.f32 %v6111, %v8073
  %v8075 = vpop.f32.mrb[0].mxu0
  %8076 = vmatprep.mubr.f32.mxu0 0.0
  %8077 = vmatmul.mubr.f32.gmra.mrb[0].mxu0 %v7857
  %v8078 = vpop.f32.mrb[0].mxu0
  %v8079 = vadd.f32 %v6111, %v8078
  %v8080 = vpop.f32.mrb[0].mxu0
  %8081 = vmatprep.mubr.f32.mxu0 0.0
  %8082 = vmatmul.mubr.f32.gmra.mrb[0].mxu0 %v7860
  %v8083 = vpop.f32.mrb[0].mxu0
  %v8084 = vadd.f32 %v6111, %v8083
  %v8085 = vpop.f32.mrb[0].mxu0
  %8086 = vdwg.mxu0
  %v8087 = vtanh.pop %v7929
  %v8088 = vtanh.pop %v7934
  %v8089 = vtanh.pop %v7939
  %v8090 = vtanh.pop %v7944
  %v8091 = vtanh.pop %v7949
  %v8092 = vtanh.pop %v7954
  %v8093 = vtanh.pop %v7959
  %v8094 = vtanh.pop %v7964
  %v8095 = vtanh.pop %v7969
  %v8096 = vtanh.pop %v7974
  %v8097 = vtanh.pop %v7979
  %v8098 = vtanh.pop %v7984
  %v8099 = vtanh.pop %v7989
  %v8100 = vtanh.pop %v7994
  %v8101 = vtanh.pop %v7999
  %v8102 = vtanh.pop %v8004
  %v8103 = vtanh.pop %v8009
  %v8104 = vtanh.pop %v8014
  %v8105 = vtanh.pop %v8019
  %v8106 = vtanh.pop %v8024
  %v8107 = vtanh.pop %v8029
  %v8108 = vtanh.pop %v8034
  %v8109 = vtanh.pop %v8039
  %v8110 = vtanh.pop %v8044
  %v8111 = vtanh.pop %v8049
  %v8112 = vtanh.pop %v8054
  %v8113 = vtanh.pop %v8059
  %v8114 = vtanh.pop %v8064
  %v8115 = vtanh.pop %v8069
  %v8116 = vtanh.pop %v8074
  %v8117 = vtanh.pop %v8079
  %v8118 = vtanh.pop %v8084
  %v8120 = vsel %vm6113, %v8087, 0
  %v8123 = vsel %vm6113, %v8088, 0
  %v8126 = vsel %vm6113, %v8089, 0
  %v8129 = vsel %vm6113, %v8090, 0
  %v8132 = vsel %vm6113, %v8091, 0
  %v8135 = vsel %vm6113, %v8092, 0
  %v8138 = vsel %vm6113, %v8093, 0
  %v8141 = vsel %vm6113, %v8094, 0
  %v8144 = vsel %vm6113, %v8095, 0
  %v8147 = vsel %vm6113, %v8096, 0
  %v8150 = vsel %vm6113, %v8097, 0
  %v8153 = vsel %vm6113, %v8098, 0
  %v8156 = vsel %vm6113, %v8099, 0
  %v8159 = vsel %vm6113, %v8100, 0
  %v8162 = vsel %vm6113, %v8101, 0
  %v8165 = vsel %vm6113, %v8102, 0
  %v8168 = vsel %vm6113, %v8103, 0
  %v8171 = vsel %vm6113, %v8104, 0
  %v8174 = vsel %vm6113, %v8105, 0
  %v8177 = vsel %vm6113, %v8106, 0
  %v8180 = vsel %vm6113, %v8107, 0
  %v8183 = vsel %vm6113, %v8108, 0
  %v8186 = vsel %vm6113, %v8109, 0
  %v8189 = vsel %vm6113, %v8110, 0
  %v8192 = vsel %vm6113, %v8111, 0
  %v8195 = vsel %vm6113, %v8112, 0
  %v8198 = vsel %vm6113, %v8113, 0
  %v8201 = vsel %vm6113, %v8114, 0
  %v8204 = vsel %vm6113, %v8115, 0
  %v8207 = vsel %vm6113, %v8116, 0
  %v8210 = vsel %vm6113, %v8117, 0
  %v8213 = vsel %vm6113, %v8118, 0
  %8215 = vmatprep.subr.mxu0 0.0
  %8216 = vmatpush1.msra.mxu0 %v5388
  %8217 = vmatprep.subr.mxu0 0.0
  %8218 = vmatpush1.msra.mxu0 %v5389
  %8219 = vmatprep.subr.mxu0 0.0
  %8220 = vmatpush1.msra.mxu0 %v5390
  %8221 = vmatprep.subr.mxu0 0.0
  %8222 = vmatpush1.msra.mxu0 %v5391
  %8223 = vmatprep.subr.mxu0 0.0
  %8224 = vmatpush1.msra.mxu0 0.0
  %8225 = vmatprep.subr.mxu0 0.0
  %8226 = vmatpush1.msra.mxu0 0.0
  %8227 = vmatprep.subr.mxu0 0.0
  %8228 = vmatpush1.msra.mxu0 0.0
  %8229 = vmatprep.subr.mxu0 0.0
  %8230 = vmatpush1.msra.mxu0 0.0
  %8231 = vmatprep.subr.mxu0 0.0
  %8232 = vmatpush1.msra.mxu0 0.0
  %8233 = vmatprep.subr.mxu0 0.0
  %8234 = vmatpush1.msra.mxu0 0.0
  %8235 = vmatprep.subr.mxu0 0.0
  %8236 = vmatpush1.msra.mxu0 0.0
  %8237 = vmatprep.subr.mxu0 0.0
  %8238 = vmatpush1.msra.mxu0 0.0
  %8239 = vmatprep.subr.mxu0 0.0
  %8240 = vmatpush1.msra.mxu0 0.0
  %8241 = vmatprep.subr.mxu0 0.0
  %8242 = vmatpush1.msra.mxu0 0.0
  %8243 = vmatprep.subr.mxu0 0.0
  %8244 = vmatpush1.msra.mxu0 0.0
  %8245 = vmatprep.subr.mxu0 0.0
  %8246 = vmatpush1.msra.mxu0 0.0
  %8247 = vmatprep.subr.mxu0 0.0
  %8248 = vmatpush1.msra.mxu0 0.0
  %8249 = vmatprep.subr.mxu0 0.0
  %8250 = vmatpush1.msra.mxu0 0.0
  %8251 = vmatprep.subr.mxu0 0.0
  %8252 = vmatpush1.msra.mxu0 0.0
  %8253 = vmatprep.subr.mxu0 0.0
  %8254 = vmatpush1.msra.mxu0 0.0
  %8255 = vmatprep.subr.mxu0 0.0
  %8256 = vmatpush1.msra.mxu0 0.0
  %8257 = vmatprep.subr.mxu0 0.0
  %8258 = vmatpush1.msra.mxu0 0.0
  %8259 = vmatprep.subr.mxu0 0.0
  %8260 = vmatpush1.msra.mxu0 0.0
  %8261 = vmatprep.subr.mxu0 0.0
  %8262 = vmatpush1.msra.mxu0 0.0
  %8263 = vmatprep.subr.mxu0 0.0
  %8264 = vmatpush1.msra.mxu0 0.0
  %8265 = vmatprep.subr.mxu0 0.0
  %8266 = vmatpush1.msra.mxu0 0.0
  %8267 = vmatprep.subr.mxu0 0.0
  %8268 = vmatpush1.msra.mxu0 0.0
  %8269 = vmatprep.subr.mxu0 0.0
  %8270 = vmatpush1.msra.mxu0 0.0
  %8271 = vmatprep.subr.mxu0 0.0
  %8272 = vmatpush1.msra.mxu0 0.0
  %8273 = vmatprep.subr.mxu0 0.0
  %8274 = vmatpush1.msra.mxu0 0.0
  %8275 = vmatprep.subr.mxu0 0.0
  %8276 = vmatpush1.msra.mxu0 0.0
  %8277 = vmatprep.subr.mxu0 0.0
  %8278 = vmatpush1.msra.mxu0 0.0
  %8279 = vmatprep.mubr.f32.mxu0 0.0
  %8280 = vmatmul.mubr.f32.gmra.mrb[0].mxu0 %v8120
  %v8281 = vpop.f32.mrb[0].mxu0
  %v8282 = vadd.f32 %v6471, %v8281
  %v8283 = vpop.f32.mrb[0].mxu0
  %8284 = vmatprep.mubr.f32.mxu0 0.0
  %8285 = vmatmul.mubr.f32.gmra.mrb[0].mxu0 %v8123
  %v8286 = vpop.f32.mrb[0].mxu0
  %v8287 = vadd.f32 %v6471, %v8286
  %v8288 = vpop.f32.mrb[0].mxu0
  %8289 = vmatprep.mubr.f32.mxu0 0.0
  %8290 = vmatmul.mubr.f32.gmra.mrb[0].mxu0 %v8126
  %v8291 = vpop.f32.mrb[0].mxu0
  %v8292 = vadd.f32 %v6471, %v8291
  %v8293 = vpop.f32.mrb[0].mxu0
  %8294 = vmatprep.mubr.f32.mxu0 0.0
  %8295 = vmatmul.mubr.f32.gmra.mrb[0].mxu0 %v8129
  %v8296 = vpop.f32.mrb[0].mxu0
  %v8297 = vadd.f32 %v6471, %v8296
  %v8298 = vpop.f32.mrb[0].mxu0
  %8299 = vmatprep.mubr.f32.mxu0 0.0
  %8300 = vmatmul.mubr.f32.gmra.mrb[0].mxu0 %v8132
  %v8301 = vpop.f32.mrb[0].mxu0
  %v8302 = vadd.f32 %v6471, %v8301
  %v8303 = vpop.f32.mrb[0].mxu0
  %8304 = vmatprep.mubr.f32.mxu0 0.0
  %8305 = vmatmul.mubr.f32.gmra.mrb[0].mxu0 %v8135
  %v8306 = vpop.f32.mrb[0].mxu0
  %v8307 = vadd.f32 %v6471, %v8306
  %v8308 = vpop.f32.mrb[0].mxu0
  %8309 = vmatprep.mubr.f32.mxu0 0.0
  %8310 = vmatmul.mubr.f32.gmra.mrb[0].mxu0 %v8138
  %v8311 = vpop.f32.mrb[0].mxu0
  %v8312 = vadd.f32 %v6471, %v8311
  %v8313 = vpop.f32.mrb[0].mxu0
  %8314 = vmatprep.mubr.f32.mxu0 0.0
  %8315 = vmatmul.mubr.f32.gmra.mrb[0].mxu0 %v8141
  %v8316 = vpop.f32.mrb[0].mxu0
  %v8317 = vadd.f32 %v6471, %v8316
  %v8318 = vpop.f32.mrb[0].mxu0
  %8319 = vmatprep.mubr.f32.mxu0 0.0
  %8320 = vmatmul.mubr.f32.gmra.mrb[0].mxu0 %v8144
  %v8321 = vpop.f32.mrb[0].mxu0
  %v8322 = vadd.f32 %v6471, %v8321
  %v8323 = vpop.f32.mrb[0].mxu0
  %8324 = vmatprep.mubr.f32.mxu0 0.0
  %8325 = vmatmul.mubr.f32.gmra.mrb[0].mxu0 %v8147
  %v8326 = vpop.f32.mrb[0].mxu0
  %v8327 = vadd.f32 %v6471, %v8326
  %v8328 = vpop.f32.mrb[0].mxu0
  %8329 = vmatprep.mubr.f32.mxu0 0.0
  %8330 = vmatmul.mubr.f32.gmra.mrb[0].mxu0 %v8150
  %v8331 = vpop.f32.mrb[0].mxu0
  %v8332 = vadd.f32 %v6471, %v8331
  %v8333 = vpop.f32.mrb[0].mxu0
  %8334 = vmatprep.mubr.f32.mxu0 0.0
  %8335 = vmatmul.mubr.f32.gmra.mrb[0].mxu0 %v8153
  %v8336 = vpop.f32.mrb[0].mxu0
  %v8337 = vadd.f32 %v6471, %v8336
  %v8338 = vpop.f32.mrb[0].mxu0
  %8339 = vmatprep.mubr.f32.mxu0 0.0
  %8340 = vmatmul.mubr.f32.gmra.mrb[0].mxu0 %v8156
  %v8341 = vpop.f32.mrb[0].mxu0
  %v8342 = vadd.f32 %v6471, %v8341
  %v8343 = vpop.f32.mrb[0].mxu0
  %8344 = vmatprep.mubr.f32.mxu0 0.0
  %8345 = vmatmul.mubr.f32.gmra.mrb[0].mxu0 %v8159
  %v8346 = vpop.f32.mrb[0].mxu0
  %v8347 = vadd.f32 %v6471, %v8346
  %v8348 = vpop.f32.mrb[0].mxu0
  %8349 = vmatprep.mubr.f32.mxu0 0.0
  %8350 = vmatmul.mubr.f32.gmra.mrb[0].mxu0 %v8162
  %v8351 = vpop.f32.mrb[0].mxu0
  %v8352 = vadd.f32 %v6471, %v8351
  %v8353 = vpop.f32.mrb[0].mxu0
  %8354 = vmatprep.mubr.f32.mxu0 0.0
  %8355 = vmatmul.mubr.f32.gmra.mrb[0].mxu0 %v8165
  %v8356 = vpop.f32.mrb[0].mxu0
  %v8357 = vadd.f32 %v6471, %v8356
  %v8358 = vpop.f32.mrb[0].mxu0
  %8359 = vmatprep.mubr.f32.mxu0 0.0
  %8360 = vmatmul.mubr.f32.gmra.mrb[0].mxu0 %v8168
  %v8361 = vpop.f32.mrb[0].mxu0
  %v8362 = vadd.f32 %v6471, %v8361
  %v8363 = vpop.f32.mrb[0].mxu0
  %8364 = vmatprep.mubr.f32.mxu0 0.0
  %8365 = vmatmul.mubr.f32.gmra.mrb[0].mxu0 %v8171
  %v8366 = vpop.f32.mrb[0].mxu0
  %v8367 = vadd.f32 %v6471, %v8366
  %v8368 = vpop.f32.mrb[0].mxu0
  %8369 = vmatprep.mubr.f32.mxu0 0.0
  %8370 = vmatmul.mubr.f32.gmra.mrb[0].mxu0 %v8174
  %v8371 = vpop.f32.mrb[0].mxu0
  %v8372 = vadd.f32 %v6471, %v8371
  %v8373 = vpop.f32.mrb[0].mxu0
  %8374 = vmatprep.mubr.f32.mxu0 0.0
  %8375 = vmatmul.mubr.f32.gmra.mrb[0].mxu0 %v8177
  %v8376 = vpop.f32.mrb[0].mxu0
  %v8377 = vadd.f32 %v6471, %v8376
  %v8378 = vpop.f32.mrb[0].mxu0
  %8379 = vmatprep.mubr.f32.mxu0 0.0
  %8380 = vmatmul.mubr.f32.gmra.mrb[0].mxu0 %v8180
  %v8381 = vpop.f32.mrb[0].mxu0
  %v8382 = vadd.f32 %v6471, %v8381
  %v8383 = vpop.f32.mrb[0].mxu0
  %8384 = vmatprep.mubr.f32.mxu0 0.0
  %8385 = vmatmul.mubr.f32.gmra.mrb[0].mxu0 %v8183
  %v8386 = vpop.f32.mrb[0].mxu0
  %v8387 = vadd.f32 %v6471, %v8386
  %v8388 = vpop.f32.mrb[0].mxu0
  %8389 = vmatprep.mubr.f32.mxu0 0.0
  %8390 = vmatmul.mubr.f32.gmra.mrb[0].mxu0 %v8186
  %v8391 = vpop.f32.mrb[0].mxu0
  %v8392 = vadd.f32 %v6471, %v8391
  %v8393 = vpop.f32.mrb[0].mxu0
  %8394 = vmatprep.mubr.f32.mxu0 0.0
  %8395 = vmatmul.mubr.f32.gmra.mrb[0].mxu0 %v8189
  %v8396 = vpop.f32.mrb[0].mxu0
  %v8397 = vadd.f32 %v6471, %v8396
  %v8398 = vpop.f32.mrb[0].mxu0
  %8399 = vmatprep.mubr.f32.mxu0 0.0
  %8400 = vmatmul.mubr.f32.gmra.mrb[0].mxu0 %v8192
  %v8401 = vpop.f32.mrb[0].mxu0
  %v8402 = vadd.f32 %v6471, %v8401
  %v8403 = vpop.f32.mrb[0].mxu0
  %8404 = vmatprep.mubr.f32.mxu0 0.0
  %8405 = vmatmul.mubr.f32.gmra.mrb[0].mxu0 %v8195
  %v8406 = vpop.f32.mrb[0].mxu0
  %v8407 = vadd.f32 %v6471, %v8406
  %v8408 = vpop.f32.mrb[0].mxu0
  %8409 = vmatprep.mubr.f32.mxu0 0.0
  %8410 = vmatmul.mubr.f32.gmra.mrb[0].mxu0 %v8198
  %v8411 = vpop.f32.mrb[0].mxu0
  %v8412 = vadd.f32 %v6471, %v8411
  %v8413 = vpop.f32.mrb[0].mxu0
  %8414 = vmatprep.mubr.f32.mxu0 0.0
  %8415 = vmatmul.mubr.f32.gmra.mrb[0].mxu0 %v8201
  %v8416 = vpop.f32.mrb[0].mxu0
  %v8417 = vadd.f32 %v6471, %v8416
  %v8418 = vpop.f32.mrb[0].mxu0
  %8419 = vmatprep.mubr.f32.mxu0 0.0
  %8420 = vmatmul.mubr.f32.gmra.mrb[0].mxu0 %v8204
  %v8421 = vpop.f32.mrb[0].mxu0
  %v8422 = vadd.f32 %v6471, %v8421
  %v8423 = vpop.f32.mrb[0].mxu0
  %8424 = vmatprep.mubr.f32.mxu0 0.0
  %8425 = vmatmul.mubr.f32.gmra.mrb[0].mxu0 %v8207
  %v8426 = vpop.f32.mrb[0].mxu0
  %v8427 = vadd.f32 %v6471, %v8426
  %v8428 = vpop.f32.mrb[0].mxu0
  %8429 = vmatprep.mubr.f32.mxu0 0.0
  %8430 = vmatmul.mubr.f32.gmra.mrb[0].mxu0 %v8210
  %v8431 = vpop.f32.mrb[0].mxu0
  %v8432 = vadd.f32 %v6471, %v8431
  %v8433 = vpop.f32.mrb[0].mxu0
  %8434 = vmatprep.mubr.f32.mxu0 0.0
  %8435 = vmatmul.mubr.f32.gmra.mrb[0].mxu0 %v8213
  %v8436 = vpop.f32.mrb[0].mxu0
  %v8437 = vadd.f32 %v6471, %v8436
  %v8438 = vpop.f32.mrb[0].mxu0
  %8439 = vdwg.mxu0
  %8440 = vmatprep.subr.mxu0 0.0
  %8441 = vmatpush1.msra.mxu0 %v8282
  %8442 = vmatprep.subr.mxu0 0.0
  %8443 = vmatpush1.msra.mxu0 %v8287
  %8444 = vmatprep.subr.mxu0 0.0
  %8445 = vmatpush1.msra.mxu0 %v8292
  %8446 = vmatprep.subr.mxu0 0.0
  %8447 = vmatpush1.msra.mxu0 %v8297
  %8448 = vmatprep.subr.mxu0 0.0
  %8449 = vmatpush1.msra.mxu0 %v8302
  %8450 = vmatprep.subr.mxu0 0.0
  %8451 = vmatpush1.msra.mxu0 %v8307
  %8452 = vmatprep.subr.mxu0 0.0
  %8453 = vmatpush1.msra.mxu0 %v8312
  %8454 = vmatprep.subr.mxu0 0.0
  %8455 = vmatpush1.msra.mxu0 %v8317
  %8456 = vmatprep.subr.mxu0 0.0
  %8457 = vmatpush1.msra.mxu0 %v8322
  %8458 = vmatprep.subr.mxu0 0.0
  %8459 = vmatpush1.msra.mxu0 %v8327
  %8460 = vmatprep.subr.mxu0 0.0
  %8461 = vmatpush1.msra.mxu0 %v8332
  %8462 = vmatprep.subr.mxu0 0.0
  %8463 = vmatpush1.msra.mxu0 %v8337
  %8464 = vmatprep.subr.mxu0 0.0
  %8465 = vmatpush1.msra.mxu0 %v8342
  %8466 = vmatprep.subr.mxu0 0.0
  %8467 = vmatpush1.msra.mxu0 %v8347
  %8468 = vmatprep.subr.mxu0 0.0
  %8469 = vmatpush1.msra.mxu0 %v8352
  %8470 = vmatprep.subr.mxu0 0.0
  %8471 = vmatpush1.msra.mxu0 %v8357
  %8472 = vmatprep.subr.mxu0 0.0
  %8473 = vmatpush1.msra.mxu0 %v8362
  %8474 = vmatprep.subr.mxu0 0.0
  %8475 = vmatpush1.msra.mxu0 %v8367
  %8476 = vmatprep.subr.mxu0 0.0
  %8477 = vmatpush1.msra.mxu0 %v8372
  %8478 = vmatprep.subr.mxu0 0.0
  %8479 = vmatpush1.msra.mxu0 %v8377
  %8480 = vmatprep.subr.mxu0 0.0
  %8481 = vmatpush1.msra.mxu0 %v8382
  %8482 = vmatprep.subr.mxu0 0.0
  %8483 = vmatpush1.msra.mxu0 %v8387
  %8484 = vmatprep.subr.mxu0 0.0
  %8485 = vmatpush1.msra.mxu0 %v8392
  %8486 = vmatprep.subr.mxu0 0.0
  %8487 = vmatpush1.msra.mxu0 %v8397
  %8488 = vmatprep.subr.mxu0 0.0
  %8489 = vmatpush1.msra.mxu0 %v8402
  %8490 = vmatprep.subr.mxu0 0.0
  %8491 = vmatpush1.msra.mxu0 %v8407
  %8492 = vmatprep.subr.mxu0 0.0
  %8493 = vmatpush1.msra.mxu0 %v8412
  %8494 = vmatprep.subr.mxu0 0.0
  %8495 = vmatpush1.msra.mxu0 %v8417
  %8496 = vmatprep.subr.mxu0 0.0
  %8497 = vmatpush1.msra.mxu0 %v8422
  %8498 = vmatprep.subr.mxu0 0.0
  %8499 = vmatpush1.msra.mxu0 %v8427
  %8500 = vmatprep.subr.mxu0 0.0
  %8501 = vmatpush1.msra.mxu0 %v8432
  %8502 = vmatprep.subr.mxu0 0.0
  %8503 = vmatpush1.msra.mxu0 %v8437
  %8504 = vmatprep.mubr.f32.mxu0 %v5352
  %8505 = vmatmul.mubr.f32.gmra.mrb[0].mxu0 %v5351
  %v8506 = vpop.f32.mrb[0].mxu0
  %v8507 = vadd.f32 0.0, %v8506
  %v8508 = vpop.f32.mrb[0].mxu0
  %8509 = vmatprep.mubr.f32.mxu0 %v5354
  %8510 = vmatmul.mubr.f32.gmra.mrb[0].mxu0 %v5353
  %v8511 = vpop.f32.mrb[0].mxu0
  %v8512 = vadd.f32 0.0, %v8511
  %v8513 = vpop.f32.mrb[0].mxu0
  %8514 = vmatprep.mubr.f32.mxu0 %v5356
  %8515 = vmatmul.mubr.f32.gmra.mrb[0].mxu0 %v5355
  %v8516 = vpop.f32.mrb[0].mxu0
  %v8517 = vadd.f32 0.0, %v8516
  %v8518 = vpop.f32.mrb[0].mxu0
  %8519 = vmatprep.mubr.f32.mxu0 %v5358
  %8520 = vmatmul.mubr.f32.gmra.mrb[0].mxu0 %v5357
  %v8521 = vpop.f32.mrb[0].mxu0
  %v8522 = vadd.f32 0.0, %v8521
  %v8523 = vpop.f32.mrb[0].mxu0
  %8524 = vmatprep.mubr.f32.mxu0 %v5360
  %8525 = vmatmul.mubr.f32.gmra.mrb[0].mxu0 %v5359
  %v8526 = vpop.f32.mrb[0].mxu0
  %v8527 = vadd.f32 0.0, %v8526
  %v8528 = vpop.f32.mrb[0].mxu0
  %8529 = vmatprep.mubr.f32.mxu0 %v5362
  %8530 = vmatmul.mubr.f32.gmra.mrb[0].mxu0 %v5361
  %v8531 = vpop.f32.mrb[0].mxu0
  %v8532 = vadd.f32 0.0, %v8531
  %v8533 = vpop.f32.mrb[0].mxu0
  %8534 = vmatprep.mubr.f32.mxu0 %v5364
  %8535 = vmatmul.mubr.f32.gmra.mrb[0].mxu0 %v5363
  %v8536 = vpop.f32.mrb[0].mxu0
  %v8537 = vadd.f32 0.0, %v8536
  %v8538 = vpop.f32.mrb[0].mxu0
  %8539 = vmatprep.mubr.f32.mxu0 %v5366
  %8540 = vmatmul.mubr.f32.gmra.mrb[0].mxu0 %v5365
  %v8541 = vpop.f32.mrb[0].mxu0
  %v8542 = vadd.f32 0.0, %v8541
  %v8543 = vpop.f32.mrb[0].mxu0
  %8544 = vdwg.mxu0
  %8545 = vmatprep.subr.mxu0 0.0
  %8546 = vmatpush1.msra.mxu0 %v8282
  %8547 = vmatprep.subr.mxu0 0.0
  %8548 = vmatpush1.msra.mxu0 %v8287
  %8549 = vmatprep.subr.mxu0 0.0
  %8550 = vmatpush1.msra.mxu0 %v8292
  %8551 = vmatprep.subr.mxu0 0.0
  %8552 = vmatpush1.msra.mxu0 %v8297
  %8553 = vmatprep.subr.mxu0 0.0
  %8554 = vmatpush1.msra.mxu0 %v8302
  %8555 = vmatprep.subr.mxu0 0.0
  %8556 = vmatpush1.msra.mxu0 %v8307
  %8557 = vmatprep.subr.mxu0 0.0
  %8558 = vmatpush1.msra.mxu0 %v8312
  %8559 = vmatprep.subr.mxu0 0.0
  %8560 = vmatpush1.msra.mxu0 %v8317
  %8561 = vmatprep.subr.mxu0 0.0
  %8562 = vmatpush1.msra.mxu0 %v8322
  %8563 = vmatprep.subr.mxu0 0.0
  %8564 = vmatpush1.msra.mxu0 %v8327
  %8565 = vmatprep.subr.mxu0 0.0
  %8566 = vmatpush1.msra.mxu0 %v8332
  %8567 = vmatprep.subr.mxu0 0.0
  %8568 = vmatpush1.msra.mxu0 %v8337
  %8569 = vmatprep.subr.mxu0 0.0
  %8570 = vmatpush1.msra.mxu0 %v8342
  %8571 = vmatprep.subr.mxu0 0.0
  %8572 = vmatpush1.msra.mxu0 %v8347
  %8573 = vmatprep.subr.mxu0 0.0
  %8574 = vmatpush1.msra.mxu0 %v8352
  %8575 = vmatprep.subr.mxu0 0.0
  %8576 = vmatpush1.msra.mxu0 %v8357
  %8577 = vmatprep.subr.mxu0 0.0
  %8578 = vmatpush1.msra.mxu0 %v8362
  %8579 = vmatprep.subr.mxu0 0.0
  %8580 = vmatpush1.msra.mxu0 %v8367
  %8581 = vmatprep.subr.mxu0 0.0
  %8582 = vmatpush1.msra.mxu0 %v8372
  %8583 = vmatprep.subr.mxu0 0.0
  %8584 = vmatpush1.msra.mxu0 %v8377
  %8585 = vmatprep.subr.mxu0 0.0
  %8586 = vmatpush1.msra.mxu0 %v8382
  %8587 = vmatprep.subr.mxu0 0.0
  %8588 = vmatpush1.msra.mxu0 %v8387
  %8589 = vmatprep.subr.mxu0 0.0
  %8590 = vmatpush1.msra.mxu0 %v8392
  %8591 = vmatprep.subr.mxu0 0.0
  %8592 = vmatpush1.msra.mxu0 %v8397
  %8593 = vmatprep.subr.mxu0 0.0
  %8594 = vmatpush1.msra.mxu0 %v8402
  %8595 = vmatprep.subr.mxu0 0.0
  %8596 = vmatpush1.msra.mxu0 %v8407
  %8597 = vmatprep.subr.mxu0 0.0
  %8598 = vmatpush1.msra.mxu0 %v8412
  %8599 = vmatprep.subr.mxu0 0.0
  %8600 = vmatpush1.msra.mxu0 %v8417
  %8601 = vmatprep.subr.mxu0 0.0
  %8602 = vmatpush1.msra.mxu0 %v8422
  %8603 = vmatprep.subr.mxu0 0.0
  %8604 = vmatpush1.msra.mxu0 %v8427
  %8605 = vmatprep.subr.mxu0 0.0
  %8606 = vmatpush1.msra.mxu0 %v8432
  %8607 = vmatprep.subr.mxu0 0.0
  %8608 = vmatpush1.msra.mxu0 %v8437
  %8609 = vmatprep.mubr.f32.mxu0 %v5368
  %8610 = vmatmul.mubr.f32.gmra.mrb[0].mxu0 %v5367
  %v8611 = vpop.f32.mrb[0].mxu0
  %v8612 = vadd.f32 0.0, %v8611
  %v8613 = vpop.f32.mrb[0].mxu0
  %8614 = vmatprep.mubr.f32.mxu0 %v5370
  %8615 = vmatmul.mubr.f32.gmra.mrb[0].mxu0 %v5369
  %v8616 = vpop.f32.mrb[0].mxu0
  %v8617 = vadd.f32 0.0, %v8616
  %v8618 = vpop.f32.mrb[0].mxu0
  %8619 = vmatprep.mubr.f32.mxu0 %v5372
  %8620 = vmatmul.mubr.f32.gmra.mrb[0].mxu0 %v5371
  %v8621 = vpop.f32.mrb[0].mxu0
  %v8622 = vadd.f32 0.0, %v8621
  %v8623 = vpop.f32.mrb[0].mxu0
  %8624 = vmatprep.mubr.f32.mxu0 %v5374
  %8625 = vmatmul.mubr.f32.gmra.mrb[0].mxu0 %v5373
  %v8626 = vpop.f32.mrb[0].mxu0
  %v8627 = vadd.f32 0.0, %v8626
  %v8628 = vpop.f32.mrb[0].mxu0
  %8629 = vmatprep.mubr.f32.mxu0 %v5376
  %8630 = vmatmul.mubr.f32.gmra.mrb[0].mxu0 %v5375
  %v8631 = vpop.f32.mrb[0].mxu0
  %v8632 = vadd.f32 0.0, %v8631
  %v8633 = vpop.f32.mrb[0].mxu0
  %8634 = vmatprep.mubr.f32.mxu0 %v5378
  %8635 = vmatmul.mubr.f32.gmra.mrb[0].mxu0 %v5377
  %v8636 = vpop.f32.mrb[0].mxu0
  %v8637 = vadd.f32 0.0, %v8636
  %v8638 = vpop.f32.mrb[0].mxu0
  %8639 = vmatprep.mubr.f32.mxu0 %v5380
  %8640 = vmatmul.mubr.f32.gmra.mrb[0].mxu0 %v5379
  %v8641 = vpop.f32.mrb[0].mxu0
  %v8642 = vadd.f32 0.0, %v8641
  %v8643 = vpop.f32.mrb[0].mxu0
  %8644 = vmatprep.mubr.f32.mxu0 %v5382
  %8645 = vmatmul.mubr.f32.gmra.mrb[0].mxu0 %v5381
  %v8646 = vpop.f32.mrb[0].mxu0
  %v8647 = vadd.f32 0.0, %v8646
  %v8648 = vpop.f32.mrb[0].mxu0
  %8649 = vdwg.mxu0
  %8658 = vrot.lane.b32.xlu0 %v8612, 32
  %v8659 = vpop.permute.xlu0 %8658
  %8660 = vrot.lane.b32.xlu0 %v8617, 32
  %v8661 = vpop.permute.xlu0 %8660
  %8662 = vrot.lane.b32.xlu0 %v8622, 32
  %v8663 = vpop.permute.xlu0 %8662
  %8664 = vrot.lane.b32.xlu0 %v8627, 32
  %v8665 = vpop.permute.xlu0 %8664
  %8666 = vrot.lane.b32.xlu0 %v8632, 32
  %v8667 = vpop.permute.xlu0 %8666
  %8668 = vrot.lane.b32.xlu0 %v8637, 32
  %v8669 = vpop.permute.xlu0 %8668
  %8670 = vrot.lane.b32.xlu0 %v8642, 32
  %v8671 = vpop.permute.xlu0 %8670
  %8672 = vrot.lane.b32.xlu0 %v8647, 32
  %v8673 = vpop.permute.xlu0 %8672
  %v8682 = vsel %vm6113, %v8507, %v8659
  %v8683 = vsel %vm6113, %v8512, %v8661
  %v8684 = vsel %vm6113, %v8517, %v8663
  %v8685 = vsel %vm6113, %v8522, %v8665
  %v8686 = vsel %vm6113, %v8527, %v8667
  %v8687 = vsel %vm6113, %v8532, %v8669
  %v8688 = vsel %vm6113, %v8537, %v8671
  %v8689 = vsel %vm6113, %v8542, %v8673
  %v8698 = vrot.slane %v8682, 7
  %v8699 = vrot.slane %v8682, 1
  %v8700 = vrot.slane %v8682, 2
  %v8701 = vrot.slane %v8682, 3
  %v8702 = vrot.slane %v8682, 4
  %v8703 = vrot.slane %v8682, 5
  %v8704 = vrot.slane %v8682, 6
  %v8705 = vrot.slane %v8683, 7
  %v8706 = vrot.slane %v8683, 1
  %v8707 = vrot.slane %v8683, 2
  %v8708 = vrot.slane %v8683, 3
  %v8709 = vrot.slane %v8683, 4
  %v8710 = vrot.slane %v8683, 5
  %v8711 = vrot.slane %v8683, 6
  %v8712 = vrot.slane %v8684, 7
  %v8713 = vrot.slane %v8684, 1
  %v8714 = vrot.slane %v8684, 2
  %v8715 = vrot.slane %v8684, 3
  %v8716 = vrot.slane %v8684, 4
  %v8717 = vrot.slane %v8684, 5
  %v8718 = vrot.slane %v8684, 6
  %v8719 = vrot.slane %v8685, 7
  %v8720 = vrot.slane %v8685, 1
  %v8721 = vrot.slane %v8685, 2
  %v8722 = vrot.slane %v8685, 3
  %v8723 = vrot.slane %v8685, 4
  %v8724 = vrot.slane %v8685, 5
  %v8725 = vrot.slane %v8685, 6
  %v8726 = vrot.slane %v8686, 7
  %v8727 = vrot.slane %v8686, 1
  %v8728 = vrot.slane %v8686, 2
  %v8729 = vrot.slane %v8686, 3
  %v8730 = vrot.slane %v8686, 4
  %v8731 = vrot.slane %v8686, 5
  %v8732 = vrot.slane %v8686, 6
  %v8733 = vrot.slane %v8687, 7
  %v8734 = vrot.slane %v8687, 1
  %v8735 = vrot.slane %v8687, 2
  %v8736 = vrot.slane %v8687, 3
  %v8737 = vrot.slane %v8687, 4
  %v8738 = vrot.slane %v8687, 5
  %v8739 = vrot.slane %v8687, 6
  %v8740 = vrot.slane %v8688, 7
  %v8741 = vrot.slane %v8688, 1
  %v8742 = vrot.slane %v8688, 2
  %v8743 = vrot.slane %v8688, 3
  %v8744 = vrot.slane %v8688, 4
  %v8745 = vrot.slane %v8688, 5
  %v8746 = vrot.slane %v8688, 6
  %v8747 = vrot.slane %v8689, 7
  %v8748 = vrot.slane %v8689, 1
  %v8749 = vrot.slane %v8689, 2
  %v8750 = vrot.slane %v8689, 3
  %v8751 = vrot.slane %v8689, 4
  %v8752 = vrot.slane %v8689, 5
  %v8753 = vrot.slane %v8689, 6
  %v8818 = vadd.f32 %v685, %v8698
  %v8819 = vadd.f32 %v758, %v8682
  %v8820 = vadd.f32 %v831, %v8699
  %v8821 = vadd.f32 %v904, %v8700
  %v8822 = vadd.f32 %v977, %v8701
  %v8823 = vadd.f32 %v1050, %v8702
  %v8824 = vadd.f32 %v1123, %v8703
  %v8825 = vadd.f32 %v1196, %v8704
  %v8826 = vadd.f32 %v1269, %v8705
  %v8827 = vadd.f32 %v1342, %v8683
  %v8828 = vadd.f32 %v1415, %v8706
  %v8829 = vadd.f32 %v1488, %v8707
  %v8830 = vadd.f32 %v1561, %v8708
  %v8831 = vadd.f32 %v1634, %v8709
  %v8832 = vadd.f32 %v1707, %v8710
  %v8833 = vadd.f32 %v1780, %v8711
  %v8834 = vadd.f32 %v1853, %v8712
  %v8835 = vadd.f32 %v1926, %v8684
  %v8836 = vadd.f32 %v1999, %v8713
  %v8837 = vadd.f32 %v2072, %v8714
  %v8838 = vadd.f32 %v2145, %v8715
  %v8839 = vadd.f32 %v2218, %v8716
  %v8840 = vadd.f32 %v2291, %v8717
  %v8841 = vadd.f32 %v2364, %v8718
  %v8842 = vadd.f32 %v2437, %v8719
  %v8843 = vadd.f32 %v2510, %v8685
  %v8844 = vadd.f32 %v2583, %v8720
  %v8845 = vadd.f32 %v2656, %v8721
  %v8846 = vadd.f32 %v2729, %v8722
  %v8847 = vadd.f32 %v2802, %v8723
  %v8848 = vadd.f32 %v2875, %v8724
  %v8849 = vadd.f32 %v2948, %v8725
  %v8850 = vadd.f32 %v3021, %v8726
  %v8851 = vadd.f32 %v3094, %v8686
  %v8852 = vadd.f32 %v3167, %v8727
  %v8853 = vadd.f32 %v3240, %v8728
  %v8854 = vadd.f32 %v3313, %v8729
  %v8855 = vadd.f32 %v3386, %v8730
  %v8856 = vadd.f32 %v3459, %v8731
  %v8857 = vadd.f32 %v3532, %v8732
  %v8858 = vadd.f32 %v3605, %v8733
  %v8859 = vadd.f32 %v3678, %v8687
  %v8860 = vadd.f32 %v3751, %v8734
  %v8861 = vadd.f32 %v3824, %v8735
  %v8862 = vadd.f32 %v3897, %v8736
  %v8863 = vadd.f32 %v3970, %v8737
  %v8864 = vadd.f32 %v4043, %v8738
  %v8865 = vadd.f32 %v4116, %v8739
  %v8866 = vadd.f32 %v4189, %v8740
  %v8867 = vadd.f32 %v4262, %v8688
  %v8868 = vadd.f32 %v4335, %v8741
  %v8869 = vadd.f32 %v4408, %v8742
  %v8870 = vadd.f32 %v4481, %v8743
  %v8871 = vadd.f32 %v4554, %v8744
  %v8872 = vadd.f32 %v4627, %v8745
  %v8873 = vadd.f32 %v4700, %v8746
  %v8874 = vadd.f32 %v4773, %v8747
  %v8875 = vadd.f32 %v4846, %v8689
  %v8876 = vadd.f32 %v4919, %v8748
  %v8877 = vadd.f32 %v4992, %v8749
  %v8878 = vadd.f32 %v5065, %v8750
  %v8879 = vadd.f32 %v5138, %v8751
  %v8880 = vadd.f32 %v5211, %v8752
  %v8881 = vadd.f32 %v5284, %v8753
  %v8946 = vrot.slane %v7173, 7
  %vm8947 = vcmask 1041409
  %v8948 = vsel %vm8947, %v8946, %v7172
  %v8949 = vrot.slane %v7174, 6
  %vm8950 = vcmask 1042434
  %v8951 = vsel %vm8950, %v8949, %v8948
  %v8952 = vrot.slane %v7175, 5
  %vm8953 = vcmask 1043459
  %v8954 = vsel %vm8953, %v8952, %v8951
  %v8955 = vrot.slane %v7176, 4
  %vm8956 = vcmask 1044484
  %v8957 = vsel %vm8956, %v8955, %v8954
  %v8958 = vrot.slane %v7177, 3
  %vm8959 = vcmask 1045509
  %v8960 = vsel %vm8959, %v8958, %v8957
  %v8961 = vrot.slane %v7178, 2
  %vm8962 = vcmask 1046534
  %v8963 = vsel %vm8962, %v8961, %v8960
  %v8964 = vrot.slane %v7179, 1
  %vm8965 = vcmask 1047559
  %v8966 = vsel %vm8965, %v8964, %v8963
  %v8967 = vrot.slane %v7181, 7
  %v8968 = vsel %vm8947, %v8967, %v7180
  %v8969 = vrot.slane %v7182, 6
  %v8970 = vsel %vm8950, %v8969, %v8968
  %v8971 = vrot.slane %v7183, 5
  %v8972 = vsel %vm8953, %v8971, %v8970
  %v8973 = vrot.slane %v7184, 4
  %v8974 = vsel %vm8956, %v8973, %v8972
  %v8975 = vrot.slane %v7185, 3
  %v8976 = vsel %vm8959, %v8975, %v8974
  %v8977 = vrot.slane %v7186, 2
  %v8978 = vsel %vm8962, %v8977, %v8976
  %v8979 = vrot.slane %v7187, 1
  %v8980 = vsel %vm8965, %v8979, %v8978
  %v8981 = vrot.slane %v7189, 7
  %v8982 = vsel %vm8947, %v8981, %v7188
  %v8983 = vrot.slane %v7190, 6
  %v8984 = vsel %vm8950, %v8983, %v8982
  %v8985 = vrot.slane %v7191, 5
  %v8986 = vsel %vm8953, %v8985, %v8984
  %v8987 = vrot.slane %v7192, 4
  %v8988 = vsel %vm8956, %v8987, %v8986
  %v8989 = vrot.slane %v7193, 3
  %v8990 = vsel %vm8959, %v8989, %v8988
  %v8991 = vrot.slane %v7194, 2
  %v8992 = vsel %vm8962, %v8991, %v8990
  %v8993 = vrot.slane %v7195, 1
  %v8994 = vsel %vm8965, %v8993, %v8992
  %v8995 = vrot.slane %v7197, 7
  %v8996 = vsel %vm8947, %v8995, %v7196
  %v8997 = vrot.slane %v7198, 6
  %v8998 = vsel %vm8950, %v8997, %v8996
  %v8999 = vrot.slane %v7199, 5
  %v9000 = vsel %vm8953, %v8999, %v8998
  %v9001 = vrot.slane %v7200, 4
  %v9002 = vsel %vm8956, %v9001, %v9000
  %v9003 = vrot.slane %v7201, 3
  %v9004 = vsel %vm8959, %v9003, %v9002
  %v9005 = vrot.slane %v7202, 2
  %v9006 = vsel %vm8962, %v9005, %v9004
  %v9007 = vrot.slane %v7203, 1
  %v9008 = vsel %vm8965, %v9007, %v9006
  %v9009 = vrot.slane %v7205, 7
  %v9010 = vsel %vm8947, %v9009, %v7204
  %v9011 = vrot.slane %v7206, 6
  %v9012 = vsel %vm8950, %v9011, %v9010
  %v9013 = vrot.slane %v7207, 5
  %v9014 = vsel %vm8953, %v9013, %v9012
  %v9015 = vrot.slane %v7208, 4
  %v9016 = vsel %vm8956, %v9015, %v9014
  %v9017 = vrot.slane %v7209, 3
  %v9018 = vsel %vm8959, %v9017, %v9016
  %v9019 = vrot.slane %v7210, 2
  %v9020 = vsel %vm8962, %v9019, %v9018
  %v9021 = vrot.slane %v7211, 1
  %v9022 = vsel %vm8965, %v9021, %v9020
  %v9023 = vrot.slane %v7213, 7
  %v9024 = vsel %vm8947, %v9023, %v7212
  %v9025 = vrot.slane %v7214, 6
  %v9026 = vsel %vm8950, %v9025, %v9024
  %v9027 = vrot.slane %v7215, 5
  %v9028 = vsel %vm8953, %v9027, %v9026
  %v9029 = vrot.slane %v7216, 4
  %v9030 = vsel %vm8956, %v9029, %v9028
  %v9031 = vrot.slane %v7217, 3
  %v9032 = vsel %vm8959, %v9031, %v9030
  %v9033 = vrot.slane %v7218, 2
  %v9034 = vsel %vm8962, %v9033, %v9032
  %v9035 = vrot.slane %v7219, 1
  %v9036 = vsel %vm8965, %v9035, %v9034
  %v9037 = vrot.slane %v7221, 7
  %v9038 = vsel %vm8947, %v9037, %v7220
  %v9039 = vrot.slane %v7222, 6
  %v9040 = vsel %vm8950, %v9039, %v9038
  %v9041 = vrot.slane %v7223, 5
  %v9042 = vsel %vm8953, %v9041, %v9040
  %v9043 = vrot.slane %v7224, 4
  %v9044 = vsel %vm8956, %v9043, %v9042
  %v9045 = vrot.slane %v7225, 3
  %v9046 = vsel %vm8959, %v9045, %v9044
  %v9047 = vrot.slane %v7226, 2
  %v9048 = vsel %vm8962, %v9047, %v9046
  %v9049 = vrot.slane %v7227, 1
  %v9050 = vsel %vm8965, %v9049, %v9048
  %v9051 = vrot.slane %v7229, 7
  %v9052 = vsel %vm8947, %v9051, %v7228
  %v9053 = vrot.slane %v7230, 6
  %v9054 = vsel %vm8950, %v9053, %v9052
  %v9055 = vrot.slane %v7231, 5
  %v9056 = vsel %vm8953, %v9055, %v9054
  %v9057 = vrot.slane %v7232, 4
  %v9058 = vsel %vm8956, %v9057, %v9056
  %v9059 = vrot.slane %v7233, 3
  %v9060 = vsel %vm8959, %v9059, %v9058
  %v9061 = vrot.slane %v7234, 2
  %v9062 = vsel %vm8962, %v9061, %v9060
  %v9063 = vrot.slane %v7235, 1
  %v9064 = vsel %vm8965, %v9063, %v9062
  %v9137 = vrot.slane %v8818, 1
  %v9138 = vsel %vm8947, %v8819, %v9137
  %v9139 = vrot.slane %v8820, 7
  %v9140 = vsel %vm8950, %v9139, %v9138
  %v9141 = vrot.slane %v8821, 6
  %v9142 = vsel %vm8953, %v9141, %v9140
  %v9143 = vrot.slane %v8822, 5
  %v9144 = vsel %vm8956, %v9143, %v9142
  %v9145 = vrot.slane %v8823, 4
  %v9146 = vsel %vm8959, %v9145, %v9144
  %v9147 = vrot.slane %v8824, 3
  %v9148 = vsel %vm8962, %v9147, %v9146
  %v9149 = vrot.slane %v8825, 2
  %v9150 = vsel %vm8965, %v9149, %v9148
  %v9151 = vrot.slane %v8826, 1
  %v9152 = vsel %vm8947, %v8827, %v9151
  %v9153 = vrot.slane %v8828, 7
  %v9154 = vsel %vm8950, %v9153, %v9152
  %v9155 = vrot.slane %v8829, 6
  %v9156 = vsel %vm8953, %v9155, %v9154
  %v9157 = vrot.slane %v8830, 5
  %v9158 = vsel %vm8956, %v9157, %v9156
  %v9159 = vrot.slane %v8831, 4
  %v9160 = vsel %vm8959, %v9159, %v9158
  %v9161 = vrot.slane %v8832, 3
  %v9162 = vsel %vm8962, %v9161, %v9160
  %v9163 = vrot.slane %v8833, 2
  %v9164 = vsel %vm8965, %v9163, %v9162
  %v9165 = vrot.slane %v8834, 1
  %v9166 = vsel %vm8947, %v8835, %v9165
  %v9167 = vrot.slane %v8836, 7
  %v9168 = vsel %vm8950, %v9167, %v9166
  %v9169 = vrot.slane %v8837, 6
  %v9170 = vsel %vm8953, %v9169, %v9168
  %v9171 = vrot.slane %v8838, 5
  %v9172 = vsel %vm8956, %v9171, %v9170
  %v9173 = vrot.slane %v8839, 4
  %v9174 = vsel %vm8959, %v9173, %v9172
  %v9175 = vrot.slane %v8840, 3
  %v9176 = vsel %vm8962, %v9175, %v9174
  %v9177 = vrot.slane %v8841, 2
  %v9178 = vsel %vm8965, %v9177, %v9176
  %v9179 = vrot.slane %v8842, 1
  %v9180 = vsel %vm8947, %v8843, %v9179
  %v9181 = vrot.slane %v8844, 7
  %v9182 = vsel %vm8950, %v9181, %v9180
  %v9183 = vrot.slane %v8845, 6
  %v9184 = vsel %vm8953, %v9183, %v9182
  %v9185 = vrot.slane %v8846, 5
  %v9186 = vsel %vm8956, %v9185, %v9184
  %v9187 = vrot.slane %v8847, 4
  %v9188 = vsel %vm8959, %v9187, %v9186
  %v9189 = vrot.slane %v8848, 3
  %v9190 = vsel %vm8962, %v9189, %v9188
  %v9191 = vrot.slane %v8849, 2
  %v9192 = vsel %vm8965, %v9191, %v9190
  %v9193 = vrot.slane %v8850, 1
  %v9194 = vsel %vm8947, %v8851, %v9193
  %v9195 = vrot.slane %v8852, 7
  %v9196 = vsel %vm8950, %v9195, %v9194
  %v9197 = vrot.slane %v8853, 6
  %v9198 = vsel %vm8953, %v9197, %v9196
  %v9199 = vrot.slane %v8854, 5
  %v9200 = vsel %vm8956, %v9199, %v9198
  %v9201 = vrot.slane %v8855, 4
  %v9202 = vsel %vm8959, %v9201, %v9200
  %v9203 = vrot.slane %v8856, 3
  %v9204 = vsel %vm8962, %v9203, %v9202
  %v9205 = vrot.slane %v8857, 2
  %v9206 = vsel %vm8965, %v9205, %v9204
  %v9207 = vrot.slane %v8858, 1
  %v9208 = vsel %vm8947, %v8859, %v9207
  %v9209 = vrot.slane %v8860, 7
  %v9210 = vsel %vm8950, %v9209, %v9208
  %v9211 = vrot.slane %v8861, 6
  %v9212 = vsel %vm8953, %v9211, %v9210
  %v9213 = vrot.slane %v8862, 5
  %v9214 = vsel %vm8956, %v9213, %v9212
  %v9215 = vrot.slane %v8863, 4
  %v9216 = vsel %vm8959, %v9215, %v9214
  %v9217 = vrot.slane %v8864, 3
  %v9218 = vsel %vm8962, %v9217, %v9216
  %v9219 = vrot.slane %v8865, 2
  %v9220 = vsel %vm8965, %v9219, %v9218
  %v9221 = vrot.slane %v8866, 1
  %v9222 = vsel %vm8947, %v8867, %v9221
  %v9223 = vrot.slane %v8868, 7
  %v9224 = vsel %vm8950, %v9223, %v9222
  %v9225 = vrot.slane %v8869, 6
  %v9226 = vsel %vm8953, %v9225, %v9224
  %v9227 = vrot.slane %v8870, 5
  %v9228 = vsel %vm8956, %v9227, %v9226
  %v9229 = vrot.slane %v8871, 4
  %v9230 = vsel %vm8959, %v9229, %v9228
  %v9231 = vrot.slane %v8872, 3
  %v9232 = vsel %vm8962, %v9231, %v9230
  %v9233 = vrot.slane %v8873, 2
  %v9234 = vsel %vm8965, %v9233, %v9232
  %v9235 = vrot.slane %v8874, 1
  %v9236 = vsel %vm8947, %v8875, %v9235
  %v9237 = vrot.slane %v8876, 7
  %v9238 = vsel %vm8950, %v9237, %v9236
  %v9239 = vrot.slane %v8877, 6
  %v9240 = vsel %vm8953, %v9239, %v9238
  %v9241 = vrot.slane %v8878, 5
  %v9242 = vsel %vm8956, %v9241, %v9240
  %v9243 = vrot.slane %v8879, 4
  %v9244 = vsel %vm8959, %v9243, %v9242
  %v9245 = vrot.slane %v8880, 3
  %v9246 = vsel %vm8962, %v9245, %v9244
  %v9247 = vrot.slane %v8881, 2
  %v9248 = vsel %vm8965, %v9247, %v9246
  %9249 = vrot.lane.b32.xlu0 %v9150, 64
  %v9250 = vpop.permute.xlu0 %9249
  %9251 = vrot.lane.b32.xlu0 %v9164, 64
  %v9252 = vpop.permute.xlu0 %9251
  %9253 = vrot.lane.b32.xlu0 %v9178, 64
  %v9254 = vpop.permute.xlu0 %9253
  %9255 = vrot.lane.b32.xlu0 %v9192, 64
  %v9256 = vpop.permute.xlu0 %9255
  %9257 = vrot.lane.b32.xlu0 %v9206, 64
  %v9258 = vpop.permute.xlu0 %9257
  %9259 = vrot.lane.b32.xlu0 %v9220, 64
  %v9260 = vpop.permute.xlu0 %9259
  %9261 = vrot.lane.b32.xlu0 %v9234, 64
  %v9262 = vpop.permute.xlu0 %9261
  %9263 = vrot.lane.b32.xlu0 %v9248, 64
  %v9264 = vpop.permute.xlu0 %9263
  %v9273 = vsel %vm614, %v8966, %v9250
  %v9274 = vsel %vm614, %v8980, %v9252
  %v9275 = vsel %vm614, %v8994, %v9254
  %v9276 = vsel %vm614, %v9008, %v9256
  %v9277 = vsel %vm614, %v9022, %v9258
  %v9278 = vsel %vm614, %v9036, %v9260
  %v9279 = vsel %vm614, %v9050, %v9262
  %v9280 = vsel %vm614, %v9064, %v9264
  %9281 = vst [vmem:[%s11] sm:$0xff] %v9273
  %9282 = vst [vmem:[%s11 + $0x8] sm:$0xff] %v9274
  %9283 = vst [vmem:[%s11 + $0x10] sm:$0xff] %v9275
  %9284 = vst [vmem:[%s11 + $0x18] sm:$0xff] %v9276
  %9285 = vst [vmem:[%s11 + $0x20] sm:$0xff] %v9277
  %9286 = vst [vmem:[%s11 + $0x28] sm:$0xff] %v9278
  %9287 = vst [vmem:[%s11 + $0x30] sm:$0xff] %v9279
  %9288 = vst [vmem:[%s11 + $0x38] sm:$0xff] %v9280
  // Predicated region
  $region46: #{closed_call.21} parent=0 // pred_check
    _
  $region47: #{closed_call.21} parent=0 // pred_check_branch
    %9290 = sbr.rel (0) target = $region49
  $region48: #{closed_call.21} parent=0 // pred_region
    _
  $region49: #{closed_call.21} parent=0 // pred_fallthru
    _
  // Predicated region
  $region50: #{closed_call.21} parent=0 // pred_check
    _
  $region51: #{closed_call.21} parent=0 // pred_check_branch
    %9292 = sbr.rel (0) target = $region53
  $region52: #{closed_call.21} parent=0 // pred_region
    _
  $region53: #{closed_call.21} parent=0 // pred_fallthru
    _

</llo_original>
